<compile_context>
chip_gen: v6e
topology: v6e:2x2x1
jax: 0.10.0
libtpu: 0.0.40
codegen_flags: <defaults>
</compile_context>

<pallas_src>
import jax
import jax.numpy as jnp
import numpy as np
from jax import lax
from jax.experimental import pallas as pl
from jax.experimental.pallas import tpu as pltpu

KH = KW = 3

_VMEM_STEP_BUDGET = 10 * 2**20      # target single-buffered working set per grid step
_VMEM_LIMIT_CAP = 48 * 2**20        # v7x-safe (64 MiB physical VMEM per TensorCore)
_VMEM_LIMIT_FLOOR = 32 * 2**20


def _ru(x, m):
    return (x + m - 1) // m * m


def _vmem_limit(step_bytes):
    return int(min(_VMEM_LIMIT_CAP, max(_VMEM_LIMIT_FLOOR, 2 * step_bytes + 4 * 2**20)))


# ----------------------------- Pallas kernels ------------------------------ #

def _upsample_conv_kernel(x_ref, w_ref, b_ref, o_ref):
    """Fused nearest-2x upsample + 3x3/pad-1 conv for one (batch, row-tile, Cout-tile).

    x_ref: (1, 1, TI+2, W+2, Cin)   pre-windowed padded input rows [t*TI, t*TI + TI + 2)
    w_ref: (2, 2, 4*Cin, TCo)       tap-folded weights, K layout = ((u*2+v)*Cin + ci)
    b_ref: (1, TCo)                 f32 bias slice
    o_ref: (1, TI, 2, W, 2, TCo)    o[0,i,a,j,b,:] = y[2*(t*TI+i)+a, 2j+b, co-tile]
    """
    TI = o_ref.shape[1]
    W = o_ref.shape[3]
    Cin = x_ref.shape[-1]

    xr = x_ref[0, 0]                     # (TI+2, W+2, Cin)
    bias = b_ref[...]                    # (1, TCo), hoisted

    # the 9 distinct shifted slabs, sliced once and shared by the 4 phase patches
    slab = {(dr, dc): xr[dr:dr + TI, dc:dc + W, :]
            for dr in (0, 1, 2) for dc in (0, 1, 2)}

    for a in (0, 1):
        for b in (0, 1):
            # im2col of the 4 effective taps -> ONE MXU GEMM with K = 4*Cin per phase.
            patch = jnp.concatenate(
                [slab[(a + u, b + v)] for u in (0, 1) for v in (0, 1)],
                axis=-1).reshape(TI * W, 4 * Cin)
            y = jnp.dot(patch, w_ref[a, b],
                        preferred_element_type=jnp.float32) + bias
            o_ref[0, :, a, :, b, :] = y.reshape(TI, W, -1).astype(o_ref.dtype)


def _upsample_nearest_kernel(x_ref, o_ref):
    """Nearest 2x upsample, lane-dense interleaved output (use_conv=False).

    x_ref: (1, TC, TH, W)
    o_ref: (1, TC, TH, 4*W)   with o[0,c,i, a*2W + 2j + b] = x[0,c,i,j]
    """
    TC, TH, W = x_ref.shape[1], x_ref.shape[2], x_ref.shape[3]
    v = x_ref[0].reshape(TC * TH, W)
    # Column nearest-upsample as a GEMM against a 0/1 expansion matrix: exact, and the
    # MXU is otherwise idle in this memory-bound kernel, so the interleave is ~free.
    rows = lax.broadcasted_iota(jnp.int32, (W, 2 * W), 0)
    cols = lax.broadcasted_iota(jnp.int32, (W, 2 * W), 1)
    expand = (cols // 2 == rows).astype(v.dtype)
    up = jnp.dot(v, expand, preferred_element_type=jnp.float32)
    up = up.astype(o_ref.dtype).reshape(TC, TH, 2 * W)
    o_ref[0, :, :, 0:2 * W] = up            # row phase a = 0
    o_ref[0, :, :, 2 * W:4 * W] = up        # row phase a = 1


# ------------------------------ helpers ------------------------------------ #

def _tap_folded_weights(weight_oihw, compute_dtype):
    """(Cout, Cin, 3, 3) -> (2, 2, 4*Cin, Cout) with K layout ((u*2+v)*Cin + ci).

    Weff[a,b,u,v] groups the 3x3 taps that hit the same input pixel when the conv runs
    on the nearest-2x upsampled image; tap-group sums are formed in f32 before casting.
    """
    wt = jnp.transpose(weight_oihw, (2, 3, 1, 0)).astype(jnp.float32)   # (KH, KW, Cin, Cout)
    rowg = [[wt[0], wt[1] + wt[2]],          # a=0: u=0 <- kh0       ; u=1 <- kh1+kh2
            [wt[0] + wt[1], wt[2]]]          # a=1: u=0 <- kh0+kh1   ; u=1 <- kh2

    def colg(m, b, v):                        # m: (KW, Cin, Cout)
        if b == 0:
            return m[0] if v == 0 else m[1] + m[2]
        return m[0] + m[1] if v == 0 else m[2]

    wmat = jnp.stack([
        jnp.stack([
            jnp.concatenate([colg(rowg[a][u], b, v)
                             for u in (0, 1) for v in (0, 1)], axis=0)
            for b in (0, 1)])
        for a in (0, 1)])                     # (2, 2, 4*Cin, Cout)
    return wmat.astype(compute_dtype)


def _pick_cout_tile(Cin, Cout, itemsize):
    cands = sorted({Cout} | {d for d in range(128, Cout, 128) if Cout % d == 0},
                   reverse=True)
    for d in cands:
        if 4 * _ru(4 * Cin, 8) * _ru(d, 128) * itemsize <= _VMEM_STEP_BUDGET // 3:
            return d
    return cands[-1]


def _conv_step_bytes(TI, W, Cin, TCo, itemsize):
    inb = (TI + 2) * _ru(W + 2, 8) * _ru(Cin, 128) * itemsize
    wb = 4 * _ru(4 * Cin, 8) * _ru(TCo, 128) * itemsize
    ob = TI * 2 * W * _ru(2, 8) * _ru(TCo, 128) * itemsize
    return inb + wb + ob + _ru(TCo, 128) * 4


def _pick_row_tile_conv(H, W, Cin, TCo, itemsize):
    for d in sorted((d for d in range(1, H + 1) if H % d == 0), reverse=True):
        if _conv_step_bytes(d, W, Cin, TCo, itemsize) <= _VMEM_STEP_BUDGET:
            return d
    return 1


def _nearest_step_bytes(TC, TH, W, itemsize):
    return TC * _ru(TH, 8) * (_ru(W, 128) + _ru(4 * W, 128)) * itemsize


def _pick_nearest_tiles(C, H, W, itemsize):
    th_opts = sorted({d for d in range(8, H + 1, 8) if H % d == 0} | {H}, reverse=True)
    c_divs = sorted((d for d in range(1, C + 1) if C % d == 0), reverse=True)
    best = (1, min(th_opts))
    for th in th_opts:
        tc = next((d for d in c_divs
                   if _nearest_step_bytes(d, th, W, itemsize) <= _VMEM_STEP_BUDGET), None)
        if tc is not None and tc * th > best[0] * best[1]:
            best = (tc, th)
    return best


# ------------------------------ JAX wrappers -------------------------------- #

@jax.jit
def upsample_nearest2x_conv3x3(x_nchw, weight_oihw, bias):
    """nearest-2x upsample followed by Conv2d(k=3, s=1, p=1); NCHW in / NCHW out."""
    N, Cin, H, W = x_nchw.shape
    Cout = weight_oihw.shape[0]
    cdt = x_nchw.dtype
    itemsize = jnp.dtype(cdt).itemsize

    TCo = _pick_cout_tile(Cin, Cout, itemsize)
    TI = _pick_row_tile_conv(H, W, Cin, TCo, itemsize)
    T = H // TI
    CB = Cout // TCo

    # NCHW -> NHWC, zero-pad the halo, and pre-window the rows so every grid step gets a
    # single contiguous (TI+2, W+2, Cin) block (no in-kernel halo concat).  The input is
    # 1/4 the size of the output, so this extra HBM pass is cheap.
    xt = jnp.transpose(x_nchw, (0, 2, 3, 1))
    xp = jnp.pad(xt, ((0, 0), (1, 1), (1, 1), (0, 0)))          # (N, H+2, W+2, Cin)
    row_idx = jnp.arange(T)[:, None] * TI + jnp.arange(TI + 2)[None, :]
    xw = xp[:, row_idx]                                         # (N, T, TI+2, W+2, Cin)

    wmat = _tap_folded_weights(weight_oihw, cdt)                # (2, 2, 4*Cin, Cout)
    b2 = bias.reshape(1, Cout).astype(jnp.float32)

    out = pl.pallas_call(
        _upsample_conv_kernel,
        out_shape=jax.ShapeDtypeStruct((N, H, 2, W, 2, Cout), cdt),
        grid=(N, T, CB),
        in_specs=[
            pl.BlockSpec((1, 1, TI + 2, W + 2, Cin), lambda n, t, c: (n, t, 0, 0, 0)),
            pl.BlockSpec((2, 2, 4 * Cin, TCo), lambda n, t, c: (0, 0, 0, c)),
            pl.BlockSpec((1, TCo), lambda n, t, c: (0, c)),
        ],
        out_specs=pl.BlockSpec((1, TI, 2, W, 2, TCo),
                               lambda n, t, c: (n, t, 0, 0, 0, c)),
        compiler_params=pltpu.CompilerParams(
            dimension_semantics=("parallel", "parallel", "parallel"),
            vmem_limit_bytes=_vmem_limit(_conv_step_bytes(TI, W, Cin, TCo, itemsize))),
    )(xw, wmat, b2)

    # Free row-major reinterpretation to NHWC, then ONE fused relayout to NCHW
    # (needed only because the PyTorch module is NCHW).
    # TODO(synk): if the surrounding UNet consumed NHWC this transpose would disappear.
    y = out.reshape(N, 2 * H, 2 * W, Cout)
    return jnp.transpose(y, (0, 3, 1, 2))


@jax.jit
def upsample_nearest2x(x_nchw):
    """nearest-2x upsample only (use_conv=False); NCHW in / NCHW out."""
    N, C, H, W = x_nchw.shape
    itemsize = jnp.dtype(x_nchw.dtype).itemsize
    TC, TH = _pick_nearest_tiles(C, H, W, itemsize)

    out = pl.pallas_call(
        _upsample_nearest_kernel,
        out_shape=jax.ShapeDtypeStruct((N, C, H, 4 * W), x_nchw.dtype),
        grid=(N, C // TC, H // TH),
        in_specs=[pl.BlockSpec((1, TC, TH, W), lambda n, c, h: (n, c, h, 0))],
        out_specs=pl.BlockSpec((1, TC, TH, 4 * W), lambda n, c, h: (n, c, h, 0)),
        compiler_params=pltpu.CompilerParams(
            dimension_semantics=("parallel", "parallel", "parallel"),
            vmem_limit_bytes=_vmem_limit(_nearest_step_bytes(TC, TH, W, itemsize))),
    )(x_nchw)
    # (N, C, H, 4W) with minor layout [a*2W + 2j + b] is bit-identical to (N, C, 2H, 2W):
    # the final NCHW view is a free reshape -- no post-kernel transpose / extra HBM pass.
    return out.reshape(N, C, 2 * H, 2 * W)


class Upsample:
    """JAX/Pallas port of the PyTorch Upsample module (dims=2)."""

    def __init__(self, channels, use_conv, dims=2, out_channels=None, padding=1, key=None):
        assert dims == 2, "TODO(synk): only dims=2 implemented (dims=1/3 not supported)"
        assert padding == 1, "TODO(synk): only padding=1 implemented (module default)"
        self.channels = channels
        self.out_channels = out_channels or channels
        self.use_conv = use_conv
        if use_conv:
            key = key if key is not None else jax.random.PRNGKey(42)
            kw_, kb_ = jax.random.split(key)
            fan_in = channels * KH * KW
            bound = 1.0 / np.sqrt(fan_in)
            self.weight = jax.random.uniform(
                kw_, (self.out_channels, channels, KH, KW),
                minval=-bound, maxval=bound, dtype=jnp.float32)
            self.bias = jax.random.uniform(
                kb_, (self.out_channels,), minval=-bound, maxval=bound, dtype=jnp.float32)

    def __call__(self, x_nchw):
        assert x_nchw.shape[1] == self.channels
        if self.use_conv:
            return upsample_nearest2x_conv3x3(x_nchw, self.weight, self.bias)
        return upsample_nearest2x(x_nchw)


# --------------------------------- main ------------------------------------ #

if __name__ == "__main__":
    key = jax.random.PRNGKey(0)
    kx, kp = jax.random.split(key)

    # Small shapes consistent with the module: NCHW = (2, 4, 16, 16)
    N, C, H, W = 2, 4, 16, 16
    x = jax.random.normal(kx, (N, C, H, W), dtype=jnp.float32)

    # reference nearest upsample (host-side jnp, outside the kernels)
    x_up = jnp.repeat(jnp.repeat(x, 2, axis=2), 2, axis=3)

    # --- use_conv=True path (interpolate 2x then Conv2d k=3, s=1, p=1), out_channels=8 ---
    up_conv = Upsample(channels=C, use_conv=True, dims=2, out_channels=8, padding=1, key=kp)
    y_conv = jax.block_until_ready(up_conv(x))
    assert y_conv.shape == (N, 8, 2 * H, 2 * W)

    ref_conv = lax.conv_general_dilated(
        x_up, up_conv.weight, window_strides=(1, 1), padding=((1, 1), (1, 1)),
        dimension_numbers=("NCHW", "OIHW", "NCHW")) + up_conv.bias.reshape(1, -1, 1, 1)
    np.testing.assert_allclose(np.asarray(y_conv), np.asarray(ref_conv), rtol=1e-5, atol=1e-5)

    # --- use_conv=False path (pure nearest 2x upsample) ---
    up_plain = Upsample(channels=C, use_conv=False, dims=2)
    y_plain = jax.block_until_ready(up_plain(x))
    assert y_plain.shape == (N, C, 2 * H, 2 * W)
    np.testing.assert_allclose(np.asarray(y_plain), np.asarray(x_up), rtol=1e-6, atol=1e-6)

    print("KERNEL_OK")
</pallas_src>

<mosaic_0001>
module attributes {stable_mosaic.version = 11 : i64} {
  func.func @_upsample_conv_kernel(%arg0: i32, %arg1: i32, %arg2: i32, %arg3: memref<1x1x18x18x4xf32, #tpu.memory_space<vmem>>, %arg4: memref<2x2x16x8xf32, #tpu.memory_space<vmem>>, %arg5: memref<1x8xf32, #tpu.memory_space<vmem>>, %arg6: memref<1x16x2x16x2x8xf32, #tpu.memory_space<vmem>>) attributes {dimension_semantics = [#tpu.dimension_semantics<parallel>, #tpu.dimension_semantics<parallel>, #tpu.dimension_semantics<parallel>], iteration_bounds = array<i64: 2, 1, 1>, scalar_prefetch = 0 : i64, scratch_operands = 0 : i64, tpu.core_type = #tpu.core_type<tc>, window_params = [{transform_indices = @transform_0, window_bounds = array<i64: 1, 1, 18, 18, 4>}, {transform_indices = @transform_1, window_bounds = array<i64: 2, 2, 16, 8>}, {transform_indices = @transform_2, window_bounds = array<i64: 1, 8>}, {transform_indices = @transform_3, window_bounds = array<i64: 1, 16, 2, 16, 2, 8>}]} {
    %c0 = arith.constant 0 : index
    %c0_0 = arith.constant 0 : index
    %c0_1 = arith.constant 0 : index
    %c0_2 = arith.constant 0 : index
    %c0_3 = arith.constant 0 : index
    %0 = vector.load %arg3[%c0, %c0_0, %c0_1, %c0_2, %c0_3] : memref<1x1x18x18x4xf32, #tpu.memory_space<vmem>>, vector<1x1x18x18x4xf32>
    %1 = vector.shape_cast %0 : vector<1x1x18x18x4xf32> to vector<18x18x4xf32>
    %c0_4 = arith.constant 0 : index
    %c0_5 = arith.constant 0 : index
    %2 = vector.load %arg5[%c0_4, %c0_5] : memref<1x8xf32, #tpu.memory_space<vmem>>, vector<1x8xf32>
    %3 = vector.extract_strided_slice %1 {offsets = [0, 0, 0], sizes = [16, 16, 4], strides = [1, 1, 1]} : vector<18x18x4xf32> to vector<16x16x4xf32>
    %4 = vector.extract_strided_slice %1 {offsets = [0, 1, 0], sizes = [16, 16, 4], strides = [1, 1, 1]} : vector<18x18x4xf32> to vector<16x16x4xf32>
    %5 = vector.extract_strided_slice %1 {offsets = [0, 2, 0], sizes = [16, 16, 4], strides = [1, 1, 1]} : vector<18x18x4xf32> to vector<16x16x4xf32>
    %6 = vector.extract_strided_slice %1 {offsets = [1, 0, 0], sizes = [16, 16, 4], strides = [1, 1, 1]} : vector<18x18x4xf32> to vector<16x16x4xf32>
    %7 = vector.extract_strided_slice %1 {offsets = [1, 1, 0], sizes = [16, 16, 4], strides = [1, 1, 1]} : vector<18x18x4xf32> to vector<16x16x4xf32>
    %8 = vector.extract_strided_slice %1 {offsets = [1, 2, 0], sizes = [16, 16, 4], strides = [1, 1, 1]} : vector<18x18x4xf32> to vector<16x16x4xf32>
    %9 = vector.extract_strided_slice %1 {offsets = [2, 0, 0], sizes = [16, 16, 4], strides = [1, 1, 1]} : vector<18x18x4xf32> to vector<16x16x4xf32>
    %10 = vector.extract_strided_slice %1 {offsets = [2, 1, 0], sizes = [16, 16, 4], strides = [1, 1, 1]} : vector<18x18x4xf32> to vector<16x16x4xf32>
    %11 = vector.extract_strided_slice %1 {offsets = [2, 2, 0], sizes = [16, 16, 4], strides = [1, 1, 1]} : vector<18x18x4xf32> to vector<16x16x4xf32>
    %12 = tpu.concatenate %3, %4, %6, %7 in 2 : vector<16x16x4xf32>, vector<16x16x4xf32>, vector<16x16x4xf32>, vector<16x16x4xf32> -> vector<16x16x16xf32>
    %13 = vector.shape_cast %12 : vector<16x16x16xf32> to vector<256x16xf32>
    %c0_6 = arith.constant 0 : index
    %c0_7 = arith.constant 0 : index
    %c0_8 = arith.constant 0 : index
    %c0_9 = arith.constant 0 : index
    %14 = vector.load %arg4[%c0_6, %c0_7, %c0_8, %c0_9] : memref<2x2x16x8xf32, #tpu.memory_space<vmem>>, vector<1x1x16x8xf32>
    %15 = vector.shape_cast %14 : vector<1x1x16x8xf32> to vector<16x8xf32>
    %cst = arith.constant dense<0.000000e+00> : vector<256x8xf32>
    %16 = tpu.matmul %13, %15, %cst {dimension_numbers = #tpu.dot_dimension_numbers<[1], [0], [0], [1], [0, 0, 1, 1], [], []>} : vector<256x16xf32>, vector<16x8xf32>, vector<256x8xf32> -> vector<256x8xf32>
    %17 = vector.broadcast %2 : vector<1x8xf32> to vector<256x8xf32>
    %18 = arith.addf %16, %17 : vector<256x8xf32>
    %19 = vector.shape_cast %18 : vector<256x8xf32> to vector<16x16x8xf32>
    %c0_10 = arith.constant 0 : index
    %c0_11 = arith.constant 0 : index
    %c0_12 = arith.constant 0 : index
    %c0_13 = arith.constant 0 : index
    %c0_14 = arith.constant 0 : index
    %c0_15 = arith.constant 0 : index
    %20 = vector.load %arg6[%c0_10, %c0_11, %c0_12, %c0_13, %c0_14, %c0_15] : memref<1x16x2x16x2x8xf32, #tpu.memory_space<vmem>>, vector<1x16x1x16x1x8xf32>
    %21 = vector.shape_cast %20 : vector<1x16x1x16x1x8xf32> to vector<16x16x8xf32>
    %22 = vector.shape_cast %19 : vector<16x16x8xf32> to vector<1x16x1x16x1x8xf32>
    tpu.vector_store %arg6[%c0_10, %c0_11, %c0_12, %c0_13, %c0_14, %c0_15], %22 {strides = array<i32>} : memref<1x16x2x16x2x8xf32, #tpu.memory_space<vmem>>, vector<1x16x1x16x1x8xf32>,
    %23 = tpu.concatenate %4, %5, %7, %8 in 2 : vector<16x16x4xf32>, vector<16x16x4xf32>, vector<16x16x4xf32>, vector<16x16x4xf32> -> vector<16x16x16xf32>
    %24 = vector.shape_cast %23 : vector<16x16x16xf32> to vector<256x16xf32>
    %c0_16 = arith.constant 0 : index
    %c1 = arith.constant 1 : index
    %c0_17 = arith.constant 0 : index
    %c0_18 = arith.constant 0 : index
    %25 = vector.load %arg4[%c0_16, %c1, %c0_17, %c0_18] : memref<2x2x16x8xf32, #tpu.memory_space<vmem>>, vector<1x1x16x8xf32>
    %26 = vector.shape_cast %25 : vector<1x1x16x8xf32> to vector<16x8xf32>
    %cst_19 = arith.constant dense<0.000000e+00> : vector<256x8xf32>
    %27 = tpu.matmul %24, %26, %cst_19 {dimension_numbers = #tpu.dot_dimension_numbers<[1], [0], [0], [1], [0, 0, 1, 1], [], []>} : vector<256x16xf32>, vector<16x8xf32>, vector<256x8xf32> -> vector<256x8xf32>
    %28 = vector.broadcast %2 : vector<1x8xf32> to vector<256x8xf32>
    %29 = arith.addf %27, %28 : vector<256x8xf32>
    %30 = vector.shape_cast %29 : vector<256x8xf32> to vector<16x16x8xf32>
    %c0_20 = arith.constant 0 : index
    %c0_21 = arith.constant 0 : index
    %c0_22 = arith.constant 0 : index
    %c0_23 = arith.constant 0 : index
    %c1_24 = arith.constant 1 : index
    %c0_25 = arith.constant 0 : index
    %31 = vector.load %arg6[%c0_20, %c0_21, %c0_22, %c0_23, %c1_24, %c0_25] : memref<1x16x2x16x2x8xf32, #tpu.memory_space<vmem>>, vector<1x16x1x16x1x8xf32>
    %32 = vector.shape_cast %31 : vector<1x16x1x16x1x8xf32> to vector<16x16x8xf32>
    %33 = vector.shape_cast %30 : vector<16x16x8xf32> to vector<1x16x1x16x1x8xf32>
    tpu.vector_store %arg6[%c0_20, %c0_21, %c0_22, %c0_23, %c1_24, %c0_25], %33 {strides = array<i32>} : memref<1x16x2x16x2x8xf32, #tpu.memory_space<vmem>>, vector<1x16x1x16x1x8xf32>,
    %34 = tpu.concatenate %6, %7, %9, %10 in 2 : vector<16x16x4xf32>, vector<16x16x4xf32>, vector<16x16x4xf32>, vector<16x16x4xf32> -> vector<16x16x16xf32>
    %35 = vector.shape_cast %34 : vector<16x16x16xf32> to vector<256x16xf32>
    %c1_26 = arith.constant 1 : index
    %c0_27 = arith.constant 0 : index
    %c0_28 = arith.constant 0 : index
    %c0_29 = arith.constant 0 : index
    %36 = vector.load %arg4[%c1_26, %c0_27, %c0_28, %c0_29] : memref<2x2x16x8xf32, #tpu.memory_space<vmem>>, vector<1x1x16x8xf32>
    %37 = vector.shape_cast %36 : vector<1x1x16x8xf32> to vector<16x8xf32>
    %cst_30 = arith.constant dense<0.000000e+00> : vector<256x8xf32>
    %38 = tpu.matmul %35, %37, %cst_30 {dimension_numbers = #tpu.dot_dimension_numbers<[1], [0], [0], [1], [0, 0, 1, 1], [], []>} : vector<256x16xf32>, vector<16x8xf32>, vector<256x8xf32> -> vector<256x8xf32>
    %39 = vector.broadcast %2 : vector<1x8xf32> to vector<256x8xf32>
    %40 = arith.addf %38, %39 : vector<256x8xf32>
    %41 = vector.shape_cast %40 : vector<256x8xf32> to vector<16x16x8xf32>
    %c0_31 = arith.constant 0 : index
    %c0_32 = arith.constant 0 : index
    %c1_33 = arith.constant 1 : index
    %c0_34 = arith.constant 0 : index
    %c0_35 = arith.constant 0 : index
    %c0_36 = arith.constant 0 : index
    %42 = vector.load %arg6[%c0_31, %c0_32, %c1_33, %c0_34, %c0_35, %c0_36] : memref<1x16x2x16x2x8xf32, #tpu.memory_space<vmem>>, vector<1x16x1x16x1x8xf32>
    %43 = vector.shape_cast %42 : vector<1x16x1x16x1x8xf32> to vector<16x16x8xf32>
    %44 = vector.shape_cast %41 : vector<16x16x8xf32> to vector<1x16x1x16x1x8xf32>
    tpu.vector_store %arg6[%c0_31, %c0_32, %c1_33, %c0_34, %c0_35, %c0_36], %44 {strides = array<i32>} : memref<1x16x2x16x2x8xf32, #tpu.memory_space<vmem>>, vector<1x16x1x16x1x8xf32>,
    %45 = tpu.concatenate %7, %8, %10, %11 in 2 : vector<16x16x4xf32>, vector<16x16x4xf32>, vector<16x16x4xf32>, vector<16x16x4xf32> -> vector<16x16x16xf32>
    %46 = vector.shape_cast %45 : vector<16x16x16xf32> to vector<256x16xf32>
    %c1_37 = arith.constant 1 : index
    %c1_38 = arith.constant 1 : index
    %c0_39 = arith.constant 0 : index
    %c0_40 = arith.constant 0 : index
    %47 = vector.load %arg4[%c1_37, %c1_38, %c0_39, %c0_40] : memref<2x2x16x8xf32, #tpu.memory_space<vmem>>, vector<1x1x16x8xf32>
    %48 = vector.shape_cast %47 : vector<1x1x16x8xf32> to vector<16x8xf32>
    %cst_41 = arith.constant dense<0.000000e+00> : vector<256x8xf32>
    %49 = tpu.matmul %46, %48, %cst_41 {dimension_numbers = #tpu.dot_dimension_numbers<[1], [0], [0], [1], [0, 0, 1, 1], [], []>} : vector<256x16xf32>, vector<16x8xf32>, vector<256x8xf32> -> vector<256x8xf32>
    %50 = vector.broadcast %2 : vector<1x8xf32> to vector<256x8xf32>
    %51 = arith.addf %49, %50 : vector<256x8xf32>
    %52 = vector.shape_cast %51 : vector<256x8xf32> to vector<16x16x8xf32>
    %c0_42 = arith.constant 0 : index
    %c0_43 = arith.constant 0 : index
    %c1_44 = arith.constant 1 : index
    %c0_45 = arith.constant 0 : index
    %c1_46 = arith.constant 1 : index
    %c0_47 = arith.constant 0 : index
    %53 = vector.load %arg6[%c0_42, %c0_43, %c1_44, %c0_45, %c1_46, %c0_47] : memref<1x16x2x16x2x8xf32, #tpu.memory_space<vmem>>, vector<1x16x1x16x1x8xf32>
    %54 = vector.shape_cast %53 : vector<1x16x1x16x1x8xf32> to vector<16x16x8xf32>
    %55 = vector.shape_cast %52 : vector<16x16x8xf32> to vector<1x16x1x16x1x8xf32>
    tpu.vector_store %arg6[%c0_42, %c0_43, %c1_44, %c0_45, %c1_46, %c0_47], %55 {strides = array<i32>} : memref<1x16x2x16x2x8xf32, #tpu.memory_space<vmem>>, vector<1x16x1x16x1x8xf32>,
    return
  }
  func.func @transform_0(%arg0: i32, %arg1: i32, %arg2: i32) -> (i32, i32, i32, i32, i32) {
    %c0_i32 = arith.constant 0 : i32
    %c0_i32_0 = arith.constant 0 : i32
    %c0_i32_1 = arith.constant 0 : i32
    %c0_i32_2 = arith.constant 0 : i32
    return %arg0, %arg1, %c0_i32, %c0_i32_0, %c0_i32_1 : i32, i32, i32, i32, i32
  }
  func.func @transform_1(%arg0: i32, %arg1: i32, %arg2: i32) -> (i32, i32, i32, i32) {
    %c0_i32 = arith.constant 0 : i32
    %c0_i32_0 = arith.constant 0 : i32
    %c0_i32_1 = arith.constant 0 : i32
    %c0_i32_2 = arith.constant 0 : i32
    return %c0_i32, %c0_i32_0, %c0_i32_1, %arg2 : i32, i32, i32, i32
  }
  func.func @transform_2(%arg0: i32, %arg1: i32, %arg2: i32) -> (i32, i32) {
    %c0_i32 = arith.constant 0 : i32
    %c0_i32_0 = arith.constant 0 : i32
    return %c0_i32, %arg2 : i32, i32
  }
  func.func @transform_3(%arg0: i32, %arg1: i32, %arg2: i32) -> (i32, i32, i32, i32, i32, i32) {
    %c0_i32 = arith.constant 0 : i32
    %c0_i32_0 = arith.constant 0 : i32
    %c0_i32_1 = arith.constant 0 : i32
    %c0_i32_2 = arith.constant 0 : i32
    return %arg0, %arg1, %c0_i32, %c0_i32_0, %c0_i32_1, %arg2 : i32, i32, i32, i32, i32, i32
  }
}

</mosaic_0001>

<llo_original>
// kernel: upsample_nearest2x_conv3x3.1
$region0: #{upsample_nearest2x_conv3x3.1}
  #allocation0 [shape = 'u32[]', space=smem, size = 0x4, offset = 0x4, fixed_abs, tag = 'smem constant byte address 0x4 - core index']
  #allocation1 [shape = 'u32[144,128]{1,0:T(1,128)}', space=vmem, size = 0x12000, scoped, tag = 'internal scratch']
  %s0 = inlined_call_operand.vmem [shape: f32[2,1,18,18,4], index: 0, kind: input, shape index: {}]
  %s1 = inlined_call_operand.vmem [shape: f32[2,2,16,8], index: 1, kind: input, shape index: {}]
  %s2 = inlined_call_operand.vmem [shape: f32[1,8], index: 2, kind: input, shape index: {}]
  %s3 = inlined_call_operand.vmem [shape: f32[2,16,2,16,2,8], index: 3, kind: output, shape index: {}]
  %s4 = sld [smem:[#allocation0]]
  $region45: #{upsample_nearest2x_conv3x3.1} parent=0
    _
  %s6 = ssub.s32 1, %s4
  %s7 = scalar_select 0, %s6, %s4
  loop: start=0, step=1, limit=4
  $region2: #{upsample_nearest2x_conv3x3.1} parent=0 // loop_pre_header
    _
  $region3: #{upsample_nearest2x_conv3x3.1} parent=0 // loop_header
    %s9 = sphi 0, %s13
    %p10 = scmp.ge.s32.totalorder %s9, 4
    %s16 = sphi 0, %s35
    %s17 = sphi 0, %s31
    %s18 = sphi 0, %s27
    %s19 = sphi 0, %s16
    %s20 = sphi 0, %s17
    %s21 = sphi 0, %s18
    %s22 = sphi 0, %s19
    %s23 = sphi 0, %s20
    %s24 = sphi 0, %s21
    %s40 = sphi 0, %s42
    %s43 = sphi 0, %s40
    %s44 = sphi 0, %s43
    %s60 = sphi 0, %s44
    %s66 = sphi 0, %s68
    %s69 = sphi 0, %s66
    %s70 = sphi 0, %s69
    %s86 = sphi 0, %s70
    %s92 = sphi 0, %s94
    %s95 = sphi 0, %s92
    %s96 = sphi 0, %s95
    %s112 = sphi 0, %s96
    %s122 = sphi 0, %s124
    %s125 = sphi 0, %s122
    %s126 = sphi 0, %s125
    %s142 = sphi 0, %s126
  $region4: #{upsample_nearest2x_conv3x3.1} parent=0 // loop_header_branch
    %12 = sbr.rel (%p10) target = $region8
  $region5: #{upsample_nearest2x_conv3x3.1} parent=0 // loop_body
    %s14 = ssub.s32 %s9, 1
    %s15 = ssub.s32 %s9, 2
    %s25 = sadd.s32 1, %s18
    %p26 = scmp.ge.s32.totalorder %s25, 1
    %s27 = scalar_select %p26, 0, %s25
    %s28 = sadd.s32 1, %s17
    %s29 = scalar_select %p26, %s28, %s17
    %p30 = scmp.ge.s32.totalorder %s29, 1
    %s31 = scalar_select %p30, 0, %s29
    %s32 = sadd.s32 1, %s16
    %s33 = scalar_select %p30, %s32, %s16
    %p34 = scmp.ge.s32.totalorder %s33, 2
    %s35 = scalar_select %p34, 0, %s33
    %s36 = ssub.s32 %s16, %s35
    %s37 = ssub.s32 %s17, %s31
    %s38 = sor.u32 %s36, %s37
    %p39 = scmp.eq.s32.totalorder %s38, 0
    %s41 = sadd.s32 %s40, 1
    %s42 = scalar_select %p39, %s40, %s41
    %p45 = pneg %p39
    %p46 = scmp.eq.s32.totalorder %s9, 1
    %p47 = por %p45, %p46
    %p48 = scmp.ne.s32.totalorder %s40, %s43
    %p49 = scmp.eq.s32.totalorder %s9, 0
    %p50 = por %p48, %p49
    %p51 = scmp.ne.s32.totalorder %s40, %s43
    %p52 = scmp.eq.s32.totalorder %s14, 1
    %p53 = por %p51, %p52
    %p54 = scmp.ne.s32.totalorder %s43, %s44
    %p55 = scmp.eq.s32.totalorder %s14, 0
    %p56 = por %p54, %p55
    %p57 = scmp.ne.s32.totalorder %s43, %s44
    %p58 = scmp.eq.s32.totalorder %s15, 1
    %p59 = por %p57, %p58
    %p61 = scmp.ne.s32.totalorder %s44, %s60
    %p62 = scmp.eq.s32.totalorder %s15, 0
    %p63 = por %p61, %p62
    %s64 = ssub.s32 %s18, %s27
    %p65 = scmp.eq.s32.totalorder %s64, 0
    %s67 = sadd.s32 %s66, 1
    %s68 = scalar_select %p65, %s66, %s67
    %p71 = pneg %p65
    %p72 = scmp.eq.s32.totalorder %s9, 1
    %p73 = por %p71, %p72
    %p74 = scmp.ne.s32.totalorder %s66, %s69
    %p75 = scmp.eq.s32.totalorder %s9, 0
    %p76 = por %p74, %p75
    %p77 = scmp.ne.s32.totalorder %s66, %s69
    %p78 = scmp.eq.s32.totalorder %s14, 1
    %p79 = por %p77, %p78
    %p80 = scmp.ne.s32.totalorder %s69, %s70
    %p81 = scmp.eq.s32.totalorder %s14, 0
    %p82 = por %p80, %p81
    %p83 = scmp.ne.s32.totalorder %s69, %s70
    %p84 = scmp.eq.s32.totalorder %s15, 1
    %p85 = por %p83, %p84
    %p87 = scmp.ne.s32.totalorder %s70, %s86
    %p88 = scmp.eq.s32.totalorder %s15, 0
    %p89 = por %p87, %p88
    %s90 = ssub.s32 %s18, %s27
    %p91 = scmp.eq.s32.totalorder %s90, 0
    %s93 = sadd.s32 %s92, 1
    %s94 = scalar_select %p91, %s92, %s93
    %p97 = pneg %p91
    %p98 = scmp.eq.s32.totalorder %s9, 1
    %p99 = por %p97, %p98
    %p100 = scmp.ne.s32.totalorder %s92, %s95
    %p101 = scmp.eq.s32.totalorder %s9, 0
    %p102 = por %p100, %p101
    %p103 = scmp.ne.s32.totalorder %s92, %s95
    %p104 = scmp.eq.s32.totalorder %s14, 1
    %p105 = por %p103, %p104
    %p106 = scmp.ne.s32.totalorder %s95, %s96
    %p107 = scmp.eq.s32.totalorder %s14, 0
    %p108 = por %p106, %p107
    %p109 = scmp.ne.s32.totalorder %s95, %s96
    %p110 = scmp.eq.s32.totalorder %s15, 1
    %p111 = por %p109, %p110
    %p113 = scmp.ne.s32.totalorder %s96, %s112
    %p114 = scmp.eq.s32.totalorder %s15, 0
    %p115 = por %p113, %p114
    %s116 = ssub.s32 %s16, %s35
    %s117 = ssub.s32 %s17, %s31
    %s118 = sor.u32 %s116, %s117
    %s119 = ssub.s32 %s18, %s27
    %s120 = sor.u32 %s118, %s119
    %p121 = scmp.eq.s32.totalorder %s120, 0
    %s123 = sadd.s32 %s122, 1
    %s124 = scalar_select %p121, %s122, %s123
    %p127 = pneg %p121
    %p128 = scmp.eq.s32.totalorder %s9, 1
    %p129 = por %p127, %p128
    %p130 = scmp.ne.s32.totalorder %s122, %s125
    %p131 = scmp.eq.s32.totalorder %s9, 0
    %p132 = por %p130, %p131
    %p133 = scmp.ne.s32.totalorder %s122, %s125
    %p134 = scmp.eq.s32.totalorder %s14, 1
    %p135 = por %p133, %p134
    %p136 = scmp.ne.s32.totalorder %s125, %s126
    %p137 = scmp.eq.s32.totalorder %s14, 0
    %p138 = por %p136, %p137
    %p139 = scmp.ne.s32.totalorder %s125, %s126
    %p140 = scmp.eq.s32.totalorder %s15, 1
    %p141 = por %p139, %p140
    %p143 = scmp.ne.s32.totalorder %s126, %s142
    %p144 = scmp.eq.s32.totalorder %s15, 0
    %p145 = por %p143, %p144
    %p146 = scmp.le.s32.totalorder 1, %s9
    %p147 = scmp.lt.s32.totalorder %s9, 3
    %p148 = pnand %p146, %p147
    %p149 = pneg %p148
    // Predicated region
    $region9: #{upsample_nearest2x_conv3x3.1} parent=5 // pred_check
      _
    $region10: #{upsample_nearest2x_conv3x3.1} parent=5 // pred_check_branch
      %151 = sbr.rel (%p148) target = $region12
    $region11: #{upsample_nearest2x_conv3x3.1} parent=5 // pred_region
      %s152 = ssub.s32 %s9, 1
      // Predicated region
      $region13: #{upsample_nearest2x_conv3x3.1} parent=11 // pred_check
        %p153 = pneg %p82
      $region14: #{upsample_nearest2x_conv3x3.1} parent=11 // pred_check_branch
        %155 = sbr.rel (%p153) target = $region16
      $region15: #{upsample_nearest2x_conv3x3.1} parent=11 // pred_region
        %p156 = scmp.lt.s32.totalorder %s21, 0
        %s157 = scalar_select %p156, %s21, 0
        %s158 = smul.addr %s157, 8
        %s159 = scalar_lea.vmem %s1, %s158
      $region16: #{upsample_nearest2x_conv3x3.1} parent=11 // pred_fallthru
        _
      // Predicated region
      $region17: #{upsample_nearest2x_conv3x3.1} parent=11 // pred_check
        %p160 = pneg %p108
      $region18: #{upsample_nearest2x_conv3x3.1} parent=11 // pred_check_branch
        %162 = sbr.rel (%p160) target = $region20
      $region19: #{upsample_nearest2x_conv3x3.1} parent=11 // pred_region
        %p163 = scmp.lt.s32.totalorder %s21, 0
        %s164 = scalar_select %p163, %s21, 0
        %s165 = scalar_lea.vmem %s2, %s164
      $region20: #{upsample_nearest2x_conv3x3.1} parent=11 // pred_fallthru
        _
    $region12: #{upsample_nearest2x_conv3x3.1} parent=5 // pred_fallthru
      _
    %p166 = scmp.lt.s32.totalorder %s9, 2
    // Predicated region
    $region21: #{upsample_nearest2x_conv3x3.1} parent=5 // pred_check
      %p167 = pneg %p166
    $region22: #{upsample_nearest2x_conv3x3.1} parent=5 // pred_check_branch
      %169 = sbr.rel (%p167) target = $region24
    $region23: #{upsample_nearest2x_conv3x3.1} parent=5 // pred_region
      // Predicated region
      $region25: #{upsample_nearest2x_conv3x3.1} parent=23 // pred_check
        %p170 = pneg %p50
      $region26: #{upsample_nearest2x_conv3x3.1} parent=23 // pred_check_branch
        %172 = sbr.rel (%p170) target = $region28
      $region27: #{upsample_nearest2x_conv3x3.1} parent=23 // pred_region
        %p173 = scmp.lt.s32.totalorder %s16, 1
        %s174 = scalar_select %p173, %s16, 1
        %p175 = scmp.lt.s32.totalorder %s17, 0
        %s176 = scalar_select %p175, %s17, 0
        %s177 = smul.addr %s176, 54
        %s178 = smul.addr %s174, 54
        %s179 = sadd.s32 %s177, %s178
        %s180 = smul.addr %s179, 8
        %s181 = scalar_lea.vmem %s0, %s180
      $region28: #{upsample_nearest2x_conv3x3.1} parent=23 // pred_fallthru
        _
    $region24: #{upsample_nearest2x_conv3x3.1} parent=5 // pred_fallthru
      _
    %p182 = scmp.le.s32.totalorder 1, %s9
    %p183 = scmp.lt.s32.totalorder %s9, 3
    %p184 = pnand %p182, %p183
    %p185 = pneg %p184
    // Predicated region
    $region29: #{upsample_nearest2x_conv3x3.1} parent=5 // pred_check
      _
    $region30: #{upsample_nearest2x_conv3x3.1} parent=5 // pred_check_branch
      %187 = sbr.rel (%p184) target = $region32
    $region31: #{upsample_nearest2x_conv3x3.1} parent=5 // pred_region
      %s188 = ssub.s32 %s9, 1
      %p189 = scmp.lt.s32.totalorder %s19, 1
      %s190 = scalar_select %p189, %s19, 1
      %p191 = scmp.lt.s32.totalorder %s20, 0
      %s192 = scalar_select %p191, %s20, 0
      %s193 = smul.addr %s192, 54
      %s194 = smul.addr %s190, 54
      %s195 = sadd.s32 %s193, %s194
      %s196 = smul.addr %s195, 8
      %s197 = scalar_lea.vmem %s0, %s196
      %p198 = pneg %p56
      %p199 = pneg %p53
      %p200 = scmp.lt.s32.totalorder %s21, 0
      %s201 = scalar_select %p200, %s21, 0
      %s202 = smul.addr %s201, 8
      %s203 = scalar_lea.vmem %s1, %s202
      %p204 = pneg %p82
      %p205 = pneg %p79
      %p206 = scmp.lt.s32.totalorder %s21, 0
      %s207 = scalar_select %p206, %s21, 0
      %s208 = scalar_lea.vmem %s2, %s207
      %p209 = pneg %p108
      %p210 = pneg %p105
      %p211 = pneg %p138
      %p212 = pneg %p135
      %s213 = smul.u32 16, %s20
      %p214 = scmp.lt.s32.totalorder %s19, 1
      %s215 = scalar_select %p214, %s19, 1
      %p216 = scmp.lt.s32.totalorder %s213, 15
      %s217 = scalar_select %p216, %s213, 15
      %p218 = scmp.lt.s32.totalorder %s21, 0
      %s219 = scalar_select %p218, %s21, 0
      %s220 = smul.addr %s217, 32
      %s221 = sadd.s32 %s219, %s220
      %s222 = smul.addr %s215, 512
      %s223 = sadd.s32 %s221, %s222
      %s224 = smul.addr %s223, 2
      %s225 = scalar_lea.vmem %s3, %s224
      %p226 = scmp.lt.s32.totalorder %s19, 1
      %s227 = scalar_select %p226, %s19, 1
      %p228 = scmp.lt.s32.totalorder %s20, 0
      %s229 = scalar_select %p228, %s20, 0
      %s230 = smul.addr %s229, 54
      %s231 = smul.addr %s227, 54
      %s232 = sadd.s32 %s230, %s231
      %s233 = smul.addr %s232, 8
      %s234 = scalar_lea.vmem %s0, %s233
      %p235 = scmp.lt.s32.totalorder %s21, 0
      %s236 = scalar_select %p235, %s21, 0
      %s237 = smul.addr %s236, 8
      %s238 = scalar_lea.vmem %s1, %s237
      %p239 = scmp.lt.s32.totalorder %s21, 0
      %s240 = scalar_select %p239, %s21, 0
      %s241 = scalar_lea.vmem %s2, %s240
      %s242 = smul.u32 16, %s20
      %p243 = scmp.lt.s32.totalorder %s19, 1
      %s244 = scalar_select %p243, %s19, 1
      %p245 = scmp.lt.s32.totalorder %s242, 15
      %s246 = scalar_select %p245, %s242, 15
      %p247 = scmp.lt.s32.totalorder %s21, 0
      %s248 = scalar_select %p247, %s21, 0
      %s249 = smul.addr %s246, 32
      %s250 = sadd.s32 %s248, %s249
      %s251 = smul.addr %s244, 512
      %s252 = sadd.s32 %s250, %s251
      %s253 = smul.addr %s252, 2
      %s254 = scalar_lea.vmem %s3, %s253
      %s255 = smul.u32 16, %s20
      %v256 = vld [vmem:[%s234] sm:$0xff]
      %v257 = vld [vmem:[%s234 + $0x8] sm:$0xff]
      %v258 = vld [vmem:[%s234 + $0x10] sm:$0x3]
      %v259 = vld [vmem:[%s234 + $0x18] sm:$0xff]
      %v260 = vld [vmem:[%s234 + $0x20] sm:$0xff]
      %v261 = vld [vmem:[%s234 + $0x28] sm:$0x3]
      %v262 = vld [vmem:[%s234 + $0x30] sm:$0xff]
      %v263 = vld [vmem:[%s234 + $0x38] sm:$0xff]
      %v264 = vld [vmem:[%s234 + $0x40] sm:$0x3]
      %v265 = vld [vmem:[%s234 + $0x48] sm:$0xff]
      %v266 = vld [vmem:[%s234 + $0x50] sm:$0xff]
      %v267 = vld [vmem:[%s234 + $0x58] sm:$0x3]
      %v268 = vld [vmem:[%s234 + $0x60] sm:$0xff]
      %v269 = vld [vmem:[%s234 + $0x68] sm:$0xff]
      %v270 = vld [vmem:[%s234 + $0x70] sm:$0x3]
      %v271 = vld [vmem:[%s234 + $0x78] sm:$0xff]
      %v272 = vld [vmem:[%s234 + $0x80] sm:$0xff]
      %v273 = vld [vmem:[%s234 + $0x88] sm:$0x3]
      %v274 = vld [vmem:[%s234 + $0x90] sm:$0xff]
      %v275 = vld [vmem:[%s234 + $0x98] sm:$0xff]
      %v276 = vld [vmem:[%s234 + $0xa0] sm:$0x3]
      %v277 = vld [vmem:[%s234 + $0xa8] sm:$0xff]
      %v278 = vld [vmem:[%s234 + $0xb0] sm:$0xff]
      %v279 = vld [vmem:[%s234 + $0xb8] sm:$0x3]
      %v280 = vld [vmem:[%s234 + $0xc0] sm:$0xff]
      %v281 = vld [vmem:[%s234 + $0xc8] sm:$0xff]
      %v282 = vld [vmem:[%s234 + $0xd0] sm:$0x3]
      %v283 = vld [vmem:[%s234 + $0xd8] sm:$0xff]
      %v284 = vld [vmem:[%s234 + $0xe0] sm:$0xff]
      %v285 = vld [vmem:[%s234 + $0xe8] sm:$0x3]
      %v286 = vld [vmem:[%s234 + $0xf0] sm:$0xff]
      %v287 = vld [vmem:[%s234 + $0xf8] sm:$0xff]
      %v288 = vld [vmem:[%s234 + $0x100] sm:$0x3]
      %v289 = vld [vmem:[%s234 + $0x108] sm:$0xff]
      %v290 = vld [vmem:[%s234 + $0x110] sm:$0xff]
      %v291 = vld [vmem:[%s234 + $0x118] sm:$0x3]
      %v292 = vld [vmem:[%s234 + $0x120] sm:$0xff]
      %v293 = vld [vmem:[%s234 + $0x128] sm:$0xff]
      %v294 = vld [vmem:[%s234 + $0x130] sm:$0x3]
      %v295 = vld [vmem:[%s234 + $0x138] sm:$0xff]
      %v296 = vld [vmem:[%s234 + $0x140] sm:$0xff]
      %v297 = vld [vmem:[%s234 + $0x148] sm:$0x3]
      %v298 = vld [vmem:[%s234 + $0x150] sm:$0xff]
      %v299 = vld [vmem:[%s234 + $0x158] sm:$0xff]
      %v300 = vld [vmem:[%s234 + $0x160] sm:$0x3]
      %v301 = vld [vmem:[%s234 + $0x168] sm:$0xff]
      %v302 = vld [vmem:[%s234 + $0x170] sm:$0xff]
      %v303 = vld [vmem:[%s234 + $0x178] sm:$0x3]
      %v304 = vld [vmem:[%s234 + $0x180] sm:$0xff]
      %v305 = vld [vmem:[%s234 + $0x188] sm:$0xff]
      %v306 = vld [vmem:[%s234 + $0x190] sm:$0x3]
      %v307 = vld [vmem:[%s234 + $0x198] sm:$0xff]
      %v308 = vld [vmem:[%s234 + $0x1a0] sm:$0xff]
      %v309 = vld [vmem:[%s234 + $0x1a8] sm:$0x3]
      %v310 = vld [vmem:[%s241] sm:$0x1]
      %vm359 = vcmask 1046528
      %v360 = vrot.slane %v256, 1
      %v361 = vrot.slane %v257, 1
      %v362 = vsel %vm359, %v360, %v361
      %v363 = vrot.slane %v258, 1
      %v364 = vsel %vm359, %v361, %v363
      %v365 = vrot.slane %v259, 1
      %v366 = vrot.slane %v260, 1
      %v367 = vsel %vm359, %v365, %v366
      %v368 = vrot.slane %v261, 1
      %v369 = vsel %vm359, %v366, %v368
      %v370 = vrot.slane %v262, 1
      %v371 = vrot.slane %v263, 1
      %v372 = vsel %vm359, %v370, %v371
      %v373 = vrot.slane %v264, 1
      %v374 = vsel %vm359, %v371, %v373
      %v375 = vrot.slane %v265, 1
      %v376 = vrot.slane %v266, 1
      %v377 = vsel %vm359, %v375, %v376
      %v378 = vrot.slane %v267, 1
      %v379 = vsel %vm359, %v376, %v378
      %v380 = vrot.slane %v268, 1
      %v381 = vrot.slane %v269, 1
      %v382 = vsel %vm359, %v380, %v381
      %v383 = vrot.slane %v270, 1
      %v384 = vsel %vm359, %v381, %v383
      %v385 = vrot.slane %v271, 1
      %v386 = vrot.slane %v272, 1
      %v387 = vsel %vm359, %v385, %v386
      %v388 = vrot.slane %v273, 1
      %v389 = vsel %vm359, %v386, %v388
      %v390 = vrot.slane %v274, 1
      %v391 = vrot.slane %v275, 1
      %v392 = vsel %vm359, %v390, %v391
      %v393 = vrot.slane %v276, 1
      %v394 = vsel %vm359, %v391, %v393
      %v395 = vrot.slane %v277, 1
      %v396 = vrot.slane %v278, 1
      %v397 = vsel %vm359, %v395, %v396
      %v398 = vrot.slane %v279, 1
      %v399 = vsel %vm359, %v396, %v398
      %v400 = vrot.slane %v280, 1
      %v401 = vrot.slane %v281, 1
      %v402 = vsel %vm359, %v400, %v401
      %v403 = vrot.slane %v282, 1
      %v404 = vsel %vm359, %v401, %v403
      %v405 = vrot.slane %v283, 1
      %v406 = vrot.slane %v284, 1
      %v407 = vsel %vm359, %v405, %v406
      %v408 = vrot.slane %v285, 1
      %v409 = vsel %vm359, %v406, %v408
      %v410 = vrot.slane %v286, 1
      %v411 = vrot.slane %v287, 1
      %v412 = vsel %vm359, %v410, %v411
      %v413 = vrot.slane %v288, 1
      %v414 = vsel %vm359, %v411, %v413
      %v415 = vrot.slane %v289, 1
      %v416 = vrot.slane %v290, 1
      %v417 = vsel %vm359, %v415, %v416
      %v418 = vrot.slane %v291, 1
      %v419 = vsel %vm359, %v416, %v418
      %v420 = vrot.slane %v292, 1
      %v421 = vrot.slane %v293, 1
      %v422 = vsel %vm359, %v420, %v421
      %v423 = vrot.slane %v294, 1
      %v424 = vsel %vm359, %v421, %v423
      %v425 = vrot.slane %v295, 1
      %v426 = vrot.slane %v296, 1
      %v427 = vsel %vm359, %v425, %v426
      %v428 = vrot.slane %v297, 1
      %v429 = vsel %vm359, %v426, %v428
      %v430 = vrot.slane %v298, 1
      %v431 = vrot.slane %v299, 1
      %v432 = vsel %vm359, %v430, %v431
      %v433 = vrot.slane %v300, 1
      %v434 = vsel %vm359, %v431, %v433
      %v435 = vrot.slane %v301, 1
      %v436 = vrot.slane %v302, 1
      %v437 = vsel %vm359, %v435, %v436
      %v438 = vrot.slane %v303, 1
      %v439 = vsel %vm359, %v436, %v438
      %440 = vrot.lane.b32.xlu0 %v362, 4
      %v441 = vpop.permute.xlu0 %440
      %442 = vrot.lane.b32.xlu0 %v364, 4
      %v443 = vpop.permute.xlu0 %442
      %444 = vrot.lane.b32.xlu0 %v367, 4
      %v445 = vpop.permute.xlu0 %444
      %446 = vrot.lane.b32.xlu0 %v369, 4
      %v447 = vpop.permute.xlu0 %446
      %448 = vrot.lane.b32.xlu0 %v372, 4
      %v449 = vpop.permute.xlu0 %448
      %450 = vrot.lane.b32.xlu0 %v374, 4
      %v451 = vpop.permute.xlu0 %450
      %452 = vrot.lane.b32.xlu0 %v377, 4
      %v453 = vpop.permute.xlu0 %452
      %454 = vrot.lane.b32.xlu0 %v379, 4
      %v455 = vpop.permute.xlu0 %454
      %456 = vrot.lane.b32.xlu0 %v382, 4
      %v457 = vpop.permute.xlu0 %456
      %458 = vrot.lane.b32.xlu0 %v384, 4
      %v459 = vpop.permute.xlu0 %458
      %460 = vrot.lane.b32.xlu0 %v387, 4
      %v461 = vpop.permute.xlu0 %460
      %462 = vrot.lane.b32.xlu0 %v389, 4
      %v463 = vpop.permute.xlu0 %462
      %464 = vrot.lane.b32.xlu0 %v392, 4
      %v465 = vpop.permute.xlu0 %464
      %466 = vrot.lane.b32.xlu0 %v394, 4
      %v467 = vpop.permute.xlu0 %466
      %468 = vrot.lane.b32.xlu0 %v397, 4
      %v469 = vpop.permute.xlu0 %468
      %470 = vrot.lane.b32.xlu0 %v399, 4
      %v471 = vpop.permute.xlu0 %470
      %472 = vrot.lane.b32.xlu0 %v402, 4
      %v473 = vpop.permute.xlu0 %472
      %474 = vrot.lane.b32.xlu0 %v404, 4
      %v475 = vpop.permute.xlu0 %474
      %476 = vrot.lane.b32.xlu0 %v407, 4
      %v477 = vpop.permute.xlu0 %476
      %478 = vrot.lane.b32.xlu0 %v409, 4
      %v479 = vpop.permute.xlu0 %478
      %480 = vrot.lane.b32.xlu0 %v412, 4
      %v481 = vpop.permute.xlu0 %480
      %482 = vrot.lane.b32.xlu0 %v414, 4
      %v483 = vpop.permute.xlu0 %482
      %484 = vrot.lane.b32.xlu0 %v417, 4
      %v485 = vpop.permute.xlu0 %484
      %486 = vrot.lane.b32.xlu0 %v419, 4
      %v487 = vpop.permute.xlu0 %486
      %488 = vrot.lane.b32.xlu0 %v422, 4
      %v489 = vpop.permute.xlu0 %488
      %490 = vrot.lane.b32.xlu0 %v424, 4
      %v491 = vpop.permute.xlu0 %490
      %492 = vrot.lane.b32.xlu0 %v427, 4
      %v493 = vpop.permute.xlu0 %492
      %494 = vrot.lane.b32.xlu0 %v429, 4
      %v495 = vpop.permute.xlu0 %494
      %496 = vrot.lane.b32.xlu0 %v432, 4
      %v497 = vpop.permute.xlu0 %496
      %498 = vrot.lane.b32.xlu0 %v434, 4
      %v499 = vpop.permute.xlu0 %498
      %500 = vrot.lane.b32.xlu0 %v437, 4
      %v501 = vpop.permute.xlu0 %500
      %502 = vrot.lane.b32.xlu0 %v439, 4
      %v503 = vpop.permute.xlu0 %502
      %538 = vrot.lane.b32.xlu0 %v259, 8
      %v539 = vpop.permute.xlu0 %538
      %540 = vrot.lane.b32.xlu0 %v260, 8
      %v541 = vpop.permute.xlu0 %540
      %542 = vrot.lane.b32.xlu0 %v262, 8
      %v543 = vpop.permute.xlu0 %542
      %544 = vrot.lane.b32.xlu0 %v263, 8
      %v545 = vpop.permute.xlu0 %544
      %546 = vrot.lane.b32.xlu0 %v265, 8
      %v547 = vpop.permute.xlu0 %546
      %548 = vrot.lane.b32.xlu0 %v266, 8
      %v549 = vpop.permute.xlu0 %548
      %550 = vrot.lane.b32.xlu0 %v268, 8
      %v551 = vpop.permute.xlu0 %550
      %552 = vrot.lane.b32.xlu0 %v269, 8
      %v553 = vpop.permute.xlu0 %552
      %554 = vrot.lane.b32.xlu0 %v271, 8
      %v555 = vpop.permute.xlu0 %554
      %556 = vrot.lane.b32.xlu0 %v272, 8
      %v557 = vpop.permute.xlu0 %556
      %558 = vrot.lane.b32.xlu0 %v274, 8
      %v559 = vpop.permute.xlu0 %558
      %560 = vrot.lane.b32.xlu0 %v275, 8
      %v561 = vpop.permute.xlu0 %560
      %562 = vrot.lane.b32.xlu0 %v277, 8
      %v563 = vpop.permute.xlu0 %562
      %564 = vrot.lane.b32.xlu0 %v278, 8
      %v565 = vpop.permute.xlu0 %564
      %566 = vrot.lane.b32.xlu0 %v280, 8
      %v567 = vpop.permute.xlu0 %566
      %568 = vrot.lane.b32.xlu0 %v281, 8
      %v569 = vpop.permute.xlu0 %568
      %570 = vrot.lane.b32.xlu0 %v283, 8
      %v571 = vpop.permute.xlu0 %570
      %572 = vrot.lane.b32.xlu0 %v284, 8
      %v573 = vpop.permute.xlu0 %572
      %574 = vrot.lane.b32.xlu0 %v286, 8
      %v575 = vpop.permute.xlu0 %574
      %576 = vrot.lane.b32.xlu0 %v287, 8
      %v577 = vpop.permute.xlu0 %576
      %578 = vrot.lane.b32.xlu0 %v289, 8
      %v579 = vpop.permute.xlu0 %578
      %580 = vrot.lane.b32.xlu0 %v290, 8
      %v581 = vpop.permute.xlu0 %580
      %582 = vrot.lane.b32.xlu0 %v292, 8
      %v583 = vpop.permute.xlu0 %582
      %584 = vrot.lane.b32.xlu0 %v293, 8
      %v585 = vpop.permute.xlu0 %584
      %586 = vrot.lane.b32.xlu0 %v295, 8
      %v587 = vpop.permute.xlu0 %586
      %588 = vrot.lane.b32.xlu0 %v296, 8
      %v589 = vpop.permute.xlu0 %588
      %590 = vrot.lane.b32.xlu0 %v298, 8
      %v591 = vpop.permute.xlu0 %590
      %592 = vrot.lane.b32.xlu0 %v299, 8
      %v593 = vpop.permute.xlu0 %592
      %594 = vrot.lane.b32.xlu0 %v301, 8
      %v595 = vpop.permute.xlu0 %594
      %596 = vrot.lane.b32.xlu0 %v302, 8
      %v597 = vpop.permute.xlu0 %596
      %598 = vrot.lane.b32.xlu0 %v304, 8
      %v599 = vpop.permute.xlu0 %598
      %600 = vrot.lane.b32.xlu0 %v305, 8
      %v601 = vpop.permute.xlu0 %600
      %v635 = vrot.slane %v304, 1
      %v636 = vrot.slane %v305, 1
      %v637 = vsel %vm359, %v635, %v636
      %v638 = vrot.slane %v306, 1
      %v639 = vsel %vm359, %v636, %v638
      %640 = vrot.lane.b32.xlu0 %v367, 12
      %v641 = vpop.permute.xlu0 %640
      %642 = vrot.lane.b32.xlu0 %v369, 12
      %v643 = vpop.permute.xlu0 %642
      %644 = vrot.lane.b32.xlu0 %v372, 12
      %v645 = vpop.permute.xlu0 %644
      %646 = vrot.lane.b32.xlu0 %v374, 12
      %v647 = vpop.permute.xlu0 %646
      %648 = vrot.lane.b32.xlu0 %v377, 12
      %v649 = vpop.permute.xlu0 %648
      %650 = vrot.lane.b32.xlu0 %v379, 12
      %v651 = vpop.permute.xlu0 %650
      %652 = vrot.lane.b32.xlu0 %v382, 12
      %v653 = vpop.permute.xlu0 %652
      %654 = vrot.lane.b32.xlu0 %v384, 12
      %v655 = vpop.permute.xlu0 %654
      %656 = vrot.lane.b32.xlu0 %v387, 12
      %v657 = vpop.permute.xlu0 %656
      %658 = vrot.lane.b32.xlu0 %v389, 12
      %v659 = vpop.permute.xlu0 %658
      %660 = vrot.lane.b32.xlu0 %v392, 12
      %v661 = vpop.permute.xlu0 %660
      %662 = vrot.lane.b32.xlu0 %v394, 12
      %v663 = vpop.permute.xlu0 %662
      %664 = vrot.lane.b32.xlu0 %v397, 12
      %v665 = vpop.permute.xlu0 %664
      %666 = vrot.lane.b32.xlu0 %v399, 12
      %v667 = vpop.permute.xlu0 %666
      %668 = vrot.lane.b32.xlu0 %v402, 12
      %v669 = vpop.permute.xlu0 %668
      %670 = vrot.lane.b32.xlu0 %v404, 12
      %v671 = vpop.permute.xlu0 %670
      %672 = vrot.lane.b32.xlu0 %v407, 12
      %v673 = vpop.permute.xlu0 %672
      %674 = vrot.lane.b32.xlu0 %v409, 12
      %v675 = vpop.permute.xlu0 %674
      %676 = vrot.lane.b32.xlu0 %v412, 12
      %v677 = vpop.permute.xlu0 %676
      %678 = vrot.lane.b32.xlu0 %v414, 12
      %v679 = vpop.permute.xlu0 %678
      %680 = vrot.lane.b32.xlu0 %v417, 12
      %v681 = vpop.permute.xlu0 %680
      %682 = vrot.lane.b32.xlu0 %v419, 12
      %v683 = vpop.permute.xlu0 %682
      %684 = vrot.lane.b32.xlu0 %v422, 12
      %v685 = vpop.permute.xlu0 %684
      %686 = vrot.lane.b32.xlu0 %v424, 12
      %v687 = vpop.permute.xlu0 %686
      %688 = vrot.lane.b32.xlu0 %v427, 12
      %v689 = vpop.permute.xlu0 %688
      %690 = vrot.lane.b32.xlu0 %v429, 12
      %v691 = vpop.permute.xlu0 %690
      %692 = vrot.lane.b32.xlu0 %v432, 12
      %v693 = vpop.permute.xlu0 %692
      %694 = vrot.lane.b32.xlu0 %v434, 12
      %v695 = vpop.permute.xlu0 %694
      %696 = vrot.lane.b32.xlu0 %v437, 12
      %v697 = vpop.permute.xlu0 %696
      %698 = vrot.lane.b32.xlu0 %v439, 12
      %v699 = vpop.permute.xlu0 %698
      %700 = vrot.lane.b32.xlu0 %v637, 12
      %v701 = vpop.permute.xlu0 %700
      %702 = vrot.lane.b32.xlu0 %v639, 12
      %v703 = vpop.permute.xlu0 %702
      %vm736 = vcmask 31744
      %v737 = vsel %vm736, %v256, %v441
      %v738 = vsel %vm736, %v257, %v443
      %v739 = vsel %vm736, %v259, %v445
      %v740 = vsel %vm736, %v260, %v447
      %v741 = vsel %vm736, %v262, %v449
      %v742 = vsel %vm736, %v263, %v451
      %v743 = vsel %vm736, %v265, %v453
      %v744 = vsel %vm736, %v266, %v455
      %v745 = vsel %vm736, %v268, %v457
      %v746 = vsel %vm736, %v269, %v459
      %v747 = vsel %vm736, %v271, %v461
      %v748 = vsel %vm736, %v272, %v463
      %v749 = vsel %vm736, %v274, %v465
      %v750 = vsel %vm736, %v275, %v467
      %v751 = vsel %vm736, %v277, %v469
      %v752 = vsel %vm736, %v278, %v471
      %v753 = vsel %vm736, %v280, %v473
      %v754 = vsel %vm736, %v281, %v475
      %v755 = vsel %vm736, %v283, %v477
      %v756 = vsel %vm736, %v284, %v479
      %v757 = vsel %vm736, %v286, %v481
      %v758 = vsel %vm736, %v287, %v483
      %v759 = vsel %vm736, %v289, %v485
      %v760 = vsel %vm736, %v290, %v487
      %v761 = vsel %vm736, %v292, %v489
      %v762 = vsel %vm736, %v293, %v491
      %v763 = vsel %vm736, %v295, %v493
      %v764 = vsel %vm736, %v296, %v495
      %v765 = vsel %vm736, %v298, %v497
      %v766 = vsel %vm736, %v299, %v499
      %v767 = vsel %vm736, %v301, %v501
      %v768 = vsel %vm736, %v302, %v503
      %vm769 = vcmask 64512
      %v770 = vsel %vm769, %v737, %v539
      %v771 = vsel %vm769, %v738, %v541
      %v772 = vsel %vm769, %v739, %v543
      %v773 = vsel %vm769, %v740, %v545
      %v774 = vsel %vm769, %v741, %v547
      %v775 = vsel %vm769, %v742, %v549
      %v776 = vsel %vm769, %v743, %v551
      %v777 = vsel %vm769, %v744, %v553
      %v778 = vsel %vm769, %v745, %v555
      %v779 = vsel %vm769, %v746, %v557
      %v780 = vsel %vm769, %v747, %v559
      %v781 = vsel %vm769, %v748, %v561
      %v782 = vsel %vm769, %v749, %v563
      %v783 = vsel %vm769, %v750, %v565
      %v784 = vsel %vm769, %v751, %v567
      %v785 = vsel %vm769, %v752, %v569
      %v786 = vsel %vm769, %v753, %v571
      %v787 = vsel %vm769, %v754, %v573
      %v788 = vsel %vm769, %v755, %v575
      %v789 = vsel %vm769, %v756, %v577
      %v790 = vsel %vm769, %v757, %v579
      %v791 = vsel %vm769, %v758, %v581
      %v792 = vsel %vm769, %v759, %v583
      %v793 = vsel %vm769, %v760, %v585
      %v794 = vsel %vm769, %v761, %v587
      %v795 = vsel %vm769, %v762, %v589
      %v796 = vsel %vm769, %v763, %v591
      %v797 = vsel %vm769, %v764, %v593
      %v798 = vsel %vm769, %v765, %v595
      %v799 = vsel %vm769, %v766, %v597
      %v800 = vsel %vm769, %v767, %v599
      %v801 = vsel %vm769, %v768, %v601
      %vm802 = vcmask 97280
      %v803 = vsel %vm802, %v770, %v641
      %v804 = vsel %vm802, %v771, %v643
      %v805 = vsel %vm802, %v772, %v645
      %v806 = vsel %vm802, %v773, %v647
      %v807 = vsel %vm802, %v774, %v649
      %v808 = vsel %vm802, %v775, %v651
      %v809 = vsel %vm802, %v776, %v653
      %v810 = vsel %vm802, %v777, %v655
      %v811 = vsel %vm802, %v778, %v657
      %v812 = vsel %vm802, %v779, %v659
      %v813 = vsel %vm802, %v780, %v661
      %v814 = vsel %vm802, %v781, %v663
      %v815 = vsel %vm802, %v782, %v665
      %v816 = vsel %vm802, %v783, %v667
      %v817 = vsel %vm802, %v784, %v669
      %v818 = vsel %vm802, %v785, %v671
      %v819 = vsel %vm802, %v786, %v673
      %v820 = vsel %vm802, %v787, %v675
      %v821 = vsel %vm802, %v788, %v677
      %v822 = vsel %vm802, %v789, %v679
      %v823 = vsel %vm802, %v790, %v681
      %v824 = vsel %vm802, %v791, %v683
      %v825 = vsel %vm802, %v792, %v685
      %v826 = vsel %vm802, %v793, %v687
      %v827 = vsel %vm802, %v794, %v689
      %v828 = vsel %vm802, %v795, %v691
      %v829 = vsel %vm802, %v796, %v693
      %v830 = vsel %vm802, %v797, %v695
      %v831 = vsel %vm802, %v798, %v697
      %v832 = vsel %vm802, %v799, %v699
      %v833 = vsel %vm802, %v800, %v701
      %v834 = vsel %vm802, %v801, %v703
      %v835 = vld [vmem:[%s238] sm:$0xff]
      %v836 = vld [vmem:[%s238 + $0x8] sm:$0xff]
      %v838 = vlaneseq
      %v839 = vshrl.u32 %v838, 7
      %v840 = vsub.s32 0, %v839
      %v841 = vrot.slane %v310, %v840
      %vm843 = vcmask 130048
      %v845 = vsel %vm843, %v803, 0
      %v848 = vsel %vm843, %v804, 0
      %v851 = vsel %vm843, %v805, 0
      %v854 = vsel %vm843, %v806, 0
      %v857 = vsel %vm843, %v807, 0
      %v860 = vsel %vm843, %v808, 0
      %v863 = vsel %vm843, %v809, 0
      %v866 = vsel %vm843, %v810, 0
      %v869 = vsel %vm843, %v811, 0
      %v872 = vsel %vm843, %v812, 0
      %v875 = vsel %vm843, %v813, 0
      %v878 = vsel %vm843, %v814, 0
      %v881 = vsel %vm843, %v815, 0
      %v884 = vsel %vm843, %v816, 0
      %v887 = vsel %vm843, %v817, 0
      %v890 = vsel %vm843, %v818, 0
      %v893 = vsel %vm843, %v819, 0
      %v896 = vsel %vm843, %v820, 0
      %v899 = vsel %vm843, %v821, 0
      %v902 = vsel %vm843, %v822, 0
      %v905 = vsel %vm843, %v823, 0
      %v908 = vsel %vm843, %v824, 0
      %v911 = vsel %vm843, %v825, 0
      %v914 = vsel %vm843, %v826, 0
      %v917 = vsel %vm843, %v827, 0
      %v920 = vsel %vm843, %v828, 0
      %v923 = vsel %vm843, %v829, 0
      %v926 = vsel %vm843, %v830, 0
      %v929 = vsel %vm843, %v831, 0
      %v932 = vsel %vm843, %v832, 0
      %v935 = vsel %vm843, %v833, 0
      %v938 = vsel %vm843, %v834, 0
      %940 = vmatprep.subr.mxu0 0.0
      %941 = vmatpush1.msra.mxu0 0.0
      %942 = vmatprep.subr.mxu0 0.0
      %943 = vmatpush1.msra.mxu0 0.0
      %944 = vmatprep.subr.mxu0 0.0
      %945 = vmatpush1.msra.mxu0 0.0
      %946 = vmatprep.subr.mxu0 0.0
      %947 = vmatpush1.msra.mxu0 0.0
      %948 = vmatprep.subr.mxu0 0.0
      %949 = vmatpush1.msra.mxu0 0.0
      %950 = vmatprep.subr.mxu0 0.0
      %951 = vmatpush1.msra.mxu0 0.0
      %952 = vmatprep.subr.mxu0 0.0
      %953 = vmatpush1.msra.mxu0 0.0
      %954 = vmatprep.subr.mxu0 0.0
      %955 = vmatpush1.msra.mxu0 0.0
      %956 = vmatprep.subr.mxu0 0.0
      %957 = vmatpush1.msra.mxu0 0.0
      %958 = vmatprep.subr.mxu0 0.0
      %959 = vmatpush1.msra.mxu0 0.0
      %960 = vmatprep.subr.mxu0 0.0
      %961 = vmatpush1.msra.mxu0 0.0
      %962 = vmatprep.subr.mxu0 0.0
      %963 = vmatpush1.msra.mxu0 0.0
      %964 = vmatprep.subr.mxu0 0.0
      %965 = vmatpush1.msra.mxu0 0.0
      %966 = vmatprep.subr.mxu0 0.0
      %967 = vmatpush1.msra.mxu0 0.0
      %968 = vmatprep.subr.mxu0 0.0
      %969 = vmatpush1.msra.mxu0 %v836
      %970 = vmatprep.subr.mxu0 0.0
      %971 = vmatpush1.msra.mxu0 %v835
      %972 = vmatprep.subr.mxu0 0.0
      %973 = vmatpush2.msra.mxu0 0.0
      %974 = vmatprep.subr.mxu0 0.0
      %975 = vmatpush2.msra.mxu0 0.0
      %976 = vmatprep.subr.mxu0 0.0
      %977 = vmatpush2.msra.mxu0 0.0
      %978 = vmatprep.subr.mxu0 0.0
      %979 = vmatpush2.msra.mxu0 0.0
      %980 = vmatprep.subr.mxu0 0.0
      %981 = vmatpush2.msra.mxu0 0.0
      %982 = vmatprep.subr.mxu0 0.0
      %983 = vmatpush2.msra.mxu0 0.0
      %984 = vmatprep.subr.mxu0 0.0
      %985 = vmatpush2.msra.mxu0 0.0
      %986 = vmatprep.subr.mxu0 0.0
      %987 = vmatpush2.msra.mxu0 0.0
      %988 = vmatprep.subr.mxu0 0.0
      %989 = vmatpush2.msra.mxu0 0.0
      %990 = vmatprep.subr.mxu0 0.0
      %991 = vmatpush2.msra.mxu0 0.0
      %992 = vmatprep.subr.mxu0 0.0
      %993 = vmatpush2.msra.mxu0 0.0
      %994 = vmatprep.subr.mxu0 0.0
      %995 = vmatpush2.msra.mxu0 0.0
      %996 = vmatprep.subr.mxu0 0.0
      %997 = vmatpush2.msra.mxu0 0.0
      %998 = vmatprep.subr.mxu0 0.0
      %999 = vmatpush2.msra.mxu0 0.0
      %1000 = vmatprep.subr.mxu0 0.0
      %1001 = vmatpush2.msra.mxu0 0.0
      %1002 = vmatprep.subr.mxu0 0.0
      %1003 = vmatpush2.msra.mxu0 0.0
      %1004 = vmatprep.mubr.f32.mxu0 0.0
      %1005 = vmatmul.mubr.f32.gmra.mxu0 %v845
      %v1006 = vpop.f32.mrf.mxu0
      %v1007 = vadd.f32 %v841, %v1006
      %v1008 = vpop.f32.mrf.mxu0
      %1009 = vmatprep.mubr.f32.mxu0 0.0
      %1010 = vmatmul.mubr.f32.gmra.mxu0 %v848
      %v1011 = vpop.f32.mrf.mxu0
      %v1012 = vadd.f32 %v841, %v1011
      %v1013 = vpop.f32.mrf.mxu0
      %1014 = vmatprep.mubr.f32.mxu0 0.0
      %1015 = vmatmul.mubr.f32.gmra.mxu0 %v851
      %v1016 = vpop.f32.mrf.mxu0
      %v1017 = vadd.f32 %v841, %v1016
      %v1018 = vpop.f32.mrf.mxu0
      %1019 = vmatprep.mubr.f32.mxu0 0.0
      %1020 = vmatmul.mubr.f32.gmra.mxu0 %v854
      %v1021 = vpop.f32.mrf.mxu0
      %v1022 = vadd.f32 %v841, %v1021
      %v1023 = vpop.f32.mrf.mxu0
      %1024 = vmatprep.mubr.f32.mxu0 0.0
      %1025 = vmatmul.mubr.f32.gmra.mxu0 %v857
      %v1026 = vpop.f32.mrf.mxu0
      %v1027 = vadd.f32 %v841, %v1026
      %v1028 = vpop.f32.mrf.mxu0
      %1029 = vmatprep.mubr.f32.mxu0 0.0
      %1030 = vmatmul.mubr.f32.gmra.mxu0 %v860
      %v1031 = vpop.f32.mrf.mxu0
      %v1032 = vadd.f32 %v841, %v1031
      %v1033 = vpop.f32.mrf.mxu0
      %1034 = vmatprep.mubr.f32.mxu0 0.0
      %1035 = vmatmul.mubr.f32.gmra.mxu0 %v863
      %v1036 = vpop.f32.mrf.mxu0
      %v1037 = vadd.f32 %v841, %v1036
      %v1038 = vpop.f32.mrf.mxu0
      %1039 = vmatprep.mubr.f32.mxu0 0.0
      %1040 = vmatmul.mubr.f32.gmra.mxu0 %v866
      %v1041 = vpop.f32.mrf.mxu0
      %v1042 = vadd.f32 %v841, %v1041
      %v1043 = vpop.f32.mrf.mxu0
      %1044 = vmatprep.mubr.f32.mxu0 0.0
      %1045 = vmatmul.mubr.f32.gmra.mxu0 %v869
      %v1046 = vpop.f32.mrf.mxu0
      %v1047 = vadd.f32 %v841, %v1046
      %v1048 = vpop.f32.mrf.mxu0
      %1049 = vmatprep.mubr.f32.mxu0 0.0
      %1050 = vmatmul.mubr.f32.gmra.mxu0 %v872
      %v1051 = vpop.f32.mrf.mxu0
      %v1052 = vadd.f32 %v841, %v1051
      %v1053 = vpop.f32.mrf.mxu0
      %1054 = vmatprep.mubr.f32.mxu0 0.0
      %1055 = vmatmul.mubr.f32.gmra.mxu0 %v875
      %v1056 = vpop.f32.mrf.mxu0
      %v1057 = vadd.f32 %v841, %v1056
      %v1058 = vpop.f32.mrf.mxu0
      %1059 = vmatprep.mubr.f32.mxu0 0.0
      %1060 = vmatmul.mubr.f32.gmra.mxu0 %v878
      %v1061 = vpop.f32.mrf.mxu0
      %v1062 = vadd.f32 %v841, %v1061
      %v1063 = vpop.f32.mrf.mxu0
      %1064 = vmatprep.mubr.f32.mxu0 0.0
      %1065 = vmatmul.mubr.f32.gmra.mxu0 %v881
      %v1066 = vpop.f32.mrf.mxu0
      %v1067 = vadd.f32 %v841, %v1066
      %v1068 = vpop.f32.mrf.mxu0
      %1069 = vmatprep.mubr.f32.mxu0 0.0
      %1070 = vmatmul.mubr.f32.gmra.mxu0 %v884
      %v1071 = vpop.f32.mrf.mxu0
      %v1072 = vadd.f32 %v841, %v1071
      %v1073 = vpop.f32.mrf.mxu0
      %1074 = vmatprep.mubr.f32.mxu0 0.0
      %1075 = vmatmul.mubr.f32.gmra.mxu0 %v887
      %v1076 = vpop.f32.mrf.mxu0
      %v1077 = vadd.f32 %v841, %v1076
      %v1078 = vpop.f32.mrf.mxu0
      %1079 = vmatprep.mubr.f32.mxu0 0.0
      %1080 = vmatmul.mubr.f32.gmra.mxu0 %v890
      %v1081 = vpop.f32.mrf.mxu0
      %v1082 = vadd.f32 %v841, %v1081
      %v1083 = vpop.f32.mrf.mxu0
      %1084 = vmatprep.mubr.f32.mxu0 0.0
      %1085 = vmatmul.mubr.f32.gmra.mxu0 %v893
      %v1086 = vpop.f32.mrf.mxu0
      %v1087 = vadd.f32 %v841, %v1086
      %v1088 = vpop.f32.mrf.mxu0
      %1089 = vmatprep.mubr.f32.mxu0 0.0
      %1090 = vmatmul.mubr.f32.gmra.mxu0 %v896
      %v1091 = vpop.f32.mrf.mxu0
      %v1092 = vadd.f32 %v841, %v1091
      %v1093 = vpop.f32.mrf.mxu0
      %1094 = vmatprep.mubr.f32.mxu0 0.0
      %1095 = vmatmul.mubr.f32.gmra.mxu0 %v899
      %v1096 = vpop.f32.mrf.mxu0
      %v1097 = vadd.f32 %v841, %v1096
      %v1098 = vpop.f32.mrf.mxu0
      %1099 = vmatprep.mubr.f32.mxu0 0.0
      %1100 = vmatmul.mubr.f32.gmra.mxu0 %v902
      %v1101 = vpop.f32.mrf.mxu0
      %v1102 = vadd.f32 %v841, %v1101
      %v1103 = vpop.f32.mrf.mxu0
      %1104 = vmatprep.mubr.f32.mxu0 0.0
      %1105 = vmatmul.mubr.f32.gmra.mxu0 %v905
      %v1106 = vpop.f32.mrf.mxu0
      %v1107 = vadd.f32 %v841, %v1106
      %v1108 = vpop.f32.mrf.mxu0
      %1109 = vmatprep.mubr.f32.mxu0 0.0
      %1110 = vmatmul.mubr.f32.gmra.mxu0 %v908
      %v1111 = vpop.f32.mrf.mxu0
      %v1112 = vadd.f32 %v841, %v1111
      %v1113 = vpop.f32.mrf.mxu0
      %1114 = vmatprep.mubr.f32.mxu0 0.0
      %1115 = vmatmul.mubr.f32.gmra.mxu0 %v911
      %v1116 = vpop.f32.mrf.mxu0
      %v1117 = vadd.f32 %v841, %v1116
      %v1118 = vpop.f32.mrf.mxu0
      %1119 = vmatprep.mubr.f32.mxu0 0.0
      %1120 = vmatmul.mubr.f32.gmra.mxu0 %v914
      %v1121 = vpop.f32.mrf.mxu0
      %v1122 = vadd.f32 %v841, %v1121
      %v1123 = vpop.f32.mrf.mxu0
      %1124 = vmatprep.mubr.f32.mxu0 0.0
      %1125 = vmatmul.mubr.f32.gmra.mxu0 %v917
      %v1126 = vpop.f32.mrf.mxu0
      %v1127 = vadd.f32 %v841, %v1126
      %v1128 = vpop.f32.mrf.mxu0
      %1129 = vmatprep.mubr.f32.mxu0 0.0
      %1130 = vmatmul.mubr.f32.gmra.mxu0 %v920
      %v1131 = vpop.f32.mrf.mxu0
      %v1132 = vadd.f32 %v841, %v1131
      %v1133 = vpop.f32.mrf.mxu0
      %1134 = vmatprep.mubr.f32.mxu0 0.0
      %1135 = vmatmul.mubr.f32.gmra.mxu0 %v923
      %v1136 = vpop.f32.mrf.mxu0
      %v1137 = vadd.f32 %v841, %v1136
      %v1138 = vpop.f32.mrf.mxu0
      %1139 = vmatprep.mubr.f32.mxu0 0.0
      %1140 = vmatmul.mubr.f32.gmra.mxu0 %v926
      %v1141 = vpop.f32.mrf.mxu0
      %v1142 = vadd.f32 %v841, %v1141
      %v1143 = vpop.f32.mrf.mxu0
      %1144 = vmatprep.mubr.f32.mxu0 0.0
      %1145 = vmatmul.mubr.f32.gmra.mxu0 %v929
      %v1146 = vpop.f32.mrf.mxu0
      %v1147 = vadd.f32 %v841, %v1146
      %v1148 = vpop.f32.mrf.mxu0
      %1149 = vmatprep.mubr.f32.mxu0 0.0
      %1150 = vmatmul.mubr.f32.gmra.mxu0 %v932
      %v1151 = vpop.f32.mrf.mxu0
      %v1152 = vadd.f32 %v841, %v1151
      %v1153 = vpop.f32.mrf.mxu0
      %1154 = vmatprep.mubr.f32.mxu0 0.0
      %1155 = vmatmul.mubr.f32.gmra.mxu0 %v935
      %v1156 = vpop.f32.mrf.mxu0
      %v1157 = vadd.f32 %v841, %v1156
      %v1158 = vpop.f32.mrf.mxu0
      %1159 = vmatprep.mubr.f32.mxu0 0.0
      %1160 = vmatmul.mubr.f32.gmra.mxu0 %v938
      %v1161 = vpop.f32.mrf.mxu0
      %v1162 = vadd.f32 %v841, %v1161
      %v1163 = vpop.f32.mrf.mxu0
      %1164 = vdwg.mxu0
      %v1197 = vcombine.high %v1007, %v1007
      %v1199 = vunpack.c.l.s4 1966171168
      %v1200 = vunpack.c.0.s8 %v1199
      %v1201 = vlaneseq
      %v1202 = vshrl.u32 %v1201, 7
      %v1203 = vsub.s32 %v1200, %v1202
      %v1204 = vrot.slane %v1007, %v1203
      %v1206 = vunpack.c.l.s4 1966171168
      %v1207 = vunpack.c.0.s8 %v1206
      %v1208 = vlaneseq
      %v1209 = vshrl.u32 %v1208, 7
      %v1210 = vsub.s32 %v1207, %v1209
      %v1211 = vrot.slane %v1197, %v1210
      %v1212 = vcombine.high %v1204, %v1204
      %v1213 = vcombine.high %v1211, %v1211
      %v1215 = vunpack.c.l.s4 1966171168
      %v1216 = vunpack.c.0.s8 %v1215
      %v1217 = vlaneseq
      %v1218 = vshrl.u32 %v1217, 7
      %v1219 = vsub.s32 %v1216, %v1218
      %v1220 = vrot.slane %v1204, %v1219
      %v1222 = vunpack.c.l.s4 1966171168
      %v1223 = vunpack.c.0.s8 %v1222
      %v1224 = vlaneseq
      %v1225 = vshrl.u32 %v1224, 7
      %v1226 = vsub.s32 %v1223, %v1225
      %v1227 = vrot.slane %v1211, %v1226
      %v1229 = vunpack.c.l.s4 1966171168
      %v1230 = vunpack.c.0.s8 %v1229
      %v1231 = vlaneseq
      %v1232 = vshrl.u32 %v1231, 7
      %v1233 = vsub.s32 %v1230, %v1232
      %v1234 = vrot.slane %v1212, %v1233
      %v1236 = vunpack.c.l.s4 1966171168
      %v1237 = vunpack.c.0.s8 %v1236
      %v1238 = vlaneseq
      %v1239 = vshrl.u32 %v1238, 7
      %v1240 = vsub.s32 %v1237, %v1239
      %v1241 = vrot.slane %v1213, %v1240
      %v1242 = vcombine.high %v1220, %v1220
      %v1243 = vcombine.high %v1227, %v1227
      %v1244 = vcombine.high %v1234, %v1234
      %v1245 = vcombine.high %v1241, %v1241
      %v1246 = vcombine.high %v1012, %v1012
      %v1248 = vunpack.c.l.s4 1966171168
      %v1249 = vunpack.c.0.s8 %v1248
      %v1250 = vlaneseq
      %v1251 = vshrl.u32 %v1250, 7
      %v1252 = vsub.s32 %v1249, %v1251
      %v1253 = vrot.slane %v1012, %v1252
      %v1255 = vunpack.c.l.s4 1966171168
      %v1256 = vunpack.c.0.s8 %v1255
      %v1257 = vlaneseq
      %v1258 = vshrl.u32 %v1257, 7
      %v1259 = vsub.s32 %v1256, %v1258
      %v1260 = vrot.slane %v1246, %v1259
      %v1261 = vcombine.high %v1253, %v1253
      %v1262 = vcombine.high %v1260, %v1260
      %v1264 = vunpack.c.l.s4 1966171168
      %v1265 = vunpack.c.0.s8 %v1264
      %v1266 = vlaneseq
      %v1267 = vshrl.u32 %v1266, 7
      %v1268 = vsub.s32 %v1265, %v1267
      %v1269 = vrot.slane %v1253, %v1268
      %v1271 = vunpack.c.l.s4 1966171168
      %v1272 = vunpack.c.0.s8 %v1271
      %v1273 = vlaneseq
      %v1274 = vshrl.u32 %v1273, 7
      %v1275 = vsub.s32 %v1272, %v1274
      %v1276 = vrot.slane %v1260, %v1275
      %v1278 = vunpack.c.l.s4 1966171168
      %v1279 = vunpack.c.0.s8 %v1278
      %v1280 = vlaneseq
      %v1281 = vshrl.u32 %v1280, 7
      %v1282 = vsub.s32 %v1279, %v1281
      %v1283 = vrot.slane %v1261, %v1282
      %v1285 = vunpack.c.l.s4 1966171168
      %v1286 = vunpack.c.0.s8 %v1285
      %v1287 = vlaneseq
      %v1288 = vshrl.u32 %v1287, 7
      %v1289 = vsub.s32 %v1286, %v1288
      %v1290 = vrot.slane %v1262, %v1289
      %v1291 = vcombine.high %v1269, %v1269
      %v1292 = vcombine.high %v1276, %v1276
      %v1293 = vcombine.high %v1283, %v1283
      %v1294 = vcombine.high %v1290, %v1290
      %v1295 = vcombine.high %v1017, %v1017
      %v1297 = vunpack.c.l.s4 1966171168
      %v1298 = vunpack.c.0.s8 %v1297
      %v1299 = vlaneseq
      %v1300 = vshrl.u32 %v1299, 7
      %v1301 = vsub.s32 %v1298, %v1300
      %v1302 = vrot.slane %v1017, %v1301
      %v1304 = vunpack.c.l.s4 1966171168
      %v1305 = vunpack.c.0.s8 %v1304
      %v1306 = vlaneseq
      %v1307 = vshrl.u32 %v1306, 7
      %v1308 = vsub.s32 %v1305, %v1307
      %v1309 = vrot.slane %v1295, %v1308
      %v1310 = vcombine.high %v1302, %v1302
      %v1311 = vcombine.high %v1309, %v1309
      %v1313 = vunpack.c.l.s4 1966171168
      %v1314 = vunpack.c.0.s8 %v1313
      %v1315 = vlaneseq
      %v1316 = vshrl.u32 %v1315, 7
      %v1317 = vsub.s32 %v1314, %v1316
      %v1318 = vrot.slane %v1302, %v1317
      %v1320 = vunpack.c.l.s4 1966171168
      %v1321 = vunpack.c.0.s8 %v1320
      %v1322 = vlaneseq
      %v1323 = vshrl.u32 %v1322, 7
      %v1324 = vsub.s32 %v1321, %v1323
      %v1325 = vrot.slane %v1309, %v1324
      %v1327 = vunpack.c.l.s4 1966171168
      %v1328 = vunpack.c.0.s8 %v1327
      %v1329 = vlaneseq
      %v1330 = vshrl.u32 %v1329, 7
      %v1331 = vsub.s32 %v1328, %v1330
      %v1332 = vrot.slane %v1310, %v1331
      %v1334 = vunpack.c.l.s4 1966171168
      %v1335 = vunpack.c.0.s8 %v1334
      %v1336 = vlaneseq
      %v1337 = vshrl.u32 %v1336, 7
      %v1338 = vsub.s32 %v1335, %v1337
      %v1339 = vrot.slane %v1311, %v1338
      %v1340 = vcombine.high %v1318, %v1318
      %v1341 = vcombine.high %v1325, %v1325
      %v1342 = vcombine.high %v1332, %v1332
      %v1343 = vcombine.high %v1339, %v1339
      %v1344 = vcombine.high %v1022, %v1022
      %v1346 = vunpack.c.l.s4 1966171168
      %v1347 = vunpack.c.0.s8 %v1346
      %v1348 = vlaneseq
      %v1349 = vshrl.u32 %v1348, 7
      %v1350 = vsub.s32 %v1347, %v1349
      %v1351 = vrot.slane %v1022, %v1350
      %v1353 = vunpack.c.l.s4 1966171168
      %v1354 = vunpack.c.0.s8 %v1353
      %v1355 = vlaneseq
      %v1356 = vshrl.u32 %v1355, 7
      %v1357 = vsub.s32 %v1354, %v1356
      %v1358 = vrot.slane %v1344, %v1357
      %v1359 = vcombine.high %v1351, %v1351
      %v1360 = vcombine.high %v1358, %v1358
      %v1362 = vunpack.c.l.s4 1966171168
      %v1363 = vunpack.c.0.s8 %v1362
      %v1364 = vlaneseq
      %v1365 = vshrl.u32 %v1364, 7
      %v1366 = vsub.s32 %v1363, %v1365
      %v1367 = vrot.slane %v1351, %v1366
      %v1369 = vunpack.c.l.s4 1966171168
      %v1370 = vunpack.c.0.s8 %v1369
      %v1371 = vlaneseq
      %v1372 = vshrl.u32 %v1371, 7
      %v1373 = vsub.s32 %v1370, %v1372
      %v1374 = vrot.slane %v1358, %v1373
      %v1376 = vunpack.c.l.s4 1966171168
      %v1377 = vunpack.c.0.s8 %v1376
      %v1378 = vlaneseq
      %v1379 = vshrl.u32 %v1378, 7
      %v1380 = vsub.s32 %v1377, %v1379
      %v1381 = vrot.slane %v1359, %v1380
      %v1383 = vunpack.c.l.s4 1966171168
      %v1384 = vunpack.c.0.s8 %v1383
      %v1385 = vlaneseq
      %v1386 = vshrl.u32 %v1385, 7
      %v1387 = vsub.s32 %v1384, %v1386
      %v1388 = vrot.slane %v1360, %v1387
      %v1389 = vcombine.high %v1367, %v1367
      %v1390 = vcombine.high %v1374, %v1374
      %v1391 = vcombine.high %v1381, %v1381
      %v1392 = vcombine.high %v1388, %v1388
      %v1393 = vcombine.high %v1027, %v1027
      %v1395 = vunpack.c.l.s4 1966171168
      %v1396 = vunpack.c.0.s8 %v1395
      %v1397 = vlaneseq
      %v1398 = vshrl.u32 %v1397, 7
      %v1399 = vsub.s32 %v1396, %v1398
      %v1400 = vrot.slane %v1027, %v1399
      %v1402 = vunpack.c.l.s4 1966171168
      %v1403 = vunpack.c.0.s8 %v1402
      %v1404 = vlaneseq
      %v1405 = vshrl.u32 %v1404, 7
      %v1406 = vsub.s32 %v1403, %v1405
      %v1407 = vrot.slane %v1393, %v1406
      %v1408 = vcombine.high %v1400, %v1400
      %v1409 = vcombine.high %v1407, %v1407
      %v1411 = vunpack.c.l.s4 1966171168
      %v1412 = vunpack.c.0.s8 %v1411
      %v1413 = vlaneseq
      %v1414 = vshrl.u32 %v1413, 7
      %v1415 = vsub.s32 %v1412, %v1414
      %v1416 = vrot.slane %v1400, %v1415
      %v1418 = vunpack.c.l.s4 1966171168
      %v1419 = vunpack.c.0.s8 %v1418
      %v1420 = vlaneseq
      %v1421 = vshrl.u32 %v1420, 7
      %v1422 = vsub.s32 %v1419, %v1421
      %v1423 = vrot.slane %v1407, %v1422
      %v1425 = vunpack.c.l.s4 1966171168
      %v1426 = vunpack.c.0.s8 %v1425
      %v1427 = vlaneseq
      %v1428 = vshrl.u32 %v1427, 7
      %v1429 = vsub.s32 %v1426, %v1428
      %v1430 = vrot.slane %v1408, %v1429
      %v1432 = vunpack.c.l.s4 1966171168
      %v1433 = vunpack.c.0.s8 %v1432
      %v1434 = vlaneseq
      %v1435 = vshrl.u32 %v1434, 7
      %v1436 = vsub.s32 %v1433, %v1435
      %v1437 = vrot.slane %v1409, %v1436
      %v1438 = vcombine.high %v1416, %v1416
      %v1439 = vcombine.high %v1423, %v1423
      %v1440 = vcombine.high %v1430, %v1430
      %v1441 = vcombine.high %v1437, %v1437
      %v1442 = vcombine.high %v1032, %v1032
      %v1444 = vunpack.c.l.s4 1966171168
      %v1445 = vunpack.c.0.s8 %v1444
      %v1446 = vlaneseq
      %v1447 = vshrl.u32 %v1446, 7
      %v1448 = vsub.s32 %v1445, %v1447
      %v1449 = vrot.slane %v1032, %v1448
      %v1451 = vunpack.c.l.s4 1966171168
      %v1452 = vunpack.c.0.s8 %v1451
      %v1453 = vlaneseq
      %v1454 = vshrl.u32 %v1453, 7
      %v1455 = vsub.s32 %v1452, %v1454
      %v1456 = vrot.slane %v1442, %v1455
      %v1457 = vcombine.high %v1449, %v1449
      %v1458 = vcombine.high %v1456, %v1456
      %v1460 = vunpack.c.l.s4 1966171168
      %v1461 = vunpack.c.0.s8 %v1460
      %v1462 = vlaneseq
      %v1463 = vshrl.u32 %v1462, 7
      %v1464 = vsub.s32 %v1461, %v1463
      %v1465 = vrot.slane %v1449, %v1464
      %v1467 = vunpack.c.l.s4 1966171168
      %v1468 = vunpack.c.0.s8 %v1467
      %v1469 = vlaneseq
      %v1470 = vshrl.u32 %v1469, 7
      %v1471 = vsub.s32 %v1468, %v1470
      %v1472 = vrot.slane %v1456, %v1471
      %v1474 = vunpack.c.l.s4 1966171168
      %v1475 = vunpack.c.0.s8 %v1474
      %v1476 = vlaneseq
      %v1477 = vshrl.u32 %v1476, 7
      %v1478 = vsub.s32 %v1475, %v1477
      %v1479 = vrot.slane %v1457, %v1478
      %v1481 = vunpack.c.l.s4 1966171168
      %v1482 = vunpack.c.0.s8 %v1481
      %v1483 = vlaneseq
      %v1484 = vshrl.u32 %v1483, 7
      %v1485 = vsub.s32 %v1482, %v1484
      %v1486 = vrot.slane %v1458, %v1485
      %v1487 = vcombine.high %v1465, %v1465
      %v1488 = vcombine.high %v1472, %v1472
      %v1489 = vcombine.high %v1479, %v1479
      %v1490 = vcombine.high %v1486, %v1486
      %v1491 = vcombine.high %v1037, %v1037
      %v1493 = vunpack.c.l.s4 1966171168
      %v1494 = vunpack.c.0.s8 %v1493
      %v1495 = vlaneseq
      %v1496 = vshrl.u32 %v1495, 7
      %v1497 = vsub.s32 %v1494, %v1496
      %v1498 = vrot.slane %v1037, %v1497
      %v1500 = vunpack.c.l.s4 1966171168
      %v1501 = vunpack.c.0.s8 %v1500
      %v1502 = vlaneseq
      %v1503 = vshrl.u32 %v1502, 7
      %v1504 = vsub.s32 %v1501, %v1503
      %v1505 = vrot.slane %v1491, %v1504
      %v1506 = vcombine.high %v1498, %v1498
      %v1507 = vcombine.high %v1505, %v1505
      %v1509 = vunpack.c.l.s4 1966171168
      %v1510 = vunpack.c.0.s8 %v1509
      %v1511 = vlaneseq
      %v1512 = vshrl.u32 %v1511, 7
      %v1513 = vsub.s32 %v1510, %v1512
      %v1514 = vrot.slane %v1498, %v1513
      %v1516 = vunpack.c.l.s4 1966171168
      %v1517 = vunpack.c.0.s8 %v1516
      %v1518 = vlaneseq
      %v1519 = vshrl.u32 %v1518, 7
      %v1520 = vsub.s32 %v1517, %v1519
      %v1521 = vrot.slane %v1505, %v1520
      %v1523 = vunpack.c.l.s4 1966171168
      %v1524 = vunpack.c.0.s8 %v1523
      %v1525 = vlaneseq
      %v1526 = vshrl.u32 %v1525, 7
      %v1527 = vsub.s32 %v1524, %v1526
      %v1528 = vrot.slane %v1506, %v1527
      %v1530 = vunpack.c.l.s4 1966171168
      %v1531 = vunpack.c.0.s8 %v1530
      %v1532 = vlaneseq
      %v1533 = vshrl.u32 %v1532, 7
      %v1534 = vsub.s32 %v1531, %v1533
      %v1535 = vrot.slane %v1507, %v1534
      %v1536 = vcombine.high %v1514, %v1514
      %v1537 = vcombine.high %v1521, %v1521
      %v1538 = vcombine.high %v1528, %v1528
      %v1539 = vcombine.high %v1535, %v1535
      %v1540 = vcombine.high %v1042, %v1042
      %v1542 = vunpack.c.l.s4 1966171168
      %v1543 = vunpack.c.0.s8 %v1542
      %v1544 = vlaneseq
      %v1545 = vshrl.u32 %v1544, 7
      %v1546 = vsub.s32 %v1543, %v1545
      %v1547 = vrot.slane %v1042, %v1546
      %v1549 = vunpack.c.l.s4 1966171168
      %v1550 = vunpack.c.0.s8 %v1549
      %v1551 = vlaneseq
      %v1552 = vshrl.u32 %v1551, 7
      %v1553 = vsub.s32 %v1550, %v1552
      %v1554 = vrot.slane %v1540, %v1553
      %v1555 = vcombine.high %v1547, %v1547
      %v1556 = vcombine.high %v1554, %v1554
      %v1558 = vunpack.c.l.s4 1966171168
      %v1559 = vunpack.c.0.s8 %v1558
      %v1560 = vlaneseq
      %v1561 = vshrl.u32 %v1560, 7
      %v1562 = vsub.s32 %v1559, %v1561
      %v1563 = vrot.slane %v1547, %v1562
      %v1565 = vunpack.c.l.s4 1966171168
      %v1566 = vunpack.c.0.s8 %v1565
      %v1567 = vlaneseq
      %v1568 = vshrl.u32 %v1567, 7
      %v1569 = vsub.s32 %v1566, %v1568
      %v1570 = vrot.slane %v1554, %v1569
      %v1572 = vunpack.c.l.s4 1966171168
      %v1573 = vunpack.c.0.s8 %v1572
      %v1574 = vlaneseq
      %v1575 = vshrl.u32 %v1574, 7
      %v1576 = vsub.s32 %v1573, %v1575
      %v1577 = vrot.slane %v1555, %v1576
      %v1579 = vunpack.c.l.s4 1966171168
      %v1580 = vunpack.c.0.s8 %v1579
      %v1581 = vlaneseq
      %v1582 = vshrl.u32 %v1581, 7
      %v1583 = vsub.s32 %v1580, %v1582
      %v1584 = vrot.slane %v1556, %v1583
      %v1585 = vcombine.high %v1563, %v1563
      %v1586 = vcombine.high %v1570, %v1570
      %v1587 = vcombine.high %v1577, %v1577
      %v1588 = vcombine.high %v1584, %v1584
      %v1589 = vcombine.high %v1047, %v1047
      %v1591 = vunpack.c.l.s4 1966171168
      %v1592 = vunpack.c.0.s8 %v1591
      %v1593 = vlaneseq
      %v1594 = vshrl.u32 %v1593, 7
      %v1595 = vsub.s32 %v1592, %v1594
      %v1596 = vrot.slane %v1047, %v1595
      %v1598 = vunpack.c.l.s4 1966171168
      %v1599 = vunpack.c.0.s8 %v1598
      %v1600 = vlaneseq
      %v1601 = vshrl.u32 %v1600, 7
      %v1602 = vsub.s32 %v1599, %v1601
      %v1603 = vrot.slane %v1589, %v1602
      %v1604 = vcombine.high %v1596, %v1596
      %v1605 = vcombine.high %v1603, %v1603
      %v1607 = vunpack.c.l.s4 1966171168
      %v1608 = vunpack.c.0.s8 %v1607
      %v1609 = vlaneseq
      %v1610 = vshrl.u32 %v1609, 7
      %v1611 = vsub.s32 %v1608, %v1610
      %v1612 = vrot.slane %v1596, %v1611
      %v1614 = vunpack.c.l.s4 1966171168
      %v1615 = vunpack.c.0.s8 %v1614
      %v1616 = vlaneseq
      %v1617 = vshrl.u32 %v1616, 7
      %v1618 = vsub.s32 %v1615, %v1617
      %v1619 = vrot.slane %v1603, %v1618
      %v1621 = vunpack.c.l.s4 1966171168
      %v1622 = vunpack.c.0.s8 %v1621
      %v1623 = vlaneseq
      %v1624 = vshrl.u32 %v1623, 7
      %v1625 = vsub.s32 %v1622, %v1624
      %v1626 = vrot.slane %v1604, %v1625
      %v1628 = vunpack.c.l.s4 1966171168
      %v1629 = vunpack.c.0.s8 %v1628
      %v1630 = vlaneseq
      %v1631 = vshrl.u32 %v1630, 7
      %v1632 = vsub.s32 %v1629, %v1631
      %v1633 = vrot.slane %v1605, %v1632
      %v1634 = vcombine.high %v1612, %v1612
      %v1635 = vcombine.high %v1619, %v1619
      %v1636 = vcombine.high %v1626, %v1626
      %v1637 = vcombine.high %v1633, %v1633
      %v1638 = vcombine.high %v1052, %v1052
      %v1640 = vunpack.c.l.s4 1966171168
      %v1641 = vunpack.c.0.s8 %v1640
      %v1642 = vlaneseq
      %v1643 = vshrl.u32 %v1642, 7
      %v1644 = vsub.s32 %v1641, %v1643
      %v1645 = vrot.slane %v1052, %v1644
      %v1647 = vunpack.c.l.s4 1966171168
      %v1648 = vunpack.c.0.s8 %v1647
      %v1649 = vlaneseq
      %v1650 = vshrl.u32 %v1649, 7
      %v1651 = vsub.s32 %v1648, %v1650
      %v1652 = vrot.slane %v1638, %v1651
      %v1653 = vcombine.high %v1645, %v1645
      %v1654 = vcombine.high %v1652, %v1652
      %v1656 = vunpack.c.l.s4 1966171168
      %v1657 = vunpack.c.0.s8 %v1656
      %v1658 = vlaneseq
      %v1659 = vshrl.u32 %v1658, 7
      %v1660 = vsub.s32 %v1657, %v1659
      %v1661 = vrot.slane %v1645, %v1660
      %v1663 = vunpack.c.l.s4 1966171168
      %v1664 = vunpack.c.0.s8 %v1663
      %v1665 = vlaneseq
      %v1666 = vshrl.u32 %v1665, 7
      %v1667 = vsub.s32 %v1664, %v1666
      %v1668 = vrot.slane %v1652, %v1667
      %v1670 = vunpack.c.l.s4 1966171168
      %v1671 = vunpack.c.0.s8 %v1670
      %v1672 = vlaneseq
      %v1673 = vshrl.u32 %v1672, 7
      %v1674 = vsub.s32 %v1671, %v1673
      %v1675 = vrot.slane %v1653, %v1674
      %v1677 = vunpack.c.l.s4 1966171168
      %v1678 = vunpack.c.0.s8 %v1677
      %v1679 = vlaneseq
      %v1680 = vshrl.u32 %v1679, 7
      %v1681 = vsub.s32 %v1678, %v1680
      %v1682 = vrot.slane %v1654, %v1681
      %v1683 = vcombine.high %v1661, %v1661
      %v1684 = vcombine.high %v1668, %v1668
      %v1685 = vcombine.high %v1675, %v1675
      %v1686 = vcombine.high %v1682, %v1682
      %v1687 = vcombine.high %v1057, %v1057
      %v1689 = vunpack.c.l.s4 1966171168
      %v1690 = vunpack.c.0.s8 %v1689
      %v1691 = vlaneseq
      %v1692 = vshrl.u32 %v1691, 7
      %v1693 = vsub.s32 %v1690, %v1692
      %v1694 = vrot.slane %v1057, %v1693
      %v1696 = vunpack.c.l.s4 1966171168
      %v1697 = vunpack.c.0.s8 %v1696
      %v1698 = vlaneseq
      %v1699 = vshrl.u32 %v1698, 7
      %v1700 = vsub.s32 %v1697, %v1699
      %v1701 = vrot.slane %v1687, %v1700
      %v1702 = vcombine.high %v1694, %v1694
      %v1703 = vcombine.high %v1701, %v1701
      %v1705 = vunpack.c.l.s4 1966171168
      %v1706 = vunpack.c.0.s8 %v1705
      %v1707 = vlaneseq
      %v1708 = vshrl.u32 %v1707, 7
      %v1709 = vsub.s32 %v1706, %v1708
      %v1710 = vrot.slane %v1694, %v1709
      %v1712 = vunpack.c.l.s4 1966171168
      %v1713 = vunpack.c.0.s8 %v1712
      %v1714 = vlaneseq
      %v1715 = vshrl.u32 %v1714, 7
      %v1716 = vsub.s32 %v1713, %v1715
      %v1717 = vrot.slane %v1701, %v1716
      %v1719 = vunpack.c.l.s4 1966171168
      %v1720 = vunpack.c.0.s8 %v1719
      %v1721 = vlaneseq
      %v1722 = vshrl.u32 %v1721, 7
      %v1723 = vsub.s32 %v1720, %v1722
      %v1724 = vrot.slane %v1702, %v1723
      %v1726 = vunpack.c.l.s4 1966171168
      %v1727 = vunpack.c.0.s8 %v1726
      %v1728 = vlaneseq
      %v1729 = vshrl.u32 %v1728, 7
      %v1730 = vsub.s32 %v1727, %v1729
      %v1731 = vrot.slane %v1703, %v1730
      %v1732 = vcombine.high %v1710, %v1710
      %v1733 = vcombine.high %v1717, %v1717
      %v1734 = vcombine.high %v1724, %v1724
      %v1735 = vcombine.high %v1731, %v1731
      %v1736 = vcombine.high %v1062, %v1062
      %v1738 = vunpack.c.l.s4 1966171168
      %v1739 = vunpack.c.0.s8 %v1738
      %v1740 = vlaneseq
      %v1741 = vshrl.u32 %v1740, 7
      %v1742 = vsub.s32 %v1739, %v1741
      %v1743 = vrot.slane %v1062, %v1742
      %v1745 = vunpack.c.l.s4 1966171168
      %v1746 = vunpack.c.0.s8 %v1745
      %v1747 = vlaneseq
      %v1748 = vshrl.u32 %v1747, 7
      %v1749 = vsub.s32 %v1746, %v1748
      %v1750 = vrot.slane %v1736, %v1749
      %v1751 = vcombine.high %v1743, %v1743
      %v1752 = vcombine.high %v1750, %v1750
      %v1754 = vunpack.c.l.s4 1966171168
      %v1755 = vunpack.c.0.s8 %v1754
      %v1756 = vlaneseq
      %v1757 = vshrl.u32 %v1756, 7
      %v1758 = vsub.s32 %v1755, %v1757
      %v1759 = vrot.slane %v1743, %v1758
      %v1761 = vunpack.c.l.s4 1966171168
      %v1762 = vunpack.c.0.s8 %v1761
      %v1763 = vlaneseq
      %v1764 = vshrl.u32 %v1763, 7
      %v1765 = vsub.s32 %v1762, %v1764
      %v1766 = vrot.slane %v1750, %v1765
      %v1768 = vunpack.c.l.s4 1966171168
      %v1769 = vunpack.c.0.s8 %v1768
      %v1770 = vlaneseq
      %v1771 = vshrl.u32 %v1770, 7
      %v1772 = vsub.s32 %v1769, %v1771
      %v1773 = vrot.slane %v1751, %v1772
      %v1775 = vunpack.c.l.s4 1966171168
      %v1776 = vunpack.c.0.s8 %v1775
      %v1777 = vlaneseq
      %v1778 = vshrl.u32 %v1777, 7
      %v1779 = vsub.s32 %v1776, %v1778
      %v1780 = vrot.slane %v1752, %v1779
      %v1781 = vcombine.high %v1759, %v1759
      %v1782 = vcombine.high %v1766, %v1766
      %v1783 = vcombine.high %v1773, %v1773
      %v1784 = vcombine.high %v1780, %v1780
      %v1785 = vcombine.high %v1067, %v1067
      %v1787 = vunpack.c.l.s4 1966171168
      %v1788 = vunpack.c.0.s8 %v1787
      %v1789 = vlaneseq
      %v1790 = vshrl.u32 %v1789, 7
      %v1791 = vsub.s32 %v1788, %v1790
      %v1792 = vrot.slane %v1067, %v1791
      %v1794 = vunpack.c.l.s4 1966171168
      %v1795 = vunpack.c.0.s8 %v1794
      %v1796 = vlaneseq
      %v1797 = vshrl.u32 %v1796, 7
      %v1798 = vsub.s32 %v1795, %v1797
      %v1799 = vrot.slane %v1785, %v1798
      %v1800 = vcombine.high %v1792, %v1792
      %v1801 = vcombine.high %v1799, %v1799
      %v1803 = vunpack.c.l.s4 1966171168
      %v1804 = vunpack.c.0.s8 %v1803
      %v1805 = vlaneseq
      %v1806 = vshrl.u32 %v1805, 7
      %v1807 = vsub.s32 %v1804, %v1806
      %v1808 = vrot.slane %v1792, %v1807
      %v1810 = vunpack.c.l.s4 1966171168
      %v1811 = vunpack.c.0.s8 %v1810
      %v1812 = vlaneseq
      %v1813 = vshrl.u32 %v1812, 7
      %v1814 = vsub.s32 %v1811, %v1813
      %v1815 = vrot.slane %v1799, %v1814
      %v1817 = vunpack.c.l.s4 1966171168
      %v1818 = vunpack.c.0.s8 %v1817
      %v1819 = vlaneseq
      %v1820 = vshrl.u32 %v1819, 7
      %v1821 = vsub.s32 %v1818, %v1820
      %v1822 = vrot.slane %v1800, %v1821
      %v1824 = vunpack.c.l.s4 1966171168
      %v1825 = vunpack.c.0.s8 %v1824
      %v1826 = vlaneseq
      %v1827 = vshrl.u32 %v1826, 7
      %v1828 = vsub.s32 %v1825, %v1827
      %v1829 = vrot.slane %v1801, %v1828
      %v1830 = vcombine.high %v1808, %v1808
      %v1831 = vcombine.high %v1815, %v1815
      %v1832 = vcombine.high %v1822, %v1822
      %v1833 = vcombine.high %v1829, %v1829
      %v1834 = vcombine.high %v1072, %v1072
      %v1836 = vunpack.c.l.s4 1966171168
      %v1837 = vunpack.c.0.s8 %v1836
      %v1838 = vlaneseq
      %v1839 = vshrl.u32 %v1838, 7
      %v1840 = vsub.s32 %v1837, %v1839
      %v1841 = vrot.slane %v1072, %v1840
      %v1843 = vunpack.c.l.s4 1966171168
      %v1844 = vunpack.c.0.s8 %v1843
      %v1845 = vlaneseq
      %v1846 = vshrl.u32 %v1845, 7
      %v1847 = vsub.s32 %v1844, %v1846
      %v1848 = vrot.slane %v1834, %v1847
      %v1849 = vcombine.high %v1841, %v1841
      %v1850 = vcombine.high %v1848, %v1848
      %v1852 = vunpack.c.l.s4 1966171168
      %v1853 = vunpack.c.0.s8 %v1852
      %v1854 = vlaneseq
      %v1855 = vshrl.u32 %v1854, 7
      %v1856 = vsub.s32 %v1853, %v1855
      %v1857 = vrot.slane %v1841, %v1856
      %v1859 = vunpack.c.l.s4 1966171168
      %v1860 = vunpack.c.0.s8 %v1859
      %v1861 = vlaneseq
      %v1862 = vshrl.u32 %v1861, 7
      %v1863 = vsub.s32 %v1860, %v1862
      %v1864 = vrot.slane %v1848, %v1863
      %v1866 = vunpack.c.l.s4 1966171168
      %v1867 = vunpack.c.0.s8 %v1866
      %v1868 = vlaneseq
      %v1869 = vshrl.u32 %v1868, 7
      %v1870 = vsub.s32 %v1867, %v1869
      %v1871 = vrot.slane %v1849, %v1870
      %v1873 = vunpack.c.l.s4 1966171168
      %v1874 = vunpack.c.0.s8 %v1873
      %v1875 = vlaneseq
      %v1876 = vshrl.u32 %v1875, 7
      %v1877 = vsub.s32 %v1874, %v1876
      %v1878 = vrot.slane %v1850, %v1877
      %v1879 = vcombine.high %v1857, %v1857
      %v1880 = vcombine.high %v1864, %v1864
      %v1881 = vcombine.high %v1871, %v1871
      %v1882 = vcombine.high %v1878, %v1878
      %v1883 = vcombine.high %v1077, %v1077
      %v1885 = vunpack.c.l.s4 1966171168
      %v1886 = vunpack.c.0.s8 %v1885
      %v1887 = vlaneseq
      %v1888 = vshrl.u32 %v1887, 7
      %v1889 = vsub.s32 %v1886, %v1888
      %v1890 = vrot.slane %v1077, %v1889
      %v1892 = vunpack.c.l.s4 1966171168
      %v1893 = vunpack.c.0.s8 %v1892
      %v1894 = vlaneseq
      %v1895 = vshrl.u32 %v1894, 7
      %v1896 = vsub.s32 %v1893, %v1895
      %v1897 = vrot.slane %v1883, %v1896
      %v1898 = vcombine.high %v1890, %v1890
      %v1899 = vcombine.high %v1897, %v1897
      %v1901 = vunpack.c.l.s4 1966171168
      %v1902 = vunpack.c.0.s8 %v1901
      %v1903 = vlaneseq
      %v1904 = vshrl.u32 %v1903, 7
      %v1905 = vsub.s32 %v1902, %v1904
      %v1906 = vrot.slane %v1890, %v1905
      %v1908 = vunpack.c.l.s4 1966171168
      %v1909 = vunpack.c.0.s8 %v1908
      %v1910 = vlaneseq
      %v1911 = vshrl.u32 %v1910, 7
      %v1912 = vsub.s32 %v1909, %v1911
      %v1913 = vrot.slane %v1897, %v1912
      %v1915 = vunpack.c.l.s4 1966171168
      %v1916 = vunpack.c.0.s8 %v1915
      %v1917 = vlaneseq
      %v1918 = vshrl.u32 %v1917, 7
      %v1919 = vsub.s32 %v1916, %v1918
      %v1920 = vrot.slane %v1898, %v1919
      %v1922 = vunpack.c.l.s4 1966171168
      %v1923 = vunpack.c.0.s8 %v1922
      %v1924 = vlaneseq
      %v1925 = vshrl.u32 %v1924, 7
      %v1926 = vsub.s32 %v1923, %v1925
      %v1927 = vrot.slane %v1899, %v1926
      %v1928 = vcombine.high %v1906, %v1906
      %v1929 = vcombine.high %v1913, %v1913
      %v1930 = vcombine.high %v1920, %v1920
      %v1931 = vcombine.high %v1927, %v1927
      %v1932 = vcombine.high %v1082, %v1082
      %v1934 = vunpack.c.l.s4 1966171168
      %v1935 = vunpack.c.0.s8 %v1934
      %v1936 = vlaneseq
      %v1937 = vshrl.u32 %v1936, 7
      %v1938 = vsub.s32 %v1935, %v1937
      %v1939 = vrot.slane %v1082, %v1938
      %v1941 = vunpack.c.l.s4 1966171168
      %v1942 = vunpack.c.0.s8 %v1941
      %v1943 = vlaneseq
      %v1944 = vshrl.u32 %v1943, 7
      %v1945 = vsub.s32 %v1942, %v1944
      %v1946 = vrot.slane %v1932, %v1945
      %v1947 = vcombine.high %v1939, %v1939
      %v1948 = vcombine.high %v1946, %v1946
      %v1950 = vunpack.c.l.s4 1966171168
      %v1951 = vunpack.c.0.s8 %v1950
      %v1952 = vlaneseq
      %v1953 = vshrl.u32 %v1952, 7
      %v1954 = vsub.s32 %v1951, %v1953
      %v1955 = vrot.slane %v1939, %v1954
      %v1957 = vunpack.c.l.s4 1966171168
      %v1958 = vunpack.c.0.s8 %v1957
      %v1959 = vlaneseq
      %v1960 = vshrl.u32 %v1959, 7
      %v1961 = vsub.s32 %v1958, %v1960
      %v1962 = vrot.slane %v1946, %v1961
      %v1964 = vunpack.c.l.s4 1966171168
      %v1965 = vunpack.c.0.s8 %v1964
      %v1966 = vlaneseq
      %v1967 = vshrl.u32 %v1966, 7
      %v1968 = vsub.s32 %v1965, %v1967
      %v1969 = vrot.slane %v1947, %v1968
      %v1971 = vunpack.c.l.s4 1966171168
      %v1972 = vunpack.c.0.s8 %v1971
      %v1973 = vlaneseq
      %v1974 = vshrl.u32 %v1973, 7
      %v1975 = vsub.s32 %v1972, %v1974
      %v1976 = vrot.slane %v1948, %v1975
      %v1977 = vcombine.high %v1955, %v1955
      %v1978 = vcombine.high %v1962, %v1962
      %v1979 = vcombine.high %v1969, %v1969
      %v1980 = vcombine.high %v1976, %v1976
      %v1981 = vcombine.high %v1087, %v1087
      %v1983 = vunpack.c.l.s4 1966171168
      %v1984 = vunpack.c.0.s8 %v1983
      %v1985 = vlaneseq
      %v1986 = vshrl.u32 %v1985, 7
      %v1987 = vsub.s32 %v1984, %v1986
      %v1988 = vrot.slane %v1087, %v1987
      %v1990 = vunpack.c.l.s4 1966171168
      %v1991 = vunpack.c.0.s8 %v1990
      %v1992 = vlaneseq
      %v1993 = vshrl.u32 %v1992, 7
      %v1994 = vsub.s32 %v1991, %v1993
      %v1995 = vrot.slane %v1981, %v1994
      %v1996 = vcombine.high %v1988, %v1988
      %v1997 = vcombine.high %v1995, %v1995
      %v1999 = vunpack.c.l.s4 1966171168
      %v2000 = vunpack.c.0.s8 %v1999
      %v2001 = vlaneseq
      %v2002 = vshrl.u32 %v2001, 7
      %v2003 = vsub.s32 %v2000, %v2002
      %v2004 = vrot.slane %v1988, %v2003
      %v2006 = vunpack.c.l.s4 1966171168
      %v2007 = vunpack.c.0.s8 %v2006
      %v2008 = vlaneseq
      %v2009 = vshrl.u32 %v2008, 7
      %v2010 = vsub.s32 %v2007, %v2009
      %v2011 = vrot.slane %v1995, %v2010
      %v2013 = vunpack.c.l.s4 1966171168
      %v2014 = vunpack.c.0.s8 %v2013
      %v2015 = vlaneseq
      %v2016 = vshrl.u32 %v2015, 7
      %v2017 = vsub.s32 %v2014, %v2016
      %v2018 = vrot.slane %v1996, %v2017
      %v2020 = vunpack.c.l.s4 1966171168
      %v2021 = vunpack.c.0.s8 %v2020
      %v2022 = vlaneseq
      %v2023 = vshrl.u32 %v2022, 7
      %v2024 = vsub.s32 %v2021, %v2023
      %v2025 = vrot.slane %v1997, %v2024
      %v2026 = vcombine.high %v2004, %v2004
      %v2027 = vcombine.high %v2011, %v2011
      %v2028 = vcombine.high %v2018, %v2018
      %v2029 = vcombine.high %v2025, %v2025
      %v2030 = vcombine.high %v1092, %v1092
      %v2032 = vunpack.c.l.s4 1966171168
      %v2033 = vunpack.c.0.s8 %v2032
      %v2034 = vlaneseq
      %v2035 = vshrl.u32 %v2034, 7
      %v2036 = vsub.s32 %v2033, %v2035
      %v2037 = vrot.slane %v1092, %v2036
      %v2039 = vunpack.c.l.s4 1966171168
      %v2040 = vunpack.c.0.s8 %v2039
      %v2041 = vlaneseq
      %v2042 = vshrl.u32 %v2041, 7
      %v2043 = vsub.s32 %v2040, %v2042
      %v2044 = vrot.slane %v2030, %v2043
      %v2045 = vcombine.high %v2037, %v2037
      %v2046 = vcombine.high %v2044, %v2044
      %v2048 = vunpack.c.l.s4 1966171168
      %v2049 = vunpack.c.0.s8 %v2048
      %v2050 = vlaneseq
      %v2051 = vshrl.u32 %v2050, 7
      %v2052 = vsub.s32 %v2049, %v2051
      %v2053 = vrot.slane %v2037, %v2052
      %v2055 = vunpack.c.l.s4 1966171168
      %v2056 = vunpack.c.0.s8 %v2055
      %v2057 = vlaneseq
      %v2058 = vshrl.u32 %v2057, 7
      %v2059 = vsub.s32 %v2056, %v2058
      %v2060 = vrot.slane %v2044, %v2059
      %v2062 = vunpack.c.l.s4 1966171168
      %v2063 = vunpack.c.0.s8 %v2062
      %v2064 = vlaneseq
      %v2065 = vshrl.u32 %v2064, 7
      %v2066 = vsub.s32 %v2063, %v2065
      %v2067 = vrot.slane %v2045, %v2066
      %v2069 = vunpack.c.l.s4 1966171168
      %v2070 = vunpack.c.0.s8 %v2069
      %v2071 = vlaneseq
      %v2072 = vshrl.u32 %v2071, 7
      %v2073 = vsub.s32 %v2070, %v2072
      %v2074 = vrot.slane %v2046, %v2073
      %v2075 = vcombine.high %v2053, %v2053
      %v2076 = vcombine.high %v2060, %v2060
      %v2077 = vcombine.high %v2067, %v2067
      %v2078 = vcombine.high %v2074, %v2074
      %v2079 = vcombine.high %v1097, %v1097
      %v2081 = vunpack.c.l.s4 1966171168
      %v2082 = vunpack.c.0.s8 %v2081
      %v2083 = vlaneseq
      %v2084 = vshrl.u32 %v2083, 7
      %v2085 = vsub.s32 %v2082, %v2084
      %v2086 = vrot.slane %v1097, %v2085
      %v2088 = vunpack.c.l.s4 1966171168
      %v2089 = vunpack.c.0.s8 %v2088
      %v2090 = vlaneseq
      %v2091 = vshrl.u32 %v2090, 7
      %v2092 = vsub.s32 %v2089, %v2091
      %v2093 = vrot.slane %v2079, %v2092
      %v2094 = vcombine.high %v2086, %v2086
      %v2095 = vcombine.high %v2093, %v2093
      %v2097 = vunpack.c.l.s4 1966171168
      %v2098 = vunpack.c.0.s8 %v2097
      %v2099 = vlaneseq
      %v2100 = vshrl.u32 %v2099, 7
      %v2101 = vsub.s32 %v2098, %v2100
      %v2102 = vrot.slane %v2086, %v2101
      %v2104 = vunpack.c.l.s4 1966171168
      %v2105 = vunpack.c.0.s8 %v2104
      %v2106 = vlaneseq
      %v2107 = vshrl.u32 %v2106, 7
      %v2108 = vsub.s32 %v2105, %v2107
      %v2109 = vrot.slane %v2093, %v2108
      %v2111 = vunpack.c.l.s4 1966171168
      %v2112 = vunpack.c.0.s8 %v2111
      %v2113 = vlaneseq
      %v2114 = vshrl.u32 %v2113, 7
      %v2115 = vsub.s32 %v2112, %v2114
      %v2116 = vrot.slane %v2094, %v2115
      %v2118 = vunpack.c.l.s4 1966171168
      %v2119 = vunpack.c.0.s8 %v2118
      %v2120 = vlaneseq
      %v2121 = vshrl.u32 %v2120, 7
      %v2122 = vsub.s32 %v2119, %v2121
      %v2123 = vrot.slane %v2095, %v2122
      %v2124 = vcombine.high %v2102, %v2102
      %v2125 = vcombine.high %v2109, %v2109
      %v2126 = vcombine.high %v2116, %v2116
      %v2127 = vcombine.high %v2123, %v2123
      %v2128 = vcombine.high %v1102, %v1102
      %v2130 = vunpack.c.l.s4 1966171168
      %v2131 = vunpack.c.0.s8 %v2130
      %v2132 = vlaneseq
      %v2133 = vshrl.u32 %v2132, 7
      %v2134 = vsub.s32 %v2131, %v2133
      %v2135 = vrot.slane %v1102, %v2134
      %v2137 = vunpack.c.l.s4 1966171168
      %v2138 = vunpack.c.0.s8 %v2137
      %v2139 = vlaneseq
      %v2140 = vshrl.u32 %v2139, 7
      %v2141 = vsub.s32 %v2138, %v2140
      %v2142 = vrot.slane %v2128, %v2141
      %v2143 = vcombine.high %v2135, %v2135
      %v2144 = vcombine.high %v2142, %v2142
      %v2146 = vunpack.c.l.s4 1966171168
      %v2147 = vunpack.c.0.s8 %v2146
      %v2148 = vlaneseq
      %v2149 = vshrl.u32 %v2148, 7
      %v2150 = vsub.s32 %v2147, %v2149
      %v2151 = vrot.slane %v2135, %v2150
      %v2153 = vunpack.c.l.s4 1966171168
      %v2154 = vunpack.c.0.s8 %v2153
      %v2155 = vlaneseq
      %v2156 = vshrl.u32 %v2155, 7
      %v2157 = vsub.s32 %v2154, %v2156
      %v2158 = vrot.slane %v2142, %v2157
      %v2160 = vunpack.c.l.s4 1966171168
      %v2161 = vunpack.c.0.s8 %v2160
      %v2162 = vlaneseq
      %v2163 = vshrl.u32 %v2162, 7
      %v2164 = vsub.s32 %v2161, %v2163
      %v2165 = vrot.slane %v2143, %v2164
      %v2167 = vunpack.c.l.s4 1966171168
      %v2168 = vunpack.c.0.s8 %v2167
      %v2169 = vlaneseq
      %v2170 = vshrl.u32 %v2169, 7
      %v2171 = vsub.s32 %v2168, %v2170
      %v2172 = vrot.slane %v2144, %v2171
      %v2173 = vcombine.high %v2151, %v2151
      %v2174 = vcombine.high %v2158, %v2158
      %v2175 = vcombine.high %v2165, %v2165
      %v2176 = vcombine.high %v2172, %v2172
      %v2177 = vcombine.high %v1107, %v1107
      %v2179 = vunpack.c.l.s4 1966171168
      %v2180 = vunpack.c.0.s8 %v2179
      %v2181 = vlaneseq
      %v2182 = vshrl.u32 %v2181, 7
      %v2183 = vsub.s32 %v2180, %v2182
      %v2184 = vrot.slane %v1107, %v2183
      %v2186 = vunpack.c.l.s4 1966171168
      %v2187 = vunpack.c.0.s8 %v2186
      %v2188 = vlaneseq
      %v2189 = vshrl.u32 %v2188, 7
      %v2190 = vsub.s32 %v2187, %v2189
      %v2191 = vrot.slane %v2177, %v2190
      %v2192 = vcombine.high %v2184, %v2184
      %v2193 = vcombine.high %v2191, %v2191
      %v2195 = vunpack.c.l.s4 1966171168
      %v2196 = vunpack.c.0.s8 %v2195
      %v2197 = vlaneseq
      %v2198 = vshrl.u32 %v2197, 7
      %v2199 = vsub.s32 %v2196, %v2198
      %v2200 = vrot.slane %v2184, %v2199
      %v2202 = vunpack.c.l.s4 1966171168
      %v2203 = vunpack.c.0.s8 %v2202
      %v2204 = vlaneseq
      %v2205 = vshrl.u32 %v2204, 7
      %v2206 = vsub.s32 %v2203, %v2205
      %v2207 = vrot.slane %v2191, %v2206
      %v2209 = vunpack.c.l.s4 1966171168
      %v2210 = vunpack.c.0.s8 %v2209
      %v2211 = vlaneseq
      %v2212 = vshrl.u32 %v2211, 7
      %v2213 = vsub.s32 %v2210, %v2212
      %v2214 = vrot.slane %v2192, %v2213
      %v2216 = vunpack.c.l.s4 1966171168
      %v2217 = vunpack.c.0.s8 %v2216
      %v2218 = vlaneseq
      %v2219 = vshrl.u32 %v2218, 7
      %v2220 = vsub.s32 %v2217, %v2219
      %v2221 = vrot.slane %v2193, %v2220
      %v2222 = vcombine.high %v2200, %v2200
      %v2223 = vcombine.high %v2207, %v2207
      %v2224 = vcombine.high %v2214, %v2214
      %v2225 = vcombine.high %v2221, %v2221
      %v2226 = vcombine.high %v1112, %v1112
      %v2228 = vunpack.c.l.s4 1966171168
      %v2229 = vunpack.c.0.s8 %v2228
      %v2230 = vlaneseq
      %v2231 = vshrl.u32 %v2230, 7
      %v2232 = vsub.s32 %v2229, %v2231
      %v2233 = vrot.slane %v1112, %v2232
      %v2235 = vunpack.c.l.s4 1966171168
      %v2236 = vunpack.c.0.s8 %v2235
      %v2237 = vlaneseq
      %v2238 = vshrl.u32 %v2237, 7
      %v2239 = vsub.s32 %v2236, %v2238
      %v2240 = vrot.slane %v2226, %v2239
      %v2241 = vcombine.high %v2233, %v2233
      %v2242 = vcombine.high %v2240, %v2240
      %v2244 = vunpack.c.l.s4 1966171168
      %v2245 = vunpack.c.0.s8 %v2244
      %v2246 = vlaneseq
      %v2247 = vshrl.u32 %v2246, 7
      %v2248 = vsub.s32 %v2245, %v2247
      %v2249 = vrot.slane %v2233, %v2248
      %v2251 = vunpack.c.l.s4 1966171168
      %v2252 = vunpack.c.0.s8 %v2251
      %v2253 = vlaneseq
      %v2254 = vshrl.u32 %v2253, 7
      %v2255 = vsub.s32 %v2252, %v2254
      %v2256 = vrot.slane %v2240, %v2255
      %v2258 = vunpack.c.l.s4 1966171168
      %v2259 = vunpack.c.0.s8 %v2258
      %v2260 = vlaneseq
      %v2261 = vshrl.u32 %v2260, 7
      %v2262 = vsub.s32 %v2259, %v2261
      %v2263 = vrot.slane %v2241, %v2262
      %v2265 = vunpack.c.l.s4 1966171168
      %v2266 = vunpack.c.0.s8 %v2265
      %v2267 = vlaneseq
      %v2268 = vshrl.u32 %v2267, 7
      %v2269 = vsub.s32 %v2266, %v2268
      %v2270 = vrot.slane %v2242, %v2269
      %v2271 = vcombine.high %v2249, %v2249
      %v2272 = vcombine.high %v2256, %v2256
      %v2273 = vcombine.high %v2263, %v2263
      %v2274 = vcombine.high %v2270, %v2270
      %v2275 = vcombine.high %v1117, %v1117
      %v2277 = vunpack.c.l.s4 1966171168
      %v2278 = vunpack.c.0.s8 %v2277
      %v2279 = vlaneseq
      %v2280 = vshrl.u32 %v2279, 7
      %v2281 = vsub.s32 %v2278, %v2280
      %v2282 = vrot.slane %v1117, %v2281
      %v2284 = vunpack.c.l.s4 1966171168
      %v2285 = vunpack.c.0.s8 %v2284
      %v2286 = vlaneseq
      %v2287 = vshrl.u32 %v2286, 7
      %v2288 = vsub.s32 %v2285, %v2287
      %v2289 = vrot.slane %v2275, %v2288
      %v2290 = vcombine.high %v2282, %v2282
      %v2291 = vcombine.high %v2289, %v2289
      %v2293 = vunpack.c.l.s4 1966171168
      %v2294 = vunpack.c.0.s8 %v2293
      %v2295 = vlaneseq
      %v2296 = vshrl.u32 %v2295, 7
      %v2297 = vsub.s32 %v2294, %v2296
      %v2298 = vrot.slane %v2282, %v2297
      %v2300 = vunpack.c.l.s4 1966171168
      %v2301 = vunpack.c.0.s8 %v2300
      %v2302 = vlaneseq
      %v2303 = vshrl.u32 %v2302, 7
      %v2304 = vsub.s32 %v2301, %v2303
      %v2305 = vrot.slane %v2289, %v2304
      %v2307 = vunpack.c.l.s4 1966171168
      %v2308 = vunpack.c.0.s8 %v2307
      %v2309 = vlaneseq
      %v2310 = vshrl.u32 %v2309, 7
      %v2311 = vsub.s32 %v2308, %v2310
      %v2312 = vrot.slane %v2290, %v2311
      %v2314 = vunpack.c.l.s4 1966171168
      %v2315 = vunpack.c.0.s8 %v2314
      %v2316 = vlaneseq
      %v2317 = vshrl.u32 %v2316, 7
      %v2318 = vsub.s32 %v2315, %v2317
      %v2319 = vrot.slane %v2291, %v2318
      %v2320 = vcombine.high %v2298, %v2298
      %v2321 = vcombine.high %v2305, %v2305
      %v2322 = vcombine.high %v2312, %v2312
      %v2323 = vcombine.high %v2319, %v2319
      %v2324 = vcombine.high %v1122, %v1122
      %v2326 = vunpack.c.l.s4 1966171168
      %v2327 = vunpack.c.0.s8 %v2326
      %v2328 = vlaneseq
      %v2329 = vshrl.u32 %v2328, 7
      %v2330 = vsub.s32 %v2327, %v2329
      %v2331 = vrot.slane %v1122, %v2330
      %v2333 = vunpack.c.l.s4 1966171168
      %v2334 = vunpack.c.0.s8 %v2333
      %v2335 = vlaneseq
      %v2336 = vshrl.u32 %v2335, 7
      %v2337 = vsub.s32 %v2334, %v2336
      %v2338 = vrot.slane %v2324, %v2337
      %v2339 = vcombine.high %v2331, %v2331
      %v2340 = vcombine.high %v2338, %v2338
      %v2342 = vunpack.c.l.s4 1966171168
      %v2343 = vunpack.c.0.s8 %v2342
      %v2344 = vlaneseq
      %v2345 = vshrl.u32 %v2344, 7
      %v2346 = vsub.s32 %v2343, %v2345
      %v2347 = vrot.slane %v2331, %v2346
      %v2349 = vunpack.c.l.s4 1966171168
      %v2350 = vunpack.c.0.s8 %v2349
      %v2351 = vlaneseq
      %v2352 = vshrl.u32 %v2351, 7
      %v2353 = vsub.s32 %v2350, %v2352
      %v2354 = vrot.slane %v2338, %v2353
      %v2356 = vunpack.c.l.s4 1966171168
      %v2357 = vunpack.c.0.s8 %v2356
      %v2358 = vlaneseq
      %v2359 = vshrl.u32 %v2358, 7
      %v2360 = vsub.s32 %v2357, %v2359
      %v2361 = vrot.slane %v2339, %v2360
      %v2363 = vunpack.c.l.s4 1966171168
      %v2364 = vunpack.c.0.s8 %v2363
      %v2365 = vlaneseq
      %v2366 = vshrl.u32 %v2365, 7
      %v2367 = vsub.s32 %v2364, %v2366
      %v2368 = vrot.slane %v2340, %v2367
      %v2369 = vcombine.high %v2347, %v2347
      %v2370 = vcombine.high %v2354, %v2354
      %v2371 = vcombine.high %v2361, %v2361
      %v2372 = vcombine.high %v2368, %v2368
      %v2373 = vcombine.high %v1127, %v1127
      %v2375 = vunpack.c.l.s4 1966171168
      %v2376 = vunpack.c.0.s8 %v2375
      %v2377 = vlaneseq
      %v2378 = vshrl.u32 %v2377, 7
      %v2379 = vsub.s32 %v2376, %v2378
      %v2380 = vrot.slane %v1127, %v2379
      %v2382 = vunpack.c.l.s4 1966171168
      %v2383 = vunpack.c.0.s8 %v2382
      %v2384 = vlaneseq
      %v2385 = vshrl.u32 %v2384, 7
      %v2386 = vsub.s32 %v2383, %v2385
      %v2387 = vrot.slane %v2373, %v2386
      %v2388 = vcombine.high %v2380, %v2380
      %v2389 = vcombine.high %v2387, %v2387
      %v2391 = vunpack.c.l.s4 1966171168
      %v2392 = vunpack.c.0.s8 %v2391
      %v2393 = vlaneseq
      %v2394 = vshrl.u32 %v2393, 7
      %v2395 = vsub.s32 %v2392, %v2394
      %v2396 = vrot.slane %v2380, %v2395
      %v2398 = vunpack.c.l.s4 1966171168
      %v2399 = vunpack.c.0.s8 %v2398
      %v2400 = vlaneseq
      %v2401 = vshrl.u32 %v2400, 7
      %v2402 = vsub.s32 %v2399, %v2401
      %v2403 = vrot.slane %v2387, %v2402
      %v2405 = vunpack.c.l.s4 1966171168
      %v2406 = vunpack.c.0.s8 %v2405
      %v2407 = vlaneseq
      %v2408 = vshrl.u32 %v2407, 7
      %v2409 = vsub.s32 %v2406, %v2408
      %v2410 = vrot.slane %v2388, %v2409
      %v2412 = vunpack.c.l.s4 1966171168
      %v2413 = vunpack.c.0.s8 %v2412
      %v2414 = vlaneseq
      %v2415 = vshrl.u32 %v2414, 7
      %v2416 = vsub.s32 %v2413, %v2415
      %v2417 = vrot.slane %v2389, %v2416
      %v2418 = vcombine.high %v2396, %v2396
      %v2419 = vcombine.high %v2403, %v2403
      %v2420 = vcombine.high %v2410, %v2410
      %v2421 = vcombine.high %v2417, %v2417
      %v2422 = vcombine.high %v1132, %v1132
      %v2424 = vunpack.c.l.s4 1966171168
      %v2425 = vunpack.c.0.s8 %v2424
      %v2426 = vlaneseq
      %v2427 = vshrl.u32 %v2426, 7
      %v2428 = vsub.s32 %v2425, %v2427
      %v2429 = vrot.slane %v1132, %v2428
      %v2431 = vunpack.c.l.s4 1966171168
      %v2432 = vunpack.c.0.s8 %v2431
      %v2433 = vlaneseq
      %v2434 = vshrl.u32 %v2433, 7
      %v2435 = vsub.s32 %v2432, %v2434
      %v2436 = vrot.slane %v2422, %v2435
      %v2437 = vcombine.high %v2429, %v2429
      %v2438 = vcombine.high %v2436, %v2436
      %v2440 = vunpack.c.l.s4 1966171168
      %v2441 = vunpack.c.0.s8 %v2440
      %v2442 = vlaneseq
      %v2443 = vshrl.u32 %v2442, 7
      %v2444 = vsub.s32 %v2441, %v2443
      %v2445 = vrot.slane %v2429, %v2444
      %v2447 = vunpack.c.l.s4 1966171168
      %v2448 = vunpack.c.0.s8 %v2447
      %v2449 = vlaneseq
      %v2450 = vshrl.u32 %v2449, 7
      %v2451 = vsub.s32 %v2448, %v2450
      %v2452 = vrot.slane %v2436, %v2451
      %v2454 = vunpack.c.l.s4 1966171168
      %v2455 = vunpack.c.0.s8 %v2454
      %v2456 = vlaneseq
      %v2457 = vshrl.u32 %v2456, 7
      %v2458 = vsub.s32 %v2455, %v2457
      %v2459 = vrot.slane %v2437, %v2458
      %v2461 = vunpack.c.l.s4 1966171168
      %v2462 = vunpack.c.0.s8 %v2461
      %v2463 = vlaneseq
      %v2464 = vshrl.u32 %v2463, 7
      %v2465 = vsub.s32 %v2462, %v2464
      %v2466 = vrot.slane %v2438, %v2465
      %v2467 = vcombine.high %v2445, %v2445
      %v2468 = vcombine.high %v2452, %v2452
      %v2469 = vcombine.high %v2459, %v2459
      %v2470 = vcombine.high %v2466, %v2466
      %v2471 = vcombine.high %v1137, %v1137
      %v2473 = vunpack.c.l.s4 1966171168
      %v2474 = vunpack.c.0.s8 %v2473
      %v2475 = vlaneseq
      %v2476 = vshrl.u32 %v2475, 7
      %v2477 = vsub.s32 %v2474, %v2476
      %v2478 = vrot.slane %v1137, %v2477
      %v2480 = vunpack.c.l.s4 1966171168
      %v2481 = vunpack.c.0.s8 %v2480
      %v2482 = vlaneseq
      %v2483 = vshrl.u32 %v2482, 7
      %v2484 = vsub.s32 %v2481, %v2483
      %v2485 = vrot.slane %v2471, %v2484
      %v2486 = vcombine.high %v2478, %v2478
      %v2487 = vcombine.high %v2485, %v2485
      %v2489 = vunpack.c.l.s4 1966171168
      %v2490 = vunpack.c.0.s8 %v2489
      %v2491 = vlaneseq
      %v2492 = vshrl.u32 %v2491, 7
      %v2493 = vsub.s32 %v2490, %v2492
      %v2494 = vrot.slane %v2478, %v2493
      %v2496 = vunpack.c.l.s4 1966171168
      %v2497 = vunpack.c.0.s8 %v2496
      %v2498 = vlaneseq
      %v2499 = vshrl.u32 %v2498, 7
      %v2500 = vsub.s32 %v2497, %v2499
      %v2501 = vrot.slane %v2485, %v2500
      %v2503 = vunpack.c.l.s4 1966171168
      %v2504 = vunpack.c.0.s8 %v2503
      %v2505 = vlaneseq
      %v2506 = vshrl.u32 %v2505, 7
      %v2507 = vsub.s32 %v2504, %v2506
      %v2508 = vrot.slane %v2486, %v2507
      %v2510 = vunpack.c.l.s4 1966171168
      %v2511 = vunpack.c.0.s8 %v2510
      %v2512 = vlaneseq
      %v2513 = vshrl.u32 %v2512, 7
      %v2514 = vsub.s32 %v2511, %v2513
      %v2515 = vrot.slane %v2487, %v2514
      %v2516 = vcombine.high %v2494, %v2494
      %v2517 = vcombine.high %v2501, %v2501
      %v2518 = vcombine.high %v2508, %v2508
      %v2519 = vcombine.high %v2515, %v2515
      %v2520 = vcombine.high %v1142, %v1142
      %v2522 = vunpack.c.l.s4 1966171168
      %v2523 = vunpack.c.0.s8 %v2522
      %v2524 = vlaneseq
      %v2525 = vshrl.u32 %v2524, 7
      %v2526 = vsub.s32 %v2523, %v2525
      %v2527 = vrot.slane %v1142, %v2526
      %v2529 = vunpack.c.l.s4 1966171168
      %v2530 = vunpack.c.0.s8 %v2529
      %v2531 = vlaneseq
      %v2532 = vshrl.u32 %v2531, 7
      %v2533 = vsub.s32 %v2530, %v2532
      %v2534 = vrot.slane %v2520, %v2533
      %v2535 = vcombine.high %v2527, %v2527
      %v2536 = vcombine.high %v2534, %v2534
      %v2538 = vunpack.c.l.s4 1966171168
      %v2539 = vunpack.c.0.s8 %v2538
      %v2540 = vlaneseq
      %v2541 = vshrl.u32 %v2540, 7
      %v2542 = vsub.s32 %v2539, %v2541
      %v2543 = vrot.slane %v2527, %v2542
      %v2545 = vunpack.c.l.s4 1966171168
      %v2546 = vunpack.c.0.s8 %v2545
      %v2547 = vlaneseq
      %v2548 = vshrl.u32 %v2547, 7
      %v2549 = vsub.s32 %v2546, %v2548
      %v2550 = vrot.slane %v2534, %v2549
      %v2552 = vunpack.c.l.s4 1966171168
      %v2553 = vunpack.c.0.s8 %v2552
      %v2554 = vlaneseq
      %v2555 = vshrl.u32 %v2554, 7
      %v2556 = vsub.s32 %v2553, %v2555
      %v2557 = vrot.slane %v2535, %v2556
      %v2559 = vunpack.c.l.s4 1966171168
      %v2560 = vunpack.c.0.s8 %v2559
      %v2561 = vlaneseq
      %v2562 = vshrl.u32 %v2561, 7
      %v2563 = vsub.s32 %v2560, %v2562
      %v2564 = vrot.slane %v2536, %v2563
      %v2565 = vcombine.high %v2543, %v2543
      %v2566 = vcombine.high %v2550, %v2550
      %v2567 = vcombine.high %v2557, %v2557
      %v2568 = vcombine.high %v2564, %v2564
      %v2569 = vcombine.high %v1147, %v1147
      %v2571 = vunpack.c.l.s4 1966171168
      %v2572 = vunpack.c.0.s8 %v2571
      %v2573 = vlaneseq
      %v2574 = vshrl.u32 %v2573, 7
      %v2575 = vsub.s32 %v2572, %v2574
      %v2576 = vrot.slane %v1147, %v2575
      %v2578 = vunpack.c.l.s4 1966171168
      %v2579 = vunpack.c.0.s8 %v2578
      %v2580 = vlaneseq
      %v2581 = vshrl.u32 %v2580, 7
      %v2582 = vsub.s32 %v2579, %v2581
      %v2583 = vrot.slane %v2569, %v2582
      %v2584 = vcombine.high %v2576, %v2576
      %v2585 = vcombine.high %v2583, %v2583
      %v2587 = vunpack.c.l.s4 1966171168
      %v2588 = vunpack.c.0.s8 %v2587
      %v2589 = vlaneseq
      %v2590 = vshrl.u32 %v2589, 7
      %v2591 = vsub.s32 %v2588, %v2590
      %v2592 = vrot.slane %v2576, %v2591
      %v2594 = vunpack.c.l.s4 1966171168
      %v2595 = vunpack.c.0.s8 %v2594
      %v2596 = vlaneseq
      %v2597 = vshrl.u32 %v2596, 7
      %v2598 = vsub.s32 %v2595, %v2597
      %v2599 = vrot.slane %v2583, %v2598
      %v2601 = vunpack.c.l.s4 1966171168
      %v2602 = vunpack.c.0.s8 %v2601
      %v2603 = vlaneseq
      %v2604 = vshrl.u32 %v2603, 7
      %v2605 = vsub.s32 %v2602, %v2604
      %v2606 = vrot.slane %v2584, %v2605
      %v2608 = vunpack.c.l.s4 1966171168
      %v2609 = vunpack.c.0.s8 %v2608
      %v2610 = vlaneseq
      %v2611 = vshrl.u32 %v2610, 7
      %v2612 = vsub.s32 %v2609, %v2611
      %v2613 = vrot.slane %v2585, %v2612
      %v2614 = vcombine.high %v2592, %v2592
      %v2615 = vcombine.high %v2599, %v2599
      %v2616 = vcombine.high %v2606, %v2606
      %v2617 = vcombine.high %v2613, %v2613
      %v2618 = vcombine.high %v1152, %v1152
      %v2620 = vunpack.c.l.s4 1966171168
      %v2621 = vunpack.c.0.s8 %v2620
      %v2622 = vlaneseq
      %v2623 = vshrl.u32 %v2622, 7
      %v2624 = vsub.s32 %v2621, %v2623
      %v2625 = vrot.slane %v1152, %v2624
      %v2627 = vunpack.c.l.s4 1966171168
      %v2628 = vunpack.c.0.s8 %v2627
      %v2629 = vlaneseq
      %v2630 = vshrl.u32 %v2629, 7
      %v2631 = vsub.s32 %v2628, %v2630
      %v2632 = vrot.slane %v2618, %v2631
      %v2633 = vcombine.high %v2625, %v2625
      %v2634 = vcombine.high %v2632, %v2632
      %v2636 = vunpack.c.l.s4 1966171168
      %v2637 = vunpack.c.0.s8 %v2636
      %v2638 = vlaneseq
      %v2639 = vshrl.u32 %v2638, 7
      %v2640 = vsub.s32 %v2637, %v2639
      %v2641 = vrot.slane %v2625, %v2640
      %v2643 = vunpack.c.l.s4 1966171168
      %v2644 = vunpack.c.0.s8 %v2643
      %v2645 = vlaneseq
      %v2646 = vshrl.u32 %v2645, 7
      %v2647 = vsub.s32 %v2644, %v2646
      %v2648 = vrot.slane %v2632, %v2647
      %v2650 = vunpack.c.l.s4 1966171168
      %v2651 = vunpack.c.0.s8 %v2650
      %v2652 = vlaneseq
      %v2653 = vshrl.u32 %v2652, 7
      %v2654 = vsub.s32 %v2651, %v2653
      %v2655 = vrot.slane %v2633, %v2654
      %v2657 = vunpack.c.l.s4 1966171168
      %v2658 = vunpack.c.0.s8 %v2657
      %v2659 = vlaneseq
      %v2660 = vshrl.u32 %v2659, 7
      %v2661 = vsub.s32 %v2658, %v2660
      %v2662 = vrot.slane %v2634, %v2661
      %v2663 = vcombine.high %v2641, %v2641
      %v2664 = vcombine.high %v2648, %v2648
      %v2665 = vcombine.high %v2655, %v2655
      %v2666 = vcombine.high %v2662, %v2662
      %v2667 = vcombine.high %v1157, %v1157
      %v2669 = vunpack.c.l.s4 1966171168
      %v2670 = vunpack.c.0.s8 %v2669
      %v2671 = vlaneseq
      %v2672 = vshrl.u32 %v2671, 7
      %v2673 = vsub.s32 %v2670, %v2672
      %v2674 = vrot.slane %v1157, %v2673
      %v2676 = vunpack.c.l.s4 1966171168
      %v2677 = vunpack.c.0.s8 %v2676
      %v2678 = vlaneseq
      %v2679 = vshrl.u32 %v2678, 7
      %v2680 = vsub.s32 %v2677, %v2679
      %v2681 = vrot.slane %v2667, %v2680
      %v2682 = vcombine.high %v2674, %v2674
      %v2683 = vcombine.high %v2681, %v2681
      %v2685 = vunpack.c.l.s4 1966171168
      %v2686 = vunpack.c.0.s8 %v2685
      %v2687 = vlaneseq
      %v2688 = vshrl.u32 %v2687, 7
      %v2689 = vsub.s32 %v2686, %v2688
      %v2690 = vrot.slane %v2674, %v2689
      %v2692 = vunpack.c.l.s4 1966171168
      %v2693 = vunpack.c.0.s8 %v2692
      %v2694 = vlaneseq
      %v2695 = vshrl.u32 %v2694, 7
      %v2696 = vsub.s32 %v2693, %v2695
      %v2697 = vrot.slane %v2681, %v2696
      %v2699 = vunpack.c.l.s4 1966171168
      %v2700 = vunpack.c.0.s8 %v2699
      %v2701 = vlaneseq
      %v2702 = vshrl.u32 %v2701, 7
      %v2703 = vsub.s32 %v2700, %v2702
      %v2704 = vrot.slane %v2682, %v2703
      %v2706 = vunpack.c.l.s4 1966171168
      %v2707 = vunpack.c.0.s8 %v2706
      %v2708 = vlaneseq
      %v2709 = vshrl.u32 %v2708, 7
      %v2710 = vsub.s32 %v2707, %v2709
      %v2711 = vrot.slane %v2683, %v2710
      %v2712 = vcombine.high %v2690, %v2690
      %v2713 = vcombine.high %v2697, %v2697
      %v2714 = vcombine.high %v2704, %v2704
      %v2715 = vcombine.high %v2711, %v2711
      %v2716 = vcombine.high %v1162, %v1162
      %v2718 = vunpack.c.l.s4 1966171168
      %v2719 = vunpack.c.0.s8 %v2718
      %v2720 = vlaneseq
      %v2721 = vshrl.u32 %v2720, 7
      %v2722 = vsub.s32 %v2719, %v2721
      %v2723 = vrot.slane %v1162, %v2722
      %v2725 = vunpack.c.l.s4 1966171168
      %v2726 = vunpack.c.0.s8 %v2725
      %v2727 = vlaneseq
      %v2728 = vshrl.u32 %v2727, 7
      %v2729 = vsub.s32 %v2726, %v2728
      %v2730 = vrot.slane %v2716, %v2729
      %v2731 = vcombine.high %v2723, %v2723
      %v2732 = vcombine.high %v2730, %v2730
      %v2734 = vunpack.c.l.s4 1966171168
      %v2735 = vunpack.c.0.s8 %v2734
      %v2736 = vlaneseq
      %v2737 = vshrl.u32 %v2736, 7
      %v2738 = vsub.s32 %v2735, %v2737
      %v2739 = vrot.slane %v2723, %v2738
      %v2741 = vunpack.c.l.s4 1966171168
      %v2742 = vunpack.c.0.s8 %v2741
      %v2743 = vlaneseq
      %v2744 = vshrl.u32 %v2743, 7
      %v2745 = vsub.s32 %v2742, %v2744
      %v2746 = vrot.slane %v2730, %v2745
      %v2748 = vunpack.c.l.s4 1966171168
      %v2749 = vunpack.c.0.s8 %v2748
      %v2750 = vlaneseq
      %v2751 = vshrl.u32 %v2750, 7
      %v2752 = vsub.s32 %v2749, %v2751
      %v2753 = vrot.slane %v2731, %v2752
      %v2755 = vunpack.c.l.s4 1966171168
      %v2756 = vunpack.c.0.s8 %v2755
      %v2757 = vlaneseq
      %v2758 = vshrl.u32 %v2757, 7
      %v2759 = vsub.s32 %v2756, %v2758
      %v2760 = vrot.slane %v2732, %v2759
      %v2761 = vcombine.high %v2739, %v2739
      %v2762 = vcombine.high %v2746, %v2746
      %v2763 = vcombine.high %v2753, %v2753
      %v2764 = vcombine.high %v2760, %v2760
      %vm3021 = vcmask 57344
      %3022 = vst.msk [vmem:[%s254] sm:$0x1] %vm3021, %v1220
      %3023 = vst.msk [vmem:[%s254 + $0x2] sm:$0x1] %vm3021, %v1234
      %3024 = vst.msk [vmem:[%s254 + $0x4] sm:$0x1] %vm3021, %v1242
      %3025 = vst.msk [vmem:[%s254 + $0x6] sm:$0x1] %vm3021, %v1244
      %3026 = vst.msk [vmem:[%s254 + $0x8] sm:$0x1] %vm3021, %v1227
      %3027 = vst.msk [vmem:[%s254 + $0xa] sm:$0x1] %vm3021, %v1241
      %3028 = vst.msk [vmem:[%s254 + $0xc] sm:$0x1] %vm3021, %v1243
      %3029 = vst.msk [vmem:[%s254 + $0xe] sm:$0x1] %vm3021, %v1245
      %3030 = vst.msk [vmem:[%s254 + $0x10] sm:$0x1] %vm3021, %v1269
      %3031 = vst.msk [vmem:[%s254 + $0x12] sm:$0x1] %vm3021, %v1283
      %3032 = vst.msk [vmem:[%s254 + $0x14] sm:$0x1] %vm3021, %v1291
      %3033 = vst.msk [vmem:[%s254 + $0x16] sm:$0x1] %vm3021, %v1293
      %3034 = vst.msk [vmem:[%s254 + $0x18] sm:$0x1] %vm3021, %v1276
      %3035 = vst.msk [vmem:[%s254 + $0x1a] sm:$0x1] %vm3021, %v1290
      %3036 = vst.msk [vmem:[%s254 + $0x1c] sm:$0x1] %vm3021, %v1292
      %3037 = vst.msk [vmem:[%s254 + $0x1e] sm:$0x1] %vm3021, %v1294
      %3038 = vst.msk [vmem:[%s254 + $0x40] sm:$0x1] %vm3021, %v1318
      %3039 = vst.msk [vmem:[%s254 + $0x42] sm:$0x1] %vm3021, %v1332
      %3040 = vst.msk [vmem:[%s254 + $0x44] sm:$0x1] %vm3021, %v1340
      %3041 = vst.msk [vmem:[%s254 + $0x46] sm:$0x1] %vm3021, %v1342
      %3042 = vst.msk [vmem:[%s254 + $0x48] sm:$0x1] %vm3021, %v1325
      %3043 = vst.msk [vmem:[%s254 + $0x4a] sm:$0x1] %vm3021, %v1339
      %3044 = vst.msk [vmem:[%s254 + $0x4c] sm:$0x1] %vm3021, %v1341
      %3045 = vst.msk [vmem:[%s254 + $0x4e] sm:$0x1] %vm3021, %v1343
      %3046 = vst.msk [vmem:[%s254 + $0x50] sm:$0x1] %vm3021, %v1367
      %3047 = vst.msk [vmem:[%s254 + $0x52] sm:$0x1] %vm3021, %v1381
      %3048 = vst.msk [vmem:[%s254 + $0x54] sm:$0x1] %vm3021, %v1389
      %3049 = vst.msk [vmem:[%s254 + $0x56] sm:$0x1] %vm3021, %v1391
      %3050 = vst.msk [vmem:[%s254 + $0x58] sm:$0x1] %vm3021, %v1374
      %3051 = vst.msk [vmem:[%s254 + $0x5a] sm:$0x1] %vm3021, %v1388
      %3052 = vst.msk [vmem:[%s254 + $0x5c] sm:$0x1] %vm3021, %v1390
      %3053 = vst.msk [vmem:[%s254 + $0x5e] sm:$0x1] %vm3021, %v1392
      %3054 = vst.msk [vmem:[%s254 + $0x80] sm:$0x1] %vm3021, %v1416
      %3055 = vst.msk [vmem:[%s254 + $0x82] sm:$0x1] %vm3021, %v1430
      %3056 = vst.msk [vmem:[%s254 + $0x84] sm:$0x1] %vm3021, %v1438
      %3057 = vst.msk [vmem:[%s254 + $0x86] sm:$0x1] %vm3021, %v1440
      %3058 = vst.msk [vmem:[%s254 + $0x88] sm:$0x1] %vm3021, %v1423
      %3059 = vst.msk [vmem:[%s254 + $0x8a] sm:$0x1] %vm3021, %v1437
      %3060 = vst.msk [vmem:[%s254 + $0x8c] sm:$0x1] %vm3021, %v1439
      %3061 = vst.msk [vmem:[%s254 + $0x8e] sm:$0x1] %vm3021, %v1441
      %3062 = vst.msk [vmem:[%s254 + $0x90] sm:$0x1] %vm3021, %v1465
      %3063 = vst.msk [vmem:[%s254 + $0x92] sm:$0x1] %vm3021, %v1479
      %3064 = vst.msk [vmem:[%s254 + $0x94] sm:$0x1] %vm3021, %v1487
      %3065 = vst.msk [vmem:[%s254 + $0x96] sm:$0x1] %vm3021, %v1489
      %3066 = vst.msk [vmem:[%s254 + $0x98] sm:$0x1] %vm3021, %v1472
      %3067 = vst.msk [vmem:[%s254 + $0x9a] sm:$0x1] %vm3021, %v1486
      %3068 = vst.msk [vmem:[%s254 + $0x9c] sm:$0x1] %vm3021, %v1488
      %3069 = vst.msk [vmem:[%s254 + $0x9e] sm:$0x1] %vm3021, %v1490
      %3070 = vst.msk [vmem:[%s254 + $0xc0] sm:$0x1] %vm3021, %v1514
      %3071 = vst.msk [vmem:[%s254 + $0xc2] sm:$0x1] %vm3021, %v1528
      %3072 = vst.msk [vmem:[%s254 + $0xc4] sm:$0x1] %vm3021, %v1536
      %3073 = vst.msk [vmem:[%s254 + $0xc6] sm:$0x1] %vm3021, %v1538
      %3074 = vst.msk [vmem:[%s254 + $0xc8] sm:$0x1] %vm3021, %v1521
      %3075 = vst.msk [vmem:[%s254 + $0xca] sm:$0x1] %vm3021, %v1535
      %3076 = vst.msk [vmem:[%s254 + $0xcc] sm:$0x1] %vm3021, %v1537
      %3077 = vst.msk [vmem:[%s254 + $0xce] sm:$0x1] %vm3021, %v1539
      %3078 = vst.msk [vmem:[%s254 + $0xd0] sm:$0x1] %vm3021, %v1563
      %3079 = vst.msk [vmem:[%s254 + $0xd2] sm:$0x1] %vm3021, %v1577
      %3080 = vst.msk [vmem:[%s254 + $0xd4] sm:$0x1] %vm3021, %v1585
      %3081 = vst.msk [vmem:[%s254 + $0xd6] sm:$0x1] %vm3021, %v1587
      %3082 = vst.msk [vmem:[%s254 + $0xd8] sm:$0x1] %vm3021, %v1570
      %3083 = vst.msk [vmem:[%s254 + $0xda] sm:$0x1] %vm3021, %v1584
      %3084 = vst.msk [vmem:[%s254 + $0xdc] sm:$0x1] %vm3021, %v1586
      %3085 = vst.msk [vmem:[%s254 + $0xde] sm:$0x1] %vm3021, %v1588
      %3086 = vst.msk [vmem:[%s254 + $0x100] sm:$0x1] %vm3021, %v1612
      %3087 = vst.msk [vmem:[%s254 + $0x102] sm:$0x1] %vm3021, %v1626
      %3088 = vst.msk [vmem:[%s254 + $0x104] sm:$0x1] %vm3021, %v1634
      %3089 = vst.msk [vmem:[%s254 + $0x106] sm:$0x1] %vm3021, %v1636
      %3090 = vst.msk [vmem:[%s254 + $0x108] sm:$0x1] %vm3021, %v1619
      %3091 = vst.msk [vmem:[%s254 + $0x10a] sm:$0x1] %vm3021, %v1633
      %3092 = vst.msk [vmem:[%s254 + $0x10c] sm:$0x1] %vm3021, %v1635
      %3093 = vst.msk [vmem:[%s254 + $0x10e] sm:$0x1] %vm3021, %v1637
      %3094 = vst.msk [vmem:[%s254 + $0x110] sm:$0x1] %vm3021, %v1661
      %3095 = vst.msk [vmem:[%s254 + $0x112] sm:$0x1] %vm3021, %v1675
      %3096 = vst.msk [vmem:[%s254 + $0x114] sm:$0x1] %vm3021, %v1683
      %3097 = vst.msk [vmem:[%s254 + $0x116] sm:$0x1] %vm3021, %v1685
      %3098 = vst.msk [vmem:[%s254 + $0x118] sm:$0x1] %vm3021, %v1668
      %3099 = vst.msk [vmem:[%s254 + $0x11a] sm:$0x1] %vm3021, %v1682
      %3100 = vst.msk [vmem:[%s254 + $0x11c] sm:$0x1] %vm3021, %v1684
      %3101 = vst.msk [vmem:[%s254 + $0x11e] sm:$0x1] %vm3021, %v1686
      %3102 = vst.msk [vmem:[%s254 + $0x140] sm:$0x1] %vm3021, %v1710
      %3103 = vst.msk [vmem:[%s254 + $0x142] sm:$0x1] %vm3021, %v1724
      %3104 = vst.msk [vmem:[%s254 + $0x144] sm:$0x1] %vm3021, %v1732
      %3105 = vst.msk [vmem:[%s254 + $0x146] sm:$0x1] %vm3021, %v1734
      %3106 = vst.msk [vmem:[%s254 + $0x148] sm:$0x1] %vm3021, %v1717
      %3107 = vst.msk [vmem:[%s254 + $0x14a] sm:$0x1] %vm3021, %v1731
      %3108 = vst.msk [vmem:[%s254 + $0x14c] sm:$0x1] %vm3021, %v1733
      %3109 = vst.msk [vmem:[%s254 + $0x14e] sm:$0x1] %vm3021, %v1735
      %3110 = vst.msk [vmem:[%s254 + $0x150] sm:$0x1] %vm3021, %v1759
      %3111 = vst.msk [vmem:[%s254 + $0x152] sm:$0x1] %vm3021, %v1773
      %3112 = vst.msk [vmem:[%s254 + $0x154] sm:$0x1] %vm3021, %v1781
      %3113 = vst.msk [vmem:[%s254 + $0x156] sm:$0x1] %vm3021, %v1783
      %3114 = vst.msk [vmem:[%s254 + $0x158] sm:$0x1] %vm3021, %v1766
      %3115 = vst.msk [vmem:[%s254 + $0x15a] sm:$0x1] %vm3021, %v1780
      %3116 = vst.msk [vmem:[%s254 + $0x15c] sm:$0x1] %vm3021, %v1782
      %3117 = vst.msk [vmem:[%s254 + $0x15e] sm:$0x1] %vm3021, %v1784
      %3118 = vst.msk [vmem:[%s254 + $0x180] sm:$0x1] %vm3021, %v1808
      %3119 = vst.msk [vmem:[%s254 + $0x182] sm:$0x1] %vm3021, %v1822
      %3120 = vst.msk [vmem:[%s254 + $0x184] sm:$0x1] %vm3021, %v1830
      %3121 = vst.msk [vmem:[%s254 + $0x186] sm:$0x1] %vm3021, %v1832
      %3122 = vst.msk [vmem:[%s254 + $0x188] sm:$0x1] %vm3021, %v1815
      %3123 = vst.msk [vmem:[%s254 + $0x18a] sm:$0x1] %vm3021, %v1829
      %3124 = vst.msk [vmem:[%s254 + $0x18c] sm:$0x1] %vm3021, %v1831
      %3125 = vst.msk [vmem:[%s254 + $0x18e] sm:$0x1] %vm3021, %v1833
      %3126 = vst.msk [vmem:[%s254 + $0x190] sm:$0x1] %vm3021, %v1857
      %3127 = vst.msk [vmem:[%s254 + $0x192] sm:$0x1] %vm3021, %v1871
      %3128 = vst.msk [vmem:[%s254 + $0x194] sm:$0x1] %vm3021, %v1879
      %3129 = vst.msk [vmem:[%s254 + $0x196] sm:$0x1] %vm3021, %v1881
      %3130 = vst.msk [vmem:[%s254 + $0x198] sm:$0x1] %vm3021, %v1864
      %3131 = vst.msk [vmem:[%s254 + $0x19a] sm:$0x1] %vm3021, %v1878
      %3132 = vst.msk [vmem:[%s254 + $0x19c] sm:$0x1] %vm3021, %v1880
      %3133 = vst.msk [vmem:[%s254 + $0x19e] sm:$0x1] %vm3021, %v1882
      %3134 = vst.msk [vmem:[%s254 + $0x1c0] sm:$0x1] %vm3021, %v1906
      %3135 = vst.msk [vmem:[%s254 + $0x1c2] sm:$0x1] %vm3021, %v1920
      %3136 = vst.msk [vmem:[%s254 + $0x1c4] sm:$0x1] %vm3021, %v1928
      %3137 = vst.msk [vmem:[%s254 + $0x1c6] sm:$0x1] %vm3021, %v1930
      %3138 = vst.msk [vmem:[%s254 + $0x1c8] sm:$0x1] %vm3021, %v1913
      %3139 = vst.msk [vmem:[%s254 + $0x1ca] sm:$0x1] %vm3021, %v1927
      %3140 = vst.msk [vmem:[%s254 + $0x1cc] sm:$0x1] %vm3021, %v1929
      %3141 = vst.msk [vmem:[%s254 + $0x1ce] sm:$0x1] %vm3021, %v1931
      %3142 = vst.msk [vmem:[%s254 + $0x1d0] sm:$0x1] %vm3021, %v1955
      %3143 = vst.msk [vmem:[%s254 + $0x1d2] sm:$0x1] %vm3021, %v1969
      %3144 = vst.msk [vmem:[%s254 + $0x1d4] sm:$0x1] %vm3021, %v1977
      %3145 = vst.msk [vmem:[%s254 + $0x1d6] sm:$0x1] %vm3021, %v1979
      %3146 = vst.msk [vmem:[%s254 + $0x1d8] sm:$0x1] %vm3021, %v1962
      %3147 = vst.msk [vmem:[%s254 + $0x1da] sm:$0x1] %vm3021, %v1976
      %3148 = vst.msk [vmem:[%s254 + $0x1dc] sm:$0x1] %vm3021, %v1978
      %3149 = vst.msk [vmem:[%s254 + $0x1de] sm:$0x1] %vm3021, %v1980
      %3150 = vst.msk [vmem:[%s254 + $0x200] sm:$0x1] %vm3021, %v2004
      %3151 = vst.msk [vmem:[%s254 + $0x202] sm:$0x1] %vm3021, %v2018
      %3152 = vst.msk [vmem:[%s254 + $0x204] sm:$0x1] %vm3021, %v2026
      %3153 = vst.msk [vmem:[%s254 + $0x206] sm:$0x1] %vm3021, %v2028
      %3154 = vst.msk [vmem:[%s254 + $0x208] sm:$0x1] %vm3021, %v2011
      %3155 = vst.msk [vmem:[%s254 + $0x20a] sm:$0x1] %vm3021, %v2025
      %3156 = vst.msk [vmem:[%s254 + $0x20c] sm:$0x1] %vm3021, %v2027
      %3157 = vst.msk [vmem:[%s254 + $0x20e] sm:$0x1] %vm3021, %v2029
      %3158 = vst.msk [vmem:[%s254 + $0x210] sm:$0x1] %vm3021, %v2053
      %3159 = vst.msk [vmem:[%s254 + $0x212] sm:$0x1] %vm3021, %v2067
      %3160 = vst.msk [vmem:[%s254 + $0x214] sm:$0x1] %vm3021, %v2075
      %3161 = vst.msk [vmem:[%s254 + $0x216] sm:$0x1] %vm3021, %v2077
      %3162 = vst.msk [vmem:[%s254 + $0x218] sm:$0x1] %vm3021, %v2060
      %3163 = vst.msk [vmem:[%s254 + $0x21a] sm:$0x1] %vm3021, %v2074
      %3164 = vst.msk [vmem:[%s254 + $0x21c] sm:$0x1] %vm3021, %v2076
      %3165 = vst.msk [vmem:[%s254 + $0x21e] sm:$0x1] %vm3021, %v2078
      %3166 = vst.msk [vmem:[%s254 + $0x240] sm:$0x1] %vm3021, %v2102
      %3167 = vst.msk [vmem:[%s254 + $0x242] sm:$0x1] %vm3021, %v2116
      %3168 = vst.msk [vmem:[%s254 + $0x244] sm:$0x1] %vm3021, %v2124
      %3169 = vst.msk [vmem:[%s254 + $0x246] sm:$0x1] %vm3021, %v2126
      %3170 = vst.msk [vmem:[%s254 + $0x248] sm:$0x1] %vm3021, %v2109
      %3171 = vst.msk [vmem:[%s254 + $0x24a] sm:$0x1] %vm3021, %v2123
      %3172 = vst.msk [vmem:[%s254 + $0x24c] sm:$0x1] %vm3021, %v2125
      %3173 = vst.msk [vmem:[%s254 + $0x24e] sm:$0x1] %vm3021, %v2127
      %3174 = vst.msk [vmem:[%s254 + $0x250] sm:$0x1] %vm3021, %v2151
      %3175 = vst.msk [vmem:[%s254 + $0x252] sm:$0x1] %vm3021, %v2165
      %3176 = vst.msk [vmem:[%s254 + $0x254] sm:$0x1] %vm3021, %v2173
      %3177 = vst.msk [vmem:[%s254 + $0x256] sm:$0x1] %vm3021, %v2175
      %3178 = vst.msk [vmem:[%s254 + $0x258] sm:$0x1] %vm3021, %v2158
      %3179 = vst.msk [vmem:[%s254 + $0x25a] sm:$0x1] %vm3021, %v2172
      %3180 = vst.msk [vmem:[%s254 + $0x25c] sm:$0x1] %vm3021, %v2174
      %3181 = vst.msk [vmem:[%s254 + $0x25e] sm:$0x1] %vm3021, %v2176
      %3182 = vst.msk [vmem:[%s254 + $0x280] sm:$0x1] %vm3021, %v2200
      %3183 = vst.msk [vmem:[%s254 + $0x282] sm:$0x1] %vm3021, %v2214
      %3184 = vst.msk [vmem:[%s254 + $0x284] sm:$0x1] %vm3021, %v2222
      %3185 = vst.msk [vmem:[%s254 + $0x286] sm:$0x1] %vm3021, %v2224
      %3186 = vst.msk [vmem:[%s254 + $0x288] sm:$0x1] %vm3021, %v2207
      %3187 = vst.msk [vmem:[%s254 + $0x28a] sm:$0x1] %vm3021, %v2221
      %3188 = vst.msk [vmem:[%s254 + $0x28c] sm:$0x1] %vm3021, %v2223
      %3189 = vst.msk [vmem:[%s254 + $0x28e] sm:$0x1] %vm3021, %v2225
      %3190 = vst.msk [vmem:[%s254 + $0x290] sm:$0x1] %vm3021, %v2249
      %3191 = vst.msk [vmem:[%s254 + $0x292] sm:$0x1] %vm3021, %v2263
      %3192 = vst.msk [vmem:[%s254 + $0x294] sm:$0x1] %vm3021, %v2271
      %3193 = vst.msk [vmem:[%s254 + $0x296] sm:$0x1] %vm3021, %v2273
      %3194 = vst.msk [vmem:[%s254 + $0x298] sm:$0x1] %vm3021, %v2256
      %3195 = vst.msk [vmem:[%s254 + $0x29a] sm:$0x1] %vm3021, %v2270
      %3196 = vst.msk [vmem:[%s254 + $0x29c] sm:$0x1] %vm3021, %v2272
      %3197 = vst.msk [vmem:[%s254 + $0x29e] sm:$0x1] %vm3021, %v2274
      %3198 = vst.msk [vmem:[%s254 + $0x2c0] sm:$0x1] %vm3021, %v2298
      %3199 = vst.msk [vmem:[%s254 + $0x2c2] sm:$0x1] %vm3021, %v2312
      %3200 = vst.msk [vmem:[%s254 + $0x2c4] sm:$0x1] %vm3021, %v2320
      %3201 = vst.msk [vmem:[%s254 + $0x2c6] sm:$0x1] %vm3021, %v2322
      %3202 = vst.msk [vmem:[%s254 + $0x2c8] sm:$0x1] %vm3021, %v2305
      %3203 = vst.msk [vmem:[%s254 + $0x2ca] sm:$0x1] %vm3021, %v2319
      %3204 = vst.msk [vmem:[%s254 + $0x2cc] sm:$0x1] %vm3021, %v2321
      %3205 = vst.msk [vmem:[%s254 + $0x2ce] sm:$0x1] %vm3021, %v2323
      %3206 = vst.msk [vmem:[%s254 + $0x2d0] sm:$0x1] %vm3021, %v2347
      %3207 = vst.msk [vmem:[%s254 + $0x2d2] sm:$0x1] %vm3021, %v2361
      %3208 = vst.msk [vmem:[%s254 + $0x2d4] sm:$0x1] %vm3021, %v2369
      %3209 = vst.msk [vmem:[%s254 + $0x2d6] sm:$0x1] %vm3021, %v2371
      %3210 = vst.msk [vmem:[%s254 + $0x2d8] sm:$0x1] %vm3021, %v2354
      %3211 = vst.msk [vmem:[%s254 + $0x2da] sm:$0x1] %vm3021, %v2368
      %3212 = vst.msk [vmem:[%s254 + $0x2dc] sm:$0x1] %vm3021, %v2370
      %3213 = vst.msk [vmem:[%s254 + $0x2de] sm:$0x1] %vm3021, %v2372
      %3214 = vst.msk [vmem:[%s254 + $0x300] sm:$0x1] %vm3021, %v2396
      %3215 = vst.msk [vmem:[%s254 + $0x302] sm:$0x1] %vm3021, %v2410
      %3216 = vst.msk [vmem:[%s254 + $0x304] sm:$0x1] %vm3021, %v2418
      %3217 = vst.msk [vmem:[%s254 + $0x306] sm:$0x1] %vm3021, %v2420
      %3218 = vst.msk [vmem:[%s254 + $0x308] sm:$0x1] %vm3021, %v2403
      %3219 = vst.msk [vmem:[%s254 + $0x30a] sm:$0x1] %vm3021, %v2417
      %3220 = vst.msk [vmem:[%s254 + $0x30c] sm:$0x1] %vm3021, %v2419
      %3221 = vst.msk [vmem:[%s254 + $0x30e] sm:$0x1] %vm3021, %v2421
      %3222 = vst.msk [vmem:[%s254 + $0x310] sm:$0x1] %vm3021, %v2445
      %3223 = vst.msk [vmem:[%s254 + $0x312] sm:$0x1] %vm3021, %v2459
      %3224 = vst.msk [vmem:[%s254 + $0x314] sm:$0x1] %vm3021, %v2467
      %3225 = vst.msk [vmem:[%s254 + $0x316] sm:$0x1] %vm3021, %v2469
      %3226 = vst.msk [vmem:[%s254 + $0x318] sm:$0x1] %vm3021, %v2452
      %3227 = vst.msk [vmem:[%s254 + $0x31a] sm:$0x1] %vm3021, %v2466
      %3228 = vst.msk [vmem:[%s254 + $0x31c] sm:$0x1] %vm3021, %v2468
      %3229 = vst.msk [vmem:[%s254 + $0x31e] sm:$0x1] %vm3021, %v2470
      %3230 = vst.msk [vmem:[%s254 + $0x340] sm:$0x1] %vm3021, %v2494
      %3231 = vst.msk [vmem:[%s254 + $0x342] sm:$0x1] %vm3021, %v2508
      %3232 = vst.msk [vmem:[%s254 + $0x344] sm:$0x1] %vm3021, %v2516
      %3233 = vst.msk [vmem:[%s254 + $0x346] sm:$0x1] %vm3021, %v2518
      %3234 = vst.msk [vmem:[%s254 + $0x348] sm:$0x1] %vm3021, %v2501
      %3235 = vst.msk [vmem:[%s254 + $0x34a] sm:$0x1] %vm3021, %v2515
      %3236 = vst.msk [vmem:[%s254 + $0x34c] sm:$0x1] %vm3021, %v2517
      %3237 = vst.msk [vmem:[%s254 + $0x34e] sm:$0x1] %vm3021, %v2519
      %3238 = vst.msk [vmem:[%s254 + $0x350] sm:$0x1] %vm3021, %v2543
      %3239 = vst.msk [vmem:[%s254 + $0x352] sm:$0x1] %vm3021, %v2557
      %3240 = vst.msk [vmem:[%s254 + $0x354] sm:$0x1] %vm3021, %v2565
      %3241 = vst.msk [vmem:[%s254 + $0x356] sm:$0x1] %vm3021, %v2567
      %3242 = vst.msk [vmem:[%s254 + $0x358] sm:$0x1] %vm3021, %v2550
      %3243 = vst.msk [vmem:[%s254 + $0x35a] sm:$0x1] %vm3021, %v2564
      %3244 = vst.msk [vmem:[%s254 + $0x35c] sm:$0x1] %vm3021, %v2566
      %3245 = vst.msk [vmem:[%s254 + $0x35e] sm:$0x1] %vm3021, %v2568
      %3246 = vst.msk [vmem:[%s254 + $0x380] sm:$0x1] %vm3021, %v2592
      %3247 = vst.msk [vmem:[%s254 + $0x382] sm:$0x1] %vm3021, %v2606
      %3248 = vst.msk [vmem:[%s254 + $0x384] sm:$0x1] %vm3021, %v2614
      %3249 = vst.msk [vmem:[%s254 + $0x386] sm:$0x1] %vm3021, %v2616
      %3250 = vst.msk [vmem:[%s254 + $0x388] sm:$0x1] %vm3021, %v2599
      %3251 = vst.msk [vmem:[%s254 + $0x38a] sm:$0x1] %vm3021, %v2613
      %3252 = vst.msk [vmem:[%s254 + $0x38c] sm:$0x1] %vm3021, %v2615
      %3253 = vst.msk [vmem:[%s254 + $0x38e] sm:$0x1] %vm3021, %v2617
      %3254 = vst.msk [vmem:[%s254 + $0x390] sm:$0x1] %vm3021, %v2641
      %3255 = vst.msk [vmem:[%s254 + $0x392] sm:$0x1] %vm3021, %v2655
      %3256 = vst.msk [vmem:[%s254 + $0x394] sm:$0x1] %vm3021, %v2663
      %3257 = vst.msk [vmem:[%s254 + $0x396] sm:$0x1] %vm3021, %v2665
      %3258 = vst.msk [vmem:[%s254 + $0x398] sm:$0x1] %vm3021, %v2648
      %3259 = vst.msk [vmem:[%s254 + $0x39a] sm:$0x1] %vm3021, %v2662
      %3260 = vst.msk [vmem:[%s254 + $0x39c] sm:$0x1] %vm3021, %v2664
      %3261 = vst.msk [vmem:[%s254 + $0x39e] sm:$0x1] %vm3021, %v2666
      %3262 = vst.msk [vmem:[%s254 + $0x3c0] sm:$0x1] %vm3021, %v2690
      %3263 = vst.msk [vmem:[%s254 + $0x3c2] sm:$0x1] %vm3021, %v2704
      %3264 = vst.msk [vmem:[%s254 + $0x3c4] sm:$0x1] %vm3021, %v2712
      %3265 = vst.msk [vmem:[%s254 + $0x3c6] sm:$0x1] %vm3021, %v2714
      %3266 = vst.msk [vmem:[%s254 + $0x3c8] sm:$0x1] %vm3021, %v2697
      %3267 = vst.msk [vmem:[%s254 + $0x3ca] sm:$0x1] %vm3021, %v2711
      %3268 = vst.msk [vmem:[%s254 + $0x3cc] sm:$0x1] %vm3021, %v2713
      %3269 = vst.msk [vmem:[%s254 + $0x3ce] sm:$0x1] %vm3021, %v2715
      %3270 = vst.msk [vmem:[%s254 + $0x3d0] sm:$0x1] %vm3021, %v2739
      %3271 = vst.msk [vmem:[%s254 + $0x3d2] sm:$0x1] %vm3021, %v2753
      %3272 = vst.msk [vmem:[%s254 + $0x3d4] sm:$0x1] %vm3021, %v2761
      %3273 = vst.msk [vmem:[%s254 + $0x3d6] sm:$0x1] %vm3021, %v2763
      %3274 = vst.msk [vmem:[%s254 + $0x3d8] sm:$0x1] %vm3021, %v2746
      %3275 = vst.msk [vmem:[%s254 + $0x3da] sm:$0x1] %vm3021, %v2760
      %3276 = vst.msk [vmem:[%s254 + $0x3dc] sm:$0x1] %vm3021, %v2762
      %3277 = vst.msk [vmem:[%s254 + $0x3de] sm:$0x1] %vm3021, %v2764
      %3278 = vrot.lane.b32.xlu0 %v363, 4
      %v3279 = vpop.permute.xlu0 %3278
      %3280 = vrot.lane.b32.xlu0 %v368, 4
      %v3281 = vpop.permute.xlu0 %3280
      %3282 = vrot.lane.b32.xlu0 %v373, 4
      %v3283 = vpop.permute.xlu0 %3282
      %3284 = vrot.lane.b32.xlu0 %v378, 4
      %v3285 = vpop.permute.xlu0 %3284
      %3286 = vrot.lane.b32.xlu0 %v383, 4
      %v3287 = vpop.permute.xlu0 %3286
      %3288 = vrot.lane.b32.xlu0 %v388, 4
      %v3289 = vpop.permute.xlu0 %3288
      %3290 = vrot.lane.b32.xlu0 %v393, 4
      %v3291 = vpop.permute.xlu0 %3290
      %3292 = vrot.lane.b32.xlu0 %v398, 4
      %v3293 = vpop.permute.xlu0 %3292
      %3294 = vrot.lane.b32.xlu0 %v403, 4
      %v3295 = vpop.permute.xlu0 %3294
      %3296 = vrot.lane.b32.xlu0 %v408, 4
      %v3297 = vpop.permute.xlu0 %3296
      %3298 = vrot.lane.b32.xlu0 %v413, 4
      %v3299 = vpop.permute.xlu0 %3298
      %3300 = vrot.lane.b32.xlu0 %v418, 4
      %v3301 = vpop.permute.xlu0 %3300
      %3302 = vrot.lane.b32.xlu0 %v423, 4
      %v3303 = vpop.permute.xlu0 %3302
      %3304 = vrot.lane.b32.xlu0 %v428, 4
      %v3305 = vpop.permute.xlu0 %3304
      %3306 = vrot.lane.b32.xlu0 %v433, 4
      %v3307 = vpop.permute.xlu0 %3306
      %3308 = vrot.lane.b32.xlu0 %v438, 4
      %v3309 = vpop.permute.xlu0 %3308
      %3326 = vrot.lane.b32.xlu0 %v261, 8
      %v3327 = vpop.permute.xlu0 %3326
      %3328 = vrot.lane.b32.xlu0 %v264, 8
      %v3329 = vpop.permute.xlu0 %3328
      %3330 = vrot.lane.b32.xlu0 %v267, 8
      %v3331 = vpop.permute.xlu0 %3330
      %3332 = vrot.lane.b32.xlu0 %v270, 8
      %v3333 = vpop.permute.xlu0 %3332
      %3334 = vrot.lane.b32.xlu0 %v273, 8
      %v3335 = vpop.permute.xlu0 %3334
      %3336 = vrot.lane.b32.xlu0 %v276, 8
      %v3337 = vpop.permute.xlu0 %3336
      %3338 = vrot.lane.b32.xlu0 %v279, 8
      %v3339 = vpop.permute.xlu0 %3338
      %3340 = vrot.lane.b32.xlu0 %v282, 8
      %v3341 = vpop.permute.xlu0 %3340
      %3342 = vrot.lane.b32.xlu0 %v285, 8
      %v3343 = vpop.permute.xlu0 %3342
      %3344 = vrot.lane.b32.xlu0 %v288, 8
      %v3345 = vpop.permute.xlu0 %3344
      %3346 = vrot.lane.b32.xlu0 %v291, 8
      %v3347 = vpop.permute.xlu0 %3346
      %3348 = vrot.lane.b32.xlu0 %v294, 8
      %v3349 = vpop.permute.xlu0 %3348
      %3350 = vrot.lane.b32.xlu0 %v297, 8
      %v3351 = vpop.permute.xlu0 %3350
      %3352 = vrot.lane.b32.xlu0 %v300, 8
      %v3353 = vpop.permute.xlu0 %3352
      %3354 = vrot.lane.b32.xlu0 %v303, 8
      %v3355 = vpop.permute.xlu0 %3354
      %3356 = vrot.lane.b32.xlu0 %v306, 8
      %v3357 = vpop.permute.xlu0 %3356
      %3374 = vrot.lane.b32.xlu0 %v368, 12
      %v3375 = vpop.permute.xlu0 %3374
      %3376 = vrot.lane.b32.xlu0 %v373, 12
      %v3377 = vpop.permute.xlu0 %3376
      %3378 = vrot.lane.b32.xlu0 %v378, 12
      %v3379 = vpop.permute.xlu0 %3378
      %3380 = vrot.lane.b32.xlu0 %v383, 12
      %v3381 = vpop.permute.xlu0 %3380
      %3382 = vrot.lane.b32.xlu0 %v388, 12
      %v3383 = vpop.permute.xlu0 %3382
      %3384 = vrot.lane.b32.xlu0 %v393, 12
      %v3385 = vpop.permute.xlu0 %3384
      %3386 = vrot.lane.b32.xlu0 %v398, 12
      %v3387 = vpop.permute.xlu0 %3386
      %3388 = vrot.lane.b32.xlu0 %v403, 12
      %v3389 = vpop.permute.xlu0 %3388
      %3390 = vrot.lane.b32.xlu0 %v408, 12
      %v3391 = vpop.permute.xlu0 %3390
      %3392 = vrot.lane.b32.xlu0 %v413, 12
      %v3393 = vpop.permute.xlu0 %3392
      %3394 = vrot.lane.b32.xlu0 %v418, 12
      %v3395 = vpop.permute.xlu0 %3394
      %3396 = vrot.lane.b32.xlu0 %v423, 12
      %v3397 = vpop.permute.xlu0 %3396
      %3398 = vrot.lane.b32.xlu0 %v428, 12
      %v3399 = vpop.permute.xlu0 %3398
      %3400 = vrot.lane.b32.xlu0 %v433, 12
      %v3401 = vpop.permute.xlu0 %3400
      %3402 = vrot.lane.b32.xlu0 %v438, 12
      %v3403 = vpop.permute.xlu0 %3402
      %3404 = vrot.lane.b32.xlu0 %v638, 12
      %v3405 = vpop.permute.xlu0 %3404
      %v3422 = vsel %vm736, %v258, %v3279
      %v3423 = vsel %vm736, %v261, %v3281
      %v3424 = vsel %vm736, %v264, %v3283
      %v3425 = vsel %vm736, %v267, %v3285
      %v3426 = vsel %vm736, %v270, %v3287
      %v3427 = vsel %vm736, %v273, %v3289
      %v3428 = vsel %vm736, %v276, %v3291
      %v3429 = vsel %vm736, %v279, %v3293
      %v3430 = vsel %vm736, %v282, %v3295
      %v3431 = vsel %vm736, %v285, %v3297
      %v3432 = vsel %vm736, %v288, %v3299
      %v3433 = vsel %vm736, %v291, %v3301
      %v3434 = vsel %vm736, %v294, %v3303
      %v3435 = vsel %vm736, %v297, %v3305
      %v3436 = vsel %vm736, %v300, %v3307
      %v3437 = vsel %vm736, %v303, %v3309
      %v3438 = vsel %vm769, %v3422, %v3327
      %v3439 = vsel %vm769, %v3423, %v3329
      %v3440 = vsel %vm769, %v3424, %v3331
      %v3441 = vsel %vm769, %v3425, %v3333
      %v3442 = vsel %vm769, %v3426, %v3335
      %v3443 = vsel %vm769, %v3427, %v3337
      %v3444 = vsel %vm769, %v3428, %v3339
      %v3445 = vsel %vm769, %v3429, %v3341
      %v3446 = vsel %vm769, %v3430, %v3343
      %v3447 = vsel %vm769, %v3431, %v3345
      %v3448 = vsel %vm769, %v3432, %v3347
      %v3449 = vsel %vm769, %v3433, %v3349
      %v3450 = vsel %vm769, %v3434, %v3351
      %v3451 = vsel %vm769, %v3435, %v3353
      %v3452 = vsel %vm769, %v3436, %v3355
      %v3453 = vsel %vm769, %v3437, %v3357
      %v3454 = vsel %vm802, %v3438, %v3375
      %v3455 = vsel %vm802, %v3439, %v3377
      %v3456 = vsel %vm802, %v3440, %v3379
      %v3457 = vsel %vm802, %v3441, %v3381
      %v3458 = vsel %vm802, %v3442, %v3383
      %v3459 = vsel %vm802, %v3443, %v3385
      %v3460 = vsel %vm802, %v3444, %v3387
      %v3461 = vsel %vm802, %v3445, %v3389
      %v3462 = vsel %vm802, %v3446, %v3391
      %v3463 = vsel %vm802, %v3447, %v3393
      %v3464 = vsel %vm802, %v3448, %v3395
      %v3465 = vsel %vm802, %v3449, %v3397
      %v3466 = vsel %vm802, %v3450, %v3399
      %v3467 = vsel %vm802, %v3451, %v3401
      %v3468 = vsel %vm802, %v3452, %v3403
      %v3469 = vsel %vm802, %v3453, %v3405
      %v3486 = vrot.slane %v803, 1
      %v3487 = vrot.slane %v804, 1
      %v3488 = vsel %vm359, %v3486, %v3487
      %v3489 = vrot.slane %v3454, 1
      %v3490 = vsel %vm359, %v3487, %v3489
      %v3491 = vrot.slane %v805, 1
      %v3492 = vrot.slane %v806, 1
      %v3493 = vsel %vm359, %v3491, %v3492
      %v3494 = vrot.slane %v3455, 1
      %v3495 = vsel %vm359, %v3492, %v3494
      %v3496 = vrot.slane %v807, 1
      %v3497 = vrot.slane %v808, 1
      %v3498 = vsel %vm359, %v3496, %v3497
      %v3499 = vrot.slane %v3456, 1
      %v3500 = vsel %vm359, %v3497, %v3499
      %v3501 = vrot.slane %v809, 1
      %v3502 = vrot.slane %v810, 1
      %v3503 = vsel %vm359, %v3501, %v3502
      %v3504 = vrot.slane %v3457, 1
      %v3505 = vsel %vm359, %v3502, %v3504
      %v3506 = vrot.slane %v811, 1
      %v3507 = vrot.slane %v812, 1
      %v3508 = vsel %vm359, %v3506, %v3507
      %v3509 = vrot.slane %v3458, 1
      %v3510 = vsel %vm359, %v3507, %v3509
      %v3511 = vrot.slane %v813, 1
      %v3512 = vrot.slane %v814, 1
      %v3513 = vsel %vm359, %v3511, %v3512
      %v3514 = vrot.slane %v3459, 1
      %v3515 = vsel %vm359, %v3512, %v3514
      %v3516 = vrot.slane %v815, 1
      %v3517 = vrot.slane %v816, 1
      %v3518 = vsel %vm359, %v3516, %v3517
      %v3519 = vrot.slane %v3460, 1
      %v3520 = vsel %vm359, %v3517, %v3519
      %v3521 = vrot.slane %v817, 1
      %v3522 = vrot.slane %v818, 1
      %v3523 = vsel %vm359, %v3521, %v3522
      %v3524 = vrot.slane %v3461, 1
      %v3525 = vsel %vm359, %v3522, %v3524
      %v3526 = vrot.slane %v819, 1
      %v3527 = vrot.slane %v820, 1
      %v3528 = vsel %vm359, %v3526, %v3527
      %v3529 = vrot.slane %v3462, 1
      %v3530 = vsel %vm359, %v3527, %v3529
      %v3531 = vrot.slane %v821, 1
      %v3532 = vrot.slane %v822, 1
      %v3533 = vsel %vm359, %v3531, %v3532
      %v3534 = vrot.slane %v3463, 1
      %v3535 = vsel %vm359, %v3532, %v3534
      %v3536 = vrot.slane %v823, 1
      %v3537 = vrot.slane %v824, 1
      %v3538 = vsel %vm359, %v3536, %v3537
      %v3539 = vrot.slane %v3464, 1
      %v3540 = vsel %vm359, %v3537, %v3539
      %v3541 = vrot.slane %v825, 1
      %v3542 = vrot.slane %v826, 1
      %v3543 = vsel %vm359, %v3541, %v3542
      %v3544 = vrot.slane %v3465, 1
      %v3545 = vsel %vm359, %v3542, %v3544
      %v3546 = vrot.slane %v827, 1
      %v3547 = vrot.slane %v828, 1
      %v3548 = vsel %vm359, %v3546, %v3547
      %v3549 = vrot.slane %v3466, 1
      %v3550 = vsel %vm359, %v3547, %v3549
      %v3551 = vrot.slane %v829, 1
      %v3552 = vrot.slane %v830, 1
      %v3553 = vsel %vm359, %v3551, %v3552
      %v3554 = vrot.slane %v3467, 1
      %v3555 = vsel %vm359, %v3552, %v3554
      %v3556 = vrot.slane %v831, 1
      %v3557 = vrot.slane %v832, 1
      %v3558 = vsel %vm359, %v3556, %v3557
      %v3559 = vrot.slane %v3468, 1
      %v3560 = vsel %vm359, %v3557, %v3559
      %v3561 = vrot.slane %v833, 1
      %v3562 = vrot.slane %v834, 1
      %v3563 = vsel %vm359, %v3561, %v3562
      %v3564 = vrot.slane %v3469, 1
      %v3565 = vsel %vm359, %v3562, %v3564
      %s3566 = scalar_lea.vmem %s238, 16
      %v3567 = vld [vmem:[%s3566] sm:$0xff]
      %v3568 = vld [vmem:[%s3566 + $0x8] sm:$0xff]
      %v3569 = vsel %vm843, %v3488, 0
      %v3571 = vsel %vm843, %v3490, 0
      %v3573 = vsel %vm843, %v3493, 0
      %v3575 = vsel %vm843, %v3495, 0
      %v3577 = vsel %vm843, %v3498, 0
      %v3579 = vsel %vm843, %v3500, 0
      %v3581 = vsel %vm843, %v3503, 0
      %v3583 = vsel %vm843, %v3505, 0
      %v3585 = vsel %vm843, %v3508, 0
      %v3587 = vsel %vm843, %v3510, 0
      %v3589 = vsel %vm843, %v3513, 0
      %v3591 = vsel %vm843, %v3515, 0
      %v3593 = vsel %vm843, %v3518, 0
      %v3595 = vsel %vm843, %v3520, 0
      %v3597 = vsel %vm843, %v3523, 0
      %v3599 = vsel %vm843, %v3525, 0
      %v3601 = vsel %vm843, %v3528, 0
      %v3603 = vsel %vm843, %v3530, 0
      %v3605 = vsel %vm843, %v3533, 0
      %v3607 = vsel %vm843, %v3535, 0
      %v3609 = vsel %vm843, %v3538, 0
      %v3611 = vsel %vm843, %v3540, 0
      %v3613 = vsel %vm843, %v3543, 0
      %v3615 = vsel %vm843, %v3545, 0
      %v3617 = vsel %vm843, %v3548, 0
      %v3619 = vsel %vm843, %v3550, 0
      %v3621 = vsel %vm843, %v3553, 0
      %v3623 = vsel %vm843, %v3555, 0
      %v3625 = vsel %vm843, %v3558, 0
      %v3627 = vsel %vm843, %v3560, 0
      %v3629 = vsel %vm843, %v3563, 0
      %v3631 = vsel %vm843, %v3565, 0
      %3633 = vmatprep.subr.mxu0 0.0
      %3634 = vmatpush1.msra.mxu0 0.0
      %3635 = vmatprep.subr.mxu0 0.0
      %3636 = vmatpush1.msra.mxu0 0.0
      %3637 = vmatprep.subr.mxu0 0.0
      %3638 = vmatpush1.msra.mxu0 0.0
      %3639 = vmatprep.subr.mxu0 0.0
      %3640 = vmatpush1.msra.mxu0 0.0
      %3641 = vmatprep.subr.mxu0 0.0
      %3642 = vmatpush1.msra.mxu0 0.0
      %3643 = vmatprep.subr.mxu0 0.0
      %3644 = vmatpush1.msra.mxu0 0.0
      %3645 = vmatprep.subr.mxu0 0.0
      %3646 = vmatpush1.msra.mxu0 0.0
      %3647 = vmatprep.subr.mxu0 0.0
      %3648 = vmatpush1.msra.mxu0 0.0
      %3649 = vmatprep.subr.mxu0 0.0
      %3650 = vmatpush1.msra.mxu0 0.0
      %3651 = vmatprep.subr.mxu0 0.0
      %3652 = vmatpush1.msra.mxu0 0.0
      %3653 = vmatprep.subr.mxu0 0.0
      %3654 = vmatpush1.msra.mxu0 0.0
      %3655 = vmatprep.subr.mxu0 0.0
      %3656 = vmatpush1.msra.mxu0 0.0
      %3657 = vmatprep.subr.mxu0 0.0
      %3658 = vmatpush1.msra.mxu0 0.0
      %3659 = vmatprep.subr.mxu0 0.0
      %3660 = vmatpush1.msra.mxu0 0.0
      %3661 = vmatprep.subr.mxu0 0.0
      %3662 = vmatpush1.msra.mxu0 %v3568
      %3663 = vmatprep.subr.mxu0 0.0
      %3664 = vmatpush1.msra.mxu0 %v3567
      %3665 = vmatprep.subr.mxu0 0.0
      %3666 = vmatpush2.msra.mxu0 0.0
      %3667 = vmatprep.subr.mxu0 0.0
      %3668 = vmatpush2.msra.mxu0 0.0
      %3669 = vmatprep.subr.mxu0 0.0
      %3670 = vmatpush2.msra.mxu0 0.0
      %3671 = vmatprep.subr.mxu0 0.0
      %3672 = vmatpush2.msra.mxu0 0.0
      %3673 = vmatprep.subr.mxu0 0.0
      %3674 = vmatpush2.msra.mxu0 0.0
      %3675 = vmatprep.subr.mxu0 0.0
      %3676 = vmatpush2.msra.mxu0 0.0
      %3677 = vmatprep.subr.mxu0 0.0
      %3678 = vmatpush2.msra.mxu0 0.0
      %3679 = vmatprep.subr.mxu0 0.0
      %3680 = vmatpush2.msra.mxu0 0.0
      %3681 = vmatprep.subr.mxu0 0.0
      %3682 = vmatpush2.msra.mxu0 0.0
      %3683 = vmatprep.subr.mxu0 0.0
      %3684 = vmatpush2.msra.mxu0 0.0
      %3685 = vmatprep.subr.mxu0 0.0
      %3686 = vmatpush2.msra.mxu0 0.0
      %3687 = vmatprep.subr.mxu0 0.0
      %3688 = vmatpush2.msra.mxu0 0.0
      %3689 = vmatprep.subr.mxu0 0.0
      %3690 = vmatpush2.msra.mxu0 0.0
      %3691 = vmatprep.subr.mxu0 0.0
      %3692 = vmatpush2.msra.mxu0 0.0
      %3693 = vmatprep.subr.mxu0 0.0
      %3694 = vmatpush2.msra.mxu0 0.0
      %3695 = vmatprep.subr.mxu0 0.0
      %3696 = vmatpush2.msra.mxu0 0.0
      %3697 = vmatprep.mubr.f32.mxu0 0.0
      %3698 = vmatmul.mubr.f32.gmra.mxu0 %v3569
      %v3699 = vpop.f32.mrf.mxu0
      %v3700 = vadd.f32 %v841, %v3699
      %v3701 = vpop.f32.mrf.mxu0
      %3702 = vmatprep.mubr.f32.mxu0 0.0
      %3703 = vmatmul.mubr.f32.gmra.mxu0 %v3571
      %v3704 = vpop.f32.mrf.mxu0
      %v3705 = vadd.f32 %v841, %v3704
      %v3706 = vpop.f32.mrf.mxu0
      %3707 = vmatprep.mubr.f32.mxu0 0.0
      %3708 = vmatmul.mubr.f32.gmra.mxu0 %v3573
      %v3709 = vpop.f32.mrf.mxu0
      %v3710 = vadd.f32 %v841, %v3709
      %v3711 = vpop.f32.mrf.mxu0
      %3712 = vmatprep.mubr.f32.mxu0 0.0
      %3713 = vmatmul.mubr.f32.gmra.mxu0 %v3575
      %v3714 = vpop.f32.mrf.mxu0
      %v3715 = vadd.f32 %v841, %v3714
      %v3716 = vpop.f32.mrf.mxu0
      %3717 = vmatprep.mubr.f32.mxu0 0.0
      %3718 = vmatmul.mubr.f32.gmra.mxu0 %v3577
      %v3719 = vpop.f32.mrf.mxu0
      %v3720 = vadd.f32 %v841, %v3719
      %v3721 = vpop.f32.mrf.mxu0
      %3722 = vmatprep.mubr.f32.mxu0 0.0
      %3723 = vmatmul.mubr.f32.gmra.mxu0 %v3579
      %v3724 = vpop.f32.mrf.mxu0
      %v3725 = vadd.f32 %v841, %v3724
      %v3726 = vpop.f32.mrf.mxu0
      %3727 = vmatprep.mubr.f32.mxu0 0.0
      %3728 = vmatmul.mubr.f32.gmra.mxu0 %v3581
      %v3729 = vpop.f32.mrf.mxu0
      %v3730 = vadd.f32 %v841, %v3729
      %v3731 = vpop.f32.mrf.mxu0
      %3732 = vmatprep.mubr.f32.mxu0 0.0
      %3733 = vmatmul.mubr.f32.gmra.mxu0 %v3583
      %v3734 = vpop.f32.mrf.mxu0
      %v3735 = vadd.f32 %v841, %v3734
      %v3736 = vpop.f32.mrf.mxu0
      %3737 = vmatprep.mubr.f32.mxu0 0.0
      %3738 = vmatmul.mubr.f32.gmra.mxu0 %v3585
      %v3739 = vpop.f32.mrf.mxu0
      %v3740 = vadd.f32 %v841, %v3739
      %v3741 = vpop.f32.mrf.mxu0
      %3742 = vmatprep.mubr.f32.mxu0 0.0
      %3743 = vmatmul.mubr.f32.gmra.mxu0 %v3587
      %v3744 = vpop.f32.mrf.mxu0
      %v3745 = vadd.f32 %v841, %v3744
      %v3746 = vpop.f32.mrf.mxu0
      %3747 = vmatprep.mubr.f32.mxu0 0.0
      %3748 = vmatmul.mubr.f32.gmra.mxu0 %v3589
      %v3749 = vpop.f32.mrf.mxu0
      %v3750 = vadd.f32 %v841, %v3749
      %v3751 = vpop.f32.mrf.mxu0
      %3752 = vmatprep.mubr.f32.mxu0 0.0
      %3753 = vmatmul.mubr.f32.gmra.mxu0 %v3591
      %v3754 = vpop.f32.mrf.mxu0
      %v3755 = vadd.f32 %v841, %v3754
      %v3756 = vpop.f32.mrf.mxu0
      %3757 = vmatprep.mubr.f32.mxu0 0.0
      %3758 = vmatmul.mubr.f32.gmra.mxu0 %v3593
      %v3759 = vpop.f32.mrf.mxu0
      %v3760 = vadd.f32 %v841, %v3759
      %v3761 = vpop.f32.mrf.mxu0
      %3762 = vmatprep.mubr.f32.mxu0 0.0
      %3763 = vmatmul.mubr.f32.gmra.mxu0 %v3595
      %v3764 = vpop.f32.mrf.mxu0
      %v3765 = vadd.f32 %v841, %v3764
      %v3766 = vpop.f32.mrf.mxu0
      %3767 = vmatprep.mubr.f32.mxu0 0.0
      %3768 = vmatmul.mubr.f32.gmra.mxu0 %v3597
      %v3769 = vpop.f32.mrf.mxu0
      %v3770 = vadd.f32 %v841, %v3769
      %v3771 = vpop.f32.mrf.mxu0
      %3772 = vmatprep.mubr.f32.mxu0 0.0
      %3773 = vmatmul.mubr.f32.gmra.mxu0 %v3599
      %v3774 = vpop.f32.mrf.mxu0
      %v3775 = vadd.f32 %v841, %v3774
      %v3776 = vpop.f32.mrf.mxu0
      %3777 = vmatprep.mubr.f32.mxu0 0.0
      %3778 = vmatmul.mubr.f32.gmra.mxu0 %v3601
      %v3779 = vpop.f32.mrf.mxu0
      %v3780 = vadd.f32 %v841, %v3779
      %v3781 = vpop.f32.mrf.mxu0
      %3782 = vmatprep.mubr.f32.mxu0 0.0
      %3783 = vmatmul.mubr.f32.gmra.mxu0 %v3603
      %v3784 = vpop.f32.mrf.mxu0
      %v3785 = vadd.f32 %v841, %v3784
      %v3786 = vpop.f32.mrf.mxu0
      %3787 = vmatprep.mubr.f32.mxu0 0.0
      %3788 = vmatmul.mubr.f32.gmra.mxu0 %v3605
      %v3789 = vpop.f32.mrf.mxu0
      %v3790 = vadd.f32 %v841, %v3789
      %v3791 = vpop.f32.mrf.mxu0
      %3792 = vmatprep.mubr.f32.mxu0 0.0
      %3793 = vmatmul.mubr.f32.gmra.mxu0 %v3607
      %v3794 = vpop.f32.mrf.mxu0
      %v3795 = vadd.f32 %v841, %v3794
      %v3796 = vpop.f32.mrf.mxu0
      %3797 = vmatprep.mubr.f32.mxu0 0.0
      %3798 = vmatmul.mubr.f32.gmra.mxu0 %v3609
      %v3799 = vpop.f32.mrf.mxu0
      %v3800 = vadd.f32 %v841, %v3799
      %v3801 = vpop.f32.mrf.mxu0
      %3802 = vmatprep.mubr.f32.mxu0 0.0
      %3803 = vmatmul.mubr.f32.gmra.mxu0 %v3611
      %v3804 = vpop.f32.mrf.mxu0
      %v3805 = vadd.f32 %v841, %v3804
      %v3806 = vpop.f32.mrf.mxu0
      %3807 = vmatprep.mubr.f32.mxu0 0.0
      %3808 = vmatmul.mubr.f32.gmra.mxu0 %v3613
      %v3809 = vpop.f32.mrf.mxu0
      %v3810 = vadd.f32 %v841, %v3809
      %v3811 = vpop.f32.mrf.mxu0
      %3812 = vmatprep.mubr.f32.mxu0 0.0
      %3813 = vmatmul.mubr.f32.gmra.mxu0 %v3615
      %v3814 = vpop.f32.mrf.mxu0
      %v3815 = vadd.f32 %v841, %v3814
      %v3816 = vpop.f32.mrf.mxu0
      %3817 = vmatprep.mubr.f32.mxu0 0.0
      %3818 = vmatmul.mubr.f32.gmra.mxu0 %v3617
      %v3819 = vpop.f32.mrf.mxu0
      %v3820 = vadd.f32 %v841, %v3819
      %v3821 = vpop.f32.mrf.mxu0
      %3822 = vmatprep.mubr.f32.mxu0 0.0
      %3823 = vmatmul.mubr.f32.gmra.mxu0 %v3619
      %v3824 = vpop.f32.mrf.mxu0
      %v3825 = vadd.f32 %v841, %v3824
      %v3826 = vpop.f32.mrf.mxu0
      %3827 = vmatprep.mubr.f32.mxu0 0.0
      %3828 = vmatmul.mubr.f32.gmra.mxu0 %v3621
      %v3829 = vpop.f32.mrf.mxu0
      %v3830 = vadd.f32 %v841, %v3829
      %v3831 = vpop.f32.mrf.mxu0
      %3832 = vmatprep.mubr.f32.mxu0 0.0
      %3833 = vmatmul.mubr.f32.gmra.mxu0 %v3623
      %v3834 = vpop.f32.mrf.mxu0
      %v3835 = vadd.f32 %v841, %v3834
      %v3836 = vpop.f32.mrf.mxu0
      %3837 = vmatprep.mubr.f32.mxu0 0.0
      %3838 = vmatmul.mubr.f32.gmra.mxu0 %v3625
      %v3839 = vpop.f32.mrf.mxu0
      %v3840 = vadd.f32 %v841, %v3839
      %v3841 = vpop.f32.mrf.mxu0
      %3842 = vmatprep.mubr.f32.mxu0 0.0
      %3843 = vmatmul.mubr.f32.gmra.mxu0 %v3627
      %v3844 = vpop.f32.mrf.mxu0
      %v3845 = vadd.f32 %v841, %v3844
      %v3846 = vpop.f32.mrf.mxu0
      %3847 = vmatprep.mubr.f32.mxu0 0.0
      %3848 = vmatmul.mubr.f32.gmra.mxu0 %v3629
      %v3849 = vpop.f32.mrf.mxu0
      %v3850 = vadd.f32 %v841, %v3849
      %v3851 = vpop.f32.mrf.mxu0
      %3852 = vmatprep.mubr.f32.mxu0 0.0
      %3853 = vmatmul.mubr.f32.gmra.mxu0 %v3631
      %v3854 = vpop.f32.mrf.mxu0
      %v3855 = vadd.f32 %v841, %v3854
      %v3856 = vpop.f32.mrf.mxu0
      %3857 = vdwg.mxu0
      %v3890 = vcombine.high %v3700, %v3700
      %v3892 = vunpack.c.l.s4 1966171168
      %v3893 = vunpack.c.0.s8 %v3892
      %v3894 = vlaneseq
      %v3895 = vshrl.u32 %v3894, 7
      %v3896 = vsub.s32 %v3893, %v3895
      %v3897 = vrot.slane %v3700, %v3896
      %v3899 = vunpack.c.l.s4 1966171168
      %v3900 = vunpack.c.0.s8 %v3899
      %v3901 = vlaneseq
      %v3902 = vshrl.u32 %v3901, 7
      %v3903 = vsub.s32 %v3900, %v3902
      %v3904 = vrot.slane %v3890, %v3903
      %v3905 = vcombine.high %v3897, %v3897
      %v3906 = vcombine.high %v3904, %v3904
      %v3908 = vunpack.c.l.s4 1966171168
      %v3909 = vunpack.c.0.s8 %v3908
      %v3910 = vlaneseq
      %v3911 = vshrl.u32 %v3910, 7
      %v3912 = vsub.s32 %v3909, %v3911
      %v3913 = vrot.slane %v3897, %v3912
      %v3915 = vunpack.c.l.s4 1966171168
      %v3916 = vunpack.c.0.s8 %v3915
      %v3917 = vlaneseq
      %v3918 = vshrl.u32 %v3917, 7
      %v3919 = vsub.s32 %v3916, %v3918
      %v3920 = vrot.slane %v3904, %v3919
      %v3922 = vunpack.c.l.s4 1966171168
      %v3923 = vunpack.c.0.s8 %v3922
      %v3924 = vlaneseq
      %v3925 = vshrl.u32 %v3924, 7
      %v3926 = vsub.s32 %v3923, %v3925
      %v3927 = vrot.slane %v3905, %v3926
      %v3929 = vunpack.c.l.s4 1966171168
      %v3930 = vunpack.c.0.s8 %v3929
      %v3931 = vlaneseq
      %v3932 = vshrl.u32 %v3931, 7
      %v3933 = vsub.s32 %v3930, %v3932
      %v3934 = vrot.slane %v3906, %v3933
      %v3935 = vcombine.high %v3913, %v3913
      %v3936 = vcombine.high %v3920, %v3920
      %v3937 = vcombine.high %v3927, %v3927
      %v3938 = vcombine.high %v3934, %v3934
      %v3939 = vcombine.high %v3705, %v3705
      %v3941 = vunpack.c.l.s4 1966171168
      %v3942 = vunpack.c.0.s8 %v3941
      %v3943 = vlaneseq
      %v3944 = vshrl.u32 %v3943, 7
      %v3945 = vsub.s32 %v3942, %v3944
      %v3946 = vrot.slane %v3705, %v3945
      %v3948 = vunpack.c.l.s4 1966171168
      %v3949 = vunpack.c.0.s8 %v3948
      %v3950 = vlaneseq
      %v3951 = vshrl.u32 %v3950, 7
      %v3952 = vsub.s32 %v3949, %v3951
      %v3953 = vrot.slane %v3939, %v3952
      %v3954 = vcombine.high %v3946, %v3946
      %v3955 = vcombine.high %v3953, %v3953
      %v3957 = vunpack.c.l.s4 1966171168
      %v3958 = vunpack.c.0.s8 %v3957
      %v3959 = vlaneseq
      %v3960 = vshrl.u32 %v3959, 7
      %v3961 = vsub.s32 %v3958, %v3960
      %v3962 = vrot.slane %v3946, %v3961
      %v3964 = vunpack.c.l.s4 1966171168
      %v3965 = vunpack.c.0.s8 %v3964
      %v3966 = vlaneseq
      %v3967 = vshrl.u32 %v3966, 7
      %v3968 = vsub.s32 %v3965, %v3967
      %v3969 = vrot.slane %v3953, %v3968
      %v3971 = vunpack.c.l.s4 1966171168
      %v3972 = vunpack.c.0.s8 %v3971
      %v3973 = vlaneseq
      %v3974 = vshrl.u32 %v3973, 7
      %v3975 = vsub.s32 %v3972, %v3974
      %v3976 = vrot.slane %v3954, %v3975
      %v3978 = vunpack.c.l.s4 1966171168
      %v3979 = vunpack.c.0.s8 %v3978
      %v3980 = vlaneseq
      %v3981 = vshrl.u32 %v3980, 7
      %v3982 = vsub.s32 %v3979, %v3981
      %v3983 = vrot.slane %v3955, %v3982
      %v3984 = vcombine.high %v3962, %v3962
      %v3985 = vcombine.high %v3969, %v3969
      %v3986 = vcombine.high %v3976, %v3976
      %v3987 = vcombine.high %v3983, %v3983
      %v3988 = vcombine.high %v3710, %v3710
      %v3990 = vunpack.c.l.s4 1966171168
      %v3991 = vunpack.c.0.s8 %v3990
      %v3992 = vlaneseq
      %v3993 = vshrl.u32 %v3992, 7
      %v3994 = vsub.s32 %v3991, %v3993
      %v3995 = vrot.slane %v3710, %v3994
      %v3997 = vunpack.c.l.s4 1966171168
      %v3998 = vunpack.c.0.s8 %v3997
      %v3999 = vlaneseq
      %v4000 = vshrl.u32 %v3999, 7
      %v4001 = vsub.s32 %v3998, %v4000
      %v4002 = vrot.slane %v3988, %v4001
      %v4003 = vcombine.high %v3995, %v3995
      %v4004 = vcombine.high %v4002, %v4002
      %v4006 = vunpack.c.l.s4 1966171168
      %v4007 = vunpack.c.0.s8 %v4006
      %v4008 = vlaneseq
      %v4009 = vshrl.u32 %v4008, 7
      %v4010 = vsub.s32 %v4007, %v4009
      %v4011 = vrot.slane %v3995, %v4010
      %v4013 = vunpack.c.l.s4 1966171168
      %v4014 = vunpack.c.0.s8 %v4013
      %v4015 = vlaneseq
      %v4016 = vshrl.u32 %v4015, 7
      %v4017 = vsub.s32 %v4014, %v4016
      %v4018 = vrot.slane %v4002, %v4017
      %v4020 = vunpack.c.l.s4 1966171168
      %v4021 = vunpack.c.0.s8 %v4020
      %v4022 = vlaneseq
      %v4023 = vshrl.u32 %v4022, 7
      %v4024 = vsub.s32 %v4021, %v4023
      %v4025 = vrot.slane %v4003, %v4024
      %v4027 = vunpack.c.l.s4 1966171168
      %v4028 = vunpack.c.0.s8 %v4027
      %v4029 = vlaneseq
      %v4030 = vshrl.u32 %v4029, 7
      %v4031 = vsub.s32 %v4028, %v4030
      %v4032 = vrot.slane %v4004, %v4031
      %v4033 = vcombine.high %v4011, %v4011
      %v4034 = vcombine.high %v4018, %v4018
      %v4035 = vcombine.high %v4025, %v4025
      %v4036 = vcombine.high %v4032, %v4032
      %v4037 = vcombine.high %v3715, %v3715
      %v4039 = vunpack.c.l.s4 1966171168
      %v4040 = vunpack.c.0.s8 %v4039
      %v4041 = vlaneseq
      %v4042 = vshrl.u32 %v4041, 7
      %v4043 = vsub.s32 %v4040, %v4042
      %v4044 = vrot.slane %v3715, %v4043
      %v4046 = vunpack.c.l.s4 1966171168
      %v4047 = vunpack.c.0.s8 %v4046
      %v4048 = vlaneseq
      %v4049 = vshrl.u32 %v4048, 7
      %v4050 = vsub.s32 %v4047, %v4049
      %v4051 = vrot.slane %v4037, %v4050
      %v4052 = vcombine.high %v4044, %v4044
      %v4053 = vcombine.high %v4051, %v4051
      %v4055 = vunpack.c.l.s4 1966171168
      %v4056 = vunpack.c.0.s8 %v4055
      %v4057 = vlaneseq
      %v4058 = vshrl.u32 %v4057, 7
      %v4059 = vsub.s32 %v4056, %v4058
      %v4060 = vrot.slane %v4044, %v4059
      %v4062 = vunpack.c.l.s4 1966171168
      %v4063 = vunpack.c.0.s8 %v4062
      %v4064 = vlaneseq
      %v4065 = vshrl.u32 %v4064, 7
      %v4066 = vsub.s32 %v4063, %v4065
      %v4067 = vrot.slane %v4051, %v4066
      %v4069 = vunpack.c.l.s4 1966171168
      %v4070 = vunpack.c.0.s8 %v4069
      %v4071 = vlaneseq
      %v4072 = vshrl.u32 %v4071, 7
      %v4073 = vsub.s32 %v4070, %v4072
      %v4074 = vrot.slane %v4052, %v4073
      %v4076 = vunpack.c.l.s4 1966171168
      %v4077 = vunpack.c.0.s8 %v4076
      %v4078 = vlaneseq
      %v4079 = vshrl.u32 %v4078, 7
      %v4080 = vsub.s32 %v4077, %v4079
      %v4081 = vrot.slane %v4053, %v4080
      %v4082 = vcombine.high %v4060, %v4060
      %v4083 = vcombine.high %v4067, %v4067
      %v4084 = vcombine.high %v4074, %v4074
      %v4085 = vcombine.high %v4081, %v4081
      %v4086 = vcombine.high %v3720, %v3720
      %v4088 = vunpack.c.l.s4 1966171168
      %v4089 = vunpack.c.0.s8 %v4088
      %v4090 = vlaneseq
      %v4091 = vshrl.u32 %v4090, 7
      %v4092 = vsub.s32 %v4089, %v4091
      %v4093 = vrot.slane %v3720, %v4092
      %v4095 = vunpack.c.l.s4 1966171168
      %v4096 = vunpack.c.0.s8 %v4095
      %v4097 = vlaneseq
      %v4098 = vshrl.u32 %v4097, 7
      %v4099 = vsub.s32 %v4096, %v4098
      %v4100 = vrot.slane %v4086, %v4099
      %v4101 = vcombine.high %v4093, %v4093
      %v4102 = vcombine.high %v4100, %v4100
      %v4104 = vunpack.c.l.s4 1966171168
      %v4105 = vunpack.c.0.s8 %v4104
      %v4106 = vlaneseq
      %v4107 = vshrl.u32 %v4106, 7
      %v4108 = vsub.s32 %v4105, %v4107
      %v4109 = vrot.slane %v4093, %v4108
      %v4111 = vunpack.c.l.s4 1966171168
      %v4112 = vunpack.c.0.s8 %v4111
      %v4113 = vlaneseq
      %v4114 = vshrl.u32 %v4113, 7
      %v4115 = vsub.s32 %v4112, %v4114
      %v4116 = vrot.slane %v4100, %v4115
      %v4118 = vunpack.c.l.s4 1966171168
      %v4119 = vunpack.c.0.s8 %v4118
      %v4120 = vlaneseq
      %v4121 = vshrl.u32 %v4120, 7
      %v4122 = vsub.s32 %v4119, %v4121
      %v4123 = vrot.slane %v4101, %v4122
      %v4125 = vunpack.c.l.s4 1966171168
      %v4126 = vunpack.c.0.s8 %v4125
      %v4127 = vlaneseq
      %v4128 = vshrl.u32 %v4127, 7
      %v4129 = vsub.s32 %v4126, %v4128
      %v4130 = vrot.slane %v4102, %v4129
      %v4131 = vcombine.high %v4109, %v4109
      %v4132 = vcombine.high %v4116, %v4116
      %v4133 = vcombine.high %v4123, %v4123
      %v4134 = vcombine.high %v4130, %v4130
      %v4135 = vcombine.high %v3725, %v3725
      %v4137 = vunpack.c.l.s4 1966171168
      %v4138 = vunpack.c.0.s8 %v4137
      %v4139 = vlaneseq
      %v4140 = vshrl.u32 %v4139, 7
      %v4141 = vsub.s32 %v4138, %v4140
      %v4142 = vrot.slane %v3725, %v4141
      %v4144 = vunpack.c.l.s4 1966171168
      %v4145 = vunpack.c.0.s8 %v4144
      %v4146 = vlaneseq
      %v4147 = vshrl.u32 %v4146, 7
      %v4148 = vsub.s32 %v4145, %v4147
      %v4149 = vrot.slane %v4135, %v4148
      %v4150 = vcombine.high %v4142, %v4142
      %v4151 = vcombine.high %v4149, %v4149
      %v4153 = vunpack.c.l.s4 1966171168
      %v4154 = vunpack.c.0.s8 %v4153
      %v4155 = vlaneseq
      %v4156 = vshrl.u32 %v4155, 7
      %v4157 = vsub.s32 %v4154, %v4156
      %v4158 = vrot.slane %v4142, %v4157
      %v4160 = vunpack.c.l.s4 1966171168
      %v4161 = vunpack.c.0.s8 %v4160
      %v4162 = vlaneseq
      %v4163 = vshrl.u32 %v4162, 7
      %v4164 = vsub.s32 %v4161, %v4163
      %v4165 = vrot.slane %v4149, %v4164
      %v4167 = vunpack.c.l.s4 1966171168
      %v4168 = vunpack.c.0.s8 %v4167
      %v4169 = vlaneseq
      %v4170 = vshrl.u32 %v4169, 7
      %v4171 = vsub.s32 %v4168, %v4170
      %v4172 = vrot.slane %v4150, %v4171
      %v4174 = vunpack.c.l.s4 1966171168
      %v4175 = vunpack.c.0.s8 %v4174
      %v4176 = vlaneseq
      %v4177 = vshrl.u32 %v4176, 7
      %v4178 = vsub.s32 %v4175, %v4177
      %v4179 = vrot.slane %v4151, %v4178
      %v4180 = vcombine.high %v4158, %v4158
      %v4181 = vcombine.high %v4165, %v4165
      %v4182 = vcombine.high %v4172, %v4172
      %v4183 = vcombine.high %v4179, %v4179
      %v4184 = vcombine.high %v3730, %v3730
      %v4186 = vunpack.c.l.s4 1966171168
      %v4187 = vunpack.c.0.s8 %v4186
      %v4188 = vlaneseq
      %v4189 = vshrl.u32 %v4188, 7
      %v4190 = vsub.s32 %v4187, %v4189
      %v4191 = vrot.slane %v3730, %v4190
      %v4193 = vunpack.c.l.s4 1966171168
      %v4194 = vunpack.c.0.s8 %v4193
      %v4195 = vlaneseq
      %v4196 = vshrl.u32 %v4195, 7
      %v4197 = vsub.s32 %v4194, %v4196
      %v4198 = vrot.slane %v4184, %v4197
      %v4199 = vcombine.high %v4191, %v4191
      %v4200 = vcombine.high %v4198, %v4198
      %v4202 = vunpack.c.l.s4 1966171168
      %v4203 = vunpack.c.0.s8 %v4202
      %v4204 = vlaneseq
      %v4205 = vshrl.u32 %v4204, 7
      %v4206 = vsub.s32 %v4203, %v4205
      %v4207 = vrot.slane %v4191, %v4206
      %v4209 = vunpack.c.l.s4 1966171168
      %v4210 = vunpack.c.0.s8 %v4209
      %v4211 = vlaneseq
      %v4212 = vshrl.u32 %v4211, 7
      %v4213 = vsub.s32 %v4210, %v4212
      %v4214 = vrot.slane %v4198, %v4213
      %v4216 = vunpack.c.l.s4 1966171168
      %v4217 = vunpack.c.0.s8 %v4216
      %v4218 = vlaneseq
      %v4219 = vshrl.u32 %v4218, 7
      %v4220 = vsub.s32 %v4217, %v4219
      %v4221 = vrot.slane %v4199, %v4220
      %v4223 = vunpack.c.l.s4 1966171168
      %v4224 = vunpack.c.0.s8 %v4223
      %v4225 = vlaneseq
      %v4226 = vshrl.u32 %v4225, 7
      %v4227 = vsub.s32 %v4224, %v4226
      %v4228 = vrot.slane %v4200, %v4227
      %v4229 = vcombine.high %v4207, %v4207
      %v4230 = vcombine.high %v4214, %v4214
      %v4231 = vcombine.high %v4221, %v4221
      %v4232 = vcombine.high %v4228, %v4228
      %v4233 = vcombine.high %v3735, %v3735
      %v4235 = vunpack.c.l.s4 1966171168
      %v4236 = vunpack.c.0.s8 %v4235
      %v4237 = vlaneseq
      %v4238 = vshrl.u32 %v4237, 7
      %v4239 = vsub.s32 %v4236, %v4238
      %v4240 = vrot.slane %v3735, %v4239
      %v4242 = vunpack.c.l.s4 1966171168
      %v4243 = vunpack.c.0.s8 %v4242
      %v4244 = vlaneseq
      %v4245 = vshrl.u32 %v4244, 7
      %v4246 = vsub.s32 %v4243, %v4245
      %v4247 = vrot.slane %v4233, %v4246
      %v4248 = vcombine.high %v4240, %v4240
      %v4249 = vcombine.high %v4247, %v4247
      %v4251 = vunpack.c.l.s4 1966171168
      %v4252 = vunpack.c.0.s8 %v4251
      %v4253 = vlaneseq
      %v4254 = vshrl.u32 %v4253, 7
      %v4255 = vsub.s32 %v4252, %v4254
      %v4256 = vrot.slane %v4240, %v4255
      %v4258 = vunpack.c.l.s4 1966171168
      %v4259 = vunpack.c.0.s8 %v4258
      %v4260 = vlaneseq
      %v4261 = vshrl.u32 %v4260, 7
      %v4262 = vsub.s32 %v4259, %v4261
      %v4263 = vrot.slane %v4247, %v4262
      %v4265 = vunpack.c.l.s4 1966171168
      %v4266 = vunpack.c.0.s8 %v4265
      %v4267 = vlaneseq
      %v4268 = vshrl.u32 %v4267, 7
      %v4269 = vsub.s32 %v4266, %v4268
      %v4270 = vrot.slane %v4248, %v4269
      %v4272 = vunpack.c.l.s4 1966171168
      %v4273 = vunpack.c.0.s8 %v4272
      %v4274 = vlaneseq
      %v4275 = vshrl.u32 %v4274, 7
      %v4276 = vsub.s32 %v4273, %v4275
      %v4277 = vrot.slane %v4249, %v4276
      %v4278 = vcombine.high %v4256, %v4256
      %v4279 = vcombine.high %v4263, %v4263
      %v4280 = vcombine.high %v4270, %v4270
      %v4281 = vcombine.high %v4277, %v4277
      %v4282 = vcombine.high %v3740, %v3740
      %v4284 = vunpack.c.l.s4 1966171168
      %v4285 = vunpack.c.0.s8 %v4284
      %v4286 = vlaneseq
      %v4287 = vshrl.u32 %v4286, 7
      %v4288 = vsub.s32 %v4285, %v4287
      %v4289 = vrot.slane %v3740, %v4288
      %v4291 = vunpack.c.l.s4 1966171168
      %v4292 = vunpack.c.0.s8 %v4291
      %v4293 = vlaneseq
      %v4294 = vshrl.u32 %v4293, 7
      %v4295 = vsub.s32 %v4292, %v4294
      %v4296 = vrot.slane %v4282, %v4295
      %v4297 = vcombine.high %v4289, %v4289
      %v4298 = vcombine.high %v4296, %v4296
      %v4300 = vunpack.c.l.s4 1966171168
      %v4301 = vunpack.c.0.s8 %v4300
      %v4302 = vlaneseq
      %v4303 = vshrl.u32 %v4302, 7
      %v4304 = vsub.s32 %v4301, %v4303
      %v4305 = vrot.slane %v4289, %v4304
      %v4307 = vunpack.c.l.s4 1966171168
      %v4308 = vunpack.c.0.s8 %v4307
      %v4309 = vlaneseq
      %v4310 = vshrl.u32 %v4309, 7
      %v4311 = vsub.s32 %v4308, %v4310
      %v4312 = vrot.slane %v4296, %v4311
      %v4314 = vunpack.c.l.s4 1966171168
      %v4315 = vunpack.c.0.s8 %v4314
      %v4316 = vlaneseq
      %v4317 = vshrl.u32 %v4316, 7
      %v4318 = vsub.s32 %v4315, %v4317
      %v4319 = vrot.slane %v4297, %v4318
      %v4321 = vunpack.c.l.s4 1966171168
      %v4322 = vunpack.c.0.s8 %v4321
      %v4323 = vlaneseq
      %v4324 = vshrl.u32 %v4323, 7
      %v4325 = vsub.s32 %v4322, %v4324
      %v4326 = vrot.slane %v4298, %v4325
      %v4327 = vcombine.high %v4305, %v4305
      %v4328 = vcombine.high %v4312, %v4312
      %v4329 = vcombine.high %v4319, %v4319
      %v4330 = vcombine.high %v4326, %v4326
      %v4331 = vcombine.high %v3745, %v3745
      %v4333 = vunpack.c.l.s4 1966171168
      %v4334 = vunpack.c.0.s8 %v4333
      %v4335 = vlaneseq
      %v4336 = vshrl.u32 %v4335, 7
      %v4337 = vsub.s32 %v4334, %v4336
      %v4338 = vrot.slane %v3745, %v4337
      %v4340 = vunpack.c.l.s4 1966171168
      %v4341 = vunpack.c.0.s8 %v4340
      %v4342 = vlaneseq
      %v4343 = vshrl.u32 %v4342, 7
      %v4344 = vsub.s32 %v4341, %v4343
      %v4345 = vrot.slane %v4331, %v4344
      %v4346 = vcombine.high %v4338, %v4338
      %v4347 = vcombine.high %v4345, %v4345
      %v4349 = vunpack.c.l.s4 1966171168
      %v4350 = vunpack.c.0.s8 %v4349
      %v4351 = vlaneseq
      %v4352 = vshrl.u32 %v4351, 7
      %v4353 = vsub.s32 %v4350, %v4352
      %v4354 = vrot.slane %v4338, %v4353
      %v4356 = vunpack.c.l.s4 1966171168
      %v4357 = vunpack.c.0.s8 %v4356
      %v4358 = vlaneseq
      %v4359 = vshrl.u32 %v4358, 7
      %v4360 = vsub.s32 %v4357, %v4359
      %v4361 = vrot.slane %v4345, %v4360
      %v4363 = vunpack.c.l.s4 1966171168
      %v4364 = vunpack.c.0.s8 %v4363
      %v4365 = vlaneseq
      %v4366 = vshrl.u32 %v4365, 7
      %v4367 = vsub.s32 %v4364, %v4366
      %v4368 = vrot.slane %v4346, %v4367
      %v4370 = vunpack.c.l.s4 1966171168
      %v4371 = vunpack.c.0.s8 %v4370
      %v4372 = vlaneseq
      %v4373 = vshrl.u32 %v4372, 7
      %v4374 = vsub.s32 %v4371, %v4373
      %v4375 = vrot.slane %v4347, %v4374
      %v4376 = vcombine.high %v4354, %v4354
      %v4377 = vcombine.high %v4361, %v4361
      %v4378 = vcombine.high %v4368, %v4368
      %v4379 = vcombine.high %v4375, %v4375
      %v4380 = vcombine.high %v3750, %v3750
      %v4382 = vunpack.c.l.s4 1966171168
      %v4383 = vunpack.c.0.s8 %v4382
      %v4384 = vlaneseq
      %v4385 = vshrl.u32 %v4384, 7
      %v4386 = vsub.s32 %v4383, %v4385
      %v4387 = vrot.slane %v3750, %v4386
      %v4389 = vunpack.c.l.s4 1966171168
      %v4390 = vunpack.c.0.s8 %v4389
      %v4391 = vlaneseq
      %v4392 = vshrl.u32 %v4391, 7
      %v4393 = vsub.s32 %v4390, %v4392
      %v4394 = vrot.slane %v4380, %v4393
      %v4395 = vcombine.high %v4387, %v4387
      %v4396 = vcombine.high %v4394, %v4394
      %v4398 = vunpack.c.l.s4 1966171168
      %v4399 = vunpack.c.0.s8 %v4398
      %v4400 = vlaneseq
      %v4401 = vshrl.u32 %v4400, 7
      %v4402 = vsub.s32 %v4399, %v4401
      %v4403 = vrot.slane %v4387, %v4402
      %v4405 = vunpack.c.l.s4 1966171168
      %v4406 = vunpack.c.0.s8 %v4405
      %v4407 = vlaneseq
      %v4408 = vshrl.u32 %v4407, 7
      %v4409 = vsub.s32 %v4406, %v4408
      %v4410 = vrot.slane %v4394, %v4409
      %v4412 = vunpack.c.l.s4 1966171168
      %v4413 = vunpack.c.0.s8 %v4412
      %v4414 = vlaneseq
      %v4415 = vshrl.u32 %v4414, 7
      %v4416 = vsub.s32 %v4413, %v4415
      %v4417 = vrot.slane %v4395, %v4416
      %v4419 = vunpack.c.l.s4 1966171168
      %v4420 = vunpack.c.0.s8 %v4419
      %v4421 = vlaneseq
      %v4422 = vshrl.u32 %v4421, 7
      %v4423 = vsub.s32 %v4420, %v4422
      %v4424 = vrot.slane %v4396, %v4423
      %v4425 = vcombine.high %v4403, %v4403
      %v4426 = vcombine.high %v4410, %v4410
      %v4427 = vcombine.high %v4417, %v4417
      %v4428 = vcombine.high %v4424, %v4424
      %v4429 = vcombine.high %v3755, %v3755
      %v4431 = vunpack.c.l.s4 1966171168
      %v4432 = vunpack.c.0.s8 %v4431
      %v4433 = vlaneseq
      %v4434 = vshrl.u32 %v4433, 7
      %v4435 = vsub.s32 %v4432, %v4434
      %v4436 = vrot.slane %v3755, %v4435
      %v4438 = vunpack.c.l.s4 1966171168
      %v4439 = vunpack.c.0.s8 %v4438
      %v4440 = vlaneseq
      %v4441 = vshrl.u32 %v4440, 7
      %v4442 = vsub.s32 %v4439, %v4441
      %v4443 = vrot.slane %v4429, %v4442
      %v4444 = vcombine.high %v4436, %v4436
      %v4445 = vcombine.high %v4443, %v4443
      %v4447 = vunpack.c.l.s4 1966171168
      %v4448 = vunpack.c.0.s8 %v4447
      %v4449 = vlaneseq
      %v4450 = vshrl.u32 %v4449, 7
      %v4451 = vsub.s32 %v4448, %v4450
      %v4452 = vrot.slane %v4436, %v4451
      %v4454 = vunpack.c.l.s4 1966171168
      %v4455 = vunpack.c.0.s8 %v4454
      %v4456 = vlaneseq
      %v4457 = vshrl.u32 %v4456, 7
      %v4458 = vsub.s32 %v4455, %v4457
      %v4459 = vrot.slane %v4443, %v4458
      %v4461 = vunpack.c.l.s4 1966171168
      %v4462 = vunpack.c.0.s8 %v4461
      %v4463 = vlaneseq
      %v4464 = vshrl.u32 %v4463, 7
      %v4465 = vsub.s32 %v4462, %v4464
      %v4466 = vrot.slane %v4444, %v4465
      %v4468 = vunpack.c.l.s4 1966171168
      %v4469 = vunpack.c.0.s8 %v4468
      %v4470 = vlaneseq
      %v4471 = vshrl.u32 %v4470, 7
      %v4472 = vsub.s32 %v4469, %v4471
      %v4473 = vrot.slane %v4445, %v4472
      %v4474 = vcombine.high %v4452, %v4452
      %v4475 = vcombine.high %v4459, %v4459
      %v4476 = vcombine.high %v4466, %v4466
      %v4477 = vcombine.high %v4473, %v4473
      %v4478 = vcombine.high %v3760, %v3760
      %v4480 = vunpack.c.l.s4 1966171168
      %v4481 = vunpack.c.0.s8 %v4480
      %v4482 = vlaneseq
      %v4483 = vshrl.u32 %v4482, 7
      %v4484 = vsub.s32 %v4481, %v4483
      %v4485 = vrot.slane %v3760, %v4484
      %v4487 = vunpack.c.l.s4 1966171168
      %v4488 = vunpack.c.0.s8 %v4487
      %v4489 = vlaneseq
      %v4490 = vshrl.u32 %v4489, 7
      %v4491 = vsub.s32 %v4488, %v4490
      %v4492 = vrot.slane %v4478, %v4491
      %v4493 = vcombine.high %v4485, %v4485
      %v4494 = vcombine.high %v4492, %v4492
      %v4496 = vunpack.c.l.s4 1966171168
      %v4497 = vunpack.c.0.s8 %v4496
      %v4498 = vlaneseq
      %v4499 = vshrl.u32 %v4498, 7
      %v4500 = vsub.s32 %v4497, %v4499
      %v4501 = vrot.slane %v4485, %v4500
      %v4503 = vunpack.c.l.s4 1966171168
      %v4504 = vunpack.c.0.s8 %v4503
      %v4505 = vlaneseq
      %v4506 = vshrl.u32 %v4505, 7
      %v4507 = vsub.s32 %v4504, %v4506
      %v4508 = vrot.slane %v4492, %v4507
      %v4510 = vunpack.c.l.s4 1966171168
      %v4511 = vunpack.c.0.s8 %v4510
      %v4512 = vlaneseq
      %v4513 = vshrl.u32 %v4512, 7
      %v4514 = vsub.s32 %v4511, %v4513
      %v4515 = vrot.slane %v4493, %v4514
      %v4517 = vunpack.c.l.s4 1966171168
      %v4518 = vunpack.c.0.s8 %v4517
      %v4519 = vlaneseq
      %v4520 = vshrl.u32 %v4519, 7
      %v4521 = vsub.s32 %v4518, %v4520
      %v4522 = vrot.slane %v4494, %v4521
      %v4523 = vcombine.high %v4501, %v4501
      %v4524 = vcombine.high %v4508, %v4508
      %v4525 = vcombine.high %v4515, %v4515
      %v4526 = vcombine.high %v4522, %v4522
      %v4527 = vcombine.high %v3765, %v3765
      %v4529 = vunpack.c.l.s4 1966171168
      %v4530 = vunpack.c.0.s8 %v4529
      %v4531 = vlaneseq
      %v4532 = vshrl.u32 %v4531, 7
      %v4533 = vsub.s32 %v4530, %v4532
      %v4534 = vrot.slane %v3765, %v4533
      %v4536 = vunpack.c.l.s4 1966171168
      %v4537 = vunpack.c.0.s8 %v4536
      %v4538 = vlaneseq
      %v4539 = vshrl.u32 %v4538, 7
      %v4540 = vsub.s32 %v4537, %v4539
      %v4541 = vrot.slane %v4527, %v4540
      %v4542 = vcombine.high %v4534, %v4534
      %v4543 = vcombine.high %v4541, %v4541
      %v4545 = vunpack.c.l.s4 1966171168
      %v4546 = vunpack.c.0.s8 %v4545
      %v4547 = vlaneseq
      %v4548 = vshrl.u32 %v4547, 7
      %v4549 = vsub.s32 %v4546, %v4548
      %v4550 = vrot.slane %v4534, %v4549
      %v4552 = vunpack.c.l.s4 1966171168
      %v4553 = vunpack.c.0.s8 %v4552
      %v4554 = vlaneseq
      %v4555 = vshrl.u32 %v4554, 7
      %v4556 = vsub.s32 %v4553, %v4555
      %v4557 = vrot.slane %v4541, %v4556
      %v4559 = vunpack.c.l.s4 1966171168
      %v4560 = vunpack.c.0.s8 %v4559
      %v4561 = vlaneseq
      %v4562 = vshrl.u32 %v4561, 7
      %v4563 = vsub.s32 %v4560, %v4562
      %v4564 = vrot.slane %v4542, %v4563
      %v4566 = vunpack.c.l.s4 1966171168
      %v4567 = vunpack.c.0.s8 %v4566
      %v4568 = vlaneseq
      %v4569 = vshrl.u32 %v4568, 7
      %v4570 = vsub.s32 %v4567, %v4569
      %v4571 = vrot.slane %v4543, %v4570
      %v4572 = vcombine.high %v4550, %v4550
      %v4573 = vcombine.high %v4557, %v4557
      %v4574 = vcombine.high %v4564, %v4564
      %v4575 = vcombine.high %v4571, %v4571
      %v4576 = vcombine.high %v3770, %v3770
      %v4578 = vunpack.c.l.s4 1966171168
      %v4579 = vunpack.c.0.s8 %v4578
      %v4580 = vlaneseq
      %v4581 = vshrl.u32 %v4580, 7
      %v4582 = vsub.s32 %v4579, %v4581
      %v4583 = vrot.slane %v3770, %v4582
      %v4585 = vunpack.c.l.s4 1966171168
      %v4586 = vunpack.c.0.s8 %v4585
      %v4587 = vlaneseq
      %v4588 = vshrl.u32 %v4587, 7
      %v4589 = vsub.s32 %v4586, %v4588
      %v4590 = vrot.slane %v4576, %v4589
      %v4591 = vcombine.high %v4583, %v4583
      %v4592 = vcombine.high %v4590, %v4590
      %v4594 = vunpack.c.l.s4 1966171168
      %v4595 = vunpack.c.0.s8 %v4594
      %v4596 = vlaneseq
      %v4597 = vshrl.u32 %v4596, 7
      %v4598 = vsub.s32 %v4595, %v4597
      %v4599 = vrot.slane %v4583, %v4598
      %v4601 = vunpack.c.l.s4 1966171168
      %v4602 = vunpack.c.0.s8 %v4601
      %v4603 = vlaneseq
      %v4604 = vshrl.u32 %v4603, 7
      %v4605 = vsub.s32 %v4602, %v4604
      %v4606 = vrot.slane %v4590, %v4605
      %v4608 = vunpack.c.l.s4 1966171168
      %v4609 = vunpack.c.0.s8 %v4608
      %v4610 = vlaneseq
      %v4611 = vshrl.u32 %v4610, 7
      %v4612 = vsub.s32 %v4609, %v4611
      %v4613 = vrot.slane %v4591, %v4612
      %v4615 = vunpack.c.l.s4 1966171168
      %v4616 = vunpack.c.0.s8 %v4615
      %v4617 = vlaneseq
      %v4618 = vshrl.u32 %v4617, 7
      %v4619 = vsub.s32 %v4616, %v4618
      %v4620 = vrot.slane %v4592, %v4619
      %v4621 = vcombine.high %v4599, %v4599
      %v4622 = vcombine.high %v4606, %v4606
      %v4623 = vcombine.high %v4613, %v4613
      %v4624 = vcombine.high %v4620, %v4620
      %v4625 = vcombine.high %v3775, %v3775
      %v4627 = vunpack.c.l.s4 1966171168
      %v4628 = vunpack.c.0.s8 %v4627
      %v4629 = vlaneseq
      %v4630 = vshrl.u32 %v4629, 7
      %v4631 = vsub.s32 %v4628, %v4630
      %v4632 = vrot.slane %v3775, %v4631
      %v4634 = vunpack.c.l.s4 1966171168
      %v4635 = vunpack.c.0.s8 %v4634
      %v4636 = vlaneseq
      %v4637 = vshrl.u32 %v4636, 7
      %v4638 = vsub.s32 %v4635, %v4637
      %v4639 = vrot.slane %v4625, %v4638
      %v4640 = vcombine.high %v4632, %v4632
      %v4641 = vcombine.high %v4639, %v4639
      %v4643 = vunpack.c.l.s4 1966171168
      %v4644 = vunpack.c.0.s8 %v4643
      %v4645 = vlaneseq
      %v4646 = vshrl.u32 %v4645, 7
      %v4647 = vsub.s32 %v4644, %v4646
      %v4648 = vrot.slane %v4632, %v4647
      %v4650 = vunpack.c.l.s4 1966171168
      %v4651 = vunpack.c.0.s8 %v4650
      %v4652 = vlaneseq
      %v4653 = vshrl.u32 %v4652, 7
      %v4654 = vsub.s32 %v4651, %v4653
      %v4655 = vrot.slane %v4639, %v4654
      %v4657 = vunpack.c.l.s4 1966171168
      %v4658 = vunpack.c.0.s8 %v4657
      %v4659 = vlaneseq
      %v4660 = vshrl.u32 %v4659, 7
      %v4661 = vsub.s32 %v4658, %v4660
      %v4662 = vrot.slane %v4640, %v4661
      %v4664 = vunpack.c.l.s4 1966171168
      %v4665 = vunpack.c.0.s8 %v4664
      %v4666 = vlaneseq
      %v4667 = vshrl.u32 %v4666, 7
      %v4668 = vsub.s32 %v4665, %v4667
      %v4669 = vrot.slane %v4641, %v4668
      %v4670 = vcombine.high %v4648, %v4648
      %v4671 = vcombine.high %v4655, %v4655
      %v4672 = vcombine.high %v4662, %v4662
      %v4673 = vcombine.high %v4669, %v4669
      %v4674 = vcombine.high %v3780, %v3780
      %v4676 = vunpack.c.l.s4 1966171168
      %v4677 = vunpack.c.0.s8 %v4676
      %v4678 = vlaneseq
      %v4679 = vshrl.u32 %v4678, 7
      %v4680 = vsub.s32 %v4677, %v4679
      %v4681 = vrot.slane %v3780, %v4680
      %v4683 = vunpack.c.l.s4 1966171168
      %v4684 = vunpack.c.0.s8 %v4683
      %v4685 = vlaneseq
      %v4686 = vshrl.u32 %v4685, 7
      %v4687 = vsub.s32 %v4684, %v4686
      %v4688 = vrot.slane %v4674, %v4687
      %v4689 = vcombine.high %v4681, %v4681
      %v4690 = vcombine.high %v4688, %v4688
      %v4692 = vunpack.c.l.s4 1966171168
      %v4693 = vunpack.c.0.s8 %v4692
      %v4694 = vlaneseq
      %v4695 = vshrl.u32 %v4694, 7
      %v4696 = vsub.s32 %v4693, %v4695
      %v4697 = vrot.slane %v4681, %v4696
      %v4699 = vunpack.c.l.s4 1966171168
      %v4700 = vunpack.c.0.s8 %v4699
      %v4701 = vlaneseq
      %v4702 = vshrl.u32 %v4701, 7
      %v4703 = vsub.s32 %v4700, %v4702
      %v4704 = vrot.slane %v4688, %v4703
      %v4706 = vunpack.c.l.s4 1966171168
      %v4707 = vunpack.c.0.s8 %v4706
      %v4708 = vlaneseq
      %v4709 = vshrl.u32 %v4708, 7
      %v4710 = vsub.s32 %v4707, %v4709
      %v4711 = vrot.slane %v4689, %v4710
      %v4713 = vunpack.c.l.s4 1966171168
      %v4714 = vunpack.c.0.s8 %v4713
      %v4715 = vlaneseq
      %v4716 = vshrl.u32 %v4715, 7
      %v4717 = vsub.s32 %v4714, %v4716
      %v4718 = vrot.slane %v4690, %v4717
      %v4719 = vcombine.high %v4697, %v4697
      %v4720 = vcombine.high %v4704, %v4704
      %v4721 = vcombine.high %v4711, %v4711
      %v4722 = vcombine.high %v4718, %v4718
      %v4723 = vcombine.high %v3785, %v3785
      %v4725 = vunpack.c.l.s4 1966171168
      %v4726 = vunpack.c.0.s8 %v4725
      %v4727 = vlaneseq
      %v4728 = vshrl.u32 %v4727, 7
      %v4729 = vsub.s32 %v4726, %v4728
      %v4730 = vrot.slane %v3785, %v4729
      %v4732 = vunpack.c.l.s4 1966171168
      %v4733 = vunpack.c.0.s8 %v4732
      %v4734 = vlaneseq
      %v4735 = vshrl.u32 %v4734, 7
      %v4736 = vsub.s32 %v4733, %v4735
      %v4737 = vrot.slane %v4723, %v4736
      %v4738 = vcombine.high %v4730, %v4730
      %v4739 = vcombine.high %v4737, %v4737
      %v4741 = vunpack.c.l.s4 1966171168
      %v4742 = vunpack.c.0.s8 %v4741
      %v4743 = vlaneseq
      %v4744 = vshrl.u32 %v4743, 7
      %v4745 = vsub.s32 %v4742, %v4744
      %v4746 = vrot.slane %v4730, %v4745
      %v4748 = vunpack.c.l.s4 1966171168
      %v4749 = vunpack.c.0.s8 %v4748
      %v4750 = vlaneseq
      %v4751 = vshrl.u32 %v4750, 7
      %v4752 = vsub.s32 %v4749, %v4751
      %v4753 = vrot.slane %v4737, %v4752
      %v4755 = vunpack.c.l.s4 1966171168
      %v4756 = vunpack.c.0.s8 %v4755
      %v4757 = vlaneseq
      %v4758 = vshrl.u32 %v4757, 7
      %v4759 = vsub.s32 %v4756, %v4758
      %v4760 = vrot.slane %v4738, %v4759
      %v4762 = vunpack.c.l.s4 1966171168
      %v4763 = vunpack.c.0.s8 %v4762
      %v4764 = vlaneseq
      %v4765 = vshrl.u32 %v4764, 7
      %v4766 = vsub.s32 %v4763, %v4765
      %v4767 = vrot.slane %v4739, %v4766
      %v4768 = vcombine.high %v4746, %v4746
      %v4769 = vcombine.high %v4753, %v4753
      %v4770 = vcombine.high %v4760, %v4760
      %v4771 = vcombine.high %v4767, %v4767
      %v4772 = vcombine.high %v3790, %v3790
      %v4774 = vunpack.c.l.s4 1966171168
      %v4775 = vunpack.c.0.s8 %v4774
      %v4776 = vlaneseq
      %v4777 = vshrl.u32 %v4776, 7
      %v4778 = vsub.s32 %v4775, %v4777
      %v4779 = vrot.slane %v3790, %v4778
      %v4781 = vunpack.c.l.s4 1966171168
      %v4782 = vunpack.c.0.s8 %v4781
      %v4783 = vlaneseq
      %v4784 = vshrl.u32 %v4783, 7
      %v4785 = vsub.s32 %v4782, %v4784
      %v4786 = vrot.slane %v4772, %v4785
      %v4787 = vcombine.high %v4779, %v4779
      %v4788 = vcombine.high %v4786, %v4786
      %v4790 = vunpack.c.l.s4 1966171168
      %v4791 = vunpack.c.0.s8 %v4790
      %v4792 = vlaneseq
      %v4793 = vshrl.u32 %v4792, 7
      %v4794 = vsub.s32 %v4791, %v4793
      %v4795 = vrot.slane %v4779, %v4794
      %v4797 = vunpack.c.l.s4 1966171168
      %v4798 = vunpack.c.0.s8 %v4797
      %v4799 = vlaneseq
      %v4800 = vshrl.u32 %v4799, 7
      %v4801 = vsub.s32 %v4798, %v4800
      %v4802 = vrot.slane %v4786, %v4801
      %v4804 = vunpack.c.l.s4 1966171168
      %v4805 = vunpack.c.0.s8 %v4804
      %v4806 = vlaneseq
      %v4807 = vshrl.u32 %v4806, 7
      %v4808 = vsub.s32 %v4805, %v4807
      %v4809 = vrot.slane %v4787, %v4808
      %v4811 = vunpack.c.l.s4 1966171168
      %v4812 = vunpack.c.0.s8 %v4811
      %v4813 = vlaneseq
      %v4814 = vshrl.u32 %v4813, 7
      %v4815 = vsub.s32 %v4812, %v4814
      %v4816 = vrot.slane %v4788, %v4815
      %v4817 = vcombine.high %v4795, %v4795
      %v4818 = vcombine.high %v4802, %v4802
      %v4819 = vcombine.high %v4809, %v4809
      %v4820 = vcombine.high %v4816, %v4816
      %v4821 = vcombine.high %v3795, %v3795
      %v4823 = vunpack.c.l.s4 1966171168
      %v4824 = vunpack.c.0.s8 %v4823
      %v4825 = vlaneseq
      %v4826 = vshrl.u32 %v4825, 7
      %v4827 = vsub.s32 %v4824, %v4826
      %v4828 = vrot.slane %v3795, %v4827
      %v4830 = vunpack.c.l.s4 1966171168
      %v4831 = vunpack.c.0.s8 %v4830
      %v4832 = vlaneseq
      %v4833 = vshrl.u32 %v4832, 7
      %v4834 = vsub.s32 %v4831, %v4833
      %v4835 = vrot.slane %v4821, %v4834
      %v4836 = vcombine.high %v4828, %v4828
      %v4837 = vcombine.high %v4835, %v4835
      %v4839 = vunpack.c.l.s4 1966171168
      %v4840 = vunpack.c.0.s8 %v4839
      %v4841 = vlaneseq
      %v4842 = vshrl.u32 %v4841, 7
      %v4843 = vsub.s32 %v4840, %v4842
      %v4844 = vrot.slane %v4828, %v4843
      %v4846 = vunpack.c.l.s4 1966171168
      %v4847 = vunpack.c.0.s8 %v4846
      %v4848 = vlaneseq
      %v4849 = vshrl.u32 %v4848, 7
      %v4850 = vsub.s32 %v4847, %v4849
      %v4851 = vrot.slane %v4835, %v4850
      %v4853 = vunpack.c.l.s4 1966171168
      %v4854 = vunpack.c.0.s8 %v4853
      %v4855 = vlaneseq
      %v4856 = vshrl.u32 %v4855, 7
      %v4857 = vsub.s32 %v4854, %v4856
      %v4858 = vrot.slane %v4836, %v4857
      %v4860 = vunpack.c.l.s4 1966171168
      %v4861 = vunpack.c.0.s8 %v4860
      %v4862 = vlaneseq
      %v4863 = vshrl.u32 %v4862, 7
      %v4864 = vsub.s32 %v4861, %v4863
      %v4865 = vrot.slane %v4837, %v4864
      %v4866 = vcombine.high %v4844, %v4844
      %v4867 = vcombine.high %v4851, %v4851
      %v4868 = vcombine.high %v4858, %v4858
      %v4869 = vcombine.high %v4865, %v4865
      %v4870 = vcombine.high %v3800, %v3800
      %v4872 = vunpack.c.l.s4 1966171168
      %v4873 = vunpack.c.0.s8 %v4872
      %v4874 = vlaneseq
      %v4875 = vshrl.u32 %v4874, 7
      %v4876 = vsub.s32 %v4873, %v4875
      %v4877 = vrot.slane %v3800, %v4876
      %v4879 = vunpack.c.l.s4 1966171168
      %v4880 = vunpack.c.0.s8 %v4879
      %v4881 = vlaneseq
      %v4882 = vshrl.u32 %v4881, 7
      %v4883 = vsub.s32 %v4880, %v4882
      %v4884 = vrot.slane %v4870, %v4883
      %v4885 = vcombine.high %v4877, %v4877
      %v4886 = vcombine.high %v4884, %v4884
      %v4888 = vunpack.c.l.s4 1966171168
      %v4889 = vunpack.c.0.s8 %v4888
      %v4890 = vlaneseq
      %v4891 = vshrl.u32 %v4890, 7
      %v4892 = vsub.s32 %v4889, %v4891
      %v4893 = vrot.slane %v4877, %v4892
      %v4895 = vunpack.c.l.s4 1966171168
      %v4896 = vunpack.c.0.s8 %v4895
      %v4897 = vlaneseq
      %v4898 = vshrl.u32 %v4897, 7
      %v4899 = vsub.s32 %v4896, %v4898
      %v4900 = vrot.slane %v4884, %v4899
      %v4902 = vunpack.c.l.s4 1966171168
      %v4903 = vunpack.c.0.s8 %v4902
      %v4904 = vlaneseq
      %v4905 = vshrl.u32 %v4904, 7
      %v4906 = vsub.s32 %v4903, %v4905
      %v4907 = vrot.slane %v4885, %v4906
      %v4909 = vunpack.c.l.s4 1966171168
      %v4910 = vunpack.c.0.s8 %v4909
      %v4911 = vlaneseq
      %v4912 = vshrl.u32 %v4911, 7
      %v4913 = vsub.s32 %v4910, %v4912
      %v4914 = vrot.slane %v4886, %v4913
      %v4915 = vcombine.high %v4893, %v4893
      %v4916 = vcombine.high %v4900, %v4900
      %v4917 = vcombine.high %v4907, %v4907
      %v4918 = vcombine.high %v4914, %v4914
      %v4919 = vcombine.high %v3805, %v3805
      %v4921 = vunpack.c.l.s4 1966171168
      %v4922 = vunpack.c.0.s8 %v4921
      %v4923 = vlaneseq
      %v4924 = vshrl.u32 %v4923, 7
      %v4925 = vsub.s32 %v4922, %v4924
      %v4926 = vrot.slane %v3805, %v4925
      %v4928 = vunpack.c.l.s4 1966171168
      %v4929 = vunpack.c.0.s8 %v4928
      %v4930 = vlaneseq
      %v4931 = vshrl.u32 %v4930, 7
      %v4932 = vsub.s32 %v4929, %v4931
      %v4933 = vrot.slane %v4919, %v4932
      %v4934 = vcombine.high %v4926, %v4926
      %v4935 = vcombine.high %v4933, %v4933
      %v4937 = vunpack.c.l.s4 1966171168
      %v4938 = vunpack.c.0.s8 %v4937
      %v4939 = vlaneseq
      %v4940 = vshrl.u32 %v4939, 7
      %v4941 = vsub.s32 %v4938, %v4940
      %v4942 = vrot.slane %v4926, %v4941
      %v4944 = vunpack.c.l.s4 1966171168
      %v4945 = vunpack.c.0.s8 %v4944
      %v4946 = vlaneseq
      %v4947 = vshrl.u32 %v4946, 7
      %v4948 = vsub.s32 %v4945, %v4947
      %v4949 = vrot.slane %v4933, %v4948
      %v4951 = vunpack.c.l.s4 1966171168
      %v4952 = vunpack.c.0.s8 %v4951
      %v4953 = vlaneseq
      %v4954 = vshrl.u32 %v4953, 7
      %v4955 = vsub.s32 %v4952, %v4954
      %v4956 = vrot.slane %v4934, %v4955
      %v4958 = vunpack.c.l.s4 1966171168
      %v4959 = vunpack.c.0.s8 %v4958
      %v4960 = vlaneseq
      %v4961 = vshrl.u32 %v4960, 7
      %v4962 = vsub.s32 %v4959, %v4961
      %v4963 = vrot.slane %v4935, %v4962
      %v4964 = vcombine.high %v4942, %v4942
      %v4965 = vcombine.high %v4949, %v4949
      %v4966 = vcombine.high %v4956, %v4956
      %v4967 = vcombine.high %v4963, %v4963
      %v4968 = vcombine.high %v3810, %v3810
      %v4970 = vunpack.c.l.s4 1966171168
      %v4971 = vunpack.c.0.s8 %v4970
      %v4972 = vlaneseq
      %v4973 = vshrl.u32 %v4972, 7
      %v4974 = vsub.s32 %v4971, %v4973
      %v4975 = vrot.slane %v3810, %v4974
      %v4977 = vunpack.c.l.s4 1966171168
      %v4978 = vunpack.c.0.s8 %v4977
      %v4979 = vlaneseq
      %v4980 = vshrl.u32 %v4979, 7
      %v4981 = vsub.s32 %v4978, %v4980
      %v4982 = vrot.slane %v4968, %v4981
      %v4983 = vcombine.high %v4975, %v4975
      %v4984 = vcombine.high %v4982, %v4982
      %v4986 = vunpack.c.l.s4 1966171168
      %v4987 = vunpack.c.0.s8 %v4986
      %v4988 = vlaneseq
      %v4989 = vshrl.u32 %v4988, 7
      %v4990 = vsub.s32 %v4987, %v4989
      %v4991 = vrot.slane %v4975, %v4990
      %v4993 = vunpack.c.l.s4 1966171168
      %v4994 = vunpack.c.0.s8 %v4993
      %v4995 = vlaneseq
      %v4996 = vshrl.u32 %v4995, 7
      %v4997 = vsub.s32 %v4994, %v4996
      %v4998 = vrot.slane %v4982, %v4997
      %v5000 = vunpack.c.l.s4 1966171168
      %v5001 = vunpack.c.0.s8 %v5000
      %v5002 = vlaneseq
      %v5003 = vshrl.u32 %v5002, 7
      %v5004 = vsub.s32 %v5001, %v5003
      %v5005 = vrot.slane %v4983, %v5004
      %v5007 = vunpack.c.l.s4 1966171168
      %v5008 = vunpack.c.0.s8 %v5007
      %v5009 = vlaneseq
      %v5010 = vshrl.u32 %v5009, 7
      %v5011 = vsub.s32 %v5008, %v5010
      %v5012 = vrot.slane %v4984, %v5011
      %v5013 = vcombine.high %v4991, %v4991
      %v5014 = vcombine.high %v4998, %v4998
      %v5015 = vcombine.high %v5005, %v5005
      %v5016 = vcombine.high %v5012, %v5012
      %v5017 = vcombine.high %v3815, %v3815
      %v5019 = vunpack.c.l.s4 1966171168
      %v5020 = vunpack.c.0.s8 %v5019
      %v5021 = vlaneseq
      %v5022 = vshrl.u32 %v5021, 7
      %v5023 = vsub.s32 %v5020, %v5022
      %v5024 = vrot.slane %v3815, %v5023
      %v5026 = vunpack.c.l.s4 1966171168
      %v5027 = vunpack.c.0.s8 %v5026
      %v5028 = vlaneseq
      %v5029 = vshrl.u32 %v5028, 7
      %v5030 = vsub.s32 %v5027, %v5029
      %v5031 = vrot.slane %v5017, %v5030
      %v5032 = vcombine.high %v5024, %v5024
      %v5033 = vcombine.high %v5031, %v5031
      %v5035 = vunpack.c.l.s4 1966171168
      %v5036 = vunpack.c.0.s8 %v5035
      %v5037 = vlaneseq
      %v5038 = vshrl.u32 %v5037, 7
      %v5039 = vsub.s32 %v5036, %v5038
      %v5040 = vrot.slane %v5024, %v5039
      %v5042 = vunpack.c.l.s4 1966171168
      %v5043 = vunpack.c.0.s8 %v5042
      %v5044 = vlaneseq
      %v5045 = vshrl.u32 %v5044, 7
      %v5046 = vsub.s32 %v5043, %v5045
      %v5047 = vrot.slane %v5031, %v5046
      %v5049 = vunpack.c.l.s4 1966171168
      %v5050 = vunpack.c.0.s8 %v5049
      %v5051 = vlaneseq
      %v5052 = vshrl.u32 %v5051, 7
      %v5053 = vsub.s32 %v5050, %v5052
      %v5054 = vrot.slane %v5032, %v5053
      %v5056 = vunpack.c.l.s4 1966171168
      %v5057 = vunpack.c.0.s8 %v5056
      %v5058 = vlaneseq
      %v5059 = vshrl.u32 %v5058, 7
      %v5060 = vsub.s32 %v5057, %v5059
      %v5061 = vrot.slane %v5033, %v5060
      %v5062 = vcombine.high %v5040, %v5040
      %v5063 = vcombine.high %v5047, %v5047
      %v5064 = vcombine.high %v5054, %v5054
      %v5065 = vcombine.high %v5061, %v5061
      %v5066 = vcombine.high %v3820, %v3820
      %v5068 = vunpack.c.l.s4 1966171168
      %v5069 = vunpack.c.0.s8 %v5068
      %v5070 = vlaneseq
      %v5071 = vshrl.u32 %v5070, 7
      %v5072 = vsub.s32 %v5069, %v5071
      %v5073 = vrot.slane %v3820, %v5072
      %v5075 = vunpack.c.l.s4 1966171168
      %v5076 = vunpack.c.0.s8 %v5075
      %v5077 = vlaneseq
      %v5078 = vshrl.u32 %v5077, 7
      %v5079 = vsub.s32 %v5076, %v5078
      %v5080 = vrot.slane %v5066, %v5079
      %v5081 = vcombine.high %v5073, %v5073
      %v5082 = vcombine.high %v5080, %v5080
      %v5084 = vunpack.c.l.s4 1966171168
      %v5085 = vunpack.c.0.s8 %v5084
      %v5086 = vlaneseq
      %v5087 = vshrl.u32 %v5086, 7
      %v5088 = vsub.s32 %v5085, %v5087
      %v5089 = vrot.slane %v5073, %v5088
      %v5091 = vunpack.c.l.s4 1966171168
      %v5092 = vunpack.c.0.s8 %v5091
      %v5093 = vlaneseq
      %v5094 = vshrl.u32 %v5093, 7
      %v5095 = vsub.s32 %v5092, %v5094
      %v5096 = vrot.slane %v5080, %v5095
      %v5098 = vunpack.c.l.s4 1966171168
      %v5099 = vunpack.c.0.s8 %v5098
      %v5100 = vlaneseq
      %v5101 = vshrl.u32 %v5100, 7
      %v5102 = vsub.s32 %v5099, %v5101
      %v5103 = vrot.slane %v5081, %v5102
      %v5105 = vunpack.c.l.s4 1966171168
      %v5106 = vunpack.c.0.s8 %v5105
      %v5107 = vlaneseq
      %v5108 = vshrl.u32 %v5107, 7
      %v5109 = vsub.s32 %v5106, %v5108
      %v5110 = vrot.slane %v5082, %v5109
      %v5111 = vcombine.high %v5089, %v5089
      %v5112 = vcombine.high %v5096, %v5096
      %v5113 = vcombine.high %v5103, %v5103
      %v5114 = vcombine.high %v5110, %v5110
      %v5115 = vcombine.high %v3825, %v3825
      %v5117 = vunpack.c.l.s4 1966171168
      %v5118 = vunpack.c.0.s8 %v5117
      %v5119 = vlaneseq
      %v5120 = vshrl.u32 %v5119, 7
      %v5121 = vsub.s32 %v5118, %v5120
      %v5122 = vrot.slane %v3825, %v5121
      %v5124 = vunpack.c.l.s4 1966171168
      %v5125 = vunpack.c.0.s8 %v5124
      %v5126 = vlaneseq
      %v5127 = vshrl.u32 %v5126, 7
      %v5128 = vsub.s32 %v5125, %v5127
      %v5129 = vrot.slane %v5115, %v5128
      %v5130 = vcombine.high %v5122, %v5122
      %v5131 = vcombine.high %v5129, %v5129
      %v5133 = vunpack.c.l.s4 1966171168
      %v5134 = vunpack.c.0.s8 %v5133
      %v5135 = vlaneseq
      %v5136 = vshrl.u32 %v5135, 7
      %v5137 = vsub.s32 %v5134, %v5136
      %v5138 = vrot.slane %v5122, %v5137
      %v5140 = vunpack.c.l.s4 1966171168
      %v5141 = vunpack.c.0.s8 %v5140
      %v5142 = vlaneseq
      %v5143 = vshrl.u32 %v5142, 7
      %v5144 = vsub.s32 %v5141, %v5143
      %v5145 = vrot.slane %v5129, %v5144
      %v5147 = vunpack.c.l.s4 1966171168
      %v5148 = vunpack.c.0.s8 %v5147
      %v5149 = vlaneseq
      %v5150 = vshrl.u32 %v5149, 7
      %v5151 = vsub.s32 %v5148, %v5150
      %v5152 = vrot.slane %v5130, %v5151
      %v5154 = vunpack.c.l.s4 1966171168
      %v5155 = vunpack.c.0.s8 %v5154
      %v5156 = vlaneseq
      %v5157 = vshrl.u32 %v5156, 7
      %v5158 = vsub.s32 %v5155, %v5157
      %v5159 = vrot.slane %v5131, %v5158
      %v5160 = vcombine.high %v5138, %v5138
      %v5161 = vcombine.high %v5145, %v5145
      %v5162 = vcombine.high %v5152, %v5152
      %v5163 = vcombine.high %v5159, %v5159
      %v5164 = vcombine.high %v3830, %v3830
      %v5166 = vunpack.c.l.s4 1966171168
      %v5167 = vunpack.c.0.s8 %v5166
      %v5168 = vlaneseq
      %v5169 = vshrl.u32 %v5168, 7
      %v5170 = vsub.s32 %v5167, %v5169
      %v5171 = vrot.slane %v3830, %v5170
      %v5173 = vunpack.c.l.s4 1966171168
      %v5174 = vunpack.c.0.s8 %v5173
      %v5175 = vlaneseq
      %v5176 = vshrl.u32 %v5175, 7
      %v5177 = vsub.s32 %v5174, %v5176
      %v5178 = vrot.slane %v5164, %v5177
      %v5179 = vcombine.high %v5171, %v5171
      %v5180 = vcombine.high %v5178, %v5178
      %v5182 = vunpack.c.l.s4 1966171168
      %v5183 = vunpack.c.0.s8 %v5182
      %v5184 = vlaneseq
      %v5185 = vshrl.u32 %v5184, 7
      %v5186 = vsub.s32 %v5183, %v5185
      %v5187 = vrot.slane %v5171, %v5186
      %v5189 = vunpack.c.l.s4 1966171168
      %v5190 = vunpack.c.0.s8 %v5189
      %v5191 = vlaneseq
      %v5192 = vshrl.u32 %v5191, 7
      %v5193 = vsub.s32 %v5190, %v5192
      %v5194 = vrot.slane %v5178, %v5193
      %v5196 = vunpack.c.l.s4 1966171168
      %v5197 = vunpack.c.0.s8 %v5196
      %v5198 = vlaneseq
      %v5199 = vshrl.u32 %v5198, 7
      %v5200 = vsub.s32 %v5197, %v5199
      %v5201 = vrot.slane %v5179, %v5200
      %v5203 = vunpack.c.l.s4 1966171168
      %v5204 = vunpack.c.0.s8 %v5203
      %v5205 = vlaneseq
      %v5206 = vshrl.u32 %v5205, 7
      %v5207 = vsub.s32 %v5204, %v5206
      %v5208 = vrot.slane %v5180, %v5207
      %v5209 = vcombine.high %v5187, %v5187
      %v5210 = vcombine.high %v5194, %v5194
      %v5211 = vcombine.high %v5201, %v5201
      %v5212 = vcombine.high %v5208, %v5208
      %v5213 = vcombine.high %v3835, %v3835
      %v5215 = vunpack.c.l.s4 1966171168
      %v5216 = vunpack.c.0.s8 %v5215
      %v5217 = vlaneseq
      %v5218 = vshrl.u32 %v5217, 7
      %v5219 = vsub.s32 %v5216, %v5218
      %v5220 = vrot.slane %v3835, %v5219
      %v5222 = vunpack.c.l.s4 1966171168
      %v5223 = vunpack.c.0.s8 %v5222
      %v5224 = vlaneseq
      %v5225 = vshrl.u32 %v5224, 7
      %v5226 = vsub.s32 %v5223, %v5225
      %v5227 = vrot.slane %v5213, %v5226
      %v5228 = vcombine.high %v5220, %v5220
      %v5229 = vcombine.high %v5227, %v5227
      %v5231 = vunpack.c.l.s4 1966171168
      %v5232 = vunpack.c.0.s8 %v5231
      %v5233 = vlaneseq
      %v5234 = vshrl.u32 %v5233, 7
      %v5235 = vsub.s32 %v5232, %v5234
      %v5236 = vrot.slane %v5220, %v5235
      %v5238 = vunpack.c.l.s4 1966171168
      %v5239 = vunpack.c.0.s8 %v5238
      %v5240 = vlaneseq
      %v5241 = vshrl.u32 %v5240, 7
      %v5242 = vsub.s32 %v5239, %v5241
      %v5243 = vrot.slane %v5227, %v5242
      %v5245 = vunpack.c.l.s4 1966171168
      %v5246 = vunpack.c.0.s8 %v5245
      %v5247 = vlaneseq
      %v5248 = vshrl.u32 %v5247, 7
      %v5249 = vsub.s32 %v5246, %v5248
      %v5250 = vrot.slane %v5228, %v5249
      %v5252 = vunpack.c.l.s4 1966171168
      %v5253 = vunpack.c.0.s8 %v5252
      %v5254 = vlaneseq
      %v5255 = vshrl.u32 %v5254, 7
      %v5256 = vsub.s32 %v5253, %v5255
      %v5257 = vrot.slane %v5229, %v5256
      %v5258 = vcombine.high %v5236, %v5236
      %v5259 = vcombine.high %v5243, %v5243
      %v5260 = vcombine.high %v5250, %v5250
      %v5261 = vcombine.high %v5257, %v5257
      %v5262 = vcombine.high %v3840, %v3840
      %v5264 = vunpack.c.l.s4 1966171168
      %v5265 = vunpack.c.0.s8 %v5264
      %v5266 = vlaneseq
      %v5267 = vshrl.u32 %v5266, 7
      %v5268 = vsub.s32 %v5265, %v5267
      %v5269 = vrot.slane %v3840, %v5268
      %v5271 = vunpack.c.l.s4 1966171168
      %v5272 = vunpack.c.0.s8 %v5271
      %v5273 = vlaneseq
      %v5274 = vshrl.u32 %v5273, 7
      %v5275 = vsub.s32 %v5272, %v5274
      %v5276 = vrot.slane %v5262, %v5275
      %v5277 = vcombine.high %v5269, %v5269
      %v5278 = vcombine.high %v5276, %v5276
      %v5280 = vunpack.c.l.s4 1966171168
      %v5281 = vunpack.c.0.s8 %v5280
      %v5282 = vlaneseq
      %v5283 = vshrl.u32 %v5282, 7
      %v5284 = vsub.s32 %v5281, %v5283
      %v5285 = vrot.slane %v5269, %v5284
      %v5287 = vunpack.c.l.s4 1966171168
      %v5288 = vunpack.c.0.s8 %v5287
      %v5289 = vlaneseq
      %v5290 = vshrl.u32 %v5289, 7
      %v5291 = vsub.s32 %v5288, %v5290
      %v5292 = vrot.slane %v5276, %v5291
      %v5294 = vunpack.c.l.s4 1966171168
      %v5295 = vunpack.c.0.s8 %v5294
      %v5296 = vlaneseq
      %v5297 = vshrl.u32 %v5296, 7
      %v5298 = vsub.s32 %v5295, %v5297
      %v5299 = vrot.slane %v5277, %v5298
      %v5301 = vunpack.c.l.s4 1966171168
      %v5302 = vunpack.c.0.s8 %v5301
      %v5303 = vlaneseq
      %v5304 = vshrl.u32 %v5303, 7
      %v5305 = vsub.s32 %v5302, %v5304
      %v5306 = vrot.slane %v5278, %v5305
      %v5307 = vcombine.high %v5285, %v5285
      %v5308 = vcombine.high %v5292, %v5292
      %v5309 = vcombine.high %v5299, %v5299
      %v5310 = vcombine.high %v5306, %v5306
      %v5311 = vcombine.high %v3845, %v3845
      %v5313 = vunpack.c.l.s4 1966171168
      %v5314 = vunpack.c.0.s8 %v5313
      %v5315 = vlaneseq
      %v5316 = vshrl.u32 %v5315, 7
      %v5317 = vsub.s32 %v5314, %v5316
      %v5318 = vrot.slane %v3845, %v5317
      %v5320 = vunpack.c.l.s4 1966171168
      %v5321 = vunpack.c.0.s8 %v5320
      %v5322 = vlaneseq
      %v5323 = vshrl.u32 %v5322, 7
      %v5324 = vsub.s32 %v5321, %v5323
      %v5325 = vrot.slane %v5311, %v5324
      %v5326 = vcombine.high %v5318, %v5318
      %v5327 = vcombine.high %v5325, %v5325
      %v5329 = vunpack.c.l.s4 1966171168
      %v5330 = vunpack.c.0.s8 %v5329
      %v5331 = vlaneseq
      %v5332 = vshrl.u32 %v5331, 7
      %v5333 = vsub.s32 %v5330, %v5332
      %v5334 = vrot.slane %v5318, %v5333
      %v5336 = vunpack.c.l.s4 1966171168
      %v5337 = vunpack.c.0.s8 %v5336
      %v5338 = vlaneseq
      %v5339 = vshrl.u32 %v5338, 7
      %v5340 = vsub.s32 %v5337, %v5339
      %v5341 = vrot.slane %v5325, %v5340
      %v5343 = vunpack.c.l.s4 1966171168
      %v5344 = vunpack.c.0.s8 %v5343
      %v5345 = vlaneseq
      %v5346 = vshrl.u32 %v5345, 7
      %v5347 = vsub.s32 %v5344, %v5346
      %v5348 = vrot.slane %v5326, %v5347
      %v5350 = vunpack.c.l.s4 1966171168
      %v5351 = vunpack.c.0.s8 %v5350
      %v5352 = vlaneseq
      %v5353 = vshrl.u32 %v5352, 7
      %v5354 = vsub.s32 %v5351, %v5353
      %v5355 = vrot.slane %v5327, %v5354
      %v5356 = vcombine.high %v5334, %v5334
      %v5357 = vcombine.high %v5341, %v5341
      %v5358 = vcombine.high %v5348, %v5348
      %v5359 = vcombine.high %v5355, %v5355
      %v5360 = vcombine.high %v3850, %v3850
      %v5362 = vunpack.c.l.s4 1966171168
      %v5363 = vunpack.c.0.s8 %v5362
      %v5364 = vlaneseq
      %v5365 = vshrl.u32 %v5364, 7
      %v5366 = vsub.s32 %v5363, %v5365
      %v5367 = vrot.slane %v3850, %v5366
      %v5369 = vunpack.c.l.s4 1966171168
      %v5370 = vunpack.c.0.s8 %v5369
      %v5371 = vlaneseq
      %v5372 = vshrl.u32 %v5371, 7
      %v5373 = vsub.s32 %v5370, %v5372
      %v5374 = vrot.slane %v5360, %v5373
      %v5375 = vcombine.high %v5367, %v5367
      %v5376 = vcombine.high %v5374, %v5374
      %v5378 = vunpack.c.l.s4 1966171168
      %v5379 = vunpack.c.0.s8 %v5378
      %v5380 = vlaneseq
      %v5381 = vshrl.u32 %v5380, 7
      %v5382 = vsub.s32 %v5379, %v5381
      %v5383 = vrot.slane %v5367, %v5382
      %v5385 = vunpack.c.l.s4 1966171168
      %v5386 = vunpack.c.0.s8 %v5385
      %v5387 = vlaneseq
      %v5388 = vshrl.u32 %v5387, 7
      %v5389 = vsub.s32 %v5386, %v5388
      %v5390 = vrot.slane %v5374, %v5389
      %v5392 = vunpack.c.l.s4 1966171168
      %v5393 = vunpack.c.0.s8 %v5392
      %v5394 = vlaneseq
      %v5395 = vshrl.u32 %v5394, 7
      %v5396 = vsub.s32 %v5393, %v5395
      %v5397 = vrot.slane %v5375, %v5396
      %v5399 = vunpack.c.l.s4 1966171168
      %v5400 = vunpack.c.0.s8 %v5399
      %v5401 = vlaneseq
      %v5402 = vshrl.u32 %v5401, 7
      %v5403 = vsub.s32 %v5400, %v5402
      %v5404 = vrot.slane %v5376, %v5403
      %v5405 = vcombine.high %v5383, %v5383
      %v5406 = vcombine.high %v5390, %v5390
      %v5407 = vcombine.high %v5397, %v5397
      %v5408 = vcombine.high %v5404, %v5404
      %v5409 = vcombine.high %v3855, %v3855
      %v5411 = vunpack.c.l.s4 1966171168
      %v5412 = vunpack.c.0.s8 %v5411
      %v5413 = vlaneseq
      %v5414 = vshrl.u32 %v5413, 7
      %v5415 = vsub.s32 %v5412, %v5414
      %v5416 = vrot.slane %v3855, %v5415
      %v5418 = vunpack.c.l.s4 1966171168
      %v5419 = vunpack.c.0.s8 %v5418
      %v5420 = vlaneseq
      %v5421 = vshrl.u32 %v5420, 7
      %v5422 = vsub.s32 %v5419, %v5421
      %v5423 = vrot.slane %v5409, %v5422
      %v5424 = vcombine.high %v5416, %v5416
      %v5425 = vcombine.high %v5423, %v5423
      %v5427 = vunpack.c.l.s4 1966171168
      %v5428 = vunpack.c.0.s8 %v5427
      %v5429 = vlaneseq
      %v5430 = vshrl.u32 %v5429, 7
      %v5431 = vsub.s32 %v5428, %v5430
      %v5432 = vrot.slane %v5416, %v5431
      %v5434 = vunpack.c.l.s4 1966171168
      %v5435 = vunpack.c.0.s8 %v5434
      %v5436 = vlaneseq
      %v5437 = vshrl.u32 %v5436, 7
      %v5438 = vsub.s32 %v5435, %v5437
      %v5439 = vrot.slane %v5423, %v5438
      %v5441 = vunpack.c.l.s4 1966171168
      %v5442 = vunpack.c.0.s8 %v5441
      %v5443 = vlaneseq
      %v5444 = vshrl.u32 %v5443, 7
      %v5445 = vsub.s32 %v5442, %v5444
      %v5446 = vrot.slane %v5424, %v5445
      %v5448 = vunpack.c.l.s4 1966171168
      %v5449 = vunpack.c.0.s8 %v5448
      %v5450 = vlaneseq
      %v5451 = vshrl.u32 %v5450, 7
      %v5452 = vsub.s32 %v5449, %v5451
      %v5453 = vrot.slane %v5425, %v5452
      %v5454 = vcombine.high %v5432, %v5432
      %v5455 = vcombine.high %v5439, %v5439
      %v5456 = vcombine.high %v5446, %v5446
      %v5457 = vcombine.high %v5453, %v5453
      %5714 = vst.msk [vmem:[%s254 + $0x1] sm:$0x1] %vm3021, %v3913
      %5715 = vst.msk [vmem:[%s254 + $0x3] sm:$0x1] %vm3021, %v3927
      %5716 = vst.msk [vmem:[%s254 + $0x5] sm:$0x1] %vm3021, %v3935
      %5717 = vst.msk [vmem:[%s254 + $0x7] sm:$0x1] %vm3021, %v3937
      %5718 = vst.msk [vmem:[%s254 + $0x9] sm:$0x1] %vm3021, %v3920
      %5719 = vst.msk [vmem:[%s254 + $0xb] sm:$0x1] %vm3021, %v3934
      %5720 = vst.msk [vmem:[%s254 + $0xd] sm:$0x1] %vm3021, %v3936
      %5721 = vst.msk [vmem:[%s254 + $0xf] sm:$0x1] %vm3021, %v3938
      %5722 = vst.msk [vmem:[%s254 + $0x11] sm:$0x1] %vm3021, %v3962
      %5723 = vst.msk [vmem:[%s254 + $0x13] sm:$0x1] %vm3021, %v3976
      %5724 = vst.msk [vmem:[%s254 + $0x15] sm:$0x1] %vm3021, %v3984
      %5725 = vst.msk [vmem:[%s254 + $0x17] sm:$0x1] %vm3021, %v3986
      %5726 = vst.msk [vmem:[%s254 + $0x19] sm:$0x1] %vm3021, %v3969
      %5727 = vst.msk [vmem:[%s254 + $0x1b] sm:$0x1] %vm3021, %v3983
      %5728 = vst.msk [vmem:[%s254 + $0x1d] sm:$0x1] %vm3021, %v3985
      %5729 = vst.msk [vmem:[%s254 + $0x1f] sm:$0x1] %vm3021, %v3987
      %5730 = vst.msk [vmem:[%s254 + $0x41] sm:$0x1] %vm3021, %v4011
      %5731 = vst.msk [vmem:[%s254 + $0x43] sm:$0x1] %vm3021, %v4025
      %5732 = vst.msk [vmem:[%s254 + $0x45] sm:$0x1] %vm3021, %v4033
      %5733 = vst.msk [vmem:[%s254 + $0x47] sm:$0x1] %vm3021, %v4035
      %5734 = vst.msk [vmem:[%s254 + $0x49] sm:$0x1] %vm3021, %v4018
      %5735 = vst.msk [vmem:[%s254 + $0x4b] sm:$0x1] %vm3021, %v4032
      %5736 = vst.msk [vmem:[%s254 + $0x4d] sm:$0x1] %vm3021, %v4034
      %5737 = vst.msk [vmem:[%s254 + $0x4f] sm:$0x1] %vm3021, %v4036
      %5738 = vst.msk [vmem:[%s254 + $0x51] sm:$0x1] %vm3021, %v4060
      %5739 = vst.msk [vmem:[%s254 + $0x53] sm:$0x1] %vm3021, %v4074
      %5740 = vst.msk [vmem:[%s254 + $0x55] sm:$0x1] %vm3021, %v4082
      %5741 = vst.msk [vmem:[%s254 + $0x57] sm:$0x1] %vm3021, %v4084
      %5742 = vst.msk [vmem:[%s254 + $0x59] sm:$0x1] %vm3021, %v4067
      %5743 = vst.msk [vmem:[%s254 + $0x5b] sm:$0x1] %vm3021, %v4081
      %5744 = vst.msk [vmem:[%s254 + $0x5d] sm:$0x1] %vm3021, %v4083
      %5745 = vst.msk [vmem:[%s254 + $0x5f] sm:$0x1] %vm3021, %v4085
      %5746 = vst.msk [vmem:[%s254 + $0x81] sm:$0x1] %vm3021, %v4109
      %5747 = vst.msk [vmem:[%s254 + $0x83] sm:$0x1] %vm3021, %v4123
      %5748 = vst.msk [vmem:[%s254 + $0x85] sm:$0x1] %vm3021, %v4131
      %5749 = vst.msk [vmem:[%s254 + $0x87] sm:$0x1] %vm3021, %v4133
      %5750 = vst.msk [vmem:[%s254 + $0x89] sm:$0x1] %vm3021, %v4116
      %5751 = vst.msk [vmem:[%s254 + $0x8b] sm:$0x1] %vm3021, %v4130
      %5752 = vst.msk [vmem:[%s254 + $0x8d] sm:$0x1] %vm3021, %v4132
      %5753 = vst.msk [vmem:[%s254 + $0x8f] sm:$0x1] %vm3021, %v4134
      %5754 = vst.msk [vmem:[%s254 + $0x91] sm:$0x1] %vm3021, %v4158
      %5755 = vst.msk [vmem:[%s254 + $0x93] sm:$0x1] %vm3021, %v4172
      %5756 = vst.msk [vmem:[%s254 + $0x95] sm:$0x1] %vm3021, %v4180
      %5757 = vst.msk [vmem:[%s254 + $0x97] sm:$0x1] %vm3021, %v4182
      %5758 = vst.msk [vmem:[%s254 + $0x99] sm:$0x1] %vm3021, %v4165
      %5759 = vst.msk [vmem:[%s254 + $0x9b] sm:$0x1] %vm3021, %v4179
      %5760 = vst.msk [vmem:[%s254 + $0x9d] sm:$0x1] %vm3021, %v4181
      %5761 = vst.msk [vmem:[%s254 + $0x9f] sm:$0x1] %vm3021, %v4183
      %5762 = vst.msk [vmem:[%s254 + $0xc1] sm:$0x1] %vm3021, %v4207
      %5763 = vst.msk [vmem:[%s254 + $0xc3] sm:$0x1] %vm3021, %v4221
      %5764 = vst.msk [vmem:[%s254 + $0xc5] sm:$0x1] %vm3021, %v4229
      %5765 = vst.msk [vmem:[%s254 + $0xc7] sm:$0x1] %vm3021, %v4231
      %5766 = vst.msk [vmem:[%s254 + $0xc9] sm:$0x1] %vm3021, %v4214
      %5767 = vst.msk [vmem:[%s254 + $0xcb] sm:$0x1] %vm3021, %v4228
      %5768 = vst.msk [vmem:[%s254 + $0xcd] sm:$0x1] %vm3021, %v4230
      %5769 = vst.msk [vmem:[%s254 + $0xcf] sm:$0x1] %vm3021, %v4232
      %5770 = vst.msk [vmem:[%s254 + $0xd1] sm:$0x1] %vm3021, %v4256
      %5771 = vst.msk [vmem:[%s254 + $0xd3] sm:$0x1] %vm3021, %v4270
      %5772 = vst.msk [vmem:[%s254 + $0xd5] sm:$0x1] %vm3021, %v4278
      %5773 = vst.msk [vmem:[%s254 + $0xd7] sm:$0x1] %vm3021, %v4280
      %5774 = vst.msk [vmem:[%s254 + $0xd9] sm:$0x1] %vm3021, %v4263
      %5775 = vst.msk [vmem:[%s254 + $0xdb] sm:$0x1] %vm3021, %v4277
      %5776 = vst.msk [vmem:[%s254 + $0xdd] sm:$0x1] %vm3021, %v4279
      %5777 = vst.msk [vmem:[%s254 + $0xdf] sm:$0x1] %vm3021, %v4281
      %5778 = vst.msk [vmem:[%s254 + $0x101] sm:$0x1] %vm3021, %v4305
      %5779 = vst.msk [vmem:[%s254 + $0x103] sm:$0x1] %vm3021, %v4319
      %5780 = vst.msk [vmem:[%s254 + $0x105] sm:$0x1] %vm3021, %v4327
      %5781 = vst.msk [vmem:[%s254 + $0x107] sm:$0x1] %vm3021, %v4329
      %5782 = vst.msk [vmem:[%s254 + $0x109] sm:$0x1] %vm3021, %v4312
      %5783 = vst.msk [vmem:[%s254 + $0x10b] sm:$0x1] %vm3021, %v4326
      %5784 = vst.msk [vmem:[%s254 + $0x10d] sm:$0x1] %vm3021, %v4328
      %5785 = vst.msk [vmem:[%s254 + $0x10f] sm:$0x1] %vm3021, %v4330
      %5786 = vst.msk [vmem:[%s254 + $0x111] sm:$0x1] %vm3021, %v4354
      %5787 = vst.msk [vmem:[%s254 + $0x113] sm:$0x1] %vm3021, %v4368
      %5788 = vst.msk [vmem:[%s254 + $0x115] sm:$0x1] %vm3021, %v4376
      %5789 = vst.msk [vmem:[%s254 + $0x117] sm:$0x1] %vm3021, %v4378
      %5790 = vst.msk [vmem:[%s254 + $0x119] sm:$0x1] %vm3021, %v4361
      %5791 = vst.msk [vmem:[%s254 + $0x11b] sm:$0x1] %vm3021, %v4375
      %5792 = vst.msk [vmem:[%s254 + $0x11d] sm:$0x1] %vm3021, %v4377
      %5793 = vst.msk [vmem:[%s254 + $0x11f] sm:$0x1] %vm3021, %v4379
      %5794 = vst.msk [vmem:[%s254 + $0x141] sm:$0x1] %vm3021, %v4403
      %5795 = vst.msk [vmem:[%s254 + $0x143] sm:$0x1] %vm3021, %v4417
      %5796 = vst.msk [vmem:[%s254 + $0x145] sm:$0x1] %vm3021, %v4425
      %5797 = vst.msk [vmem:[%s254 + $0x147] sm:$0x1] %vm3021, %v4427
      %5798 = vst.msk [vmem:[%s254 + $0x149] sm:$0x1] %vm3021, %v4410
      %5799 = vst.msk [vmem:[%s254 + $0x14b] sm:$0x1] %vm3021, %v4424
      %5800 = vst.msk [vmem:[%s254 + $0x14d] sm:$0x1] %vm3021, %v4426
      %5801 = vst.msk [vmem:[%s254 + $0x14f] sm:$0x1] %vm3021, %v4428
      %5802 = vst.msk [vmem:[%s254 + $0x151] sm:$0x1] %vm3021, %v4452
      %5803 = vst.msk [vmem:[%s254 + $0x153] sm:$0x1] %vm3021, %v4466
      %5804 = vst.msk [vmem:[%s254 + $0x155] sm:$0x1] %vm3021, %v4474
      %5805 = vst.msk [vmem:[%s254 + $0x157] sm:$0x1] %vm3021, %v4476
      %5806 = vst.msk [vmem:[%s254 + $0x159] sm:$0x1] %vm3021, %v4459
      %5807 = vst.msk [vmem:[%s254 + $0x15b] sm:$0x1] %vm3021, %v4473
      %5808 = vst.msk [vmem:[%s254 + $0x15d] sm:$0x1] %vm3021, %v4475
      %5809 = vst.msk [vmem:[%s254 + $0x15f] sm:$0x1] %vm3021, %v4477
      %5810 = vst.msk [vmem:[%s254 + $0x181] sm:$0x1] %vm3021, %v4501
      %5811 = vst.msk [vmem:[%s254 + $0x183] sm:$0x1] %vm3021, %v4515
      %5812 = vst.msk [vmem:[%s254 + $0x185] sm:$0x1] %vm3021, %v4523
      %5813 = vst.msk [vmem:[%s254 + $0x187] sm:$0x1] %vm3021, %v4525
      %5814 = vst.msk [vmem:[%s254 + $0x189] sm:$0x1] %vm3021, %v4508
      %5815 = vst.msk [vmem:[%s254 + $0x18b] sm:$0x1] %vm3021, %v4522
      %5816 = vst.msk [vmem:[%s254 + $0x18d] sm:$0x1] %vm3021, %v4524
      %5817 = vst.msk [vmem:[%s254 + $0x18f] sm:$0x1] %vm3021, %v4526
      %5818 = vst.msk [vmem:[%s254 + $0x191] sm:$0x1] %vm3021, %v4550
      %5819 = vst.msk [vmem:[%s254 + $0x193] sm:$0x1] %vm3021, %v4564
      %5820 = vst.msk [vmem:[%s254 + $0x195] sm:$0x1] %vm3021, %v4572
      %5821 = vst.msk [vmem:[%s254 + $0x197] sm:$0x1] %vm3021, %v4574
      %5822 = vst.msk [vmem:[%s254 + $0x199] sm:$0x1] %vm3021, %v4557
      %5823 = vst.msk [vmem:[%s254 + $0x19b] sm:$0x1] %vm3021, %v4571
      %5824 = vst.msk [vmem:[%s254 + $0x19d] sm:$0x1] %vm3021, %v4573
      %5825 = vst.msk [vmem:[%s254 + $0x19f] sm:$0x1] %vm3021, %v4575
      %5826 = vst.msk [vmem:[%s254 + $0x1c1] sm:$0x1] %vm3021, %v4599
      %5827 = vst.msk [vmem:[%s254 + $0x1c3] sm:$0x1] %vm3021, %v4613
      %5828 = vst.msk [vmem:[%s254 + $0x1c5] sm:$0x1] %vm3021, %v4621
      %5829 = vst.msk [vmem:[%s254 + $0x1c7] sm:$0x1] %vm3021, %v4623
      %5830 = vst.msk [vmem:[%s254 + $0x1c9] sm:$0x1] %vm3021, %v4606
      %5831 = vst.msk [vmem:[%s254 + $0x1cb] sm:$0x1] %vm3021, %v4620
      %5832 = vst.msk [vmem:[%s254 + $0x1cd] sm:$0x1] %vm3021, %v4622
      %5833 = vst.msk [vmem:[%s254 + $0x1cf] sm:$0x1] %vm3021, %v4624
      %5834 = vst.msk [vmem:[%s254 + $0x1d1] sm:$0x1] %vm3021, %v4648
      %5835 = vst.msk [vmem:[%s254 + $0x1d3] sm:$0x1] %vm3021, %v4662
      %5836 = vst.msk [vmem:[%s254 + $0x1d5] sm:$0x1] %vm3021, %v4670
      %5837 = vst.msk [vmem:[%s254 + $0x1d7] sm:$0x1] %vm3021, %v4672
      %5838 = vst.msk [vmem:[%s254 + $0x1d9] sm:$0x1] %vm3021, %v4655
      %5839 = vst.msk [vmem:[%s254 + $0x1db] sm:$0x1] %vm3021, %v4669
      %5840 = vst.msk [vmem:[%s254 + $0x1dd] sm:$0x1] %vm3021, %v4671
      %5841 = vst.msk [vmem:[%s254 + $0x1df] sm:$0x1] %vm3021, %v4673
      %5842 = vst.msk [vmem:[%s254 + $0x201] sm:$0x1] %vm3021, %v4697
      %5843 = vst.msk [vmem:[%s254 + $0x203] sm:$0x1] %vm3021, %v4711
      %5844 = vst.msk [vmem:[%s254 + $0x205] sm:$0x1] %vm3021, %v4719
      %5845 = vst.msk [vmem:[%s254 + $0x207] sm:$0x1] %vm3021, %v4721
      %5846 = vst.msk [vmem:[%s254 + $0x209] sm:$0x1] %vm3021, %v4704
      %5847 = vst.msk [vmem:[%s254 + $0x20b] sm:$0x1] %vm3021, %v4718
      %5848 = vst.msk [vmem:[%s254 + $0x20d] sm:$0x1] %vm3021, %v4720
      %5849 = vst.msk [vmem:[%s254 + $0x20f] sm:$0x1] %vm3021, %v4722
      %5850 = vst.msk [vmem:[%s254 + $0x211] sm:$0x1] %vm3021, %v4746
      %5851 = vst.msk [vmem:[%s254 + $0x213] sm:$0x1] %vm3021, %v4760
      %5852 = vst.msk [vmem:[%s254 + $0x215] sm:$0x1] %vm3021, %v4768
      %5853 = vst.msk [vmem:[%s254 + $0x217] sm:$0x1] %vm3021, %v4770
      %5854 = vst.msk [vmem:[%s254 + $0x219] sm:$0x1] %vm3021, %v4753
      %5855 = vst.msk [vmem:[%s254 + $0x21b] sm:$0x1] %vm3021, %v4767
      %5856 = vst.msk [vmem:[%s254 + $0x21d] sm:$0x1] %vm3021, %v4769
      %5857 = vst.msk [vmem:[%s254 + $0x21f] sm:$0x1] %vm3021, %v4771
      %5858 = vst.msk [vmem:[%s254 + $0x241] sm:$0x1] %vm3021, %v4795
      %5859 = vst.msk [vmem:[%s254 + $0x243] sm:$0x1] %vm3021, %v4809
      %5860 = vst.msk [vmem:[%s254 + $0x245] sm:$0x1] %vm3021, %v4817
      %5861 = vst.msk [vmem:[%s254 + $0x247] sm:$0x1] %vm3021, %v4819
      %5862 = vst.msk [vmem:[%s254 + $0x249] sm:$0x1] %vm3021, %v4802
      %5863 = vst.msk [vmem:[%s254 + $0x24b] sm:$0x1] %vm3021, %v4816
      %5864 = vst.msk [vmem:[%s254 + $0x24d] sm:$0x1] %vm3021, %v4818
      %5865 = vst.msk [vmem:[%s254 + $0x24f] sm:$0x1] %vm3021, %v4820
      %5866 = vst.msk [vmem:[%s254 + $0x251] sm:$0x1] %vm3021, %v4844
      %5867 = vst.msk [vmem:[%s254 + $0x253] sm:$0x1] %vm3021, %v4858
      %5868 = vst.msk [vmem:[%s254 + $0x255] sm:$0x1] %vm3021, %v4866
      %5869 = vst.msk [vmem:[%s254 + $0x257] sm:$0x1] %vm3021, %v4868
      %5870 = vst.msk [vmem:[%s254 + $0x259] sm:$0x1] %vm3021, %v4851
      %5871 = vst.msk [vmem:[%s254 + $0x25b] sm:$0x1] %vm3021, %v4865
      %5872 = vst.msk [vmem:[%s254 + $0x25d] sm:$0x1] %vm3021, %v4867
      %5873 = vst.msk [vmem:[%s254 + $0x25f] sm:$0x1] %vm3021, %v4869
      %5874 = vst.msk [vmem:[%s254 + $0x281] sm:$0x1] %vm3021, %v4893
      %5875 = vst.msk [vmem:[%s254 + $0x283] sm:$0x1] %vm3021, %v4907
      %5876 = vst.msk [vmem:[%s254 + $0x285] sm:$0x1] %vm3021, %v4915
      %5877 = vst.msk [vmem:[%s254 + $0x287] sm:$0x1] %vm3021, %v4917
      %5878 = vst.msk [vmem:[%s254 + $0x289] sm:$0x1] %vm3021, %v4900
      %5879 = vst.msk [vmem:[%s254 + $0x28b] sm:$0x1] %vm3021, %v4914
      %5880 = vst.msk [vmem:[%s254 + $0x28d] sm:$0x1] %vm3021, %v4916
      %5881 = vst.msk [vmem:[%s254 + $0x28f] sm:$0x1] %vm3021, %v4918
      %5882 = vst.msk [vmem:[%s254 + $0x291] sm:$0x1] %vm3021, %v4942
      %5883 = vst.msk [vmem:[%s254 + $0x293] sm:$0x1] %vm3021, %v4956
      %5884 = vst.msk [vmem:[%s254 + $0x295] sm:$0x1] %vm3021, %v4964
      %5885 = vst.msk [vmem:[%s254 + $0x297] sm:$0x1] %vm3021, %v4966
      %5886 = vst.msk [vmem:[%s254 + $0x299] sm:$0x1] %vm3021, %v4949
      %5887 = vst.msk [vmem:[%s254 + $0x29b] sm:$0x1] %vm3021, %v4963
      %5888 = vst.msk [vmem:[%s254 + $0x29d] sm:$0x1] %vm3021, %v4965
      %5889 = vst.msk [vmem:[%s254 + $0x29f] sm:$0x1] %vm3021, %v4967
      %5890 = vst.msk [vmem:[%s254 + $0x2c1] sm:$0x1] %vm3021, %v4991
      %5891 = vst.msk [vmem:[%s254 + $0x2c3] sm:$0x1] %vm3021, %v5005
      %5892 = vst.msk [vmem:[%s254 + $0x2c5] sm:$0x1] %vm3021, %v5013
      %5893 = vst.msk [vmem:[%s254 + $0x2c7] sm:$0x1] %vm3021, %v5015
      %5894 = vst.msk [vmem:[%s254 + $0x2c9] sm:$0x1] %vm3021, %v4998
      %5895 = vst.msk [vmem:[%s254 + $0x2cb] sm:$0x1] %vm3021, %v5012
      %5896 = vst.msk [vmem:[%s254 + $0x2cd] sm:$0x1] %vm3021, %v5014
      %5897 = vst.msk [vmem:[%s254 + $0x2cf] sm:$0x1] %vm3021, %v5016
      %5898 = vst.msk [vmem:[%s254 + $0x2d1] sm:$0x1] %vm3021, %v5040
      %5899 = vst.msk [vmem:[%s254 + $0x2d3] sm:$0x1] %vm3021, %v5054
      %5900 = vst.msk [vmem:[%s254 + $0x2d5] sm:$0x1] %vm3021, %v5062
      %5901 = vst.msk [vmem:[%s254 + $0x2d7] sm:$0x1] %vm3021, %v5064
      %5902 = vst.msk [vmem:[%s254 + $0x2d9] sm:$0x1] %vm3021, %v5047
      %5903 = vst.msk [vmem:[%s254 + $0x2db] sm:$0x1] %vm3021, %v5061
      %5904 = vst.msk [vmem:[%s254 + $0x2dd] sm:$0x1] %vm3021, %v5063
      %5905 = vst.msk [vmem:[%s254 + $0x2df] sm:$0x1] %vm3021, %v5065
      %5906 = vst.msk [vmem:[%s254 + $0x301] sm:$0x1] %vm3021, %v5089
      %5907 = vst.msk [vmem:[%s254 + $0x303] sm:$0x1] %vm3021, %v5103
      %5908 = vst.msk [vmem:[%s254 + $0x305] sm:$0x1] %vm3021, %v5111
      %5909 = vst.msk [vmem:[%s254 + $0x307] sm:$0x1] %vm3021, %v5113
      %5910 = vst.msk [vmem:[%s254 + $0x309] sm:$0x1] %vm3021, %v5096
      %5911 = vst.msk [vmem:[%s254 + $0x30b] sm:$0x1] %vm3021, %v5110
      %5912 = vst.msk [vmem:[%s254 + $0x30d] sm:$0x1] %vm3021, %v5112
      %5913 = vst.msk [vmem:[%s254 + $0x30f] sm:$0x1] %vm3021, %v5114
      %5914 = vst.msk [vmem:[%s254 + $0x311] sm:$0x1] %vm3021, %v5138
      %5915 = vst.msk [vmem:[%s254 + $0x313] sm:$0x1] %vm3021, %v5152
      %5916 = vst.msk [vmem:[%s254 + $0x315] sm:$0x1] %vm3021, %v5160
      %5917 = vst.msk [vmem:[%s254 + $0x317] sm:$0x1] %vm3021, %v5162
      %5918 = vst.msk [vmem:[%s254 + $0x319] sm:$0x1] %vm3021, %v5145
      %5919 = vst.msk [vmem:[%s254 + $0x31b] sm:$0x1] %vm3021, %v5159
      %5920 = vst.msk [vmem:[%s254 + $0x31d] sm:$0x1] %vm3021, %v5161
      %5921 = vst.msk [vmem:[%s254 + $0x31f] sm:$0x1] %vm3021, %v5163
      %5922 = vst.msk [vmem:[%s254 + $0x341] sm:$0x1] %vm3021, %v5187
      %5923 = vst.msk [vmem:[%s254 + $0x343] sm:$0x1] %vm3021, %v5201
      %5924 = vst.msk [vmem:[%s254 + $0x345] sm:$0x1] %vm3021, %v5209
      %5925 = vst.msk [vmem:[%s254 + $0x347] sm:$0x1] %vm3021, %v5211
      %5926 = vst.msk [vmem:[%s254 + $0x349] sm:$0x1] %vm3021, %v5194
      %5927 = vst.msk [vmem:[%s254 + $0x34b] sm:$0x1] %vm3021, %v5208
      %5928 = vst.msk [vmem:[%s254 + $0x34d] sm:$0x1] %vm3021, %v5210
      %5929 = vst.msk [vmem:[%s254 + $0x34f] sm:$0x1] %vm3021, %v5212
      %5930 = vst.msk [vmem:[%s254 + $0x351] sm:$0x1] %vm3021, %v5236
      %5931 = vst.msk [vmem:[%s254 + $0x353] sm:$0x1] %vm3021, %v5250
      %5932 = vst.msk [vmem:[%s254 + $0x355] sm:$0x1] %vm3021, %v5258
      %5933 = vst.msk [vmem:[%s254 + $0x357] sm:$0x1] %vm3021, %v5260
      %5934 = vst.msk [vmem:[%s254 + $0x359] sm:$0x1] %vm3021, %v5243
      %5935 = vst.msk [vmem:[%s254 + $0x35b] sm:$0x1] %vm3021, %v5257
      %5936 = vst.msk [vmem:[%s254 + $0x35d] sm:$0x1] %vm3021, %v5259
      %5937 = vst.msk [vmem:[%s254 + $0x35f] sm:$0x1] %vm3021, %v5261
      %5938 = vst.msk [vmem:[%s254 + $0x381] sm:$0x1] %vm3021, %v5285
      %5939 = vst.msk [vmem:[%s254 + $0x383] sm:$0x1] %vm3021, %v5299
      %5940 = vst.msk [vmem:[%s254 + $0x385] sm:$0x1] %vm3021, %v5307
      %5941 = vst.msk [vmem:[%s254 + $0x387] sm:$0x1] %vm3021, %v5309
      %5942 = vst.msk [vmem:[%s254 + $0x389] sm:$0x1] %vm3021, %v5292
      %5943 = vst.msk [vmem:[%s254 + $0x38b] sm:$0x1] %vm3021, %v5306
      %5944 = vst.msk [vmem:[%s254 + $0x38d] sm:$0x1] %vm3021, %v5308
      %5945 = vst.msk [vmem:[%s254 + $0x38f] sm:$0x1] %vm3021, %v5310
      %5946 = vst.msk [vmem:[%s254 + $0x391] sm:$0x1] %vm3021, %v5334
      %5947 = vst.msk [vmem:[%s254 + $0x393] sm:$0x1] %vm3021, %v5348
      %5948 = vst.msk [vmem:[%s254 + $0x395] sm:$0x1] %vm3021, %v5356
      %5949 = vst.msk [vmem:[%s254 + $0x397] sm:$0x1] %vm3021, %v5358
      %5950 = vst.msk [vmem:[%s254 + $0x399] sm:$0x1] %vm3021, %v5341
      %5951 = vst.msk [vmem:[%s254 + $0x39b] sm:$0x1] %vm3021, %v5355
      %5952 = vst.msk [vmem:[%s254 + $0x39d] sm:$0x1] %vm3021, %v5357
      %5953 = vst.msk [vmem:[%s254 + $0x39f] sm:$0x1] %vm3021, %v5359
      %5954 = vst.msk [vmem:[%s254 + $0x3c1] sm:$0x1] %vm3021, %v5383
      %5955 = vst.msk [vmem:[%s254 + $0x3c3] sm:$0x1] %vm3021, %v5397
      %5956 = vst.msk [vmem:[%s254 + $0x3c5] sm:$0x1] %vm3021, %v5405
      %5957 = vst.msk [vmem:[%s254 + $0x3c7] sm:$0x1] %vm3021, %v5407
      %5958 = vst.msk [vmem:[%s254 + $0x3c9] sm:$0x1] %vm3021, %v5390
      %5959 = vst.msk [vmem:[%s254 + $0x3cb] sm:$0x1] %vm3021, %v5404
      %5960 = vst.msk [vmem:[%s254 + $0x3cd] sm:$0x1] %vm3021, %v5406
      %5961 = vst.msk [vmem:[%s254 + $0x3cf] sm:$0x1] %vm3021, %v5408
      %5962 = vst.msk [vmem:[%s254 + $0x3d1] sm:$0x1] %vm3021, %v5432
      %5963 = vst.msk [vmem:[%s254 + $0x3d3] sm:$0x1] %vm3021, %v5446
      %5964 = vst.msk [vmem:[%s254 + $0x3d5] sm:$0x1] %vm3021, %v5454
      %5965 = vst.msk [vmem:[%s254 + $0x3d7] sm:$0x1] %vm3021, %v5456
      %5966 = vst.msk [vmem:[%s254 + $0x3d9] sm:$0x1] %vm3021, %v5439
      %5967 = vst.msk [vmem:[%s254 + $0x3db] sm:$0x1] %vm3021, %v5453
      %5968 = vst.msk [vmem:[%s254 + $0x3dd] sm:$0x1] %vm3021, %v5455
      %5969 = vst.msk [vmem:[%s254 + $0x3df] sm:$0x1] %vm3021, %v5457
      %5970 = vrot.lane.b32.xlu0 %v637, 4
      %v5971 = vpop.permute.xlu0 %5970
      %5972 = vrot.lane.b32.xlu0 %v639, 4
      %v5973 = vpop.permute.xlu0 %5972
      %5978 = vrot.lane.b32.xlu0 %v307, 8
      %v5979 = vpop.permute.xlu0 %5978
      %5980 = vrot.lane.b32.xlu0 %v308, 8
      %v5981 = vpop.permute.xlu0 %5980
      %v5985 = vrot.slane %v307, 1
      %v5986 = vrot.slane %v308, 1
      %v5987 = vsel %vm359, %v5985, %v5986
      %v5988 = vrot.slane %v309, 1
      %v5989 = vsel %vm359, %v5986, %v5988
      %5990 = vrot.lane.b32.xlu0 %v5987, 12
      %v5991 = vpop.permute.xlu0 %5990
      %5992 = vrot.lane.b32.xlu0 %v5989, 12
      %v5993 = vpop.permute.xlu0 %5992
      %v5996 = vsel %vm736, %v304, %v5971
      %v5997 = vsel %vm736, %v305, %v5973
      %v5998 = vsel %vm769, %v5996, %v5979
      %v5999 = vsel %vm769, %v5997, %v5981
      %v6000 = vsel %vm802, %v5998, %v5991
      %v6001 = vsel %vm802, %v5999, %v5993
      %s6002 = scalar_lea.vmem %s238, 32
      %v6003 = vld [vmem:[%s6002] sm:$0xff]
      %v6004 = vld [vmem:[%s6002 + $0x8] sm:$0xff]
      %v6006 = vsel %vm843, %v6000, 0
      %v6009 = vsel %vm843, %v6001, 0
      %6011 = vmatprep.subr.mxu0 0.0
      %6012 = vmatpush1.msra.mxu0 0.0
      %6013 = vmatprep.subr.mxu0 0.0
      %6014 = vmatpush1.msra.mxu0 0.0
      %6015 = vmatprep.subr.mxu0 0.0
      %6016 = vmatpush1.msra.mxu0 0.0
      %6017 = vmatprep.subr.mxu0 0.0
      %6018 = vmatpush1.msra.mxu0 0.0
      %6019 = vmatprep.subr.mxu0 0.0
      %6020 = vmatpush1.msra.mxu0 0.0
      %6021 = vmatprep.subr.mxu0 0.0
      %6022 = vmatpush1.msra.mxu0 0.0
      %6023 = vmatprep.subr.mxu0 0.0
      %6024 = vmatpush1.msra.mxu0 0.0
      %6025 = vmatprep.subr.mxu0 0.0
      %6026 = vmatpush1.msra.mxu0 0.0
      %6027 = vmatprep.subr.mxu0 0.0
      %6028 = vmatpush1.msra.mxu0 0.0
      %6029 = vmatprep.subr.mxu0 0.0
      %6030 = vmatpush1.msra.mxu0 0.0
      %6031 = vmatprep.subr.mxu0 0.0
      %6032 = vmatpush1.msra.mxu0 0.0
      %6033 = vmatprep.subr.mxu0 0.0
      %6034 = vmatpush1.msra.mxu0 0.0
      %6035 = vmatprep.subr.mxu0 0.0
      %6036 = vmatpush1.msra.mxu0 0.0
      %6037 = vmatprep.subr.mxu0 0.0
      %6038 = vmatpush1.msra.mxu0 0.0
      %6039 = vmatprep.subr.mxu0 0.0
      %6040 = vmatpush1.msra.mxu0 %v6004
      %6041 = vmatprep.subr.mxu0 0.0
      %6042 = vmatpush1.msra.mxu0 %v6003
      %6043 = vmatprep.subr.mxu0 0.0
      %6044 = vmatpush2.msra.mxu0 0.0
      %6045 = vmatprep.subr.mxu0 0.0
      %6046 = vmatpush2.msra.mxu0 0.0
      %6047 = vmatprep.subr.mxu0 0.0
      %6048 = vmatpush2.msra.mxu0 0.0
      %6049 = vmatprep.subr.mxu0 0.0
      %6050 = vmatpush2.msra.mxu0 0.0
      %6051 = vmatprep.subr.mxu0 0.0
      %6052 = vmatpush2.msra.mxu0 0.0
      %6053 = vmatprep.subr.mxu0 0.0
      %6054 = vmatpush2.msra.mxu0 0.0
      %6055 = vmatprep.subr.mxu0 0.0
      %6056 = vmatpush2.msra.mxu0 0.0
      %6057 = vmatprep.subr.mxu0 0.0
      %6058 = vmatpush2.msra.mxu0 0.0
      %6059 = vmatprep.subr.mxu0 0.0
      %6060 = vmatpush2.msra.mxu0 0.0
      %6061 = vmatprep.subr.mxu0 0.0
      %6062 = vmatpush2.msra.mxu0 0.0
      %6063 = vmatprep.subr.mxu0 0.0
      %6064 = vmatpush2.msra.mxu0 0.0
      %6065 = vmatprep.subr.mxu0 0.0
      %6066 = vmatpush2.msra.mxu0 0.0
      %6067 = vmatprep.subr.mxu0 0.0
      %6068 = vmatpush2.msra.mxu0 0.0
      %6069 = vmatprep.subr.mxu0 0.0
      %6070 = vmatpush2.msra.mxu0 0.0
      %6071 = vmatprep.subr.mxu0 0.0
      %6072 = vmatpush2.msra.mxu0 0.0
      %6073 = vmatprep.subr.mxu0 0.0
      %6074 = vmatpush2.msra.mxu0 0.0
      %6075 = vmatprep.mubr.f32.mxu0 0.0
      %6076 = vmatmul.mubr.f32.gmra.mxu0 %v851
      %v6077 = vpop.f32.mrf.mxu0
      %v6078 = vadd.f32 %v841, %v6077
      %v6079 = vpop.f32.mrf.mxu0
      %6080 = vmatprep.mubr.f32.mxu0 0.0
      %6081 = vmatmul.mubr.f32.gmra.mxu0 %v854
      %v6082 = vpop.f32.mrf.mxu0
      %v6083 = vadd.f32 %v841, %v6082
      %v6084 = vpop.f32.mrf.mxu0
      %6085 = vmatprep.mubr.f32.mxu0 0.0
      %6086 = vmatmul.mubr.f32.gmra.mxu0 %v857
      %v6087 = vpop.f32.mrf.mxu0
      %v6088 = vadd.f32 %v841, %v6087
      %v6089 = vpop.f32.mrf.mxu0
      %6090 = vmatprep.mubr.f32.mxu0 0.0
      %6091 = vmatmul.mubr.f32.gmra.mxu0 %v860
      %v6092 = vpop.f32.mrf.mxu0
      %v6093 = vadd.f32 %v841, %v6092
      %v6094 = vpop.f32.mrf.mxu0
      %6095 = vmatprep.mubr.f32.mxu0 0.0
      %6096 = vmatmul.mubr.f32.gmra.mxu0 %v863
      %v6097 = vpop.f32.mrf.mxu0
      %v6098 = vadd.f32 %v841, %v6097
      %v6099 = vpop.f32.mrf.mxu0
      %6100 = vmatprep.mubr.f32.mxu0 0.0
      %6101 = vmatmul.mubr.f32.gmra.mxu0 %v866
      %v6102 = vpop.f32.mrf.mxu0
      %v6103 = vadd.f32 %v841, %v6102
      %v6104 = vpop.f32.mrf.mxu0
      %6105 = vmatprep.mubr.f32.mxu0 0.0
      %6106 = vmatmul.mubr.f32.gmra.mxu0 %v869
      %v6107 = vpop.f32.mrf.mxu0
      %v6108 = vadd.f32 %v841, %v6107
      %v6109 = vpop.f32.mrf.mxu0
      %6110 = vmatprep.mubr.f32.mxu0 0.0
      %6111 = vmatmul.mubr.f32.gmra.mxu0 %v872
      %v6112 = vpop.f32.mrf.mxu0
      %v6113 = vadd.f32 %v841, %v6112
      %v6114 = vpop.f32.mrf.mxu0
      %6115 = vmatprep.mubr.f32.mxu0 0.0
      %6116 = vmatmul.mubr.f32.gmra.mxu0 %v875
      %v6117 = vpop.f32.mrf.mxu0
      %v6118 = vadd.f32 %v841, %v6117
      %v6119 = vpop.f32.mrf.mxu0
      %6120 = vmatprep.mubr.f32.mxu0 0.0
      %6121 = vmatmul.mubr.f32.gmra.mxu0 %v878
      %v6122 = vpop.f32.mrf.mxu0
      %v6123 = vadd.f32 %v841, %v6122
      %v6124 = vpop.f32.mrf.mxu0
      %6125 = vmatprep.mubr.f32.mxu0 0.0
      %6126 = vmatmul.mubr.f32.gmra.mxu0 %v881
      %v6127 = vpop.f32.mrf.mxu0
      %v6128 = vadd.f32 %v841, %v6127
      %v6129 = vpop.f32.mrf.mxu0
      %6130 = vmatprep.mubr.f32.mxu0 0.0
      %6131 = vmatmul.mubr.f32.gmra.mxu0 %v884
      %v6132 = vpop.f32.mrf.mxu0
      %v6133 = vadd.f32 %v841, %v6132
      %v6134 = vpop.f32.mrf.mxu0
      %6135 = vmatprep.mubr.f32.mxu0 0.0
      %6136 = vmatmul.mubr.f32.gmra.mxu0 %v887
      %v6137 = vpop.f32.mrf.mxu0
      %v6138 = vadd.f32 %v841, %v6137
      %v6139 = vpop.f32.mrf.mxu0
      %6140 = vmatprep.mubr.f32.mxu0 0.0
      %6141 = vmatmul.mubr.f32.gmra.mxu0 %v890
      %v6142 = vpop.f32.mrf.mxu0
      %v6143 = vadd.f32 %v841, %v6142
      %v6144 = vpop.f32.mrf.mxu0
      %6145 = vmatprep.mubr.f32.mxu0 0.0
      %6146 = vmatmul.mubr.f32.gmra.mxu0 %v893
      %v6147 = vpop.f32.mrf.mxu0
      %v6148 = vadd.f32 %v841, %v6147
      %v6149 = vpop.f32.mrf.mxu0
      %6150 = vmatprep.mubr.f32.mxu0 0.0
      %6151 = vmatmul.mubr.f32.gmra.mxu0 %v896
      %v6152 = vpop.f32.mrf.mxu0
      %v6153 = vadd.f32 %v841, %v6152
      %v6154 = vpop.f32.mrf.mxu0
      %6155 = vmatprep.mubr.f32.mxu0 0.0
      %6156 = vmatmul.mubr.f32.gmra.mxu0 %v899
      %v6157 = vpop.f32.mrf.mxu0
      %v6158 = vadd.f32 %v841, %v6157
      %v6159 = vpop.f32.mrf.mxu0
      %6160 = vmatprep.mubr.f32.mxu0 0.0
      %6161 = vmatmul.mubr.f32.gmra.mxu0 %v902
      %v6162 = vpop.f32.mrf.mxu0
      %v6163 = vadd.f32 %v841, %v6162
      %v6164 = vpop.f32.mrf.mxu0
      %6165 = vmatprep.mubr.f32.mxu0 0.0
      %6166 = vmatmul.mubr.f32.gmra.mxu0 %v905
      %v6167 = vpop.f32.mrf.mxu0
      %v6168 = vadd.f32 %v841, %v6167
      %v6169 = vpop.f32.mrf.mxu0
      %6170 = vmatprep.mubr.f32.mxu0 0.0
      %6171 = vmatmul.mubr.f32.gmra.mxu0 %v908
      %v6172 = vpop.f32.mrf.mxu0
      %v6173 = vadd.f32 %v841, %v6172
      %v6174 = vpop.f32.mrf.mxu0
      %6175 = vmatprep.mubr.f32.mxu0 0.0
      %6176 = vmatmul.mubr.f32.gmra.mxu0 %v911
      %v6177 = vpop.f32.mrf.mxu0
      %v6178 = vadd.f32 %v841, %v6177
      %v6179 = vpop.f32.mrf.mxu0
      %6180 = vmatprep.mubr.f32.mxu0 0.0
      %6181 = vmatmul.mubr.f32.gmra.mxu0 %v914
      %v6182 = vpop.f32.mrf.mxu0
      %v6183 = vadd.f32 %v841, %v6182
      %v6184 = vpop.f32.mrf.mxu0
      %6185 = vmatprep.mubr.f32.mxu0 0.0
      %6186 = vmatmul.mubr.f32.gmra.mxu0 %v917
      %v6187 = vpop.f32.mrf.mxu0
      %v6188 = vadd.f32 %v841, %v6187
      %v6189 = vpop.f32.mrf.mxu0
      %6190 = vmatprep.mubr.f32.mxu0 0.0
      %6191 = vmatmul.mubr.f32.gmra.mxu0 %v920
      %v6192 = vpop.f32.mrf.mxu0
      %v6193 = vadd.f32 %v841, %v6192
      %v6194 = vpop.f32.mrf.mxu0
      %6195 = vmatprep.mubr.f32.mxu0 0.0
      %6196 = vmatmul.mubr.f32.gmra.mxu0 %v923
      %v6197 = vpop.f32.mrf.mxu0
      %v6198 = vadd.f32 %v841, %v6197
      %v6199 = vpop.f32.mrf.mxu0
      %6200 = vmatprep.mubr.f32.mxu0 0.0
      %6201 = vmatmul.mubr.f32.gmra.mxu0 %v926
      %v6202 = vpop.f32.mrf.mxu0
      %v6203 = vadd.f32 %v841, %v6202
      %v6204 = vpop.f32.mrf.mxu0
      %6205 = vmatprep.mubr.f32.mxu0 0.0
      %6206 = vmatmul.mubr.f32.gmra.mxu0 %v929
      %v6207 = vpop.f32.mrf.mxu0
      %v6208 = vadd.f32 %v841, %v6207
      %v6209 = vpop.f32.mrf.mxu0
      %6210 = vmatprep.mubr.f32.mxu0 0.0
      %6211 = vmatmul.mubr.f32.gmra.mxu0 %v932
      %v6212 = vpop.f32.mrf.mxu0
      %v6213 = vadd.f32 %v841, %v6212
      %v6214 = vpop.f32.mrf.mxu0
      %6215 = vmatprep.mubr.f32.mxu0 0.0
      %6216 = vmatmul.mubr.f32.gmra.mxu0 %v935
      %v6217 = vpop.f32.mrf.mxu0
      %v6218 = vadd.f32 %v841, %v6217
      %v6219 = vpop.f32.mrf.mxu0
      %6220 = vmatprep.mubr.f32.mxu0 0.0
      %6221 = vmatmul.mubr.f32.gmra.mxu0 %v938
      %v6222 = vpop.f32.mrf.mxu0
      %v6223 = vadd.f32 %v841, %v6222
      %v6224 = vpop.f32.mrf.mxu0
      %6225 = vmatprep.mubr.f32.mxu0 0.0
      %6226 = vmatmul.mubr.f32.gmra.mxu0 %v6006
      %v6227 = vpop.f32.mrf.mxu0
      %v6228 = vadd.f32 %v841, %v6227
      %v6229 = vpop.f32.mrf.mxu0
      %6230 = vmatprep.mubr.f32.mxu0 0.0
      %6231 = vmatmul.mubr.f32.gmra.mxu0 %v6009
      %v6232 = vpop.f32.mrf.mxu0
      %v6233 = vadd.f32 %v841, %v6232
      %v6234 = vpop.f32.mrf.mxu0
      %6235 = vdwg.mxu0
      %v6268 = vcombine.high %v6078, %v6078
      %v6270 = vunpack.c.l.s4 1966171168
      %v6271 = vunpack.c.0.s8 %v6270
      %v6272 = vlaneseq
      %v6273 = vshrl.u32 %v6272, 7
      %v6274 = vsub.s32 %v6271, %v6273
      %v6275 = vrot.slane %v6078, %v6274
      %v6277 = vunpack.c.l.s4 1966171168
      %v6278 = vunpack.c.0.s8 %v6277
      %v6279 = vlaneseq
      %v6280 = vshrl.u32 %v6279, 7
      %v6281 = vsub.s32 %v6278, %v6280
      %v6282 = vrot.slane %v6268, %v6281
      %v6283 = vcombine.high %v6275, %v6275
      %v6284 = vcombine.high %v6282, %v6282
      %v6286 = vunpack.c.l.s4 1966171168
      %v6287 = vunpack.c.0.s8 %v6286
      %v6288 = vlaneseq
      %v6289 = vshrl.u32 %v6288, 7
      %v6290 = vsub.s32 %v6287, %v6289
      %v6291 = vrot.slane %v6275, %v6290
      %v6293 = vunpack.c.l.s4 1966171168
      %v6294 = vunpack.c.0.s8 %v6293
      %v6295 = vlaneseq
      %v6296 = vshrl.u32 %v6295, 7
      %v6297 = vsub.s32 %v6294, %v6296
      %v6298 = vrot.slane %v6282, %v6297
      %v6300 = vunpack.c.l.s4 1966171168
      %v6301 = vunpack.c.0.s8 %v6300
      %v6302 = vlaneseq
      %v6303 = vshrl.u32 %v6302, 7
      %v6304 = vsub.s32 %v6301, %v6303
      %v6305 = vrot.slane %v6283, %v6304
      %v6307 = vunpack.c.l.s4 1966171168
      %v6308 = vunpack.c.0.s8 %v6307
      %v6309 = vlaneseq
      %v6310 = vshrl.u32 %v6309, 7
      %v6311 = vsub.s32 %v6308, %v6310
      %v6312 = vrot.slane %v6284, %v6311
      %v6313 = vcombine.high %v6291, %v6291
      %v6314 = vcombine.high %v6298, %v6298
      %v6315 = vcombine.high %v6305, %v6305
      %v6316 = vcombine.high %v6312, %v6312
      %v6317 = vcombine.high %v6083, %v6083
      %v6319 = vunpack.c.l.s4 1966171168
      %v6320 = vunpack.c.0.s8 %v6319
      %v6321 = vlaneseq
      %v6322 = vshrl.u32 %v6321, 7
      %v6323 = vsub.s32 %v6320, %v6322
      %v6324 = vrot.slane %v6083, %v6323
      %v6326 = vunpack.c.l.s4 1966171168
      %v6327 = vunpack.c.0.s8 %v6326
      %v6328 = vlaneseq
      %v6329 = vshrl.u32 %v6328, 7
      %v6330 = vsub.s32 %v6327, %v6329
      %v6331 = vrot.slane %v6317, %v6330
      %v6332 = vcombine.high %v6324, %v6324
      %v6333 = vcombine.high %v6331, %v6331
      %v6335 = vunpack.c.l.s4 1966171168
      %v6336 = vunpack.c.0.s8 %v6335
      %v6337 = vlaneseq
      %v6338 = vshrl.u32 %v6337, 7
      %v6339 = vsub.s32 %v6336, %v6338
      %v6340 = vrot.slane %v6324, %v6339
      %v6342 = vunpack.c.l.s4 1966171168
      %v6343 = vunpack.c.0.s8 %v6342
      %v6344 = vlaneseq
      %v6345 = vshrl.u32 %v6344, 7
      %v6346 = vsub.s32 %v6343, %v6345
      %v6347 = vrot.slane %v6331, %v6346
      %v6349 = vunpack.c.l.s4 1966171168
      %v6350 = vunpack.c.0.s8 %v6349
      %v6351 = vlaneseq
      %v6352 = vshrl.u32 %v6351, 7
      %v6353 = vsub.s32 %v6350, %v6352
      %v6354 = vrot.slane %v6332, %v6353
      %v6356 = vunpack.c.l.s4 1966171168
      %v6357 = vunpack.c.0.s8 %v6356
      %v6358 = vlaneseq
      %v6359 = vshrl.u32 %v6358, 7
      %v6360 = vsub.s32 %v6357, %v6359
      %v6361 = vrot.slane %v6333, %v6360
      %v6362 = vcombine.high %v6340, %v6340
      %v6363 = vcombine.high %v6347, %v6347
      %v6364 = vcombine.high %v6354, %v6354
      %v6365 = vcombine.high %v6361, %v6361
      %v6366 = vcombine.high %v6088, %v6088
      %v6368 = vunpack.c.l.s4 1966171168
      %v6369 = vunpack.c.0.s8 %v6368
      %v6370 = vlaneseq
      %v6371 = vshrl.u32 %v6370, 7
      %v6372 = vsub.s32 %v6369, %v6371
      %v6373 = vrot.slane %v6088, %v6372
      %v6375 = vunpack.c.l.s4 1966171168
      %v6376 = vunpack.c.0.s8 %v6375
      %v6377 = vlaneseq
      %v6378 = vshrl.u32 %v6377, 7
      %v6379 = vsub.s32 %v6376, %v6378
      %v6380 = vrot.slane %v6366, %v6379
      %v6381 = vcombine.high %v6373, %v6373
      %v6382 = vcombine.high %v6380, %v6380
      %v6384 = vunpack.c.l.s4 1966171168
      %v6385 = vunpack.c.0.s8 %v6384
      %v6386 = vlaneseq
      %v6387 = vshrl.u32 %v6386, 7
      %v6388 = vsub.s32 %v6385, %v6387
      %v6389 = vrot.slane %v6373, %v6388
      %v6391 = vunpack.c.l.s4 1966171168
      %v6392 = vunpack.c.0.s8 %v6391
      %v6393 = vlaneseq
      %v6394 = vshrl.u32 %v6393, 7
      %v6395 = vsub.s32 %v6392, %v6394
      %v6396 = vrot.slane %v6380, %v6395
      %v6398 = vunpack.c.l.s4 1966171168
      %v6399 = vunpack.c.0.s8 %v6398
      %v6400 = vlaneseq
      %v6401 = vshrl.u32 %v6400, 7
      %v6402 = vsub.s32 %v6399, %v6401
      %v6403 = vrot.slane %v6381, %v6402
      %v6405 = vunpack.c.l.s4 1966171168
      %v6406 = vunpack.c.0.s8 %v6405
      %v6407 = vlaneseq
      %v6408 = vshrl.u32 %v6407, 7
      %v6409 = vsub.s32 %v6406, %v6408
      %v6410 = vrot.slane %v6382, %v6409
      %v6411 = vcombine.high %v6389, %v6389
      %v6412 = vcombine.high %v6396, %v6396
      %v6413 = vcombine.high %v6403, %v6403
      %v6414 = vcombine.high %v6410, %v6410
      %v6415 = vcombine.high %v6093, %v6093
      %v6417 = vunpack.c.l.s4 1966171168
      %v6418 = vunpack.c.0.s8 %v6417
      %v6419 = vlaneseq
      %v6420 = vshrl.u32 %v6419, 7
      %v6421 = vsub.s32 %v6418, %v6420
      %v6422 = vrot.slane %v6093, %v6421
      %v6424 = vunpack.c.l.s4 1966171168
      %v6425 = vunpack.c.0.s8 %v6424
      %v6426 = vlaneseq
      %v6427 = vshrl.u32 %v6426, 7
      %v6428 = vsub.s32 %v6425, %v6427
      %v6429 = vrot.slane %v6415, %v6428
      %v6430 = vcombine.high %v6422, %v6422
      %v6431 = vcombine.high %v6429, %v6429
      %v6433 = vunpack.c.l.s4 1966171168
      %v6434 = vunpack.c.0.s8 %v6433
      %v6435 = vlaneseq
      %v6436 = vshrl.u32 %v6435, 7
      %v6437 = vsub.s32 %v6434, %v6436
      %v6438 = vrot.slane %v6422, %v6437
      %v6440 = vunpack.c.l.s4 1966171168
      %v6441 = vunpack.c.0.s8 %v6440
      %v6442 = vlaneseq
      %v6443 = vshrl.u32 %v6442, 7
      %v6444 = vsub.s32 %v6441, %v6443
      %v6445 = vrot.slane %v6429, %v6444
      %v6447 = vunpack.c.l.s4 1966171168
      %v6448 = vunpack.c.0.s8 %v6447
      %v6449 = vlaneseq
      %v6450 = vshrl.u32 %v6449, 7
      %v6451 = vsub.s32 %v6448, %v6450
      %v6452 = vrot.slane %v6430, %v6451
      %v6454 = vunpack.c.l.s4 1966171168
      %v6455 = vunpack.c.0.s8 %v6454
      %v6456 = vlaneseq
      %v6457 = vshrl.u32 %v6456, 7
      %v6458 = vsub.s32 %v6455, %v6457
      %v6459 = vrot.slane %v6431, %v6458
      %v6460 = vcombine.high %v6438, %v6438
      %v6461 = vcombine.high %v6445, %v6445
      %v6462 = vcombine.high %v6452, %v6452
      %v6463 = vcombine.high %v6459, %v6459
      %v6464 = vcombine.high %v6098, %v6098
      %v6466 = vunpack.c.l.s4 1966171168
      %v6467 = vunpack.c.0.s8 %v6466
      %v6468 = vlaneseq
      %v6469 = vshrl.u32 %v6468, 7
      %v6470 = vsub.s32 %v6467, %v6469
      %v6471 = vrot.slane %v6098, %v6470
      %v6473 = vunpack.c.l.s4 1966171168
      %v6474 = vunpack.c.0.s8 %v6473
      %v6475 = vlaneseq
      %v6476 = vshrl.u32 %v6475, 7
      %v6477 = vsub.s32 %v6474, %v6476
      %v6478 = vrot.slane %v6464, %v6477
      %v6479 = vcombine.high %v6471, %v6471
      %v6480 = vcombine.high %v6478, %v6478
      %v6482 = vunpack.c.l.s4 1966171168
      %v6483 = vunpack.c.0.s8 %v6482
      %v6484 = vlaneseq
      %v6485 = vshrl.u32 %v6484, 7
      %v6486 = vsub.s32 %v6483, %v6485
      %v6487 = vrot.slane %v6471, %v6486
      %v6489 = vunpack.c.l.s4 1966171168
      %v6490 = vunpack.c.0.s8 %v6489
      %v6491 = vlaneseq
      %v6492 = vshrl.u32 %v6491, 7
      %v6493 = vsub.s32 %v6490, %v6492
      %v6494 = vrot.slane %v6478, %v6493
      %v6496 = vunpack.c.l.s4 1966171168
      %v6497 = vunpack.c.0.s8 %v6496
      %v6498 = vlaneseq
      %v6499 = vshrl.u32 %v6498, 7
      %v6500 = vsub.s32 %v6497, %v6499
      %v6501 = vrot.slane %v6479, %v6500
      %v6503 = vunpack.c.l.s4 1966171168
      %v6504 = vunpack.c.0.s8 %v6503
      %v6505 = vlaneseq
      %v6506 = vshrl.u32 %v6505, 7
      %v6507 = vsub.s32 %v6504, %v6506
      %v6508 = vrot.slane %v6480, %v6507
      %v6509 = vcombine.high %v6487, %v6487
      %v6510 = vcombine.high %v6494, %v6494
      %v6511 = vcombine.high %v6501, %v6501
      %v6512 = vcombine.high %v6508, %v6508
      %v6513 = vcombine.high %v6103, %v6103
      %v6515 = vunpack.c.l.s4 1966171168
      %v6516 = vunpack.c.0.s8 %v6515
      %v6517 = vlaneseq
      %v6518 = vshrl.u32 %v6517, 7
      %v6519 = vsub.s32 %v6516, %v6518
      %v6520 = vrot.slane %v6103, %v6519
      %v6522 = vunpack.c.l.s4 1966171168
      %v6523 = vunpack.c.0.s8 %v6522
      %v6524 = vlaneseq
      %v6525 = vshrl.u32 %v6524, 7
      %v6526 = vsub.s32 %v6523, %v6525
      %v6527 = vrot.slane %v6513, %v6526
      %v6528 = vcombine.high %v6520, %v6520
      %v6529 = vcombine.high %v6527, %v6527
      %v6531 = vunpack.c.l.s4 1966171168
      %v6532 = vunpack.c.0.s8 %v6531
      %v6533 = vlaneseq
      %v6534 = vshrl.u32 %v6533, 7
      %v6535 = vsub.s32 %v6532, %v6534
      %v6536 = vrot.slane %v6520, %v6535
      %v6538 = vunpack.c.l.s4 1966171168
      %v6539 = vunpack.c.0.s8 %v6538
      %v6540 = vlaneseq
      %v6541 = vshrl.u32 %v6540, 7
      %v6542 = vsub.s32 %v6539, %v6541
      %v6543 = vrot.slane %v6527, %v6542
      %v6545 = vunpack.c.l.s4 1966171168
      %v6546 = vunpack.c.0.s8 %v6545
      %v6547 = vlaneseq
      %v6548 = vshrl.u32 %v6547, 7
      %v6549 = vsub.s32 %v6546, %v6548
      %v6550 = vrot.slane %v6528, %v6549
      %v6552 = vunpack.c.l.s4 1966171168
      %v6553 = vunpack.c.0.s8 %v6552
      %v6554 = vlaneseq
      %v6555 = vshrl.u32 %v6554, 7
      %v6556 = vsub.s32 %v6553, %v6555
      %v6557 = vrot.slane %v6529, %v6556
      %v6558 = vcombine.high %v6536, %v6536
      %v6559 = vcombine.high %v6543, %v6543
      %v6560 = vcombine.high %v6550, %v6550
      %v6561 = vcombine.high %v6557, %v6557
      %v6562 = vcombine.high %v6108, %v6108
      %v6564 = vunpack.c.l.s4 1966171168
      %v6565 = vunpack.c.0.s8 %v6564
      %v6566 = vlaneseq
      %v6567 = vshrl.u32 %v6566, 7
      %v6568 = vsub.s32 %v6565, %v6567
      %v6569 = vrot.slane %v6108, %v6568
      %v6571 = vunpack.c.l.s4 1966171168
      %v6572 = vunpack.c.0.s8 %v6571
      %v6573 = vlaneseq
      %v6574 = vshrl.u32 %v6573, 7
      %v6575 = vsub.s32 %v6572, %v6574
      %v6576 = vrot.slane %v6562, %v6575
      %v6577 = vcombine.high %v6569, %v6569
      %v6578 = vcombine.high %v6576, %v6576
      %v6580 = vunpack.c.l.s4 1966171168
      %v6581 = vunpack.c.0.s8 %v6580
      %v6582 = vlaneseq
      %v6583 = vshrl.u32 %v6582, 7
      %v6584 = vsub.s32 %v6581, %v6583
      %v6585 = vrot.slane %v6569, %v6584
      %v6587 = vunpack.c.l.s4 1966171168
      %v6588 = vunpack.c.0.s8 %v6587
      %v6589 = vlaneseq
      %v6590 = vshrl.u32 %v6589, 7
      %v6591 = vsub.s32 %v6588, %v6590
      %v6592 = vrot.slane %v6576, %v6591
      %v6594 = vunpack.c.l.s4 1966171168
      %v6595 = vunpack.c.0.s8 %v6594
      %v6596 = vlaneseq
      %v6597 = vshrl.u32 %v6596, 7
      %v6598 = vsub.s32 %v6595, %v6597
      %v6599 = vrot.slane %v6577, %v6598
      %v6601 = vunpack.c.l.s4 1966171168
      %v6602 = vunpack.c.0.s8 %v6601
      %v6603 = vlaneseq
      %v6604 = vshrl.u32 %v6603, 7
      %v6605 = vsub.s32 %v6602, %v6604
      %v6606 = vrot.slane %v6578, %v6605
      %v6607 = vcombine.high %v6585, %v6585
      %v6608 = vcombine.high %v6592, %v6592
      %v6609 = vcombine.high %v6599, %v6599
      %v6610 = vcombine.high %v6606, %v6606
      %v6611 = vcombine.high %v6113, %v6113
      %v6613 = vunpack.c.l.s4 1966171168
      %v6614 = vunpack.c.0.s8 %v6613
      %v6615 = vlaneseq
      %v6616 = vshrl.u32 %v6615, 7
      %v6617 = vsub.s32 %v6614, %v6616
      %v6618 = vrot.slane %v6113, %v6617
      %v6620 = vunpack.c.l.s4 1966171168
      %v6621 = vunpack.c.0.s8 %v6620
      %v6622 = vlaneseq
      %v6623 = vshrl.u32 %v6622, 7
      %v6624 = vsub.s32 %v6621, %v6623
      %v6625 = vrot.slane %v6611, %v6624
      %v6626 = vcombine.high %v6618, %v6618
      %v6627 = vcombine.high %v6625, %v6625
      %v6629 = vunpack.c.l.s4 1966171168
      %v6630 = vunpack.c.0.s8 %v6629
      %v6631 = vlaneseq
      %v6632 = vshrl.u32 %v6631, 7
      %v6633 = vsub.s32 %v6630, %v6632
      %v6634 = vrot.slane %v6618, %v6633
      %v6636 = vunpack.c.l.s4 1966171168
      %v6637 = vunpack.c.0.s8 %v6636
      %v6638 = vlaneseq
      %v6639 = vshrl.u32 %v6638, 7
      %v6640 = vsub.s32 %v6637, %v6639
      %v6641 = vrot.slane %v6625, %v6640
      %v6643 = vunpack.c.l.s4 1966171168
      %v6644 = vunpack.c.0.s8 %v6643
      %v6645 = vlaneseq
      %v6646 = vshrl.u32 %v6645, 7
      %v6647 = vsub.s32 %v6644, %v6646
      %v6648 = vrot.slane %v6626, %v6647
      %v6650 = vunpack.c.l.s4 1966171168
      %v6651 = vunpack.c.0.s8 %v6650
      %v6652 = vlaneseq
      %v6653 = vshrl.u32 %v6652, 7
      %v6654 = vsub.s32 %v6651, %v6653
      %v6655 = vrot.slane %v6627, %v6654
      %v6656 = vcombine.high %v6634, %v6634
      %v6657 = vcombine.high %v6641, %v6641
      %v6658 = vcombine.high %v6648, %v6648
      %v6659 = vcombine.high %v6655, %v6655
      %v6660 = vcombine.high %v6118, %v6118
      %v6662 = vunpack.c.l.s4 1966171168
      %v6663 = vunpack.c.0.s8 %v6662
      %v6664 = vlaneseq
      %v6665 = vshrl.u32 %v6664, 7
      %v6666 = vsub.s32 %v6663, %v6665
      %v6667 = vrot.slane %v6118, %v6666
      %v6669 = vunpack.c.l.s4 1966171168
      %v6670 = vunpack.c.0.s8 %v6669
      %v6671 = vlaneseq
      %v6672 = vshrl.u32 %v6671, 7
      %v6673 = vsub.s32 %v6670, %v6672
      %v6674 = vrot.slane %v6660, %v6673
      %v6675 = vcombine.high %v6667, %v6667
      %v6676 = vcombine.high %v6674, %v6674
      %v6678 = vunpack.c.l.s4 1966171168
      %v6679 = vunpack.c.0.s8 %v6678
      %v6680 = vlaneseq
      %v6681 = vshrl.u32 %v6680, 7
      %v6682 = vsub.s32 %v6679, %v6681
      %v6683 = vrot.slane %v6667, %v6682
      %v6685 = vunpack.c.l.s4 1966171168
      %v6686 = vunpack.c.0.s8 %v6685
      %v6687 = vlaneseq
      %v6688 = vshrl.u32 %v6687, 7
      %v6689 = vsub.s32 %v6686, %v6688
      %v6690 = vrot.slane %v6674, %v6689
      %v6692 = vunpack.c.l.s4 1966171168
      %v6693 = vunpack.c.0.s8 %v6692
      %v6694 = vlaneseq
      %v6695 = vshrl.u32 %v6694, 7
      %v6696 = vsub.s32 %v6693, %v6695
      %v6697 = vrot.slane %v6675, %v6696
      %v6699 = vunpack.c.l.s4 1966171168
      %v6700 = vunpack.c.0.s8 %v6699
      %v6701 = vlaneseq
      %v6702 = vshrl.u32 %v6701, 7
      %v6703 = vsub.s32 %v6700, %v6702
      %v6704 = vrot.slane %v6676, %v6703
      %v6705 = vcombine.high %v6683, %v6683
      %v6706 = vcombine.high %v6690, %v6690
      %v6707 = vcombine.high %v6697, %v6697
      %v6708 = vcombine.high %v6704, %v6704
      %v6709 = vcombine.high %v6123, %v6123
      %v6711 = vunpack.c.l.s4 1966171168
      %v6712 = vunpack.c.0.s8 %v6711
      %v6713 = vlaneseq
      %v6714 = vshrl.u32 %v6713, 7
      %v6715 = vsub.s32 %v6712, %v6714
      %v6716 = vrot.slane %v6123, %v6715
      %v6718 = vunpack.c.l.s4 1966171168
      %v6719 = vunpack.c.0.s8 %v6718
      %v6720 = vlaneseq
      %v6721 = vshrl.u32 %v6720, 7
      %v6722 = vsub.s32 %v6719, %v6721
      %v6723 = vrot.slane %v6709, %v6722
      %v6724 = vcombine.high %v6716, %v6716
      %v6725 = vcombine.high %v6723, %v6723
      %v6727 = vunpack.c.l.s4 1966171168
      %v6728 = vunpack.c.0.s8 %v6727
      %v6729 = vlaneseq
      %v6730 = vshrl.u32 %v6729, 7
      %v6731 = vsub.s32 %v6728, %v6730
      %v6732 = vrot.slane %v6716, %v6731
      %v6734 = vunpack.c.l.s4 1966171168
      %v6735 = vunpack.c.0.s8 %v6734
      %v6736 = vlaneseq
      %v6737 = vshrl.u32 %v6736, 7
      %v6738 = vsub.s32 %v6735, %v6737
      %v6739 = vrot.slane %v6723, %v6738
      %v6741 = vunpack.c.l.s4 1966171168
      %v6742 = vunpack.c.0.s8 %v6741
      %v6743 = vlaneseq
      %v6744 = vshrl.u32 %v6743, 7
      %v6745 = vsub.s32 %v6742, %v6744
      %v6746 = vrot.slane %v6724, %v6745
      %v6748 = vunpack.c.l.s4 1966171168
      %v6749 = vunpack.c.0.s8 %v6748
      %v6750 = vlaneseq
      %v6751 = vshrl.u32 %v6750, 7
      %v6752 = vsub.s32 %v6749, %v6751
      %v6753 = vrot.slane %v6725, %v6752
      %v6754 = vcombine.high %v6732, %v6732
      %v6755 = vcombine.high %v6739, %v6739
      %v6756 = vcombine.high %v6746, %v6746
      %v6757 = vcombine.high %v6753, %v6753
      %v6758 = vcombine.high %v6128, %v6128
      %v6760 = vunpack.c.l.s4 1966171168
      %v6761 = vunpack.c.0.s8 %v6760
      %v6762 = vlaneseq
      %v6763 = vshrl.u32 %v6762, 7
      %v6764 = vsub.s32 %v6761, %v6763
      %v6765 = vrot.slane %v6128, %v6764
      %v6767 = vunpack.c.l.s4 1966171168
      %v6768 = vunpack.c.0.s8 %v6767
      %v6769 = vlaneseq
      %v6770 = vshrl.u32 %v6769, 7
      %v6771 = vsub.s32 %v6768, %v6770
      %v6772 = vrot.slane %v6758, %v6771
      %v6773 = vcombine.high %v6765, %v6765
      %v6774 = vcombine.high %v6772, %v6772
      %v6776 = vunpack.c.l.s4 1966171168
      %v6777 = vunpack.c.0.s8 %v6776
      %v6778 = vlaneseq
      %v6779 = vshrl.u32 %v6778, 7
      %v6780 = vsub.s32 %v6777, %v6779
      %v6781 = vrot.slane %v6765, %v6780
      %v6783 = vunpack.c.l.s4 1966171168
      %v6784 = vunpack.c.0.s8 %v6783
      %v6785 = vlaneseq
      %v6786 = vshrl.u32 %v6785, 7
      %v6787 = vsub.s32 %v6784, %v6786
      %v6788 = vrot.slane %v6772, %v6787
      %v6790 = vunpack.c.l.s4 1966171168
      %v6791 = vunpack.c.0.s8 %v6790
      %v6792 = vlaneseq
      %v6793 = vshrl.u32 %v6792, 7
      %v6794 = vsub.s32 %v6791, %v6793
      %v6795 = vrot.slane %v6773, %v6794
      %v6797 = vunpack.c.l.s4 1966171168
      %v6798 = vunpack.c.0.s8 %v6797
      %v6799 = vlaneseq
      %v6800 = vshrl.u32 %v6799, 7
      %v6801 = vsub.s32 %v6798, %v6800
      %v6802 = vrot.slane %v6774, %v6801
      %v6803 = vcombine.high %v6781, %v6781
      %v6804 = vcombine.high %v6788, %v6788
      %v6805 = vcombine.high %v6795, %v6795
      %v6806 = vcombine.high %v6802, %v6802
      %v6807 = vcombine.high %v6133, %v6133
      %v6809 = vunpack.c.l.s4 1966171168
      %v6810 = vunpack.c.0.s8 %v6809
      %v6811 = vlaneseq
      %v6812 = vshrl.u32 %v6811, 7
      %v6813 = vsub.s32 %v6810, %v6812
      %v6814 = vrot.slane %v6133, %v6813
      %v6816 = vunpack.c.l.s4 1966171168
      %v6817 = vunpack.c.0.s8 %v6816
      %v6818 = vlaneseq
      %v6819 = vshrl.u32 %v6818, 7
      %v6820 = vsub.s32 %v6817, %v6819
      %v6821 = vrot.slane %v6807, %v6820
      %v6822 = vcombine.high %v6814, %v6814
      %v6823 = vcombine.high %v6821, %v6821
      %v6825 = vunpack.c.l.s4 1966171168
      %v6826 = vunpack.c.0.s8 %v6825
      %v6827 = vlaneseq
      %v6828 = vshrl.u32 %v6827, 7
      %v6829 = vsub.s32 %v6826, %v6828
      %v6830 = vrot.slane %v6814, %v6829
      %v6832 = vunpack.c.l.s4 1966171168
      %v6833 = vunpack.c.0.s8 %v6832
      %v6834 = vlaneseq
      %v6835 = vshrl.u32 %v6834, 7
      %v6836 = vsub.s32 %v6833, %v6835
      %v6837 = vrot.slane %v6821, %v6836
      %v6839 = vunpack.c.l.s4 1966171168
      %v6840 = vunpack.c.0.s8 %v6839
      %v6841 = vlaneseq
      %v6842 = vshrl.u32 %v6841, 7
      %v6843 = vsub.s32 %v6840, %v6842
      %v6844 = vrot.slane %v6822, %v6843
      %v6846 = vunpack.c.l.s4 1966171168
      %v6847 = vunpack.c.0.s8 %v6846
      %v6848 = vlaneseq
      %v6849 = vshrl.u32 %v6848, 7
      %v6850 = vsub.s32 %v6847, %v6849
      %v6851 = vrot.slane %v6823, %v6850
      %v6852 = vcombine.high %v6830, %v6830
      %v6853 = vcombine.high %v6837, %v6837
      %v6854 = vcombine.high %v6844, %v6844
      %v6855 = vcombine.high %v6851, %v6851
      %v6856 = vcombine.high %v6138, %v6138
      %v6858 = vunpack.c.l.s4 1966171168
      %v6859 = vunpack.c.0.s8 %v6858
      %v6860 = vlaneseq
      %v6861 = vshrl.u32 %v6860, 7
      %v6862 = vsub.s32 %v6859, %v6861
      %v6863 = vrot.slane %v6138, %v6862
      %v6865 = vunpack.c.l.s4 1966171168
      %v6866 = vunpack.c.0.s8 %v6865
      %v6867 = vlaneseq
      %v6868 = vshrl.u32 %v6867, 7
      %v6869 = vsub.s32 %v6866, %v6868
      %v6870 = vrot.slane %v6856, %v6869
      %v6871 = vcombine.high %v6863, %v6863
      %v6872 = vcombine.high %v6870, %v6870
      %v6874 = vunpack.c.l.s4 1966171168
      %v6875 = vunpack.c.0.s8 %v6874
      %v6876 = vlaneseq
      %v6877 = vshrl.u32 %v6876, 7
      %v6878 = vsub.s32 %v6875, %v6877
      %v6879 = vrot.slane %v6863, %v6878
      %v6881 = vunpack.c.l.s4 1966171168
      %v6882 = vunpack.c.0.s8 %v6881
      %v6883 = vlaneseq
      %v6884 = vshrl.u32 %v6883, 7
      %v6885 = vsub.s32 %v6882, %v6884
      %v6886 = vrot.slane %v6870, %v6885
      %v6888 = vunpack.c.l.s4 1966171168
      %v6889 = vunpack.c.0.s8 %v6888
      %v6890 = vlaneseq
      %v6891 = vshrl.u32 %v6890, 7
      %v6892 = vsub.s32 %v6889, %v6891
      %v6893 = vrot.slane %v6871, %v6892
      %v6895 = vunpack.c.l.s4 1966171168
      %v6896 = vunpack.c.0.s8 %v6895
      %v6897 = vlaneseq
      %v6898 = vshrl.u32 %v6897, 7
      %v6899 = vsub.s32 %v6896, %v6898
      %v6900 = vrot.slane %v6872, %v6899
      %v6901 = vcombine.high %v6879, %v6879
      %v6902 = vcombine.high %v6886, %v6886
      %v6903 = vcombine.high %v6893, %v6893
      %v6904 = vcombine.high %v6900, %v6900
      %v6905 = vcombine.high %v6143, %v6143
      %v6907 = vunpack.c.l.s4 1966171168
      %v6908 = vunpack.c.0.s8 %v6907
      %v6909 = vlaneseq
      %v6910 = vshrl.u32 %v6909, 7
      %v6911 = vsub.s32 %v6908, %v6910
      %v6912 = vrot.slane %v6143, %v6911
      %v6914 = vunpack.c.l.s4 1966171168
      %v6915 = vunpack.c.0.s8 %v6914
      %v6916 = vlaneseq
      %v6917 = vshrl.u32 %v6916, 7
      %v6918 = vsub.s32 %v6915, %v6917
      %v6919 = vrot.slane %v6905, %v6918
      %v6920 = vcombine.high %v6912, %v6912
      %v6921 = vcombine.high %v6919, %v6919
      %v6923 = vunpack.c.l.s4 1966171168
      %v6924 = vunpack.c.0.s8 %v6923
      %v6925 = vlaneseq
      %v6926 = vshrl.u32 %v6925, 7
      %v6927 = vsub.s32 %v6924, %v6926
      %v6928 = vrot.slane %v6912, %v6927
      %v6930 = vunpack.c.l.s4 1966171168
      %v6931 = vunpack.c.0.s8 %v6930
      %v6932 = vlaneseq
      %v6933 = vshrl.u32 %v6932, 7
      %v6934 = vsub.s32 %v6931, %v6933
      %v6935 = vrot.slane %v6919, %v6934
      %v6937 = vunpack.c.l.s4 1966171168
      %v6938 = vunpack.c.0.s8 %v6937
      %v6939 = vlaneseq
      %v6940 = vshrl.u32 %v6939, 7
      %v6941 = vsub.s32 %v6938, %v6940
      %v6942 = vrot.slane %v6920, %v6941
      %v6944 = vunpack.c.l.s4 1966171168
      %v6945 = vunpack.c.0.s8 %v6944
      %v6946 = vlaneseq
      %v6947 = vshrl.u32 %v6946, 7
      %v6948 = vsub.s32 %v6945, %v6947
      %v6949 = vrot.slane %v6921, %v6948
      %v6950 = vcombine.high %v6928, %v6928
      %v6951 = vcombine.high %v6935, %v6935
      %v6952 = vcombine.high %v6942, %v6942
      %v6953 = vcombine.high %v6949, %v6949
      %v6954 = vcombine.high %v6148, %v6148
      %v6956 = vunpack.c.l.s4 1966171168
      %v6957 = vunpack.c.0.s8 %v6956
      %v6958 = vlaneseq
      %v6959 = vshrl.u32 %v6958, 7
      %v6960 = vsub.s32 %v6957, %v6959
      %v6961 = vrot.slane %v6148, %v6960
      %v6963 = vunpack.c.l.s4 1966171168
      %v6964 = vunpack.c.0.s8 %v6963
      %v6965 = vlaneseq
      %v6966 = vshrl.u32 %v6965, 7
      %v6967 = vsub.s32 %v6964, %v6966
      %v6968 = vrot.slane %v6954, %v6967
      %v6969 = vcombine.high %v6961, %v6961
      %v6970 = vcombine.high %v6968, %v6968
      %v6972 = vunpack.c.l.s4 1966171168
      %v6973 = vunpack.c.0.s8 %v6972
      %v6974 = vlaneseq
      %v6975 = vshrl.u32 %v6974, 7
      %v6976 = vsub.s32 %v6973, %v6975
      %v6977 = vrot.slane %v6961, %v6976
      %v6979 = vunpack.c.l.s4 1966171168
      %v6980 = vunpack.c.0.s8 %v6979
      %v6981 = vlaneseq
      %v6982 = vshrl.u32 %v6981, 7
      %v6983 = vsub.s32 %v6980, %v6982
      %v6984 = vrot.slane %v6968, %v6983
      %v6986 = vunpack.c.l.s4 1966171168
      %v6987 = vunpack.c.0.s8 %v6986
      %v6988 = vlaneseq
      %v6989 = vshrl.u32 %v6988, 7
      %v6990 = vsub.s32 %v6987, %v6989
      %v6991 = vrot.slane %v6969, %v6990
      %v6993 = vunpack.c.l.s4 1966171168
      %v6994 = vunpack.c.0.s8 %v6993
      %v6995 = vlaneseq
      %v6996 = vshrl.u32 %v6995, 7
      %v6997 = vsub.s32 %v6994, %v6996
      %v6998 = vrot.slane %v6970, %v6997
      %v6999 = vcombine.high %v6977, %v6977
      %v7000 = vcombine.high %v6984, %v6984
      %v7001 = vcombine.high %v6991, %v6991
      %v7002 = vcombine.high %v6998, %v6998
      %v7003 = vcombine.high %v6153, %v6153
      %v7005 = vunpack.c.l.s4 1966171168
      %v7006 = vunpack.c.0.s8 %v7005
      %v7007 = vlaneseq
      %v7008 = vshrl.u32 %v7007, 7
      %v7009 = vsub.s32 %v7006, %v7008
      %v7010 = vrot.slane %v6153, %v7009
      %v7012 = vunpack.c.l.s4 1966171168
      %v7013 = vunpack.c.0.s8 %v7012
      %v7014 = vlaneseq
      %v7015 = vshrl.u32 %v7014, 7
      %v7016 = vsub.s32 %v7013, %v7015
      %v7017 = vrot.slane %v7003, %v7016
      %v7018 = vcombine.high %v7010, %v7010
      %v7019 = vcombine.high %v7017, %v7017
      %v7021 = vunpack.c.l.s4 1966171168
      %v7022 = vunpack.c.0.s8 %v7021
      %v7023 = vlaneseq
      %v7024 = vshrl.u32 %v7023, 7
      %v7025 = vsub.s32 %v7022, %v7024
      %v7026 = vrot.slane %v7010, %v7025
      %v7028 = vunpack.c.l.s4 1966171168
      %v7029 = vunpack.c.0.s8 %v7028
      %v7030 = vlaneseq
      %v7031 = vshrl.u32 %v7030, 7
      %v7032 = vsub.s32 %v7029, %v7031
      %v7033 = vrot.slane %v7017, %v7032
      %v7035 = vunpack.c.l.s4 1966171168
      %v7036 = vunpack.c.0.s8 %v7035
      %v7037 = vlaneseq
      %v7038 = vshrl.u32 %v7037, 7
      %v7039 = vsub.s32 %v7036, %v7038
      %v7040 = vrot.slane %v7018, %v7039
      %v7042 = vunpack.c.l.s4 1966171168
      %v7043 = vunpack.c.0.s8 %v7042
      %v7044 = vlaneseq
      %v7045 = vshrl.u32 %v7044, 7
      %v7046 = vsub.s32 %v7043, %v7045
      %v7047 = vrot.slane %v7019, %v7046
      %v7048 = vcombine.high %v7026, %v7026
      %v7049 = vcombine.high %v7033, %v7033
      %v7050 = vcombine.high %v7040, %v7040
      %v7051 = vcombine.high %v7047, %v7047
      %v7052 = vcombine.high %v6158, %v6158
      %v7054 = vunpack.c.l.s4 1966171168
      %v7055 = vunpack.c.0.s8 %v7054
      %v7056 = vlaneseq
      %v7057 = vshrl.u32 %v7056, 7
      %v7058 = vsub.s32 %v7055, %v7057
      %v7059 = vrot.slane %v6158, %v7058
      %v7061 = vunpack.c.l.s4 1966171168
      %v7062 = vunpack.c.0.s8 %v7061
      %v7063 = vlaneseq
      %v7064 = vshrl.u32 %v7063, 7
      %v7065 = vsub.s32 %v7062, %v7064
      %v7066 = vrot.slane %v7052, %v7065
      %v7067 = vcombine.high %v7059, %v7059
      %v7068 = vcombine.high %v7066, %v7066
      %v7070 = vunpack.c.l.s4 1966171168
      %v7071 = vunpack.c.0.s8 %v7070
      %v7072 = vlaneseq
      %v7073 = vshrl.u32 %v7072, 7
      %v7074 = vsub.s32 %v7071, %v7073
      %v7075 = vrot.slane %v7059, %v7074
      %v7077 = vunpack.c.l.s4 1966171168
      %v7078 = vunpack.c.0.s8 %v7077
      %v7079 = vlaneseq
      %v7080 = vshrl.u32 %v7079, 7
      %v7081 = vsub.s32 %v7078, %v7080
      %v7082 = vrot.slane %v7066, %v7081
      %v7084 = vunpack.c.l.s4 1966171168
      %v7085 = vunpack.c.0.s8 %v7084
      %v7086 = vlaneseq
      %v7087 = vshrl.u32 %v7086, 7
      %v7088 = vsub.s32 %v7085, %v7087
      %v7089 = vrot.slane %v7067, %v7088
      %v7091 = vunpack.c.l.s4 1966171168
      %v7092 = vunpack.c.0.s8 %v7091
      %v7093 = vlaneseq
      %v7094 = vshrl.u32 %v7093, 7
      %v7095 = vsub.s32 %v7092, %v7094
      %v7096 = vrot.slane %v7068, %v7095
      %v7097 = vcombine.high %v7075, %v7075
      %v7098 = vcombine.high %v7082, %v7082
      %v7099 = vcombine.high %v7089, %v7089
      %v7100 = vcombine.high %v7096, %v7096
      %v7101 = vcombine.high %v6163, %v6163
      %v7103 = vunpack.c.l.s4 1966171168
      %v7104 = vunpack.c.0.s8 %v7103
      %v7105 = vlaneseq
      %v7106 = vshrl.u32 %v7105, 7
      %v7107 = vsub.s32 %v7104, %v7106
      %v7108 = vrot.slane %v6163, %v7107
      %v7110 = vunpack.c.l.s4 1966171168
      %v7111 = vunpack.c.0.s8 %v7110
      %v7112 = vlaneseq
      %v7113 = vshrl.u32 %v7112, 7
      %v7114 = vsub.s32 %v7111, %v7113
      %v7115 = vrot.slane %v7101, %v7114
      %v7116 = vcombine.high %v7108, %v7108
      %v7117 = vcombine.high %v7115, %v7115
      %v7119 = vunpack.c.l.s4 1966171168
      %v7120 = vunpack.c.0.s8 %v7119
      %v7121 = vlaneseq
      %v7122 = vshrl.u32 %v7121, 7
      %v7123 = vsub.s32 %v7120, %v7122
      %v7124 = vrot.slane %v7108, %v7123
      %v7126 = vunpack.c.l.s4 1966171168
      %v7127 = vunpack.c.0.s8 %v7126
      %v7128 = vlaneseq
      %v7129 = vshrl.u32 %v7128, 7
      %v7130 = vsub.s32 %v7127, %v7129
      %v7131 = vrot.slane %v7115, %v7130
      %v7133 = vunpack.c.l.s4 1966171168
      %v7134 = vunpack.c.0.s8 %v7133
      %v7135 = vlaneseq
      %v7136 = vshrl.u32 %v7135, 7
      %v7137 = vsub.s32 %v7134, %v7136
      %v7138 = vrot.slane %v7116, %v7137
      %v7140 = vunpack.c.l.s4 1966171168
      %v7141 = vunpack.c.0.s8 %v7140
      %v7142 = vlaneseq
      %v7143 = vshrl.u32 %v7142, 7
      %v7144 = vsub.s32 %v7141, %v7143
      %v7145 = vrot.slane %v7117, %v7144
      %v7146 = vcombine.high %v7124, %v7124
      %v7147 = vcombine.high %v7131, %v7131
      %v7148 = vcombine.high %v7138, %v7138
      %v7149 = vcombine.high %v7145, %v7145
      %v7150 = vcombine.high %v6168, %v6168
      %v7152 = vunpack.c.l.s4 1966171168
      %v7153 = vunpack.c.0.s8 %v7152
      %v7154 = vlaneseq
      %v7155 = vshrl.u32 %v7154, 7
      %v7156 = vsub.s32 %v7153, %v7155
      %v7157 = vrot.slane %v6168, %v7156
      %v7159 = vunpack.c.l.s4 1966171168
      %v7160 = vunpack.c.0.s8 %v7159
      %v7161 = vlaneseq
      %v7162 = vshrl.u32 %v7161, 7
      %v7163 = vsub.s32 %v7160, %v7162
      %v7164 = vrot.slane %v7150, %v7163
      %v7165 = vcombine.high %v7157, %v7157
      %v7166 = vcombine.high %v7164, %v7164
      %v7168 = vunpack.c.l.s4 1966171168
      %v7169 = vunpack.c.0.s8 %v7168
      %v7170 = vlaneseq
      %v7171 = vshrl.u32 %v7170, 7
      %v7172 = vsub.s32 %v7169, %v7171
      %v7173 = vrot.slane %v7157, %v7172
      %v7175 = vunpack.c.l.s4 1966171168
      %v7176 = vunpack.c.0.s8 %v7175
      %v7177 = vlaneseq
      %v7178 = vshrl.u32 %v7177, 7
      %v7179 = vsub.s32 %v7176, %v7178
      %v7180 = vrot.slane %v7164, %v7179
      %v7182 = vunpack.c.l.s4 1966171168
      %v7183 = vunpack.c.0.s8 %v7182
      %v7184 = vlaneseq
      %v7185 = vshrl.u32 %v7184, 7
      %v7186 = vsub.s32 %v7183, %v7185
      %v7187 = vrot.slane %v7165, %v7186
      %v7189 = vunpack.c.l.s4 1966171168
      %v7190 = vunpack.c.0.s8 %v7189
      %v7191 = vlaneseq
      %v7192 = vshrl.u32 %v7191, 7
      %v7193 = vsub.s32 %v7190, %v7192
      %v7194 = vrot.slane %v7166, %v7193
      %v7195 = vcombine.high %v7173, %v7173
      %v7196 = vcombine.high %v7180, %v7180
      %v7197 = vcombine.high %v7187, %v7187
      %v7198 = vcombine.high %v7194, %v7194
      %v7199 = vcombine.high %v6173, %v6173
      %v7201 = vunpack.c.l.s4 1966171168
      %v7202 = vunpack.c.0.s8 %v7201
      %v7203 = vlaneseq
      %v7204 = vshrl.u32 %v7203, 7
      %v7205 = vsub.s32 %v7202, %v7204
      %v7206 = vrot.slane %v6173, %v7205
      %v7208 = vunpack.c.l.s4 1966171168
      %v7209 = vunpack.c.0.s8 %v7208
      %v7210 = vlaneseq
      %v7211 = vshrl.u32 %v7210, 7
      %v7212 = vsub.s32 %v7209, %v7211
      %v7213 = vrot.slane %v7199, %v7212
      %v7214 = vcombine.high %v7206, %v7206
      %v7215 = vcombine.high %v7213, %v7213
      %v7217 = vunpack.c.l.s4 1966171168
      %v7218 = vunpack.c.0.s8 %v7217
      %v7219 = vlaneseq
      %v7220 = vshrl.u32 %v7219, 7
      %v7221 = vsub.s32 %v7218, %v7220
      %v7222 = vrot.slane %v7206, %v7221
      %v7224 = vunpack.c.l.s4 1966171168
      %v7225 = vunpack.c.0.s8 %v7224
      %v7226 = vlaneseq
      %v7227 = vshrl.u32 %v7226, 7
      %v7228 = vsub.s32 %v7225, %v7227
      %v7229 = vrot.slane %v7213, %v7228
      %v7231 = vunpack.c.l.s4 1966171168
      %v7232 = vunpack.c.0.s8 %v7231
      %v7233 = vlaneseq
      %v7234 = vshrl.u32 %v7233, 7
      %v7235 = vsub.s32 %v7232, %v7234
      %v7236 = vrot.slane %v7214, %v7235
      %v7238 = vunpack.c.l.s4 1966171168
      %v7239 = vunpack.c.0.s8 %v7238
      %v7240 = vlaneseq
      %v7241 = vshrl.u32 %v7240, 7
      %v7242 = vsub.s32 %v7239, %v7241
      %v7243 = vrot.slane %v7215, %v7242
      %v7244 = vcombine.high %v7222, %v7222
      %v7245 = vcombine.high %v7229, %v7229
      %v7246 = vcombine.high %v7236, %v7236
      %v7247 = vcombine.high %v7243, %v7243
      %v7248 = vcombine.high %v6178, %v6178
      %v7250 = vunpack.c.l.s4 1966171168
      %v7251 = vunpack.c.0.s8 %v7250
      %v7252 = vlaneseq
      %v7253 = vshrl.u32 %v7252, 7
      %v7254 = vsub.s32 %v7251, %v7253
      %v7255 = vrot.slane %v6178, %v7254
      %v7257 = vunpack.c.l.s4 1966171168
      %v7258 = vunpack.c.0.s8 %v7257
      %v7259 = vlaneseq
      %v7260 = vshrl.u32 %v7259, 7
      %v7261 = vsub.s32 %v7258, %v7260
      %v7262 = vrot.slane %v7248, %v7261
      %v7263 = vcombine.high %v7255, %v7255
      %v7264 = vcombine.high %v7262, %v7262
      %v7266 = vunpack.c.l.s4 1966171168
      %v7267 = vunpack.c.0.s8 %v7266
      %v7268 = vlaneseq
      %v7269 = vshrl.u32 %v7268, 7
      %v7270 = vsub.s32 %v7267, %v7269
      %v7271 = vrot.slane %v7255, %v7270
      %v7273 = vunpack.c.l.s4 1966171168
      %v7274 = vunpack.c.0.s8 %v7273
      %v7275 = vlaneseq
      %v7276 = vshrl.u32 %v7275, 7
      %v7277 = vsub.s32 %v7274, %v7276
      %v7278 = vrot.slane %v7262, %v7277
      %v7280 = vunpack.c.l.s4 1966171168
      %v7281 = vunpack.c.0.s8 %v7280
      %v7282 = vlaneseq
      %v7283 = vshrl.u32 %v7282, 7
      %v7284 = vsub.s32 %v7281, %v7283
      %v7285 = vrot.slane %v7263, %v7284
      %v7287 = vunpack.c.l.s4 1966171168
      %v7288 = vunpack.c.0.s8 %v7287
      %v7289 = vlaneseq
      %v7290 = vshrl.u32 %v7289, 7
      %v7291 = vsub.s32 %v7288, %v7290
      %v7292 = vrot.slane %v7264, %v7291
      %v7293 = vcombine.high %v7271, %v7271
      %v7294 = vcombine.high %v7278, %v7278
      %v7295 = vcombine.high %v7285, %v7285
      %v7296 = vcombine.high %v7292, %v7292
      %v7297 = vcombine.high %v6183, %v6183
      %v7299 = vunpack.c.l.s4 1966171168
      %v7300 = vunpack.c.0.s8 %v7299
      %v7301 = vlaneseq
      %v7302 = vshrl.u32 %v7301, 7
      %v7303 = vsub.s32 %v7300, %v7302
      %v7304 = vrot.slane %v6183, %v7303
      %v7306 = vunpack.c.l.s4 1966171168
      %v7307 = vunpack.c.0.s8 %v7306
      %v7308 = vlaneseq
      %v7309 = vshrl.u32 %v7308, 7
      %v7310 = vsub.s32 %v7307, %v7309
      %v7311 = vrot.slane %v7297, %v7310
      %v7312 = vcombine.high %v7304, %v7304
      %v7313 = vcombine.high %v7311, %v7311
      %v7315 = vunpack.c.l.s4 1966171168
      %v7316 = vunpack.c.0.s8 %v7315
      %v7317 = vlaneseq
      %v7318 = vshrl.u32 %v7317, 7
      %v7319 = vsub.s32 %v7316, %v7318
      %v7320 = vrot.slane %v7304, %v7319
      %v7322 = vunpack.c.l.s4 1966171168
      %v7323 = vunpack.c.0.s8 %v7322
      %v7324 = vlaneseq
      %v7325 = vshrl.u32 %v7324, 7
      %v7326 = vsub.s32 %v7323, %v7325
      %v7327 = vrot.slane %v7311, %v7326
      %v7329 = vunpack.c.l.s4 1966171168
      %v7330 = vunpack.c.0.s8 %v7329
      %v7331 = vlaneseq
      %v7332 = vshrl.u32 %v7331, 7
      %v7333 = vsub.s32 %v7330, %v7332
      %v7334 = vrot.slane %v7312, %v7333
      %v7336 = vunpack.c.l.s4 1966171168
      %v7337 = vunpack.c.0.s8 %v7336
      %v7338 = vlaneseq
      %v7339 = vshrl.u32 %v7338, 7
      %v7340 = vsub.s32 %v7337, %v7339
      %v7341 = vrot.slane %v7313, %v7340
      %v7342 = vcombine.high %v7320, %v7320
      %v7343 = vcombine.high %v7327, %v7327
      %v7344 = vcombine.high %v7334, %v7334
      %v7345 = vcombine.high %v7341, %v7341
      %v7346 = vcombine.high %v6188, %v6188
      %v7348 = vunpack.c.l.s4 1966171168
      %v7349 = vunpack.c.0.s8 %v7348
      %v7350 = vlaneseq
      %v7351 = vshrl.u32 %v7350, 7
      %v7352 = vsub.s32 %v7349, %v7351
      %v7353 = vrot.slane %v6188, %v7352
      %v7355 = vunpack.c.l.s4 1966171168
      %v7356 = vunpack.c.0.s8 %v7355
      %v7357 = vlaneseq
      %v7358 = vshrl.u32 %v7357, 7
      %v7359 = vsub.s32 %v7356, %v7358
      %v7360 = vrot.slane %v7346, %v7359
      %v7361 = vcombine.high %v7353, %v7353
      %v7362 = vcombine.high %v7360, %v7360
      %v7364 = vunpack.c.l.s4 1966171168
      %v7365 = vunpack.c.0.s8 %v7364
      %v7366 = vlaneseq
      %v7367 = vshrl.u32 %v7366, 7
      %v7368 = vsub.s32 %v7365, %v7367
      %v7369 = vrot.slane %v7353, %v7368
      %v7371 = vunpack.c.l.s4 1966171168
      %v7372 = vunpack.c.0.s8 %v7371
      %v7373 = vlaneseq
      %v7374 = vshrl.u32 %v7373, 7
      %v7375 = vsub.s32 %v7372, %v7374
      %v7376 = vrot.slane %v7360, %v7375
      %v7378 = vunpack.c.l.s4 1966171168
      %v7379 = vunpack.c.0.s8 %v7378
      %v7380 = vlaneseq
      %v7381 = vshrl.u32 %v7380, 7
      %v7382 = vsub.s32 %v7379, %v7381
      %v7383 = vrot.slane %v7361, %v7382
      %v7385 = vunpack.c.l.s4 1966171168
      %v7386 = vunpack.c.0.s8 %v7385
      %v7387 = vlaneseq
      %v7388 = vshrl.u32 %v7387, 7
      %v7389 = vsub.s32 %v7386, %v7388
      %v7390 = vrot.slane %v7362, %v7389
      %v7391 = vcombine.high %v7369, %v7369
      %v7392 = vcombine.high %v7376, %v7376
      %v7393 = vcombine.high %v7383, %v7383
      %v7394 = vcombine.high %v7390, %v7390
      %v7395 = vcombine.high %v6193, %v6193
      %v7397 = vunpack.c.l.s4 1966171168
      %v7398 = vunpack.c.0.s8 %v7397
      %v7399 = vlaneseq
      %v7400 = vshrl.u32 %v7399, 7
      %v7401 = vsub.s32 %v7398, %v7400
      %v7402 = vrot.slane %v6193, %v7401
      %v7404 = vunpack.c.l.s4 1966171168
      %v7405 = vunpack.c.0.s8 %v7404
      %v7406 = vlaneseq
      %v7407 = vshrl.u32 %v7406, 7
      %v7408 = vsub.s32 %v7405, %v7407
      %v7409 = vrot.slane %v7395, %v7408
      %v7410 = vcombine.high %v7402, %v7402
      %v7411 = vcombine.high %v7409, %v7409
      %v7413 = vunpack.c.l.s4 1966171168
      %v7414 = vunpack.c.0.s8 %v7413
      %v7415 = vlaneseq
      %v7416 = vshrl.u32 %v7415, 7
      %v7417 = vsub.s32 %v7414, %v7416
      %v7418 = vrot.slane %v7402, %v7417
      %v7420 = vunpack.c.l.s4 1966171168
      %v7421 = vunpack.c.0.s8 %v7420
      %v7422 = vlaneseq
      %v7423 = vshrl.u32 %v7422, 7
      %v7424 = vsub.s32 %v7421, %v7423
      %v7425 = vrot.slane %v7409, %v7424
      %v7427 = vunpack.c.l.s4 1966171168
      %v7428 = vunpack.c.0.s8 %v7427
      %v7429 = vlaneseq
      %v7430 = vshrl.u32 %v7429, 7
      %v7431 = vsub.s32 %v7428, %v7430
      %v7432 = vrot.slane %v7410, %v7431
      %v7434 = vunpack.c.l.s4 1966171168
      %v7435 = vunpack.c.0.s8 %v7434
      %v7436 = vlaneseq
      %v7437 = vshrl.u32 %v7436, 7
      %v7438 = vsub.s32 %v7435, %v7437
      %v7439 = vrot.slane %v7411, %v7438
      %v7440 = vcombine.high %v7418, %v7418
      %v7441 = vcombine.high %v7425, %v7425
      %v7442 = vcombine.high %v7432, %v7432
      %v7443 = vcombine.high %v7439, %v7439
      %v7444 = vcombine.high %v6198, %v6198
      %v7446 = vunpack.c.l.s4 1966171168
      %v7447 = vunpack.c.0.s8 %v7446
      %v7448 = vlaneseq
      %v7449 = vshrl.u32 %v7448, 7
      %v7450 = vsub.s32 %v7447, %v7449
      %v7451 = vrot.slane %v6198, %v7450
      %v7453 = vunpack.c.l.s4 1966171168
      %v7454 = vunpack.c.0.s8 %v7453
      %v7455 = vlaneseq
      %v7456 = vshrl.u32 %v7455, 7
      %v7457 = vsub.s32 %v7454, %v7456
      %v7458 = vrot.slane %v7444, %v7457
      %v7459 = vcombine.high %v7451, %v7451
      %v7460 = vcombine.high %v7458, %v7458
      %v7462 = vunpack.c.l.s4 1966171168
      %v7463 = vunpack.c.0.s8 %v7462
      %v7464 = vlaneseq
      %v7465 = vshrl.u32 %v7464, 7
      %v7466 = vsub.s32 %v7463, %v7465
      %v7467 = vrot.slane %v7451, %v7466
      %v7469 = vunpack.c.l.s4 1966171168
      %v7470 = vunpack.c.0.s8 %v7469
      %v7471 = vlaneseq
      %v7472 = vshrl.u32 %v7471, 7
      %v7473 = vsub.s32 %v7470, %v7472
      %v7474 = vrot.slane %v7458, %v7473
      %v7476 = vunpack.c.l.s4 1966171168
      %v7477 = vunpack.c.0.s8 %v7476
      %v7478 = vlaneseq
      %v7479 = vshrl.u32 %v7478, 7
      %v7480 = vsub.s32 %v7477, %v7479
      %v7481 = vrot.slane %v7459, %v7480
      %v7483 = vunpack.c.l.s4 1966171168
      %v7484 = vunpack.c.0.s8 %v7483
      %v7485 = vlaneseq
      %v7486 = vshrl.u32 %v7485, 7
      %v7487 = vsub.s32 %v7484, %v7486
      %v7488 = vrot.slane %v7460, %v7487
      %v7489 = vcombine.high %v7467, %v7467
      %v7490 = vcombine.high %v7474, %v7474
      %v7491 = vcombine.high %v7481, %v7481
      %v7492 = vcombine.high %v7488, %v7488
      %v7493 = vcombine.high %v6203, %v6203
      %v7495 = vunpack.c.l.s4 1966171168
      %v7496 = vunpack.c.0.s8 %v7495
      %v7497 = vlaneseq
      %v7498 = vshrl.u32 %v7497, 7
      %v7499 = vsub.s32 %v7496, %v7498
      %v7500 = vrot.slane %v6203, %v7499
      %v7502 = vunpack.c.l.s4 1966171168
      %v7503 = vunpack.c.0.s8 %v7502
      %v7504 = vlaneseq
      %v7505 = vshrl.u32 %v7504, 7
      %v7506 = vsub.s32 %v7503, %v7505
      %v7507 = vrot.slane %v7493, %v7506
      %v7508 = vcombine.high %v7500, %v7500
      %v7509 = vcombine.high %v7507, %v7507
      %v7511 = vunpack.c.l.s4 1966171168
      %v7512 = vunpack.c.0.s8 %v7511
      %v7513 = vlaneseq
      %v7514 = vshrl.u32 %v7513, 7
      %v7515 = vsub.s32 %v7512, %v7514
      %v7516 = vrot.slane %v7500, %v7515
      %v7518 = vunpack.c.l.s4 1966171168
      %v7519 = vunpack.c.0.s8 %v7518
      %v7520 = vlaneseq
      %v7521 = vshrl.u32 %v7520, 7
      %v7522 = vsub.s32 %v7519, %v7521
      %v7523 = vrot.slane %v7507, %v7522
      %v7525 = vunpack.c.l.s4 1966171168
      %v7526 = vunpack.c.0.s8 %v7525
      %v7527 = vlaneseq
      %v7528 = vshrl.u32 %v7527, 7
      %v7529 = vsub.s32 %v7526, %v7528
      %v7530 = vrot.slane %v7508, %v7529
      %v7532 = vunpack.c.l.s4 1966171168
      %v7533 = vunpack.c.0.s8 %v7532
      %v7534 = vlaneseq
      %v7535 = vshrl.u32 %v7534, 7
      %v7536 = vsub.s32 %v7533, %v7535
      %v7537 = vrot.slane %v7509, %v7536
      %v7538 = vcombine.high %v7516, %v7516
      %v7539 = vcombine.high %v7523, %v7523
      %v7540 = vcombine.high %v7530, %v7530
      %v7541 = vcombine.high %v7537, %v7537
      %v7542 = vcombine.high %v6208, %v6208
      %v7544 = vunpack.c.l.s4 1966171168
      %v7545 = vunpack.c.0.s8 %v7544
      %v7546 = vlaneseq
      %v7547 = vshrl.u32 %v7546, 7
      %v7548 = vsub.s32 %v7545, %v7547
      %v7549 = vrot.slane %v6208, %v7548
      %v7551 = vunpack.c.l.s4 1966171168
      %v7552 = vunpack.c.0.s8 %v7551
      %v7553 = vlaneseq
      %v7554 = vshrl.u32 %v7553, 7
      %v7555 = vsub.s32 %v7552, %v7554
      %v7556 = vrot.slane %v7542, %v7555
      %v7557 = vcombine.high %v7549, %v7549
      %v7558 = vcombine.high %v7556, %v7556
      %v7560 = vunpack.c.l.s4 1966171168
      %v7561 = vunpack.c.0.s8 %v7560
      %v7562 = vlaneseq
      %v7563 = vshrl.u32 %v7562, 7
      %v7564 = vsub.s32 %v7561, %v7563
      %v7565 = vrot.slane %v7549, %v7564
      %v7567 = vunpack.c.l.s4 1966171168
      %v7568 = vunpack.c.0.s8 %v7567
      %v7569 = vlaneseq
      %v7570 = vshrl.u32 %v7569, 7
      %v7571 = vsub.s32 %v7568, %v7570
      %v7572 = vrot.slane %v7556, %v7571
      %v7574 = vunpack.c.l.s4 1966171168
      %v7575 = vunpack.c.0.s8 %v7574
      %v7576 = vlaneseq
      %v7577 = vshrl.u32 %v7576, 7
      %v7578 = vsub.s32 %v7575, %v7577
      %v7579 = vrot.slane %v7557, %v7578
      %v7581 = vunpack.c.l.s4 1966171168
      %v7582 = vunpack.c.0.s8 %v7581
      %v7583 = vlaneseq
      %v7584 = vshrl.u32 %v7583, 7
      %v7585 = vsub.s32 %v7582, %v7584
      %v7586 = vrot.slane %v7558, %v7585
      %v7587 = vcombine.high %v7565, %v7565
      %v7588 = vcombine.high %v7572, %v7572
      %v7589 = vcombine.high %v7579, %v7579
      %v7590 = vcombine.high %v7586, %v7586
      %v7591 = vcombine.high %v6213, %v6213
      %v7593 = vunpack.c.l.s4 1966171168
      %v7594 = vunpack.c.0.s8 %v7593
      %v7595 = vlaneseq
      %v7596 = vshrl.u32 %v7595, 7
      %v7597 = vsub.s32 %v7594, %v7596
      %v7598 = vrot.slane %v6213, %v7597
      %v7600 = vunpack.c.l.s4 1966171168
      %v7601 = vunpack.c.0.s8 %v7600
      %v7602 = vlaneseq
      %v7603 = vshrl.u32 %v7602, 7
      %v7604 = vsub.s32 %v7601, %v7603
      %v7605 = vrot.slane %v7591, %v7604
      %v7606 = vcombine.high %v7598, %v7598
      %v7607 = vcombine.high %v7605, %v7605
      %v7609 = vunpack.c.l.s4 1966171168
      %v7610 = vunpack.c.0.s8 %v7609
      %v7611 = vlaneseq
      %v7612 = vshrl.u32 %v7611, 7
      %v7613 = vsub.s32 %v7610, %v7612
      %v7614 = vrot.slane %v7598, %v7613
      %v7616 = vunpack.c.l.s4 1966171168
      %v7617 = vunpack.c.0.s8 %v7616
      %v7618 = vlaneseq
      %v7619 = vshrl.u32 %v7618, 7
      %v7620 = vsub.s32 %v7617, %v7619
      %v7621 = vrot.slane %v7605, %v7620
      %v7623 = vunpack.c.l.s4 1966171168
      %v7624 = vunpack.c.0.s8 %v7623
      %v7625 = vlaneseq
      %v7626 = vshrl.u32 %v7625, 7
      %v7627 = vsub.s32 %v7624, %v7626
      %v7628 = vrot.slane %v7606, %v7627
      %v7630 = vunpack.c.l.s4 1966171168
      %v7631 = vunpack.c.0.s8 %v7630
      %v7632 = vlaneseq
      %v7633 = vshrl.u32 %v7632, 7
      %v7634 = vsub.s32 %v7631, %v7633
      %v7635 = vrot.slane %v7607, %v7634
      %v7636 = vcombine.high %v7614, %v7614
      %v7637 = vcombine.high %v7621, %v7621
      %v7638 = vcombine.high %v7628, %v7628
      %v7639 = vcombine.high %v7635, %v7635
      %v7640 = vcombine.high %v6218, %v6218
      %v7642 = vunpack.c.l.s4 1966171168
      %v7643 = vunpack.c.0.s8 %v7642
      %v7644 = vlaneseq
      %v7645 = vshrl.u32 %v7644, 7
      %v7646 = vsub.s32 %v7643, %v7645
      %v7647 = vrot.slane %v6218, %v7646
      %v7649 = vunpack.c.l.s4 1966171168
      %v7650 = vunpack.c.0.s8 %v7649
      %v7651 = vlaneseq
      %v7652 = vshrl.u32 %v7651, 7
      %v7653 = vsub.s32 %v7650, %v7652
      %v7654 = vrot.slane %v7640, %v7653
      %v7655 = vcombine.high %v7647, %v7647
      %v7656 = vcombine.high %v7654, %v7654
      %v7658 = vunpack.c.l.s4 1966171168
      %v7659 = vunpack.c.0.s8 %v7658
      %v7660 = vlaneseq
      %v7661 = vshrl.u32 %v7660, 7
      %v7662 = vsub.s32 %v7659, %v7661
      %v7663 = vrot.slane %v7647, %v7662
      %v7665 = vunpack.c.l.s4 1966171168
      %v7666 = vunpack.c.0.s8 %v7665
      %v7667 = vlaneseq
      %v7668 = vshrl.u32 %v7667, 7
      %v7669 = vsub.s32 %v7666, %v7668
      %v7670 = vrot.slane %v7654, %v7669
      %v7672 = vunpack.c.l.s4 1966171168
      %v7673 = vunpack.c.0.s8 %v7672
      %v7674 = vlaneseq
      %v7675 = vshrl.u32 %v7674, 7
      %v7676 = vsub.s32 %v7673, %v7675
      %v7677 = vrot.slane %v7655, %v7676
      %v7679 = vunpack.c.l.s4 1966171168
      %v7680 = vunpack.c.0.s8 %v7679
      %v7681 = vlaneseq
      %v7682 = vshrl.u32 %v7681, 7
      %v7683 = vsub.s32 %v7680, %v7682
      %v7684 = vrot.slane %v7656, %v7683
      %v7685 = vcombine.high %v7663, %v7663
      %v7686 = vcombine.high %v7670, %v7670
      %v7687 = vcombine.high %v7677, %v7677
      %v7688 = vcombine.high %v7684, %v7684
      %v7689 = vcombine.high %v6223, %v6223
      %v7691 = vunpack.c.l.s4 1966171168
      %v7692 = vunpack.c.0.s8 %v7691
      %v7693 = vlaneseq
      %v7694 = vshrl.u32 %v7693, 7
      %v7695 = vsub.s32 %v7692, %v7694
      %v7696 = vrot.slane %v6223, %v7695
      %v7698 = vunpack.c.l.s4 1966171168
      %v7699 = vunpack.c.0.s8 %v7698
      %v7700 = vlaneseq
      %v7701 = vshrl.u32 %v7700, 7
      %v7702 = vsub.s32 %v7699, %v7701
      %v7703 = vrot.slane %v7689, %v7702
      %v7704 = vcombine.high %v7696, %v7696
      %v7705 = vcombine.high %v7703, %v7703
      %v7707 = vunpack.c.l.s4 1966171168
      %v7708 = vunpack.c.0.s8 %v7707
      %v7709 = vlaneseq
      %v7710 = vshrl.u32 %v7709, 7
      %v7711 = vsub.s32 %v7708, %v7710
      %v7712 = vrot.slane %v7696, %v7711
      %v7714 = vunpack.c.l.s4 1966171168
      %v7715 = vunpack.c.0.s8 %v7714
      %v7716 = vlaneseq
      %v7717 = vshrl.u32 %v7716, 7
      %v7718 = vsub.s32 %v7715, %v7717
      %v7719 = vrot.slane %v7703, %v7718
      %v7721 = vunpack.c.l.s4 1966171168
      %v7722 = vunpack.c.0.s8 %v7721
      %v7723 = vlaneseq
      %v7724 = vshrl.u32 %v7723, 7
      %v7725 = vsub.s32 %v7722, %v7724
      %v7726 = vrot.slane %v7704, %v7725
      %v7728 = vunpack.c.l.s4 1966171168
      %v7729 = vunpack.c.0.s8 %v7728
      %v7730 = vlaneseq
      %v7731 = vshrl.u32 %v7730, 7
      %v7732 = vsub.s32 %v7729, %v7731
      %v7733 = vrot.slane %v7705, %v7732
      %v7734 = vcombine.high %v7712, %v7712
      %v7735 = vcombine.high %v7719, %v7719
      %v7736 = vcombine.high %v7726, %v7726
      %v7737 = vcombine.high %v7733, %v7733
      %v7738 = vcombine.high %v6228, %v6228
      %v7740 = vunpack.c.l.s4 1966171168
      %v7741 = vunpack.c.0.s8 %v7740
      %v7742 = vlaneseq
      %v7743 = vshrl.u32 %v7742, 7
      %v7744 = vsub.s32 %v7741, %v7743
      %v7745 = vrot.slane %v6228, %v7744
      %v7747 = vunpack.c.l.s4 1966171168
      %v7748 = vunpack.c.0.s8 %v7747
      %v7749 = vlaneseq
      %v7750 = vshrl.u32 %v7749, 7
      %v7751 = vsub.s32 %v7748, %v7750
      %v7752 = vrot.slane %v7738, %v7751
      %v7753 = vcombine.high %v7745, %v7745
      %v7754 = vcombine.high %v7752, %v7752
      %v7756 = vunpack.c.l.s4 1966171168
      %v7757 = vunpack.c.0.s8 %v7756
      %v7758 = vlaneseq
      %v7759 = vshrl.u32 %v7758, 7
      %v7760 = vsub.s32 %v7757, %v7759
      %v7761 = vrot.slane %v7745, %v7760
      %v7763 = vunpack.c.l.s4 1966171168
      %v7764 = vunpack.c.0.s8 %v7763
      %v7765 = vlaneseq
      %v7766 = vshrl.u32 %v7765, 7
      %v7767 = vsub.s32 %v7764, %v7766
      %v7768 = vrot.slane %v7752, %v7767
      %v7770 = vunpack.c.l.s4 1966171168
      %v7771 = vunpack.c.0.s8 %v7770
      %v7772 = vlaneseq
      %v7773 = vshrl.u32 %v7772, 7
      %v7774 = vsub.s32 %v7771, %v7773
      %v7775 = vrot.slane %v7753, %v7774
      %v7777 = vunpack.c.l.s4 1966171168
      %v7778 = vunpack.c.0.s8 %v7777
      %v7779 = vlaneseq
      %v7780 = vshrl.u32 %v7779, 7
      %v7781 = vsub.s32 %v7778, %v7780
      %v7782 = vrot.slane %v7754, %v7781
      %v7783 = vcombine.high %v7761, %v7761
      %v7784 = vcombine.high %v7768, %v7768
      %v7785 = vcombine.high %v7775, %v7775
      %v7786 = vcombine.high %v7782, %v7782
      %v7787 = vcombine.high %v6233, %v6233
      %v7789 = vunpack.c.l.s4 1966171168
      %v7790 = vunpack.c.0.s8 %v7789
      %v7791 = vlaneseq
      %v7792 = vshrl.u32 %v7791, 7
      %v7793 = vsub.s32 %v7790, %v7792
      %v7794 = vrot.slane %v6233, %v7793
      %v7796 = vunpack.c.l.s4 1966171168
      %v7797 = vunpack.c.0.s8 %v7796
      %v7798 = vlaneseq
      %v7799 = vshrl.u32 %v7798, 7
      %v7800 = vsub.s32 %v7797, %v7799
      %v7801 = vrot.slane %v7787, %v7800
      %v7802 = vcombine.high %v7794, %v7794
      %v7803 = vcombine.high %v7801, %v7801
      %v7805 = vunpack.c.l.s4 1966171168
      %v7806 = vunpack.c.0.s8 %v7805
      %v7807 = vlaneseq
      %v7808 = vshrl.u32 %v7807, 7
      %v7809 = vsub.s32 %v7806, %v7808
      %v7810 = vrot.slane %v7794, %v7809
      %v7812 = vunpack.c.l.s4 1966171168
      %v7813 = vunpack.c.0.s8 %v7812
      %v7814 = vlaneseq
      %v7815 = vshrl.u32 %v7814, 7
      %v7816 = vsub.s32 %v7813, %v7815
      %v7817 = vrot.slane %v7801, %v7816
      %v7819 = vunpack.c.l.s4 1966171168
      %v7820 = vunpack.c.0.s8 %v7819
      %v7821 = vlaneseq
      %v7822 = vshrl.u32 %v7821, 7
      %v7823 = vsub.s32 %v7820, %v7822
      %v7824 = vrot.slane %v7802, %v7823
      %v7826 = vunpack.c.l.s4 1966171168
      %v7827 = vunpack.c.0.s8 %v7826
      %v7828 = vlaneseq
      %v7829 = vshrl.u32 %v7828, 7
      %v7830 = vsub.s32 %v7827, %v7829
      %v7831 = vrot.slane %v7803, %v7830
      %v7832 = vcombine.high %v7810, %v7810
      %v7833 = vcombine.high %v7817, %v7817
      %v7834 = vcombine.high %v7824, %v7824
      %v7835 = vcombine.high %v7831, %v7831
      %s8092 = scalar_lea.vmem %s254, 32
      %8093 = vst.msk [vmem:[%s8092] sm:$0x1] %vm3021, %v6291
      %8094 = vst.msk [vmem:[%s8092 + $0x2] sm:$0x1] %vm3021, %v6305
      %8095 = vst.msk [vmem:[%s8092 + $0x4] sm:$0x1] %vm3021, %v6313
      %8096 = vst.msk [vmem:[%s8092 + $0x6] sm:$0x1] %vm3021, %v6315
      %8097 = vst.msk [vmem:[%s8092 + $0x8] sm:$0x1] %vm3021, %v6298
      %8098 = vst.msk [vmem:[%s8092 + $0xa] sm:$0x1] %vm3021, %v6312
      %8099 = vst.msk [vmem:[%s8092 + $0xc] sm:$0x1] %vm3021, %v6314
      %8100 = vst.msk [vmem:[%s8092 + $0xe] sm:$0x1] %vm3021, %v6316
      %8101 = vst.msk [vmem:[%s8092 + $0x10] sm:$0x1] %vm3021, %v6340
      %8102 = vst.msk [vmem:[%s8092 + $0x12] sm:$0x1] %vm3021, %v6354
      %8103 = vst.msk [vmem:[%s8092 + $0x14] sm:$0x1] %vm3021, %v6362
      %8104 = vst.msk [vmem:[%s8092 + $0x16] sm:$0x1] %vm3021, %v6364
      %8105 = vst.msk [vmem:[%s8092 + $0x18] sm:$0x1] %vm3021, %v6347
      %8106 = vst.msk [vmem:[%s8092 + $0x1a] sm:$0x1] %vm3021, %v6361
      %8107 = vst.msk [vmem:[%s8092 + $0x1c] sm:$0x1] %vm3021, %v6363
      %8108 = vst.msk [vmem:[%s8092 + $0x1e] sm:$0x1] %vm3021, %v6365
      %8109 = vst.msk [vmem:[%s8092 + $0x40] sm:$0x1] %vm3021, %v6389
      %8110 = vst.msk [vmem:[%s8092 + $0x42] sm:$0x1] %vm3021, %v6403
      %8111 = vst.msk [vmem:[%s8092 + $0x44] sm:$0x1] %vm3021, %v6411
      %8112 = vst.msk [vmem:[%s8092 + $0x46] sm:$0x1] %vm3021, %v6413
      %8113 = vst.msk [vmem:[%s8092 + $0x48] sm:$0x1] %vm3021, %v6396
      %8114 = vst.msk [vmem:[%s8092 + $0x4a] sm:$0x1] %vm3021, %v6410
      %8115 = vst.msk [vmem:[%s8092 + $0x4c] sm:$0x1] %vm3021, %v6412
      %8116 = vst.msk [vmem:[%s8092 + $0x4e] sm:$0x1] %vm3021, %v6414
      %8117 = vst.msk [vmem:[%s8092 + $0x50] sm:$0x1] %vm3021, %v6438
      %8118 = vst.msk [vmem:[%s8092 + $0x52] sm:$0x1] %vm3021, %v6452
      %8119 = vst.msk [vmem:[%s8092 + $0x54] sm:$0x1] %vm3021, %v6460
      %8120 = vst.msk [vmem:[%s8092 + $0x56] sm:$0x1] %vm3021, %v6462
      %8121 = vst.msk [vmem:[%s8092 + $0x58] sm:$0x1] %vm3021, %v6445
      %8122 = vst.msk [vmem:[%s8092 + $0x5a] sm:$0x1] %vm3021, %v6459
      %8123 = vst.msk [vmem:[%s8092 + $0x5c] sm:$0x1] %vm3021, %v6461
      %8124 = vst.msk [vmem:[%s8092 + $0x5e] sm:$0x1] %vm3021, %v6463
      %8125 = vst.msk [vmem:[%s8092 + $0x80] sm:$0x1] %vm3021, %v6487
      %8126 = vst.msk [vmem:[%s8092 + $0x82] sm:$0x1] %vm3021, %v6501
      %8127 = vst.msk [vmem:[%s8092 + $0x84] sm:$0x1] %vm3021, %v6509
      %8128 = vst.msk [vmem:[%s8092 + $0x86] sm:$0x1] %vm3021, %v6511
      %8129 = vst.msk [vmem:[%s8092 + $0x88] sm:$0x1] %vm3021, %v6494
      %8130 = vst.msk [vmem:[%s8092 + $0x8a] sm:$0x1] %vm3021, %v6508
      %8131 = vst.msk [vmem:[%s8092 + $0x8c] sm:$0x1] %vm3021, %v6510
      %8132 = vst.msk [vmem:[%s8092 + $0x8e] sm:$0x1] %vm3021, %v6512
      %8133 = vst.msk [vmem:[%s8092 + $0x90] sm:$0x1] %vm3021, %v6536
      %8134 = vst.msk [vmem:[%s8092 + $0x92] sm:$0x1] %vm3021, %v6550
      %8135 = vst.msk [vmem:[%s8092 + $0x94] sm:$0x1] %vm3021, %v6558
      %8136 = vst.msk [vmem:[%s8092 + $0x96] sm:$0x1] %vm3021, %v6560
      %8137 = vst.msk [vmem:[%s8092 + $0x98] sm:$0x1] %vm3021, %v6543
      %8138 = vst.msk [vmem:[%s8092 + $0x9a] sm:$0x1] %vm3021, %v6557
      %8139 = vst.msk [vmem:[%s8092 + $0x9c] sm:$0x1] %vm3021, %v6559
      %8140 = vst.msk [vmem:[%s8092 + $0x9e] sm:$0x1] %vm3021, %v6561
      %8141 = vst.msk [vmem:[%s8092 + $0xc0] sm:$0x1] %vm3021, %v6585
      %8142 = vst.msk [vmem:[%s8092 + $0xc2] sm:$0x1] %vm3021, %v6599
      %8143 = vst.msk [vmem:[%s8092 + $0xc4] sm:$0x1] %vm3021, %v6607
      %8144 = vst.msk [vmem:[%s8092 + $0xc6] sm:$0x1] %vm3021, %v6609
      %8145 = vst.msk [vmem:[%s8092 + $0xc8] sm:$0x1] %vm3021, %v6592
      %8146 = vst.msk [vmem:[%s8092 + $0xca] sm:$0x1] %vm3021, %v6606
      %8147 = vst.msk [vmem:[%s8092 + $0xcc] sm:$0x1] %vm3021, %v6608
      %8148 = vst.msk [vmem:[%s8092 + $0xce] sm:$0x1] %vm3021, %v6610
      %8149 = vst.msk [vmem:[%s8092 + $0xd0] sm:$0x1] %vm3021, %v6634
      %8150 = vst.msk [vmem:[%s8092 + $0xd2] sm:$0x1] %vm3021, %v6648
      %8151 = vst.msk [vmem:[%s8092 + $0xd4] sm:$0x1] %vm3021, %v6656
      %8152 = vst.msk [vmem:[%s8092 + $0xd6] sm:$0x1] %vm3021, %v6658
      %8153 = vst.msk [vmem:[%s8092 + $0xd8] sm:$0x1] %vm3021, %v6641
      %8154 = vst.msk [vmem:[%s8092 + $0xda] sm:$0x1] %vm3021, %v6655
      %8155 = vst.msk [vmem:[%s8092 + $0xdc] sm:$0x1] %vm3021, %v6657
      %8156 = vst.msk [vmem:[%s8092 + $0xde] sm:$0x1] %vm3021, %v6659
      %8157 = vst.msk [vmem:[%s8092 + $0x100] sm:$0x1] %vm3021, %v6683
      %8158 = vst.msk [vmem:[%s8092 + $0x102] sm:$0x1] %vm3021, %v6697
      %8159 = vst.msk [vmem:[%s8092 + $0x104] sm:$0x1] %vm3021, %v6705
      %8160 = vst.msk [vmem:[%s8092 + $0x106] sm:$0x1] %vm3021, %v6707
      %8161 = vst.msk [vmem:[%s8092 + $0x108] sm:$0x1] %vm3021, %v6690
      %8162 = vst.msk [vmem:[%s8092 + $0x10a] sm:$0x1] %vm3021, %v6704
      %8163 = vst.msk [vmem:[%s8092 + $0x10c] sm:$0x1] %vm3021, %v6706
      %8164 = vst.msk [vmem:[%s8092 + $0x10e] sm:$0x1] %vm3021, %v6708
      %8165 = vst.msk [vmem:[%s8092 + $0x110] sm:$0x1] %vm3021, %v6732
      %8166 = vst.msk [vmem:[%s8092 + $0x112] sm:$0x1] %vm3021, %v6746
      %8167 = vst.msk [vmem:[%s8092 + $0x114] sm:$0x1] %vm3021, %v6754
      %8168 = vst.msk [vmem:[%s8092 + $0x116] sm:$0x1] %vm3021, %v6756
      %8169 = vst.msk [vmem:[%s8092 + $0x118] sm:$0x1] %vm3021, %v6739
      %8170 = vst.msk [vmem:[%s8092 + $0x11a] sm:$0x1] %vm3021, %v6753
      %8171 = vst.msk [vmem:[%s8092 + $0x11c] sm:$0x1] %vm3021, %v6755
      %8172 = vst.msk [vmem:[%s8092 + $0x11e] sm:$0x1] %vm3021, %v6757
      %8173 = vst.msk [vmem:[%s8092 + $0x140] sm:$0x1] %vm3021, %v6781
      %8174 = vst.msk [vmem:[%s8092 + $0x142] sm:$0x1] %vm3021, %v6795
      %8175 = vst.msk [vmem:[%s8092 + $0x144] sm:$0x1] %vm3021, %v6803
      %8176 = vst.msk [vmem:[%s8092 + $0x146] sm:$0x1] %vm3021, %v6805
      %8177 = vst.msk [vmem:[%s8092 + $0x148] sm:$0x1] %vm3021, %v6788
      %8178 = vst.msk [vmem:[%s8092 + $0x14a] sm:$0x1] %vm3021, %v6802
      %8179 = vst.msk [vmem:[%s8092 + $0x14c] sm:$0x1] %vm3021, %v6804
      %8180 = vst.msk [vmem:[%s8092 + $0x14e] sm:$0x1] %vm3021, %v6806
      %8181 = vst.msk [vmem:[%s8092 + $0x150] sm:$0x1] %vm3021, %v6830
      %8182 = vst.msk [vmem:[%s8092 + $0x152] sm:$0x1] %vm3021, %v6844
      %8183 = vst.msk [vmem:[%s8092 + $0x154] sm:$0x1] %vm3021, %v6852
      %8184 = vst.msk [vmem:[%s8092 + $0x156] sm:$0x1] %vm3021, %v6854
      %8185 = vst.msk [vmem:[%s8092 + $0x158] sm:$0x1] %vm3021, %v6837
      %8186 = vst.msk [vmem:[%s8092 + $0x15a] sm:$0x1] %vm3021, %v6851
      %8187 = vst.msk [vmem:[%s8092 + $0x15c] sm:$0x1] %vm3021, %v6853
      %8188 = vst.msk [vmem:[%s8092 + $0x15e] sm:$0x1] %vm3021, %v6855
      %8189 = vst.msk [vmem:[%s8092 + $0x180] sm:$0x1] %vm3021, %v6879
      %8190 = vst.msk [vmem:[%s8092 + $0x182] sm:$0x1] %vm3021, %v6893
      %8191 = vst.msk [vmem:[%s8092 + $0x184] sm:$0x1] %vm3021, %v6901
      %8192 = vst.msk [vmem:[%s8092 + $0x186] sm:$0x1] %vm3021, %v6903
      %8193 = vst.msk [vmem:[%s8092 + $0x188] sm:$0x1] %vm3021, %v6886
      %8194 = vst.msk [vmem:[%s8092 + $0x18a] sm:$0x1] %vm3021, %v6900
      %8195 = vst.msk [vmem:[%s8092 + $0x18c] sm:$0x1] %vm3021, %v6902
      %8196 = vst.msk [vmem:[%s8092 + $0x18e] sm:$0x1] %vm3021, %v6904
      %8197 = vst.msk [vmem:[%s8092 + $0x190] sm:$0x1] %vm3021, %v6928
      %8198 = vst.msk [vmem:[%s8092 + $0x192] sm:$0x1] %vm3021, %v6942
      %8199 = vst.msk [vmem:[%s8092 + $0x194] sm:$0x1] %vm3021, %v6950
      %8200 = vst.msk [vmem:[%s8092 + $0x196] sm:$0x1] %vm3021, %v6952
      %8201 = vst.msk [vmem:[%s8092 + $0x198] sm:$0x1] %vm3021, %v6935
      %8202 = vst.msk [vmem:[%s8092 + $0x19a] sm:$0x1] %vm3021, %v6949
      %8203 = vst.msk [vmem:[%s8092 + $0x19c] sm:$0x1] %vm3021, %v6951
      %8204 = vst.msk [vmem:[%s8092 + $0x19e] sm:$0x1] %vm3021, %v6953
      %8205 = vst.msk [vmem:[%s8092 + $0x1c0] sm:$0x1] %vm3021, %v6977
      %8206 = vst.msk [vmem:[%s8092 + $0x1c2] sm:$0x1] %vm3021, %v6991
      %8207 = vst.msk [vmem:[%s8092 + $0x1c4] sm:$0x1] %vm3021, %v6999
      %8208 = vst.msk [vmem:[%s8092 + $0x1c6] sm:$0x1] %vm3021, %v7001
      %8209 = vst.msk [vmem:[%s8092 + $0x1c8] sm:$0x1] %vm3021, %v6984
      %8210 = vst.msk [vmem:[%s8092 + $0x1ca] sm:$0x1] %vm3021, %v6998
      %8211 = vst.msk [vmem:[%s8092 + $0x1cc] sm:$0x1] %vm3021, %v7000
      %8212 = vst.msk [vmem:[%s8092 + $0x1ce] sm:$0x1] %vm3021, %v7002
      %8213 = vst.msk [vmem:[%s8092 + $0x1d0] sm:$0x1] %vm3021, %v7026
      %8214 = vst.msk [vmem:[%s8092 + $0x1d2] sm:$0x1] %vm3021, %v7040
      %8215 = vst.msk [vmem:[%s8092 + $0x1d4] sm:$0x1] %vm3021, %v7048
      %8216 = vst.msk [vmem:[%s8092 + $0x1d6] sm:$0x1] %vm3021, %v7050
      %8217 = vst.msk [vmem:[%s8092 + $0x1d8] sm:$0x1] %vm3021, %v7033
      %8218 = vst.msk [vmem:[%s8092 + $0x1da] sm:$0x1] %vm3021, %v7047
      %8219 = vst.msk [vmem:[%s8092 + $0x1dc] sm:$0x1] %vm3021, %v7049
      %8220 = vst.msk [vmem:[%s8092 + $0x1de] sm:$0x1] %vm3021, %v7051
      %8221 = vst.msk [vmem:[%s8092 + $0x200] sm:$0x1] %vm3021, %v7075
      %8222 = vst.msk [vmem:[%s8092 + $0x202] sm:$0x1] %vm3021, %v7089
      %8223 = vst.msk [vmem:[%s8092 + $0x204] sm:$0x1] %vm3021, %v7097
      %8224 = vst.msk [vmem:[%s8092 + $0x206] sm:$0x1] %vm3021, %v7099
      %8225 = vst.msk [vmem:[%s8092 + $0x208] sm:$0x1] %vm3021, %v7082
      %8226 = vst.msk [vmem:[%s8092 + $0x20a] sm:$0x1] %vm3021, %v7096
      %8227 = vst.msk [vmem:[%s8092 + $0x20c] sm:$0x1] %vm3021, %v7098
      %8228 = vst.msk [vmem:[%s8092 + $0x20e] sm:$0x1] %vm3021, %v7100
      %8229 = vst.msk [vmem:[%s8092 + $0x210] sm:$0x1] %vm3021, %v7124
      %8230 = vst.msk [vmem:[%s8092 + $0x212] sm:$0x1] %vm3021, %v7138
      %8231 = vst.msk [vmem:[%s8092 + $0x214] sm:$0x1] %vm3021, %v7146
      %8232 = vst.msk [vmem:[%s8092 + $0x216] sm:$0x1] %vm3021, %v7148
      %8233 = vst.msk [vmem:[%s8092 + $0x218] sm:$0x1] %vm3021, %v7131
      %8234 = vst.msk [vmem:[%s8092 + $0x21a] sm:$0x1] %vm3021, %v7145
      %8235 = vst.msk [vmem:[%s8092 + $0x21c] sm:$0x1] %vm3021, %v7147
      %8236 = vst.msk [vmem:[%s8092 + $0x21e] sm:$0x1] %vm3021, %v7149
      %8237 = vst.msk [vmem:[%s8092 + $0x240] sm:$0x1] %vm3021, %v7173
      %8238 = vst.msk [vmem:[%s8092 + $0x242] sm:$0x1] %vm3021, %v7187
      %8239 = vst.msk [vmem:[%s8092 + $0x244] sm:$0x1] %vm3021, %v7195
      %8240 = vst.msk [vmem:[%s8092 + $0x246] sm:$0x1] %vm3021, %v7197
      %8241 = vst.msk [vmem:[%s8092 + $0x248] sm:$0x1] %vm3021, %v7180
      %8242 = vst.msk [vmem:[%s8092 + $0x24a] sm:$0x1] %vm3021, %v7194
      %8243 = vst.msk [vmem:[%s8092 + $0x24c] sm:$0x1] %vm3021, %v7196
      %8244 = vst.msk [vmem:[%s8092 + $0x24e] sm:$0x1] %vm3021, %v7198
      %8245 = vst.msk [vmem:[%s8092 + $0x250] sm:$0x1] %vm3021, %v7222
      %8246 = vst.msk [vmem:[%s8092 + $0x252] sm:$0x1] %vm3021, %v7236
      %8247 = vst.msk [vmem:[%s8092 + $0x254] sm:$0x1] %vm3021, %v7244
      %8248 = vst.msk [vmem:[%s8092 + $0x256] sm:$0x1] %vm3021, %v7246
      %8249 = vst.msk [vmem:[%s8092 + $0x258] sm:$0x1] %vm3021, %v7229
      %8250 = vst.msk [vmem:[%s8092 + $0x25a] sm:$0x1] %vm3021, %v7243
      %8251 = vst.msk [vmem:[%s8092 + $0x25c] sm:$0x1] %vm3021, %v7245
      %8252 = vst.msk [vmem:[%s8092 + $0x25e] sm:$0x1] %vm3021, %v7247
      %8253 = vst.msk [vmem:[%s8092 + $0x280] sm:$0x1] %vm3021, %v7271
      %8254 = vst.msk [vmem:[%s8092 + $0x282] sm:$0x1] %vm3021, %v7285
      %8255 = vst.msk [vmem:[%s8092 + $0x284] sm:$0x1] %vm3021, %v7293
      %8256 = vst.msk [vmem:[%s8092 + $0x286] sm:$0x1] %vm3021, %v7295
      %8257 = vst.msk [vmem:[%s8092 + $0x288] sm:$0x1] %vm3021, %v7278
      %8258 = vst.msk [vmem:[%s8092 + $0x28a] sm:$0x1] %vm3021, %v7292
      %8259 = vst.msk [vmem:[%s8092 + $0x28c] sm:$0x1] %vm3021, %v7294
      %8260 = vst.msk [vmem:[%s8092 + $0x28e] sm:$0x1] %vm3021, %v7296
      %8261 = vst.msk [vmem:[%s8092 + $0x290] sm:$0x1] %vm3021, %v7320
      %8262 = vst.msk [vmem:[%s8092 + $0x292] sm:$0x1] %vm3021, %v7334
      %8263 = vst.msk [vmem:[%s8092 + $0x294] sm:$0x1] %vm3021, %v7342
      %8264 = vst.msk [vmem:[%s8092 + $0x296] sm:$0x1] %vm3021, %v7344
      %8265 = vst.msk [vmem:[%s8092 + $0x298] sm:$0x1] %vm3021, %v7327
      %8266 = vst.msk [vmem:[%s8092 + $0x29a] sm:$0x1] %vm3021, %v7341
      %8267 = vst.msk [vmem:[%s8092 + $0x29c] sm:$0x1] %vm3021, %v7343
      %8268 = vst.msk [vmem:[%s8092 + $0x29e] sm:$0x1] %vm3021, %v7345
      %8269 = vst.msk [vmem:[%s8092 + $0x2c0] sm:$0x1] %vm3021, %v7369
      %8270 = vst.msk [vmem:[%s8092 + $0x2c2] sm:$0x1] %vm3021, %v7383
      %8271 = vst.msk [vmem:[%s8092 + $0x2c4] sm:$0x1] %vm3021, %v7391
      %8272 = vst.msk [vmem:[%s8092 + $0x2c6] sm:$0x1] %vm3021, %v7393
      %8273 = vst.msk [vmem:[%s8092 + $0x2c8] sm:$0x1] %vm3021, %v7376
      %8274 = vst.msk [vmem:[%s8092 + $0x2ca] sm:$0x1] %vm3021, %v7390
      %8275 = vst.msk [vmem:[%s8092 + $0x2cc] sm:$0x1] %vm3021, %v7392
      %8276 = vst.msk [vmem:[%s8092 + $0x2ce] sm:$0x1] %vm3021, %v7394
      %8277 = vst.msk [vmem:[%s8092 + $0x2d0] sm:$0x1] %vm3021, %v7418
      %8278 = vst.msk [vmem:[%s8092 + $0x2d2] sm:$0x1] %vm3021, %v7432
      %8279 = vst.msk [vmem:[%s8092 + $0x2d4] sm:$0x1] %vm3021, %v7440
      %8280 = vst.msk [vmem:[%s8092 + $0x2d6] sm:$0x1] %vm3021, %v7442
      %8281 = vst.msk [vmem:[%s8092 + $0x2d8] sm:$0x1] %vm3021, %v7425
      %8282 = vst.msk [vmem:[%s8092 + $0x2da] sm:$0x1] %vm3021, %v7439
      %8283 = vst.msk [vmem:[%s8092 + $0x2dc] sm:$0x1] %vm3021, %v7441
      %8284 = vst.msk [vmem:[%s8092 + $0x2de] sm:$0x1] %vm3021, %v7443
      %8285 = vst.msk [vmem:[%s8092 + $0x300] sm:$0x1] %vm3021, %v7467
      %8286 = vst.msk [vmem:[%s8092 + $0x302] sm:$0x1] %vm3021, %v7481
      %8287 = vst.msk [vmem:[%s8092 + $0x304] sm:$0x1] %vm3021, %v7489
      %8288 = vst.msk [vmem:[%s8092 + $0x306] sm:$0x1] %vm3021, %v7491
      %8289 = vst.msk [vmem:[%s8092 + $0x308] sm:$0x1] %vm3021, %v7474
      %8290 = vst.msk [vmem:[%s8092 + $0x30a] sm:$0x1] %vm3021, %v7488
      %8291 = vst.msk [vmem:[%s8092 + $0x30c] sm:$0x1] %vm3021, %v7490
      %8292 = vst.msk [vmem:[%s8092 + $0x30e] sm:$0x1] %vm3021, %v7492
      %8293 = vst.msk [vmem:[%s8092 + $0x310] sm:$0x1] %vm3021, %v7516
      %8294 = vst.msk [vmem:[%s8092 + $0x312] sm:$0x1] %vm3021, %v7530
      %8295 = vst.msk [vmem:[%s8092 + $0x314] sm:$0x1] %vm3021, %v7538
      %8296 = vst.msk [vmem:[%s8092 + $0x316] sm:$0x1] %vm3021, %v7540
      %8297 = vst.msk [vmem:[%s8092 + $0x318] sm:$0x1] %vm3021, %v7523
      %8298 = vst.msk [vmem:[%s8092 + $0x31a] sm:$0x1] %vm3021, %v7537
      %8299 = vst.msk [vmem:[%s8092 + $0x31c] sm:$0x1] %vm3021, %v7539
      %8300 = vst.msk [vmem:[%s8092 + $0x31e] sm:$0x1] %vm3021, %v7541
      %8301 = vst.msk [vmem:[%s8092 + $0x340] sm:$0x1] %vm3021, %v7565
      %8302 = vst.msk [vmem:[%s8092 + $0x342] sm:$0x1] %vm3021, %v7579
      %8303 = vst.msk [vmem:[%s8092 + $0x344] sm:$0x1] %vm3021, %v7587
      %8304 = vst.msk [vmem:[%s8092 + $0x346] sm:$0x1] %vm3021, %v7589
      %8305 = vst.msk [vmem:[%s8092 + $0x348] sm:$0x1] %vm3021, %v7572
      %8306 = vst.msk [vmem:[%s8092 + $0x34a] sm:$0x1] %vm3021, %v7586
      %8307 = vst.msk [vmem:[%s8092 + $0x34c] sm:$0x1] %vm3021, %v7588
      %8308 = vst.msk [vmem:[%s8092 + $0x34e] sm:$0x1] %vm3021, %v7590
      %8309 = vst.msk [vmem:[%s8092 + $0x350] sm:$0x1] %vm3021, %v7614
      %8310 = vst.msk [vmem:[%s8092 + $0x352] sm:$0x1] %vm3021, %v7628
      %8311 = vst.msk [vmem:[%s8092 + $0x354] sm:$0x1] %vm3021, %v7636
      %8312 = vst.msk [vmem:[%s8092 + $0x356] sm:$0x1] %vm3021, %v7638
      %8313 = vst.msk [vmem:[%s8092 + $0x358] sm:$0x1] %vm3021, %v7621
      %8314 = vst.msk [vmem:[%s8092 + $0x35a] sm:$0x1] %vm3021, %v7635
      %8315 = vst.msk [vmem:[%s8092 + $0x35c] sm:$0x1] %vm3021, %v7637
      %8316 = vst.msk [vmem:[%s8092 + $0x35e] sm:$0x1] %vm3021, %v7639
      %8317 = vst.msk [vmem:[%s8092 + $0x380] sm:$0x1] %vm3021, %v7663
      %8318 = vst.msk [vmem:[%s8092 + $0x382] sm:$0x1] %vm3021, %v7677
      %8319 = vst.msk [vmem:[%s8092 + $0x384] sm:$0x1] %vm3021, %v7685
      %8320 = vst.msk [vmem:[%s8092 + $0x386] sm:$0x1] %vm3021, %v7687
      %8321 = vst.msk [vmem:[%s8092 + $0x388] sm:$0x1] %vm3021, %v7670
      %8322 = vst.msk [vmem:[%s8092 + $0x38a] sm:$0x1] %vm3021, %v7684
      %8323 = vst.msk [vmem:[%s8092 + $0x38c] sm:$0x1] %vm3021, %v7686
      %8324 = vst.msk [vmem:[%s8092 + $0x38e] sm:$0x1] %vm3021, %v7688
      %8325 = vst.msk [vmem:[%s8092 + $0x390] sm:$0x1] %vm3021, %v7712
      %8326 = vst.msk [vmem:[%s8092 + $0x392] sm:$0x1] %vm3021, %v7726
      %8327 = vst.msk [vmem:[%s8092 + $0x394] sm:$0x1] %vm3021, %v7734
      %8328 = vst.msk [vmem:[%s8092 + $0x396] sm:$0x1] %vm3021, %v7736
      %8329 = vst.msk [vmem:[%s8092 + $0x398] sm:$0x1] %vm3021, %v7719
      %8330 = vst.msk [vmem:[%s8092 + $0x39a] sm:$0x1] %vm3021, %v7733
      %8331 = vst.msk [vmem:[%s8092 + $0x39c] sm:$0x1] %vm3021, %v7735
      %8332 = vst.msk [vmem:[%s8092 + $0x39e] sm:$0x1] %vm3021, %v7737
      %8333 = vst.msk [vmem:[%s8092 + $0x3c0] sm:$0x1] %vm3021, %v7761
      %8334 = vst.msk [vmem:[%s8092 + $0x3c2] sm:$0x1] %vm3021, %v7775
      %8335 = vst.msk [vmem:[%s8092 + $0x3c4] sm:$0x1] %vm3021, %v7783
      %8336 = vst.msk [vmem:[%s8092 + $0x3c6] sm:$0x1] %vm3021, %v7785
      %8337 = vst.msk [vmem:[%s8092 + $0x3c8] sm:$0x1] %vm3021, %v7768
      %8338 = vst.msk [vmem:[%s8092 + $0x3ca] sm:$0x1] %vm3021, %v7782
      %8339 = vst.msk [vmem:[%s8092 + $0x3cc] sm:$0x1] %vm3021, %v7784
      %8340 = vst.msk [vmem:[%s8092 + $0x3ce] sm:$0x1] %vm3021, %v7786
      %8341 = vst.msk [vmem:[%s8092 + $0x3d0] sm:$0x1] %vm3021, %v7810
      %8342 = vst.msk [vmem:[%s8092 + $0x3d2] sm:$0x1] %vm3021, %v7824
      %8343 = vst.msk [vmem:[%s8092 + $0x3d4] sm:$0x1] %vm3021, %v7832
      %8344 = vst.msk [vmem:[%s8092 + $0x3d6] sm:$0x1] %vm3021, %v7834
      %8345 = vst.msk [vmem:[%s8092 + $0x3d8] sm:$0x1] %vm3021, %v7817
      %8346 = vst.msk [vmem:[%s8092 + $0x3da] sm:$0x1] %vm3021, %v7831
      %8347 = vst.msk [vmem:[%s8092 + $0x3dc] sm:$0x1] %vm3021, %v7833
      %8348 = vst.msk [vmem:[%s8092 + $0x3de] sm:$0x1] %vm3021, %v7835
      %8349 = vrot.lane.b32.xlu0 %v638, 4
      %v8350 = vpop.permute.xlu0 %8349
      %8352 = vrot.lane.b32.xlu0 %v309, 8
      %v8353 = vpop.permute.xlu0 %8352
      %8355 = vrot.lane.b32.xlu0 %v5988, 12
      %v8356 = vpop.permute.xlu0 %8355
      %v8358 = vsel %vm736, %v306, %v8350
      %v8359 = vsel %vm769, %v8358, %v8353
      %v8360 = vsel %vm802, %v8359, %v8356
      %v8362 = vrot.slane %v6000, 1
      %v8363 = vrot.slane %v6001, 1
      %v8364 = vsel %vm359, %v8362, %v8363
      %v8365 = vrot.slane %v8360, 1
      %v8366 = vsel %vm359, %v8363, %v8365
      %s8367 = scalar_lea.vmem %s238, 48
      %v8368 = vld [vmem:[%s8367] sm:$0xff]
      %v8369 = vld [vmem:[%s8367 + $0x8] sm:$0xff]
      %v8370 = vsel %vm843, %v8364, 0
      %v8372 = vsel %vm843, %v8366, 0
      %8374 = vmatprep.subr.mxu0 0.0
      %8375 = vmatpush1.msra.mxu0 0.0
      %8376 = vmatprep.subr.mxu0 0.0
      %8377 = vmatpush1.msra.mxu0 0.0
      %8378 = vmatprep.subr.mxu0 0.0
      %8379 = vmatpush1.msra.mxu0 0.0
      %8380 = vmatprep.subr.mxu0 0.0
      %8381 = vmatpush1.msra.mxu0 0.0
      %8382 = vmatprep.subr.mxu0 0.0
      %8383 = vmatpush1.msra.mxu0 0.0
      %8384 = vmatprep.subr.mxu0 0.0
      %8385 = vmatpush1.msra.mxu0 0.0
      %8386 = vmatprep.subr.mxu0 0.0
      %8387 = vmatpush1.msra.mxu0 0.0
      %8388 = vmatprep.subr.mxu0 0.0
      %8389 = vmatpush1.msra.mxu0 0.0
      %8390 = vmatprep.subr.mxu0 0.0
      %8391 = vmatpush1.msra.mxu0 0.0
      %8392 = vmatprep.subr.mxu0 0.0
      %8393 = vmatpush1.msra.mxu0 0.0
      %8394 = vmatprep.subr.mxu0 0.0
      %8395 = vmatpush1.msra.mxu0 0.0
      %8396 = vmatprep.subr.mxu0 0.0
      %8397 = vmatpush1.msra.mxu0 0.0
      %8398 = vmatprep.subr.mxu0 0.0
      %8399 = vmatpush1.msra.mxu0 0.0
      %8400 = vmatprep.subr.mxu0 0.0
      %8401 = vmatpush1.msra.mxu0 0.0
      %8402 = vmatprep.subr.mxu0 0.0
      %8403 = vmatpush1.msra.mxu0 %v8369
      %8404 = vmatprep.subr.mxu0 0.0
      %8405 = vmatpush1.msra.mxu0 %v8368
      %8406 = vmatprep.subr.mxu0 0.0
      %8407 = vmatpush2.msra.mxu0 0.0
      %8408 = vmatprep.subr.mxu0 0.0
      %8409 = vmatpush2.msra.mxu0 0.0
      %8410 = vmatprep.subr.mxu0 0.0
      %8411 = vmatpush2.msra.mxu0 0.0
      %8412 = vmatprep.subr.mxu0 0.0
      %8413 = vmatpush2.msra.mxu0 0.0
      %8414 = vmatprep.subr.mxu0 0.0
      %8415 = vmatpush2.msra.mxu0 0.0
      %8416 = vmatprep.subr.mxu0 0.0
      %8417 = vmatpush2.msra.mxu0 0.0
      %8418 = vmatprep.subr.mxu0 0.0
      %8419 = vmatpush2.msra.mxu0 0.0
      %8420 = vmatprep.subr.mxu0 0.0
      %8421 = vmatpush2.msra.mxu0 0.0
      %8422 = vmatprep.subr.mxu0 0.0
      %8423 = vmatpush2.msra.mxu0 0.0
      %8424 = vmatprep.subr.mxu0 0.0
      %8425 = vmatpush2.msra.mxu0 0.0
      %8426 = vmatprep.subr.mxu0 0.0
      %8427 = vmatpush2.msra.mxu0 0.0
      %8428 = vmatprep.subr.mxu0 0.0
      %8429 = vmatpush2.msra.mxu0 0.0
      %8430 = vmatprep.subr.mxu0 0.0
      %8431 = vmatpush2.msra.mxu0 0.0
      %8432 = vmatprep.subr.mxu0 0.0
      %8433 = vmatpush2.msra.mxu0 0.0
      %8434 = vmatprep.subr.mxu0 0.0
      %8435 = vmatpush2.msra.mxu0 0.0
      %8436 = vmatprep.subr.mxu0 0.0
      %8437 = vmatpush2.msra.mxu0 0.0
      %8438 = vmatprep.mubr.f32.mxu0 0.0
      %8439 = vmatmul.mubr.f32.gmra.mxu0 %v3573
      %v8440 = vpop.f32.mrf.mxu0
      %v8441 = vadd.f32 %v841, %v8440
      %v8442 = vpop.f32.mrf.mxu0
      %8443 = vmatprep.mubr.f32.mxu0 0.0
      %8444 = vmatmul.mubr.f32.gmra.mxu0 %v3575
      %v8445 = vpop.f32.mrf.mxu0
      %v8446 = vadd.f32 %v841, %v8445
      %v8447 = vpop.f32.mrf.mxu0
      %8448 = vmatprep.mubr.f32.mxu0 0.0
      %8449 = vmatmul.mubr.f32.gmra.mxu0 %v3577
      %v8450 = vpop.f32.mrf.mxu0
      %v8451 = vadd.f32 %v841, %v8450
      %v8452 = vpop.f32.mrf.mxu0
      %8453 = vmatprep.mubr.f32.mxu0 0.0
      %8454 = vmatmul.mubr.f32.gmra.mxu0 %v3579
      %v8455 = vpop.f32.mrf.mxu0
      %v8456 = vadd.f32 %v841, %v8455
      %v8457 = vpop.f32.mrf.mxu0
      %8458 = vmatprep.mubr.f32.mxu0 0.0
      %8459 = vmatmul.mubr.f32.gmra.mxu0 %v3581
      %v8460 = vpop.f32.mrf.mxu0
      %v8461 = vadd.f32 %v841, %v8460
      %v8462 = vpop.f32.mrf.mxu0
      %8463 = vmatprep.mubr.f32.mxu0 0.0
      %8464 = vmatmul.mubr.f32.gmra.mxu0 %v3583
      %v8465 = vpop.f32.mrf.mxu0
      %v8466 = vadd.f32 %v841, %v8465
      %v8467 = vpop.f32.mrf.mxu0
      %8468 = vmatprep.mubr.f32.mxu0 0.0
      %8469 = vmatmul.mubr.f32.gmra.mxu0 %v3585
      %v8470 = vpop.f32.mrf.mxu0
      %v8471 = vadd.f32 %v841, %v8470
      %v8472 = vpop.f32.mrf.mxu0
      %8473 = vmatprep.mubr.f32.mxu0 0.0
      %8474 = vmatmul.mubr.f32.gmra.mxu0 %v3587
      %v8475 = vpop.f32.mrf.mxu0
      %v8476 = vadd.f32 %v841, %v8475
      %v8477 = vpop.f32.mrf.mxu0
      %8478 = vmatprep.mubr.f32.mxu0 0.0
      %8479 = vmatmul.mubr.f32.gmra.mxu0 %v3589
      %v8480 = vpop.f32.mrf.mxu0
      %v8481 = vadd.f32 %v841, %v8480
      %v8482 = vpop.f32.mrf.mxu0
      %8483 = vmatprep.mubr.f32.mxu0 0.0
      %8484 = vmatmul.mubr.f32.gmra.mxu0 %v3591
      %v8485 = vpop.f32.mrf.mxu0
      %v8486 = vadd.f32 %v841, %v8485
      %v8487 = vpop.f32.mrf.mxu0
      %8488 = vmatprep.mubr.f32.mxu0 0.0
      %8489 = vmatmul.mubr.f32.gmra.mxu0 %v3593
      %v8490 = vpop.f32.mrf.mxu0
      %v8491 = vadd.f32 %v841, %v8490
      %v8492 = vpop.f32.mrf.mxu0
      %8493 = vmatprep.mubr.f32.mxu0 0.0
      %8494 = vmatmul.mubr.f32.gmra.mxu0 %v3595
      %v8495 = vpop.f32.mrf.mxu0
      %v8496 = vadd.f32 %v841, %v8495
      %v8497 = vpop.f32.mrf.mxu0
      %8498 = vmatprep.mubr.f32.mxu0 0.0
      %8499 = vmatmul.mubr.f32.gmra.mxu0 %v3597
      %v8500 = vpop.f32.mrf.mxu0
      %v8501 = vadd.f32 %v841, %v8500
      %v8502 = vpop.f32.mrf.mxu0
      %8503 = vmatprep.mubr.f32.mxu0 0.0
      %8504 = vmatmul.mubr.f32.gmra.mxu0 %v3599
      %v8505 = vpop.f32.mrf.mxu0
      %v8506 = vadd.f32 %v841, %v8505
      %v8507 = vpop.f32.mrf.mxu0
      %8508 = vmatprep.mubr.f32.mxu0 0.0
      %8509 = vmatmul.mubr.f32.gmra.mxu0 %v3601
      %v8510 = vpop.f32.mrf.mxu0
      %v8511 = vadd.f32 %v841, %v8510
      %v8512 = vpop.f32.mrf.mxu0
      %8513 = vmatprep.mubr.f32.mxu0 0.0
      %8514 = vmatmul.mubr.f32.gmra.mxu0 %v3603
      %v8515 = vpop.f32.mrf.mxu0
      %v8516 = vadd.f32 %v841, %v8515
      %v8517 = vpop.f32.mrf.mxu0
      %8518 = vmatprep.mubr.f32.mxu0 0.0
      %8519 = vmatmul.mubr.f32.gmra.mxu0 %v3605
      %v8520 = vpop.f32.mrf.mxu0
      %v8521 = vadd.f32 %v841, %v8520
      %v8522 = vpop.f32.mrf.mxu0
      %8523 = vmatprep.mubr.f32.mxu0 0.0
      %8524 = vmatmul.mubr.f32.gmra.mxu0 %v3607
      %v8525 = vpop.f32.mrf.mxu0
      %v8526 = vadd.f32 %v841, %v8525
      %v8527 = vpop.f32.mrf.mxu0
      %8528 = vmatprep.mubr.f32.mxu0 0.0
      %8529 = vmatmul.mubr.f32.gmra.mxu0 %v3609
      %v8530 = vpop.f32.mrf.mxu0
      %v8531 = vadd.f32 %v841, %v8530
      %v8532 = vpop.f32.mrf.mxu0
      %8533 = vmatprep.mubr.f32.mxu0 0.0
      %8534 = vmatmul.mubr.f32.gmra.mxu0 %v3611
      %v8535 = vpop.f32.mrf.mxu0
      %v8536 = vadd.f32 %v841, %v8535
      %v8537 = vpop.f32.mrf.mxu0
      %8538 = vmatprep.mubr.f32.mxu0 0.0
      %8539 = vmatmul.mubr.f32.gmra.mxu0 %v3613
      %v8540 = vpop.f32.mrf.mxu0
      %v8541 = vadd.f32 %v841, %v8540
      %v8542 = vpop.f32.mrf.mxu0
      %8543 = vmatprep.mubr.f32.mxu0 0.0
      %8544 = vmatmul.mubr.f32.gmra.mxu0 %v3615
      %v8545 = vpop.f32.mrf.mxu0
      %v8546 = vadd.f32 %v841, %v8545
      %v8547 = vpop.f32.mrf.mxu0
      %8548 = vmatprep.mubr.f32.mxu0 0.0
      %8549 = vmatmul.mubr.f32.gmra.mxu0 %v3617
      %v8550 = vpop.f32.mrf.mxu0
      %v8551 = vadd.f32 %v841, %v8550
      %v8552 = vpop.f32.mrf.mxu0
      %8553 = vmatprep.mubr.f32.mxu0 0.0
      %8554 = vmatmul.mubr.f32.gmra.mxu0 %v3619
      %v8555 = vpop.f32.mrf.mxu0
      %v8556 = vadd.f32 %v841, %v8555
      %v8557 = vpop.f32.mrf.mxu0
      %8558 = vmatprep.mubr.f32.mxu0 0.0
      %8559 = vmatmul.mubr.f32.gmra.mxu0 %v3621
      %v8560 = vpop.f32.mrf.mxu0
      %v8561 = vadd.f32 %v841, %v8560
      %v8562 = vpop.f32.mrf.mxu0
      %8563 = vmatprep.mubr.f32.mxu0 0.0
      %8564 = vmatmul.mubr.f32.gmra.mxu0 %v3623
      %v8565 = vpop.f32.mrf.mxu0
      %v8566 = vadd.f32 %v841, %v8565
      %v8567 = vpop.f32.mrf.mxu0
      %8568 = vmatprep.mubr.f32.mxu0 0.0
      %8569 = vmatmul.mubr.f32.gmra.mxu0 %v3625
      %v8570 = vpop.f32.mrf.mxu0
      %v8571 = vadd.f32 %v841, %v8570
      %v8572 = vpop.f32.mrf.mxu0
      %8573 = vmatprep.mubr.f32.mxu0 0.0
      %8574 = vmatmul.mubr.f32.gmra.mxu0 %v3627
      %v8575 = vpop.f32.mrf.mxu0
      %v8576 = vadd.f32 %v841, %v8575
      %v8577 = vpop.f32.mrf.mxu0
      %8578 = vmatprep.mubr.f32.mxu0 0.0
      %8579 = vmatmul.mubr.f32.gmra.mxu0 %v3629
      %v8580 = vpop.f32.mrf.mxu0
      %v8581 = vadd.f32 %v841, %v8580
      %v8582 = vpop.f32.mrf.mxu0
      %8583 = vmatprep.mubr.f32.mxu0 0.0
      %8584 = vmatmul.mubr.f32.gmra.mxu0 %v3631
      %v8585 = vpop.f32.mrf.mxu0
      %v8586 = vadd.f32 %v841, %v8585
      %v8587 = vpop.f32.mrf.mxu0
      %8588 = vmatprep.mubr.f32.mxu0 0.0
      %8589 = vmatmul.mubr.f32.gmra.mxu0 %v8370
      %v8590 = vpop.f32.mrf.mxu0
      %v8591 = vadd.f32 %v841, %v8590
      %v8592 = vpop.f32.mrf.mxu0
      %8593 = vmatprep.mubr.f32.mxu0 0.0
      %8594 = vmatmul.mubr.f32.gmra.mxu0 %v8372
      %v8595 = vpop.f32.mrf.mxu0
      %v8596 = vadd.f32 %v841, %v8595
      %v8597 = vpop.f32.mrf.mxu0
      %8598 = vdwg.mxu0
      %v8631 = vcombine.high %v8441, %v8441
      %v8633 = vunpack.c.l.s4 1966171168
      %v8634 = vunpack.c.0.s8 %v8633
      %v8635 = vlaneseq
      %v8636 = vshrl.u32 %v8635, 7
      %v8637 = vsub.s32 %v8634, %v8636
      %v8638 = vrot.slane %v8441, %v8637
      %v8640 = vunpack.c.l.s4 1966171168
      %v8641 = vunpack.c.0.s8 %v8640
      %v8642 = vlaneseq
      %v8643 = vshrl.u32 %v8642, 7
      %v8644 = vsub.s32 %v8641, %v8643
      %v8645 = vrot.slane %v8631, %v8644
      %v8646 = vcombine.high %v8638, %v8638
      %v8647 = vcombine.high %v8645, %v8645
      %v8649 = vunpack.c.l.s4 1966171168
      %v8650 = vunpack.c.0.s8 %v8649
      %v8651 = vlaneseq
      %v8652 = vshrl.u32 %v8651, 7
      %v8653 = vsub.s32 %v8650, %v8652
      %v8654 = vrot.slane %v8638, %v8653
      %v8656 = vunpack.c.l.s4 1966171168
      %v8657 = vunpack.c.0.s8 %v8656
      %v8658 = vlaneseq
      %v8659 = vshrl.u32 %v8658, 7
      %v8660 = vsub.s32 %v8657, %v8659
      %v8661 = vrot.slane %v8645, %v8660
      %v8663 = vunpack.c.l.s4 1966171168
      %v8664 = vunpack.c.0.s8 %v8663
      %v8665 = vlaneseq
      %v8666 = vshrl.u32 %v8665, 7
      %v8667 = vsub.s32 %v8664, %v8666
      %v8668 = vrot.slane %v8646, %v8667
      %v8670 = vunpack.c.l.s4 1966171168
      %v8671 = vunpack.c.0.s8 %v8670
      %v8672 = vlaneseq
      %v8673 = vshrl.u32 %v8672, 7
      %v8674 = vsub.s32 %v8671, %v8673
      %v8675 = vrot.slane %v8647, %v8674
      %v8676 = vcombine.high %v8654, %v8654
      %v8677 = vcombine.high %v8661, %v8661
      %v8678 = vcombine.high %v8668, %v8668
      %v8679 = vcombine.high %v8675, %v8675
      %v8680 = vcombine.high %v8446, %v8446
      %v8682 = vunpack.c.l.s4 1966171168
      %v8683 = vunpack.c.0.s8 %v8682
      %v8684 = vlaneseq
      %v8685 = vshrl.u32 %v8684, 7
      %v8686 = vsub.s32 %v8683, %v8685
      %v8687 = vrot.slane %v8446, %v8686
      %v8689 = vunpack.c.l.s4 1966171168
      %v8690 = vunpack.c.0.s8 %v8689
      %v8691 = vlaneseq
      %v8692 = vshrl.u32 %v8691, 7
      %v8693 = vsub.s32 %v8690, %v8692
      %v8694 = vrot.slane %v8680, %v8693
      %v8695 = vcombine.high %v8687, %v8687
      %v8696 = vcombine.high %v8694, %v8694
      %v8698 = vunpack.c.l.s4 1966171168
      %v8699 = vunpack.c.0.s8 %v8698
      %v8700 = vlaneseq
      %v8701 = vshrl.u32 %v8700, 7
      %v8702 = vsub.s32 %v8699, %v8701
      %v8703 = vrot.slane %v8687, %v8702
      %v8705 = vunpack.c.l.s4 1966171168
      %v8706 = vunpack.c.0.s8 %v8705
      %v8707 = vlaneseq
      %v8708 = vshrl.u32 %v8707, 7
      %v8709 = vsub.s32 %v8706, %v8708
      %v8710 = vrot.slane %v8694, %v8709
      %v8712 = vunpack.c.l.s4 1966171168
      %v8713 = vunpack.c.0.s8 %v8712
      %v8714 = vlaneseq
      %v8715 = vshrl.u32 %v8714, 7
      %v8716 = vsub.s32 %v8713, %v8715
      %v8717 = vrot.slane %v8695, %v8716
      %v8719 = vunpack.c.l.s4 1966171168
      %v8720 = vunpack.c.0.s8 %v8719
      %v8721 = vlaneseq
      %v8722 = vshrl.u32 %v8721, 7
      %v8723 = vsub.s32 %v8720, %v8722
      %v8724 = vrot.slane %v8696, %v8723
      %v8725 = vcombine.high %v8703, %v8703
      %v8726 = vcombine.high %v8710, %v8710
      %v8727 = vcombine.high %v8717, %v8717
      %v8728 = vcombine.high %v8724, %v8724
      %v8729 = vcombine.high %v8451, %v8451
      %v8731 = vunpack.c.l.s4 1966171168
      %v8732 = vunpack.c.0.s8 %v8731
      %v8733 = vlaneseq
      %v8734 = vshrl.u32 %v8733, 7
      %v8735 = vsub.s32 %v8732, %v8734
      %v8736 = vrot.slane %v8451, %v8735
      %v8738 = vunpack.c.l.s4 1966171168
      %v8739 = vunpack.c.0.s8 %v8738
      %v8740 = vlaneseq
      %v8741 = vshrl.u32 %v8740, 7
      %v8742 = vsub.s32 %v8739, %v8741
      %v8743 = vrot.slane %v8729, %v8742
      %v8744 = vcombine.high %v8736, %v8736
      %v8745 = vcombine.high %v8743, %v8743
      %v8747 = vunpack.c.l.s4 1966171168
      %v8748 = vunpack.c.0.s8 %v8747
      %v8749 = vlaneseq
      %v8750 = vshrl.u32 %v8749, 7
      %v8751 = vsub.s32 %v8748, %v8750
      %v8752 = vrot.slane %v8736, %v8751
      %v8754 = vunpack.c.l.s4 1966171168
      %v8755 = vunpack.c.0.s8 %v8754
      %v8756 = vlaneseq
      %v8757 = vshrl.u32 %v8756, 7
      %v8758 = vsub.s32 %v8755, %v8757
      %v8759 = vrot.slane %v8743, %v8758
      %v8761 = vunpack.c.l.s4 1966171168
      %v8762 = vunpack.c.0.s8 %v8761
      %v8763 = vlaneseq
      %v8764 = vshrl.u32 %v8763, 7
      %v8765 = vsub.s32 %v8762, %v8764
      %v8766 = vrot.slane %v8744, %v8765
      %v8768 = vunpack.c.l.s4 1966171168
      %v8769 = vunpack.c.0.s8 %v8768
      %v8770 = vlaneseq
      %v8771 = vshrl.u32 %v8770, 7
      %v8772 = vsub.s32 %v8769, %v8771
      %v8773 = vrot.slane %v8745, %v8772
      %v8774 = vcombine.high %v8752, %v8752
      %v8775 = vcombine.high %v8759, %v8759
      %v8776 = vcombine.high %v8766, %v8766
      %v8777 = vcombine.high %v8773, %v8773
      %v8778 = vcombine.high %v8456, %v8456
      %v8780 = vunpack.c.l.s4 1966171168
      %v8781 = vunpack.c.0.s8 %v8780
      %v8782 = vlaneseq
      %v8783 = vshrl.u32 %v8782, 7
      %v8784 = vsub.s32 %v8781, %v8783
      %v8785 = vrot.slane %v8456, %v8784
      %v8787 = vunpack.c.l.s4 1966171168
      %v8788 = vunpack.c.0.s8 %v8787
      %v8789 = vlaneseq
      %v8790 = vshrl.u32 %v8789, 7
      %v8791 = vsub.s32 %v8788, %v8790
      %v8792 = vrot.slane %v8778, %v8791
      %v8793 = vcombine.high %v8785, %v8785
      %v8794 = vcombine.high %v8792, %v8792
      %v8796 = vunpack.c.l.s4 1966171168
      %v8797 = vunpack.c.0.s8 %v8796
      %v8798 = vlaneseq
      %v8799 = vshrl.u32 %v8798, 7
      %v8800 = vsub.s32 %v8797, %v8799
      %v8801 = vrot.slane %v8785, %v8800
      %v8803 = vunpack.c.l.s4 1966171168
      %v8804 = vunpack.c.0.s8 %v8803
      %v8805 = vlaneseq
      %v8806 = vshrl.u32 %v8805, 7
      %v8807 = vsub.s32 %v8804, %v8806
      %v8808 = vrot.slane %v8792, %v8807
      %v8810 = vunpack.c.l.s4 1966171168
      %v8811 = vunpack.c.0.s8 %v8810
      %v8812 = vlaneseq
      %v8813 = vshrl.u32 %v8812, 7
      %v8814 = vsub.s32 %v8811, %v8813
      %v8815 = vrot.slane %v8793, %v8814
      %v8817 = vunpack.c.l.s4 1966171168
      %v8818 = vunpack.c.0.s8 %v8817
      %v8819 = vlaneseq
      %v8820 = vshrl.u32 %v8819, 7
      %v8821 = vsub.s32 %v8818, %v8820
      %v8822 = vrot.slane %v8794, %v8821
      %v8823 = vcombine.high %v8801, %v8801
      %v8824 = vcombine.high %v8808, %v8808
      %v8825 = vcombine.high %v8815, %v8815
      %v8826 = vcombine.high %v8822, %v8822
      %v8827 = vcombine.high %v8461, %v8461
      %v8829 = vunpack.c.l.s4 1966171168
      %v8830 = vunpack.c.0.s8 %v8829
      %v8831 = vlaneseq
      %v8832 = vshrl.u32 %v8831, 7
      %v8833 = vsub.s32 %v8830, %v8832
      %v8834 = vrot.slane %v8461, %v8833
      %v8836 = vunpack.c.l.s4 1966171168
      %v8837 = vunpack.c.0.s8 %v8836
      %v8838 = vlaneseq
      %v8839 = vshrl.u32 %v8838, 7
      %v8840 = vsub.s32 %v8837, %v8839
      %v8841 = vrot.slane %v8827, %v8840
      %v8842 = vcombine.high %v8834, %v8834
      %v8843 = vcombine.high %v8841, %v8841
      %v8845 = vunpack.c.l.s4 1966171168
      %v8846 = vunpack.c.0.s8 %v8845
      %v8847 = vlaneseq
      %v8848 = vshrl.u32 %v8847, 7
      %v8849 = vsub.s32 %v8846, %v8848
      %v8850 = vrot.slane %v8834, %v8849
      %v8852 = vunpack.c.l.s4 1966171168
      %v8853 = vunpack.c.0.s8 %v8852
      %v8854 = vlaneseq
      %v8855 = vshrl.u32 %v8854, 7
      %v8856 = vsub.s32 %v8853, %v8855
      %v8857 = vrot.slane %v8841, %v8856
      %v8859 = vunpack.c.l.s4 1966171168
      %v8860 = vunpack.c.0.s8 %v8859
      %v8861 = vlaneseq
      %v8862 = vshrl.u32 %v8861, 7
      %v8863 = vsub.s32 %v8860, %v8862
      %v8864 = vrot.slane %v8842, %v8863
      %v8866 = vunpack.c.l.s4 1966171168
      %v8867 = vunpack.c.0.s8 %v8866
      %v8868 = vlaneseq
      %v8869 = vshrl.u32 %v8868, 7
      %v8870 = vsub.s32 %v8867, %v8869
      %v8871 = vrot.slane %v8843, %v8870
      %v8872 = vcombine.high %v8850, %v8850
      %v8873 = vcombine.high %v8857, %v8857
      %v8874 = vcombine.high %v8864, %v8864
      %v8875 = vcombine.high %v8871, %v8871
      %v8876 = vcombine.high %v8466, %v8466
      %v8878 = vunpack.c.l.s4 1966171168
      %v8879 = vunpack.c.0.s8 %v8878
      %v8880 = vlaneseq
      %v8881 = vshrl.u32 %v8880, 7
      %v8882 = vsub.s32 %v8879, %v8881
      %v8883 = vrot.slane %v8466, %v8882
      %v8885 = vunpack.c.l.s4 1966171168
      %v8886 = vunpack.c.0.s8 %v8885
      %v8887 = vlaneseq
      %v8888 = vshrl.u32 %v8887, 7
      %v8889 = vsub.s32 %v8886, %v8888
      %v8890 = vrot.slane %v8876, %v8889
      %v8891 = vcombine.high %v8883, %v8883
      %v8892 = vcombine.high %v8890, %v8890
      %v8894 = vunpack.c.l.s4 1966171168
      %v8895 = vunpack.c.0.s8 %v8894
      %v8896 = vlaneseq
      %v8897 = vshrl.u32 %v8896, 7
      %v8898 = vsub.s32 %v8895, %v8897
      %v8899 = vrot.slane %v8883, %v8898
      %v8901 = vunpack.c.l.s4 1966171168
      %v8902 = vunpack.c.0.s8 %v8901
      %v8903 = vlaneseq
      %v8904 = vshrl.u32 %v8903, 7
      %v8905 = vsub.s32 %v8902, %v8904
      %v8906 = vrot.slane %v8890, %v8905
      %v8908 = vunpack.c.l.s4 1966171168
      %v8909 = vunpack.c.0.s8 %v8908
      %v8910 = vlaneseq
      %v8911 = vshrl.u32 %v8910, 7
      %v8912 = vsub.s32 %v8909, %v8911
      %v8913 = vrot.slane %v8891, %v8912
      %v8915 = vunpack.c.l.s4 1966171168
      %v8916 = vunpack.c.0.s8 %v8915
      %v8917 = vlaneseq
      %v8918 = vshrl.u32 %v8917, 7
      %v8919 = vsub.s32 %v8916, %v8918
      %v8920 = vrot.slane %v8892, %v8919
      %v8921 = vcombine.high %v8899, %v8899
      %v8922 = vcombine.high %v8906, %v8906
      %v8923 = vcombine.high %v8913, %v8913
      %v8924 = vcombine.high %v8920, %v8920
      %v8925 = vcombine.high %v8471, %v8471
      %v8927 = vunpack.c.l.s4 1966171168
      %v8928 = vunpack.c.0.s8 %v8927
      %v8929 = vlaneseq
      %v8930 = vshrl.u32 %v8929, 7
      %v8931 = vsub.s32 %v8928, %v8930
      %v8932 = vrot.slane %v8471, %v8931
      %v8934 = vunpack.c.l.s4 1966171168
      %v8935 = vunpack.c.0.s8 %v8934
      %v8936 = vlaneseq
      %v8937 = vshrl.u32 %v8936, 7
      %v8938 = vsub.s32 %v8935, %v8937
      %v8939 = vrot.slane %v8925, %v8938
      %v8940 = vcombine.high %v8932, %v8932
      %v8941 = vcombine.high %v8939, %v8939
      %v8943 = vunpack.c.l.s4 1966171168
      %v8944 = vunpack.c.0.s8 %v8943
      %v8945 = vlaneseq
      %v8946 = vshrl.u32 %v8945, 7
      %v8947 = vsub.s32 %v8944, %v8946
      %v8948 = vrot.slane %v8932, %v8947
      %v8950 = vunpack.c.l.s4 1966171168
      %v8951 = vunpack.c.0.s8 %v8950
      %v8952 = vlaneseq
      %v8953 = vshrl.u32 %v8952, 7
      %v8954 = vsub.s32 %v8951, %v8953
      %v8955 = vrot.slane %v8939, %v8954
      %v8957 = vunpack.c.l.s4 1966171168
      %v8958 = vunpack.c.0.s8 %v8957
      %v8959 = vlaneseq
      %v8960 = vshrl.u32 %v8959, 7
      %v8961 = vsub.s32 %v8958, %v8960
      %v8962 = vrot.slane %v8940, %v8961
      %v8964 = vunpack.c.l.s4 1966171168
      %v8965 = vunpack.c.0.s8 %v8964
      %v8966 = vlaneseq
      %v8967 = vshrl.u32 %v8966, 7
      %v8968 = vsub.s32 %v8965, %v8967
      %v8969 = vrot.slane %v8941, %v8968
      %v8970 = vcombine.high %v8948, %v8948
      %v8971 = vcombine.high %v8955, %v8955
      %v8972 = vcombine.high %v8962, %v8962
      %v8973 = vcombine.high %v8969, %v8969
      %v8974 = vcombine.high %v8476, %v8476
      %v8976 = vunpack.c.l.s4 1966171168
      %v8977 = vunpack.c.0.s8 %v8976
      %v8978 = vlaneseq
      %v8979 = vshrl.u32 %v8978, 7
      %v8980 = vsub.s32 %v8977, %v8979
      %v8981 = vrot.slane %v8476, %v8980
      %v8983 = vunpack.c.l.s4 1966171168
      %v8984 = vunpack.c.0.s8 %v8983
      %v8985 = vlaneseq
      %v8986 = vshrl.u32 %v8985, 7
      %v8987 = vsub.s32 %v8984, %v8986
      %v8988 = vrot.slane %v8974, %v8987
      %v8989 = vcombine.high %v8981, %v8981
      %v8990 = vcombine.high %v8988, %v8988
      %v8992 = vunpack.c.l.s4 1966171168
      %v8993 = vunpack.c.0.s8 %v8992
      %v8994 = vlaneseq
      %v8995 = vshrl.u32 %v8994, 7
      %v8996 = vsub.s32 %v8993, %v8995
      %v8997 = vrot.slane %v8981, %v8996
      %v8999 = vunpack.c.l.s4 1966171168
      %v9000 = vunpack.c.0.s8 %v8999
      %v9001 = vlaneseq
      %v9002 = vshrl.u32 %v9001, 7
      %v9003 = vsub.s32 %v9000, %v9002
      %v9004 = vrot.slane %v8988, %v9003
      %v9006 = vunpack.c.l.s4 1966171168
      %v9007 = vunpack.c.0.s8 %v9006
      %v9008 = vlaneseq
      %v9009 = vshrl.u32 %v9008, 7
      %v9010 = vsub.s32 %v9007, %v9009
      %v9011 = vrot.slane %v8989, %v9010
      %v9013 = vunpack.c.l.s4 1966171168
      %v9014 = vunpack.c.0.s8 %v9013
      %v9015 = vlaneseq
      %v9016 = vshrl.u32 %v9015, 7
      %v9017 = vsub.s32 %v9014, %v9016
      %v9018 = vrot.slane %v8990, %v9017
      %v9019 = vcombine.high %v8997, %v8997
      %v9020 = vcombine.high %v9004, %v9004
      %v9021 = vcombine.high %v9011, %v9011
      %v9022 = vcombine.high %v9018, %v9018
      %v9023 = vcombine.high %v8481, %v8481
      %v9025 = vunpack.c.l.s4 1966171168
      %v9026 = vunpack.c.0.s8 %v9025
      %v9027 = vlaneseq
      %v9028 = vshrl.u32 %v9027, 7
      %v9029 = vsub.s32 %v9026, %v9028
      %v9030 = vrot.slane %v8481, %v9029
      %v9032 = vunpack.c.l.s4 1966171168
      %v9033 = vunpack.c.0.s8 %v9032
      %v9034 = vlaneseq
      %v9035 = vshrl.u32 %v9034, 7
      %v9036 = vsub.s32 %v9033, %v9035
      %v9037 = vrot.slane %v9023, %v9036
      %v9038 = vcombine.high %v9030, %v9030
      %v9039 = vcombine.high %v9037, %v9037
      %v9041 = vunpack.c.l.s4 1966171168
      %v9042 = vunpack.c.0.s8 %v9041
      %v9043 = vlaneseq
      %v9044 = vshrl.u32 %v9043, 7
      %v9045 = vsub.s32 %v9042, %v9044
      %v9046 = vrot.slane %v9030, %v9045
      %v9048 = vunpack.c.l.s4 1966171168
      %v9049 = vunpack.c.0.s8 %v9048
      %v9050 = vlaneseq
      %v9051 = vshrl.u32 %v9050, 7
      %v9052 = vsub.s32 %v9049, %v9051
      %v9053 = vrot.slane %v9037, %v9052
      %v9055 = vunpack.c.l.s4 1966171168
      %v9056 = vunpack.c.0.s8 %v9055
      %v9057 = vlaneseq
      %v9058 = vshrl.u32 %v9057, 7
      %v9059 = vsub.s32 %v9056, %v9058
      %v9060 = vrot.slane %v9038, %v9059
      %v9062 = vunpack.c.l.s4 1966171168
      %v9063 = vunpack.c.0.s8 %v9062
      %v9064 = vlaneseq
      %v9065 = vshrl.u32 %v9064, 7
      %v9066 = vsub.s32 %v9063, %v9065
      %v9067 = vrot.slane %v9039, %v9066
      %v9068 = vcombine.high %v9046, %v9046
      %v9069 = vcombine.high %v9053, %v9053
      %v9070 = vcombine.high %v9060, %v9060
      %v9071 = vcombine.high %v9067, %v9067
      %v9072 = vcombine.high %v8486, %v8486
      %v9074 = vunpack.c.l.s4 1966171168
      %v9075 = vunpack.c.0.s8 %v9074
      %v9076 = vlaneseq
      %v9077 = vshrl.u32 %v9076, 7
      %v9078 = vsub.s32 %v9075, %v9077
      %v9079 = vrot.slane %v8486, %v9078
      %v9081 = vunpack.c.l.s4 1966171168
      %v9082 = vunpack.c.0.s8 %v9081
      %v9083 = vlaneseq
      %v9084 = vshrl.u32 %v9083, 7
      %v9085 = vsub.s32 %v9082, %v9084
      %v9086 = vrot.slane %v9072, %v9085
      %v9087 = vcombine.high %v9079, %v9079
      %v9088 = vcombine.high %v9086, %v9086
      %v9090 = vunpack.c.l.s4 1966171168
      %v9091 = vunpack.c.0.s8 %v9090
      %v9092 = vlaneseq
      %v9093 = vshrl.u32 %v9092, 7
      %v9094 = vsub.s32 %v9091, %v9093
      %v9095 = vrot.slane %v9079, %v9094
      %v9097 = vunpack.c.l.s4 1966171168
      %v9098 = vunpack.c.0.s8 %v9097
      %v9099 = vlaneseq
      %v9100 = vshrl.u32 %v9099, 7
      %v9101 = vsub.s32 %v9098, %v9100
      %v9102 = vrot.slane %v9086, %v9101
      %v9104 = vunpack.c.l.s4 1966171168
      %v9105 = vunpack.c.0.s8 %v9104
      %v9106 = vlaneseq
      %v9107 = vshrl.u32 %v9106, 7
      %v9108 = vsub.s32 %v9105, %v9107
      %v9109 = vrot.slane %v9087, %v9108
      %v9111 = vunpack.c.l.s4 1966171168
      %v9112 = vunpack.c.0.s8 %v9111
      %v9113 = vlaneseq
      %v9114 = vshrl.u32 %v9113, 7
      %v9115 = vsub.s32 %v9112, %v9114
      %v9116 = vrot.slane %v9088, %v9115
      %v9117 = vcombine.high %v9095, %v9095
      %v9118 = vcombine.high %v9102, %v9102
      %v9119 = vcombine.high %v9109, %v9109
      %v9120 = vcombine.high %v9116, %v9116
      %v9121 = vcombine.high %v8491, %v8491
      %v9123 = vunpack.c.l.s4 1966171168
      %v9124 = vunpack.c.0.s8 %v9123
      %v9125 = vlaneseq
      %v9126 = vshrl.u32 %v9125, 7
      %v9127 = vsub.s32 %v9124, %v9126
      %v9128 = vrot.slane %v8491, %v9127
      %v9130 = vunpack.c.l.s4 1966171168
      %v9131 = vunpack.c.0.s8 %v9130
      %v9132 = vlaneseq
      %v9133 = vshrl.u32 %v9132, 7
      %v9134 = vsub.s32 %v9131, %v9133
      %v9135 = vrot.slane %v9121, %v9134
      %v9136 = vcombine.high %v9128, %v9128
      %v9137 = vcombine.high %v9135, %v9135
      %v9139 = vunpack.c.l.s4 1966171168
      %v9140 = vunpack.c.0.s8 %v9139
      %v9141 = vlaneseq
      %v9142 = vshrl.u32 %v9141, 7
      %v9143 = vsub.s32 %v9140, %v9142
      %v9144 = vrot.slane %v9128, %v9143
      %v9146 = vunpack.c.l.s4 1966171168
      %v9147 = vunpack.c.0.s8 %v9146
      %v9148 = vlaneseq
      %v9149 = vshrl.u32 %v9148, 7
      %v9150 = vsub.s32 %v9147, %v9149
      %v9151 = vrot.slane %v9135, %v9150
      %v9153 = vunpack.c.l.s4 1966171168
      %v9154 = vunpack.c.0.s8 %v9153
      %v9155 = vlaneseq
      %v9156 = vshrl.u32 %v9155, 7
      %v9157 = vsub.s32 %v9154, %v9156
      %v9158 = vrot.slane %v9136, %v9157
      %v9160 = vunpack.c.l.s4 1966171168
      %v9161 = vunpack.c.0.s8 %v9160
      %v9162 = vlaneseq
      %v9163 = vshrl.u32 %v9162, 7
      %v9164 = vsub.s32 %v9161, %v9163
      %v9165 = vrot.slane %v9137, %v9164
      %v9166 = vcombine.high %v9144, %v9144
      %v9167 = vcombine.high %v9151, %v9151
      %v9168 = vcombine.high %v9158, %v9158
      %v9169 = vcombine.high %v9165, %v9165
      %v9170 = vcombine.high %v8496, %v8496
      %v9172 = vunpack.c.l.s4 1966171168
      %v9173 = vunpack.c.0.s8 %v9172
      %v9174 = vlaneseq
      %v9175 = vshrl.u32 %v9174, 7
      %v9176 = vsub.s32 %v9173, %v9175
      %v9177 = vrot.slane %v8496, %v9176
      %v9179 = vunpack.c.l.s4 1966171168
      %v9180 = vunpack.c.0.s8 %v9179
      %v9181 = vlaneseq
      %v9182 = vshrl.u32 %v9181, 7
      %v9183 = vsub.s32 %v9180, %v9182
      %v9184 = vrot.slane %v9170, %v9183
      %v9185 = vcombine.high %v9177, %v9177
      %v9186 = vcombine.high %v9184, %v9184
      %v9188 = vunpack.c.l.s4 1966171168
      %v9189 = vunpack.c.0.s8 %v9188
      %v9190 = vlaneseq
      %v9191 = vshrl.u32 %v9190, 7
      %v9192 = vsub.s32 %v9189, %v9191
      %v9193 = vrot.slane %v9177, %v9192
      %v9195 = vunpack.c.l.s4 1966171168
      %v9196 = vunpack.c.0.s8 %v9195
      %v9197 = vlaneseq
      %v9198 = vshrl.u32 %v9197, 7
      %v9199 = vsub.s32 %v9196, %v9198
      %v9200 = vrot.slane %v9184, %v9199
      %v9202 = vunpack.c.l.s4 1966171168
      %v9203 = vunpack.c.0.s8 %v9202
      %v9204 = vlaneseq
      %v9205 = vshrl.u32 %v9204, 7
      %v9206 = vsub.s32 %v9203, %v9205
      %v9207 = vrot.slane %v9185, %v9206
      %v9209 = vunpack.c.l.s4 1966171168
      %v9210 = vunpack.c.0.s8 %v9209
      %v9211 = vlaneseq
      %v9212 = vshrl.u32 %v9211, 7
      %v9213 = vsub.s32 %v9210, %v9212
      %v9214 = vrot.slane %v9186, %v9213
      %v9215 = vcombine.high %v9193, %v9193
      %v9216 = vcombine.high %v9200, %v9200
      %v9217 = vcombine.high %v9207, %v9207
      %v9218 = vcombine.high %v9214, %v9214
      %v9219 = vcombine.high %v8501, %v8501
      %v9221 = vunpack.c.l.s4 1966171168
      %v9222 = vunpack.c.0.s8 %v9221
      %v9223 = vlaneseq
      %v9224 = vshrl.u32 %v9223, 7
      %v9225 = vsub.s32 %v9222, %v9224
      %v9226 = vrot.slane %v8501, %v9225
      %v9228 = vunpack.c.l.s4 1966171168
      %v9229 = vunpack.c.0.s8 %v9228
      %v9230 = vlaneseq
      %v9231 = vshrl.u32 %v9230, 7
      %v9232 = vsub.s32 %v9229, %v9231
      %v9233 = vrot.slane %v9219, %v9232
      %v9234 = vcombine.high %v9226, %v9226
      %v9235 = vcombine.high %v9233, %v9233
      %v9237 = vunpack.c.l.s4 1966171168
      %v9238 = vunpack.c.0.s8 %v9237
      %v9239 = vlaneseq
      %v9240 = vshrl.u32 %v9239, 7
      %v9241 = vsub.s32 %v9238, %v9240
      %v9242 = vrot.slane %v9226, %v9241
      %v9244 = vunpack.c.l.s4 1966171168
      %v9245 = vunpack.c.0.s8 %v9244
      %v9246 = vlaneseq
      %v9247 = vshrl.u32 %v9246, 7
      %v9248 = vsub.s32 %v9245, %v9247
      %v9249 = vrot.slane %v9233, %v9248
      %v9251 = vunpack.c.l.s4 1966171168
      %v9252 = vunpack.c.0.s8 %v9251
      %v9253 = vlaneseq
      %v9254 = vshrl.u32 %v9253, 7
      %v9255 = vsub.s32 %v9252, %v9254
      %v9256 = vrot.slane %v9234, %v9255
      %v9258 = vunpack.c.l.s4 1966171168
      %v9259 = vunpack.c.0.s8 %v9258
      %v9260 = vlaneseq
      %v9261 = vshrl.u32 %v9260, 7
      %v9262 = vsub.s32 %v9259, %v9261
      %v9263 = vrot.slane %v9235, %v9262
      %v9264 = vcombine.high %v9242, %v9242
      %v9265 = vcombine.high %v9249, %v9249
      %v9266 = vcombine.high %v9256, %v9256
      %v9267 = vcombine.high %v9263, %v9263
      %v9268 = vcombine.high %v8506, %v8506
      %v9270 = vunpack.c.l.s4 1966171168
      %v9271 = vunpack.c.0.s8 %v9270
      %v9272 = vlaneseq
      %v9273 = vshrl.u32 %v9272, 7
      %v9274 = vsub.s32 %v9271, %v9273
      %v9275 = vrot.slane %v8506, %v9274
      %v9277 = vunpack.c.l.s4 1966171168
      %v9278 = vunpack.c.0.s8 %v9277
      %v9279 = vlaneseq
      %v9280 = vshrl.u32 %v9279, 7
      %v9281 = vsub.s32 %v9278, %v9280
      %v9282 = vrot.slane %v9268, %v9281
      %v9283 = vcombine.high %v9275, %v9275
      %v9284 = vcombine.high %v9282, %v9282
      %v9286 = vunpack.c.l.s4 1966171168
      %v9287 = vunpack.c.0.s8 %v9286
      %v9288 = vlaneseq
      %v9289 = vshrl.u32 %v9288, 7
      %v9290 = vsub.s32 %v9287, %v9289
      %v9291 = vrot.slane %v9275, %v9290
      %v9293 = vunpack.c.l.s4 1966171168
      %v9294 = vunpack.c.0.s8 %v9293
      %v9295 = vlaneseq
      %v9296 = vshrl.u32 %v9295, 7
      %v9297 = vsub.s32 %v9294, %v9296
      %v9298 = vrot.slane %v9282, %v9297
      %v9300 = vunpack.c.l.s4 1966171168
      %v9301 = vunpack.c.0.s8 %v9300
      %v9302 = vlaneseq
      %v9303 = vshrl.u32 %v9302, 7
      %v9304 = vsub.s32 %v9301, %v9303
      %v9305 = vrot.slane %v9283, %v9304
      %v9307 = vunpack.c.l.s4 1966171168
      %v9308 = vunpack.c.0.s8 %v9307
      %v9309 = vlaneseq
      %v9310 = vshrl.u32 %v9309, 7
      %v9311 = vsub.s32 %v9308, %v9310
      %v9312 = vrot.slane %v9284, %v9311
      %v9313 = vcombine.high %v9291, %v9291
      %v9314 = vcombine.high %v9298, %v9298
      %v9315 = vcombine.high %v9305, %v9305
      %v9316 = vcombine.high %v9312, %v9312
      %v9317 = vcombine.high %v8511, %v8511
      %v9319 = vunpack.c.l.s4 1966171168
      %v9320 = vunpack.c.0.s8 %v9319
      %v9321 = vlaneseq
      %v9322 = vshrl.u32 %v9321, 7
      %v9323 = vsub.s32 %v9320, %v9322
      %v9324 = vrot.slane %v8511, %v9323
      %v9326 = vunpack.c.l.s4 1966171168
      %v9327 = vunpack.c.0.s8 %v9326
      %v9328 = vlaneseq
      %v9329 = vshrl.u32 %v9328, 7
      %v9330 = vsub.s32 %v9327, %v9329
      %v9331 = vrot.slane %v9317, %v9330
      %v9332 = vcombine.high %v9324, %v9324
      %v9333 = vcombine.high %v9331, %v9331
      %v9335 = vunpack.c.l.s4 1966171168
      %v9336 = vunpack.c.0.s8 %v9335
      %v9337 = vlaneseq
      %v9338 = vshrl.u32 %v9337, 7
      %v9339 = vsub.s32 %v9336, %v9338
      %v9340 = vrot.slane %v9324, %v9339
      %v9342 = vunpack.c.l.s4 1966171168
      %v9343 = vunpack.c.0.s8 %v9342
      %v9344 = vlaneseq
      %v9345 = vshrl.u32 %v9344, 7
      %v9346 = vsub.s32 %v9343, %v9345
      %v9347 = vrot.slane %v9331, %v9346
      %v9349 = vunpack.c.l.s4 1966171168
      %v9350 = vunpack.c.0.s8 %v9349
      %v9351 = vlaneseq
      %v9352 = vshrl.u32 %v9351, 7
      %v9353 = vsub.s32 %v9350, %v9352
      %v9354 = vrot.slane %v9332, %v9353
      %v9356 = vunpack.c.l.s4 1966171168
      %v9357 = vunpack.c.0.s8 %v9356
      %v9358 = vlaneseq
      %v9359 = vshrl.u32 %v9358, 7
      %v9360 = vsub.s32 %v9357, %v9359
      %v9361 = vrot.slane %v9333, %v9360
      %v9362 = vcombine.high %v9340, %v9340
      %v9363 = vcombine.high %v9347, %v9347
      %v9364 = vcombine.high %v9354, %v9354
      %v9365 = vcombine.high %v9361, %v9361
      %v9366 = vcombine.high %v8516, %v8516
      %v9368 = vunpack.c.l.s4 1966171168
      %v9369 = vunpack.c.0.s8 %v9368
      %v9370 = vlaneseq
      %v9371 = vshrl.u32 %v9370, 7
      %v9372 = vsub.s32 %v9369, %v9371
      %v9373 = vrot.slane %v8516, %v9372
      %v9375 = vunpack.c.l.s4 1966171168
      %v9376 = vunpack.c.0.s8 %v9375
      %v9377 = vlaneseq
      %v9378 = vshrl.u32 %v9377, 7
      %v9379 = vsub.s32 %v9376, %v9378
      %v9380 = vrot.slane %v9366, %v9379
      %v9381 = vcombine.high %v9373, %v9373
      %v9382 = vcombine.high %v9380, %v9380
      %v9384 = vunpack.c.l.s4 1966171168
      %v9385 = vunpack.c.0.s8 %v9384
      %v9386 = vlaneseq
      %v9387 = vshrl.u32 %v9386, 7
      %v9388 = vsub.s32 %v9385, %v9387
      %v9389 = vrot.slane %v9373, %v9388
      %v9391 = vunpack.c.l.s4 1966171168
      %v9392 = vunpack.c.0.s8 %v9391
      %v9393 = vlaneseq
      %v9394 = vshrl.u32 %v9393, 7
      %v9395 = vsub.s32 %v9392, %v9394
      %v9396 = vrot.slane %v9380, %v9395
      %v9398 = vunpack.c.l.s4 1966171168
      %v9399 = vunpack.c.0.s8 %v9398
      %v9400 = vlaneseq
      %v9401 = vshrl.u32 %v9400, 7
      %v9402 = vsub.s32 %v9399, %v9401
      %v9403 = vrot.slane %v9381, %v9402
      %v9405 = vunpack.c.l.s4 1966171168
      %v9406 = vunpack.c.0.s8 %v9405
      %v9407 = vlaneseq
      %v9408 = vshrl.u32 %v9407, 7
      %v9409 = vsub.s32 %v9406, %v9408
      %v9410 = vrot.slane %v9382, %v9409
      %v9411 = vcombine.high %v9389, %v9389
      %v9412 = vcombine.high %v9396, %v9396
      %v9413 = vcombine.high %v9403, %v9403
      %v9414 = vcombine.high %v9410, %v9410
      %v9415 = vcombine.high %v8521, %v8521
      %v9417 = vunpack.c.l.s4 1966171168
      %v9418 = vunpack.c.0.s8 %v9417
      %v9419 = vlaneseq
      %v9420 = vshrl.u32 %v9419, 7
      %v9421 = vsub.s32 %v9418, %v9420
      %v9422 = vrot.slane %v8521, %v9421
      %v9424 = vunpack.c.l.s4 1966171168
      %v9425 = vunpack.c.0.s8 %v9424
      %v9426 = vlaneseq
      %v9427 = vshrl.u32 %v9426, 7
      %v9428 = vsub.s32 %v9425, %v9427
      %v9429 = vrot.slane %v9415, %v9428
      %v9430 = vcombine.high %v9422, %v9422
      %v9431 = vcombine.high %v9429, %v9429
      %v9433 = vunpack.c.l.s4 1966171168
      %v9434 = vunpack.c.0.s8 %v9433
      %v9435 = vlaneseq
      %v9436 = vshrl.u32 %v9435, 7
      %v9437 = vsub.s32 %v9434, %v9436
      %v9438 = vrot.slane %v9422, %v9437
      %v9440 = vunpack.c.l.s4 1966171168
      %v9441 = vunpack.c.0.s8 %v9440
      %v9442 = vlaneseq
      %v9443 = vshrl.u32 %v9442, 7
      %v9444 = vsub.s32 %v9441, %v9443
      %v9445 = vrot.slane %v9429, %v9444
      %v9447 = vunpack.c.l.s4 1966171168
      %v9448 = vunpack.c.0.s8 %v9447
      %v9449 = vlaneseq
      %v9450 = vshrl.u32 %v9449, 7
      %v9451 = vsub.s32 %v9448, %v9450
      %v9452 = vrot.slane %v9430, %v9451
      %v9454 = vunpack.c.l.s4 1966171168
      %v9455 = vunpack.c.0.s8 %v9454
      %v9456 = vlaneseq
      %v9457 = vshrl.u32 %v9456, 7
      %v9458 = vsub.s32 %v9455, %v9457
      %v9459 = vrot.slane %v9431, %v9458
      %v9460 = vcombine.high %v9438, %v9438
      %v9461 = vcombine.high %v9445, %v9445
      %v9462 = vcombine.high %v9452, %v9452
      %v9463 = vcombine.high %v9459, %v9459
      %v9464 = vcombine.high %v8526, %v8526
      %v9466 = vunpack.c.l.s4 1966171168
      %v9467 = vunpack.c.0.s8 %v9466
      %v9468 = vlaneseq
      %v9469 = vshrl.u32 %v9468, 7
      %v9470 = vsub.s32 %v9467, %v9469
      %v9471 = vrot.slane %v8526, %v9470
      %v9473 = vunpack.c.l.s4 1966171168
      %v9474 = vunpack.c.0.s8 %v9473
      %v9475 = vlaneseq
      %v9476 = vshrl.u32 %v9475, 7
      %v9477 = vsub.s32 %v9474, %v9476
      %v9478 = vrot.slane %v9464, %v9477
      %v9479 = vcombine.high %v9471, %v9471
      %v9480 = vcombine.high %v9478, %v9478
      %v9482 = vunpack.c.l.s4 1966171168
      %v9483 = vunpack.c.0.s8 %v9482
      %v9484 = vlaneseq
      %v9485 = vshrl.u32 %v9484, 7
      %v9486 = vsub.s32 %v9483, %v9485
      %v9487 = vrot.slane %v9471, %v9486
      %v9489 = vunpack.c.l.s4 1966171168
      %v9490 = vunpack.c.0.s8 %v9489
      %v9491 = vlaneseq
      %v9492 = vshrl.u32 %v9491, 7
      %v9493 = vsub.s32 %v9490, %v9492
      %v9494 = vrot.slane %v9478, %v9493
      %v9496 = vunpack.c.l.s4 1966171168
      %v9497 = vunpack.c.0.s8 %v9496
      %v9498 = vlaneseq
      %v9499 = vshrl.u32 %v9498, 7
      %v9500 = vsub.s32 %v9497, %v9499
      %v9501 = vrot.slane %v9479, %v9500
      %v9503 = vunpack.c.l.s4 1966171168
      %v9504 = vunpack.c.0.s8 %v9503
      %v9505 = vlaneseq
      %v9506 = vshrl.u32 %v9505, 7
      %v9507 = vsub.s32 %v9504, %v9506
      %v9508 = vrot.slane %v9480, %v9507
      %v9509 = vcombine.high %v9487, %v9487
      %v9510 = vcombine.high %v9494, %v9494
      %v9511 = vcombine.high %v9501, %v9501
      %v9512 = vcombine.high %v9508, %v9508
      %v9513 = vcombine.high %v8531, %v8531
      %v9515 = vunpack.c.l.s4 1966171168
      %v9516 = vunpack.c.0.s8 %v9515
      %v9517 = vlaneseq
      %v9518 = vshrl.u32 %v9517, 7
      %v9519 = vsub.s32 %v9516, %v9518
      %v9520 = vrot.slane %v8531, %v9519
      %v9522 = vunpack.c.l.s4 1966171168
      %v9523 = vunpack.c.0.s8 %v9522
      %v9524 = vlaneseq
      %v9525 = vshrl.u32 %v9524, 7
      %v9526 = vsub.s32 %v9523, %v9525
      %v9527 = vrot.slane %v9513, %v9526
      %v9528 = vcombine.high %v9520, %v9520
      %v9529 = vcombine.high %v9527, %v9527
      %v9531 = vunpack.c.l.s4 1966171168
      %v9532 = vunpack.c.0.s8 %v9531
      %v9533 = vlaneseq
      %v9534 = vshrl.u32 %v9533, 7
      %v9535 = vsub.s32 %v9532, %v9534
      %v9536 = vrot.slane %v9520, %v9535
      %v9538 = vunpack.c.l.s4 1966171168
      %v9539 = vunpack.c.0.s8 %v9538
      %v9540 = vlaneseq
      %v9541 = vshrl.u32 %v9540, 7
      %v9542 = vsub.s32 %v9539, %v9541
      %v9543 = vrot.slane %v9527, %v9542
      %v9545 = vunpack.c.l.s4 1966171168
      %v9546 = vunpack.c.0.s8 %v9545
      %v9547 = vlaneseq
      %v9548 = vshrl.u32 %v9547, 7
      %v9549 = vsub.s32 %v9546, %v9548
      %v9550 = vrot.slane %v9528, %v9549
      %v9552 = vunpack.c.l.s4 1966171168
      %v9553 = vunpack.c.0.s8 %v9552
      %v9554 = vlaneseq
      %v9555 = vshrl.u32 %v9554, 7
      %v9556 = vsub.s32 %v9553, %v9555
      %v9557 = vrot.slane %v9529, %v9556
      %v9558 = vcombine.high %v9536, %v9536
      %v9559 = vcombine.high %v9543, %v9543
      %v9560 = vcombine.high %v9550, %v9550
      %v9561 = vcombine.high %v9557, %v9557
      %v9562 = vcombine.high %v8536, %v8536
      %v9564 = vunpack.c.l.s4 1966171168
      %v9565 = vunpack.c.0.s8 %v9564
      %v9566 = vlaneseq
      %v9567 = vshrl.u32 %v9566, 7
      %v9568 = vsub.s32 %v9565, %v9567
      %v9569 = vrot.slane %v8536, %v9568
      %v9571 = vunpack.c.l.s4 1966171168
      %v9572 = vunpack.c.0.s8 %v9571
      %v9573 = vlaneseq
      %v9574 = vshrl.u32 %v9573, 7
      %v9575 = vsub.s32 %v9572, %v9574
      %v9576 = vrot.slane %v9562, %v9575
      %v9577 = vcombine.high %v9569, %v9569
      %v9578 = vcombine.high %v9576, %v9576
      %v9580 = vunpack.c.l.s4 1966171168
      %v9581 = vunpack.c.0.s8 %v9580
      %v9582 = vlaneseq
      %v9583 = vshrl.u32 %v9582, 7
      %v9584 = vsub.s32 %v9581, %v9583
      %v9585 = vrot.slane %v9569, %v9584
      %v9587 = vunpack.c.l.s4 1966171168
      %v9588 = vunpack.c.0.s8 %v9587
      %v9589 = vlaneseq
      %v9590 = vshrl.u32 %v9589, 7
      %v9591 = vsub.s32 %v9588, %v9590
      %v9592 = vrot.slane %v9576, %v9591
      %v9594 = vunpack.c.l.s4 1966171168
      %v9595 = vunpack.c.0.s8 %v9594
      %v9596 = vlaneseq
      %v9597 = vshrl.u32 %v9596, 7
      %v9598 = vsub.s32 %v9595, %v9597
      %v9599 = vrot.slane %v9577, %v9598
      %v9601 = vunpack.c.l.s4 1966171168
      %v9602 = vunpack.c.0.s8 %v9601
      %v9603 = vlaneseq
      %v9604 = vshrl.u32 %v9603, 7
      %v9605 = vsub.s32 %v9602, %v9604
      %v9606 = vrot.slane %v9578, %v9605
      %v9607 = vcombine.high %v9585, %v9585
      %v9608 = vcombine.high %v9592, %v9592
      %v9609 = vcombine.high %v9599, %v9599
      %v9610 = vcombine.high %v9606, %v9606
      %v9611 = vcombine.high %v8541, %v8541
      %v9613 = vunpack.c.l.s4 1966171168
      %v9614 = vunpack.c.0.s8 %v9613
      %v9615 = vlaneseq
      %v9616 = vshrl.u32 %v9615, 7
      %v9617 = vsub.s32 %v9614, %v9616
      %v9618 = vrot.slane %v8541, %v9617
      %v9620 = vunpack.c.l.s4 1966171168
      %v9621 = vunpack.c.0.s8 %v9620
      %v9622 = vlaneseq
      %v9623 = vshrl.u32 %v9622, 7
      %v9624 = vsub.s32 %v9621, %v9623
      %v9625 = vrot.slane %v9611, %v9624
      %v9626 = vcombine.high %v9618, %v9618
      %v9627 = vcombine.high %v9625, %v9625
      %v9629 = vunpack.c.l.s4 1966171168
      %v9630 = vunpack.c.0.s8 %v9629
      %v9631 = vlaneseq
      %v9632 = vshrl.u32 %v9631, 7
      %v9633 = vsub.s32 %v9630, %v9632
      %v9634 = vrot.slane %v9618, %v9633
      %v9636 = vunpack.c.l.s4 1966171168
      %v9637 = vunpack.c.0.s8 %v9636
      %v9638 = vlaneseq
      %v9639 = vshrl.u32 %v9638, 7
      %v9640 = vsub.s32 %v9637, %v9639
      %v9641 = vrot.slane %v9625, %v9640
      %v9643 = vunpack.c.l.s4 1966171168
      %v9644 = vunpack.c.0.s8 %v9643
      %v9645 = vlaneseq
      %v9646 = vshrl.u32 %v9645, 7
      %v9647 = vsub.s32 %v9644, %v9646
      %v9648 = vrot.slane %v9626, %v9647
      %v9650 = vunpack.c.l.s4 1966171168
      %v9651 = vunpack.c.0.s8 %v9650
      %v9652 = vlaneseq
      %v9653 = vshrl.u32 %v9652, 7
      %v9654 = vsub.s32 %v9651, %v9653
      %v9655 = vrot.slane %v9627, %v9654
      %v9656 = vcombine.high %v9634, %v9634
      %v9657 = vcombine.high %v9641, %v9641
      %v9658 = vcombine.high %v9648, %v9648
      %v9659 = vcombine.high %v9655, %v9655
      %v9660 = vcombine.high %v8546, %v8546
      %v9662 = vunpack.c.l.s4 1966171168
      %v9663 = vunpack.c.0.s8 %v9662
      %v9664 = vlaneseq
      %v9665 = vshrl.u32 %v9664, 7
      %v9666 = vsub.s32 %v9663, %v9665
      %v9667 = vrot.slane %v8546, %v9666
      %v9669 = vunpack.c.l.s4 1966171168
      %v9670 = vunpack.c.0.s8 %v9669
      %v9671 = vlaneseq
      %v9672 = vshrl.u32 %v9671, 7
      %v9673 = vsub.s32 %v9670, %v9672
      %v9674 = vrot.slane %v9660, %v9673
      %v9675 = vcombine.high %v9667, %v9667
      %v9676 = vcombine.high %v9674, %v9674
      %v9678 = vunpack.c.l.s4 1966171168
      %v9679 = vunpack.c.0.s8 %v9678
      %v9680 = vlaneseq
      %v9681 = vshrl.u32 %v9680, 7
      %v9682 = vsub.s32 %v9679, %v9681
      %v9683 = vrot.slane %v9667, %v9682
      %v9685 = vunpack.c.l.s4 1966171168
      %v9686 = vunpack.c.0.s8 %v9685
      %v9687 = vlaneseq
      %v9688 = vshrl.u32 %v9687, 7
      %v9689 = vsub.s32 %v9686, %v9688
      %v9690 = vrot.slane %v9674, %v9689
      %v9692 = vunpack.c.l.s4 1966171168
      %v9693 = vunpack.c.0.s8 %v9692
      %v9694 = vlaneseq
      %v9695 = vshrl.u32 %v9694, 7
      %v9696 = vsub.s32 %v9693, %v9695
      %v9697 = vrot.slane %v9675, %v9696
      %v9699 = vunpack.c.l.s4 1966171168
      %v9700 = vunpack.c.0.s8 %v9699
      %v9701 = vlaneseq
      %v9702 = vshrl.u32 %v9701, 7
      %v9703 = vsub.s32 %v9700, %v9702
      %v9704 = vrot.slane %v9676, %v9703
      %v9705 = vcombine.high %v9683, %v9683
      %v9706 = vcombine.high %v9690, %v9690
      %v9707 = vcombine.high %v9697, %v9697
      %v9708 = vcombine.high %v9704, %v9704
      %v9709 = vcombine.high %v8551, %v8551
      %v9711 = vunpack.c.l.s4 1966171168
      %v9712 = vunpack.c.0.s8 %v9711
      %v9713 = vlaneseq
      %v9714 = vshrl.u32 %v9713, 7
      %v9715 = vsub.s32 %v9712, %v9714
      %v9716 = vrot.slane %v8551, %v9715
      %v9718 = vunpack.c.l.s4 1966171168
      %v9719 = vunpack.c.0.s8 %v9718
      %v9720 = vlaneseq
      %v9721 = vshrl.u32 %v9720, 7
      %v9722 = vsub.s32 %v9719, %v9721
      %v9723 = vrot.slane %v9709, %v9722
      %v9724 = vcombine.high %v9716, %v9716
      %v9725 = vcombine.high %v9723, %v9723
      %v9727 = vunpack.c.l.s4 1966171168
      %v9728 = vunpack.c.0.s8 %v9727
      %v9729 = vlaneseq
      %v9730 = vshrl.u32 %v9729, 7
      %v9731 = vsub.s32 %v9728, %v9730
      %v9732 = vrot.slane %v9716, %v9731
      %v9734 = vunpack.c.l.s4 1966171168
      %v9735 = vunpack.c.0.s8 %v9734
      %v9736 = vlaneseq
      %v9737 = vshrl.u32 %v9736, 7
      %v9738 = vsub.s32 %v9735, %v9737
      %v9739 = vrot.slane %v9723, %v9738
      %v9741 = vunpack.c.l.s4 1966171168
      %v9742 = vunpack.c.0.s8 %v9741
      %v9743 = vlaneseq
      %v9744 = vshrl.u32 %v9743, 7
      %v9745 = vsub.s32 %v9742, %v9744
      %v9746 = vrot.slane %v9724, %v9745
      %v9748 = vunpack.c.l.s4 1966171168
      %v9749 = vunpack.c.0.s8 %v9748
      %v9750 = vlaneseq
      %v9751 = vshrl.u32 %v9750, 7
      %v9752 = vsub.s32 %v9749, %v9751
      %v9753 = vrot.slane %v9725, %v9752
      %v9754 = vcombine.high %v9732, %v9732
      %v9755 = vcombine.high %v9739, %v9739
      %v9756 = vcombine.high %v9746, %v9746
      %v9757 = vcombine.high %v9753, %v9753
      %v9758 = vcombine.high %v8556, %v8556
      %v9760 = vunpack.c.l.s4 1966171168
      %v9761 = vunpack.c.0.s8 %v9760
      %v9762 = vlaneseq
      %v9763 = vshrl.u32 %v9762, 7
      %v9764 = vsub.s32 %v9761, %v9763
      %v9765 = vrot.slane %v8556, %v9764
      %v9767 = vunpack.c.l.s4 1966171168
      %v9768 = vunpack.c.0.s8 %v9767
      %v9769 = vlaneseq
      %v9770 = vshrl.u32 %v9769, 7
      %v9771 = vsub.s32 %v9768, %v9770
      %v9772 = vrot.slane %v9758, %v9771
      %v9773 = vcombine.high %v9765, %v9765
      %v9774 = vcombine.high %v9772, %v9772
      %v9776 = vunpack.c.l.s4 1966171168
      %v9777 = vunpack.c.0.s8 %v9776
      %v9778 = vlaneseq
      %v9779 = vshrl.u32 %v9778, 7
      %v9780 = vsub.s32 %v9777, %v9779
      %v9781 = vrot.slane %v9765, %v9780
      %v9783 = vunpack.c.l.s4 1966171168
      %v9784 = vunpack.c.0.s8 %v9783
      %v9785 = vlaneseq
      %v9786 = vshrl.u32 %v9785, 7
      %v9787 = vsub.s32 %v9784, %v9786
      %v9788 = vrot.slane %v9772, %v9787
      %v9790 = vunpack.c.l.s4 1966171168
      %v9791 = vunpack.c.0.s8 %v9790
      %v9792 = vlaneseq
      %v9793 = vshrl.u32 %v9792, 7
      %v9794 = vsub.s32 %v9791, %v9793
      %v9795 = vrot.slane %v9773, %v9794
      %v9797 = vunpack.c.l.s4 1966171168
      %v9798 = vunpack.c.0.s8 %v9797
      %v9799 = vlaneseq
      %v9800 = vshrl.u32 %v9799, 7
      %v9801 = vsub.s32 %v9798, %v9800
      %v9802 = vrot.slane %v9774, %v9801
      %v9803 = vcombine.high %v9781, %v9781
      %v9804 = vcombine.high %v9788, %v9788
      %v9805 = vcombine.high %v9795, %v9795
      %v9806 = vcombine.high %v9802, %v9802
      %v9807 = vcombine.high %v8561, %v8561
      %v9809 = vunpack.c.l.s4 1966171168
      %v9810 = vunpack.c.0.s8 %v9809
      %v9811 = vlaneseq
      %v9812 = vshrl.u32 %v9811, 7
      %v9813 = vsub.s32 %v9810, %v9812
      %v9814 = vrot.slane %v8561, %v9813
      %v9816 = vunpack.c.l.s4 1966171168
      %v9817 = vunpack.c.0.s8 %v9816
      %v9818 = vlaneseq
      %v9819 = vshrl.u32 %v9818, 7
      %v9820 = vsub.s32 %v9817, %v9819
      %v9821 = vrot.slane %v9807, %v9820
      %v9822 = vcombine.high %v9814, %v9814
      %v9823 = vcombine.high %v9821, %v9821
      %v9825 = vunpack.c.l.s4 1966171168
      %v9826 = vunpack.c.0.s8 %v9825
      %v9827 = vlaneseq
      %v9828 = vshrl.u32 %v9827, 7
      %v9829 = vsub.s32 %v9826, %v9828
      %v9830 = vrot.slane %v9814, %v9829
      %v9832 = vunpack.c.l.s4 1966171168
      %v9833 = vunpack.c.0.s8 %v9832
      %v9834 = vlaneseq
      %v9835 = vshrl.u32 %v9834, 7
      %v9836 = vsub.s32 %v9833, %v9835
      %v9837 = vrot.slane %v9821, %v9836
      %v9839 = vunpack.c.l.s4 1966171168
      %v9840 = vunpack.c.0.s8 %v9839
      %v9841 = vlaneseq
      %v9842 = vshrl.u32 %v9841, 7
      %v9843 = vsub.s32 %v9840, %v9842
      %v9844 = vrot.slane %v9822, %v9843
      %v9846 = vunpack.c.l.s4 1966171168
      %v9847 = vunpack.c.0.s8 %v9846
      %v9848 = vlaneseq
      %v9849 = vshrl.u32 %v9848, 7
      %v9850 = vsub.s32 %v9847, %v9849
      %v9851 = vrot.slane %v9823, %v9850
      %v9852 = vcombine.high %v9830, %v9830
      %v9853 = vcombine.high %v9837, %v9837
      %v9854 = vcombine.high %v9844, %v9844
      %v9855 = vcombine.high %v9851, %v9851
      %v9856 = vcombine.high %v8566, %v8566
      %v9858 = vunpack.c.l.s4 1966171168
      %v9859 = vunpack.c.0.s8 %v9858
      %v9860 = vlaneseq
      %v9861 = vshrl.u32 %v9860, 7
      %v9862 = vsub.s32 %v9859, %v9861
      %v9863 = vrot.slane %v8566, %v9862
      %v9865 = vunpack.c.l.s4 1966171168
      %v9866 = vunpack.c.0.s8 %v9865
      %v9867 = vlaneseq
      %v9868 = vshrl.u32 %v9867, 7
      %v9869 = vsub.s32 %v9866, %v9868
      %v9870 = vrot.slane %v9856, %v9869
      %v9871 = vcombine.high %v9863, %v9863
      %v9872 = vcombine.high %v9870, %v9870
      %v9874 = vunpack.c.l.s4 1966171168
      %v9875 = vunpack.c.0.s8 %v9874
      %v9876 = vlaneseq
      %v9877 = vshrl.u32 %v9876, 7
      %v9878 = vsub.s32 %v9875, %v9877
      %v9879 = vrot.slane %v9863, %v9878
      %v9881 = vunpack.c.l.s4 1966171168
      %v9882 = vunpack.c.0.s8 %v9881
      %v9883 = vlaneseq
      %v9884 = vshrl.u32 %v9883, 7
      %v9885 = vsub.s32 %v9882, %v9884
      %v9886 = vrot.slane %v9870, %v9885
      %v9888 = vunpack.c.l.s4 1966171168
      %v9889 = vunpack.c.0.s8 %v9888
      %v9890 = vlaneseq
      %v9891 = vshrl.u32 %v9890, 7
      %v9892 = vsub.s32 %v9889, %v9891
      %v9893 = vrot.slane %v9871, %v9892
      %v9895 = vunpack.c.l.s4 1966171168
      %v9896 = vunpack.c.0.s8 %v9895
      %v9897 = vlaneseq
      %v9898 = vshrl.u32 %v9897, 7
      %v9899 = vsub.s32 %v9896, %v9898
      %v9900 = vrot.slane %v9872, %v9899
      %v9901 = vcombine.high %v9879, %v9879
      %v9902 = vcombine.high %v9886, %v9886
      %v9903 = vcombine.high %v9893, %v9893
      %v9904 = vcombine.high %v9900, %v9900
      %v9905 = vcombine.high %v8571, %v8571
      %v9907 = vunpack.c.l.s4 1966171168
      %v9908 = vunpack.c.0.s8 %v9907
      %v9909 = vlaneseq
      %v9910 = vshrl.u32 %v9909, 7
      %v9911 = vsub.s32 %v9908, %v9910
      %v9912 = vrot.slane %v8571, %v9911
      %v9914 = vunpack.c.l.s4 1966171168
      %v9915 = vunpack.c.0.s8 %v9914
      %v9916 = vlaneseq
      %v9917 = vshrl.u32 %v9916, 7
      %v9918 = vsub.s32 %v9915, %v9917
      %v9919 = vrot.slane %v9905, %v9918
      %v9920 = vcombine.high %v9912, %v9912
      %v9921 = vcombine.high %v9919, %v9919
      %v9923 = vunpack.c.l.s4 1966171168
      %v9924 = vunpack.c.0.s8 %v9923
      %v9925 = vlaneseq
      %v9926 = vshrl.u32 %v9925, 7
      %v9927 = vsub.s32 %v9924, %v9926
      %v9928 = vrot.slane %v9912, %v9927
      %v9930 = vunpack.c.l.s4 1966171168
      %v9931 = vunpack.c.0.s8 %v9930
      %v9932 = vlaneseq
      %v9933 = vshrl.u32 %v9932, 7
      %v9934 = vsub.s32 %v9931, %v9933
      %v9935 = vrot.slane %v9919, %v9934
      %v9937 = vunpack.c.l.s4 1966171168
      %v9938 = vunpack.c.0.s8 %v9937
      %v9939 = vlaneseq
      %v9940 = vshrl.u32 %v9939, 7
      %v9941 = vsub.s32 %v9938, %v9940
      %v9942 = vrot.slane %v9920, %v9941
      %v9944 = vunpack.c.l.s4 1966171168
      %v9945 = vunpack.c.0.s8 %v9944
      %v9946 = vlaneseq
      %v9947 = vshrl.u32 %v9946, 7
      %v9948 = vsub.s32 %v9945, %v9947
      %v9949 = vrot.slane %v9921, %v9948
      %v9950 = vcombine.high %v9928, %v9928
      %v9951 = vcombine.high %v9935, %v9935
      %v9952 = vcombine.high %v9942, %v9942
      %v9953 = vcombine.high %v9949, %v9949
      %v9954 = vcombine.high %v8576, %v8576
      %v9956 = vunpack.c.l.s4 1966171168
      %v9957 = vunpack.c.0.s8 %v9956
      %v9958 = vlaneseq
      %v9959 = vshrl.u32 %v9958, 7
      %v9960 = vsub.s32 %v9957, %v9959
      %v9961 = vrot.slane %v8576, %v9960
      %v9963 = vunpack.c.l.s4 1966171168
      %v9964 = vunpack.c.0.s8 %v9963
      %v9965 = vlaneseq
      %v9966 = vshrl.u32 %v9965, 7
      %v9967 = vsub.s32 %v9964, %v9966
      %v9968 = vrot.slane %v9954, %v9967
      %v9969 = vcombine.high %v9961, %v9961
      %v9970 = vcombine.high %v9968, %v9968
      %v9972 = vunpack.c.l.s4 1966171168
      %v9973 = vunpack.c.0.s8 %v9972
      %v9974 = vlaneseq
      %v9975 = vshrl.u32 %v9974, 7
      %v9976 = vsub.s32 %v9973, %v9975
      %v9977 = vrot.slane %v9961, %v9976
      %v9979 = vunpack.c.l.s4 1966171168
      %v9980 = vunpack.c.0.s8 %v9979
      %v9981 = vlaneseq
      %v9982 = vshrl.u32 %v9981, 7
      %v9983 = vsub.s32 %v9980, %v9982
      %v9984 = vrot.slane %v9968, %v9983
      %v9986 = vunpack.c.l.s4 1966171168
      %v9987 = vunpack.c.0.s8 %v9986
      %v9988 = vlaneseq
      %v9989 = vshrl.u32 %v9988, 7
      %v9990 = vsub.s32 %v9987, %v9989
      %v9991 = vrot.slane %v9969, %v9990
      %v9993 = vunpack.c.l.s4 1966171168
      %v9994 = vunpack.c.0.s8 %v9993
      %v9995 = vlaneseq
      %v9996 = vshrl.u32 %v9995, 7
      %v9997 = vsub.s32 %v9994, %v9996
      %v9998 = vrot.slane %v9970, %v9997
      %v9999 = vcombine.high %v9977, %v9977
      %v10000 = vcombine.high %v9984, %v9984
      %v10001 = vcombine.high %v9991, %v9991
      %v10002 = vcombine.high %v9998, %v9998
      %v10003 = vcombine.high %v8581, %v8581
      %v10005 = vunpack.c.l.s4 1966171168
      %v10006 = vunpack.c.0.s8 %v10005
      %v10007 = vlaneseq
      %v10008 = vshrl.u32 %v10007, 7
      %v10009 = vsub.s32 %v10006, %v10008
      %v10010 = vrot.slane %v8581, %v10009
      %v10012 = vunpack.c.l.s4 1966171168
      %v10013 = vunpack.c.0.s8 %v10012
      %v10014 = vlaneseq
      %v10015 = vshrl.u32 %v10014, 7
      %v10016 = vsub.s32 %v10013, %v10015
      %v10017 = vrot.slane %v10003, %v10016
      %v10018 = vcombine.high %v10010, %v10010
      %v10019 = vcombine.high %v10017, %v10017
      %v10021 = vunpack.c.l.s4 1966171168
      %v10022 = vunpack.c.0.s8 %v10021
      %v10023 = vlaneseq
      %v10024 = vshrl.u32 %v10023, 7
      %v10025 = vsub.s32 %v10022, %v10024
      %v10026 = vrot.slane %v10010, %v10025
      %v10028 = vunpack.c.l.s4 1966171168
      %v10029 = vunpack.c.0.s8 %v10028
      %v10030 = vlaneseq
      %v10031 = vshrl.u32 %v10030, 7
      %v10032 = vsub.s32 %v10029, %v10031
      %v10033 = vrot.slane %v10017, %v10032
      %v10035 = vunpack.c.l.s4 1966171168
      %v10036 = vunpack.c.0.s8 %v10035
      %v10037 = vlaneseq
      %v10038 = vshrl.u32 %v10037, 7
      %v10039 = vsub.s32 %v10036, %v10038
      %v10040 = vrot.slane %v10018, %v10039
      %v10042 = vunpack.c.l.s4 1966171168
      %v10043 = vunpack.c.0.s8 %v10042
      %v10044 = vlaneseq
      %v10045 = vshrl.u32 %v10044, 7
      %v10046 = vsub.s32 %v10043, %v10045
      %v10047 = vrot.slane %v10019, %v10046
      %v10048 = vcombine.high %v10026, %v10026
      %v10049 = vcombine.high %v10033, %v10033
      %v10050 = vcombine.high %v10040, %v10040
      %v10051 = vcombine.high %v10047, %v10047
      %v10052 = vcombine.high %v8586, %v8586
      %v10054 = vunpack.c.l.s4 1966171168
      %v10055 = vunpack.c.0.s8 %v10054
      %v10056 = vlaneseq
      %v10057 = vshrl.u32 %v10056, 7
      %v10058 = vsub.s32 %v10055, %v10057
      %v10059 = vrot.slane %v8586, %v10058
      %v10061 = vunpack.c.l.s4 1966171168
      %v10062 = vunpack.c.0.s8 %v10061
      %v10063 = vlaneseq
      %v10064 = vshrl.u32 %v10063, 7
      %v10065 = vsub.s32 %v10062, %v10064
      %v10066 = vrot.slane %v10052, %v10065
      %v10067 = vcombine.high %v10059, %v10059
      %v10068 = vcombine.high %v10066, %v10066
      %v10070 = vunpack.c.l.s4 1966171168
      %v10071 = vunpack.c.0.s8 %v10070
      %v10072 = vlaneseq
      %v10073 = vshrl.u32 %v10072, 7
      %v10074 = vsub.s32 %v10071, %v10073
      %v10075 = vrot.slane %v10059, %v10074
      %v10077 = vunpack.c.l.s4 1966171168
      %v10078 = vunpack.c.0.s8 %v10077
      %v10079 = vlaneseq
      %v10080 = vshrl.u32 %v10079, 7
      %v10081 = vsub.s32 %v10078, %v10080
      %v10082 = vrot.slane %v10066, %v10081
      %v10084 = vunpack.c.l.s4 1966171168
      %v10085 = vunpack.c.0.s8 %v10084
      %v10086 = vlaneseq
      %v10087 = vshrl.u32 %v10086, 7
      %v10088 = vsub.s32 %v10085, %v10087
      %v10089 = vrot.slane %v10067, %v10088
      %v10091 = vunpack.c.l.s4 1966171168
      %v10092 = vunpack.c.0.s8 %v10091
      %v10093 = vlaneseq
      %v10094 = vshrl.u32 %v10093, 7
      %v10095 = vsub.s32 %v10092, %v10094
      %v10096 = vrot.slane %v10068, %v10095
      %v10097 = vcombine.high %v10075, %v10075
      %v10098 = vcombine.high %v10082, %v10082
      %v10099 = vcombine.high %v10089, %v10089
      %v10100 = vcombine.high %v10096, %v10096
      %v10101 = vcombine.high %v8591, %v8591
      %v10103 = vunpack.c.l.s4 1966171168
      %v10104 = vunpack.c.0.s8 %v10103
      %v10105 = vlaneseq
      %v10106 = vshrl.u32 %v10105, 7
      %v10107 = vsub.s32 %v10104, %v10106
      %v10108 = vrot.slane %v8591, %v10107
      %v10110 = vunpack.c.l.s4 1966171168
      %v10111 = vunpack.c.0.s8 %v10110
      %v10112 = vlaneseq
      %v10113 = vshrl.u32 %v10112, 7
      %v10114 = vsub.s32 %v10111, %v10113
      %v10115 = vrot.slane %v10101, %v10114
      %v10116 = vcombine.high %v10108, %v10108
      %v10117 = vcombine.high %v10115, %v10115
      %v10119 = vunpack.c.l.s4 1966171168
      %v10120 = vunpack.c.0.s8 %v10119
      %v10121 = vlaneseq
      %v10122 = vshrl.u32 %v10121, 7
      %v10123 = vsub.s32 %v10120, %v10122
      %v10124 = vrot.slane %v10108, %v10123
      %v10126 = vunpack.c.l.s4 1966171168
      %v10127 = vunpack.c.0.s8 %v10126
      %v10128 = vlaneseq
      %v10129 = vshrl.u32 %v10128, 7
      %v10130 = vsub.s32 %v10127, %v10129
      %v10131 = vrot.slane %v10115, %v10130
      %v10133 = vunpack.c.l.s4 1966171168
      %v10134 = vunpack.c.0.s8 %v10133
      %v10135 = vlaneseq
      %v10136 = vshrl.u32 %v10135, 7
      %v10137 = vsub.s32 %v10134, %v10136
      %v10138 = vrot.slane %v10116, %v10137
      %v10140 = vunpack.c.l.s4 1966171168
      %v10141 = vunpack.c.0.s8 %v10140
      %v10142 = vlaneseq
      %v10143 = vshrl.u32 %v10142, 7
      %v10144 = vsub.s32 %v10141, %v10143
      %v10145 = vrot.slane %v10117, %v10144
      %v10146 = vcombine.high %v10124, %v10124
      %v10147 = vcombine.high %v10131, %v10131
      %v10148 = vcombine.high %v10138, %v10138
      %v10149 = vcombine.high %v10145, %v10145
      %v10150 = vcombine.high %v8596, %v8596
      %v10152 = vunpack.c.l.s4 1966171168
      %v10153 = vunpack.c.0.s8 %v10152
      %v10154 = vlaneseq
      %v10155 = vshrl.u32 %v10154, 7
      %v10156 = vsub.s32 %v10153, %v10155
      %v10157 = vrot.slane %v8596, %v10156
      %v10159 = vunpack.c.l.s4 1966171168
      %v10160 = vunpack.c.0.s8 %v10159
      %v10161 = vlaneseq
      %v10162 = vshrl.u32 %v10161, 7
      %v10163 = vsub.s32 %v10160, %v10162
      %v10164 = vrot.slane %v10150, %v10163
      %v10165 = vcombine.high %v10157, %v10157
      %v10166 = vcombine.high %v10164, %v10164
      %v10168 = vunpack.c.l.s4 1966171168
      %v10169 = vunpack.c.0.s8 %v10168
      %v10170 = vlaneseq
      %v10171 = vshrl.u32 %v10170, 7
      %v10172 = vsub.s32 %v10169, %v10171
      %v10173 = vrot.slane %v10157, %v10172
      %v10175 = vunpack.c.l.s4 1966171168
      %v10176 = vunpack.c.0.s8 %v10175
      %v10177 = vlaneseq
      %v10178 = vshrl.u32 %v10177, 7
      %v10179 = vsub.s32 %v10176, %v10178
      %v10180 = vrot.slane %v10164, %v10179
      %v10182 = vunpack.c.l.s4 1966171168
      %v10183 = vunpack.c.0.s8 %v10182
      %v10184 = vlaneseq
      %v10185 = vshrl.u32 %v10184, 7
      %v10186 = vsub.s32 %v10183, %v10185
      %v10187 = vrot.slane %v10165, %v10186
      %v10189 = vunpack.c.l.s4 1966171168
      %v10190 = vunpack.c.0.s8 %v10189
      %v10191 = vlaneseq
      %v10192 = vshrl.u32 %v10191, 7
      %v10193 = vsub.s32 %v10190, %v10192
      %v10194 = vrot.slane %v10166, %v10193
      %v10195 = vcombine.high %v10173, %v10173
      %v10196 = vcombine.high %v10180, %v10180
      %v10197 = vcombine.high %v10187, %v10187
      %v10198 = vcombine.high %v10194, %v10194
      %10455 = vst.msk [vmem:[%s8092 + $0x1] sm:$0x1] %vm3021, %v8654
      %10456 = vst.msk [vmem:[%s8092 + $0x3] sm:$0x1] %vm3021, %v8668
      %10457 = vst.msk [vmem:[%s8092 + $0x5] sm:$0x1] %vm3021, %v8676
      %10458 = vst.msk [vmem:[%s8092 + $0x7] sm:$0x1] %vm3021, %v8678
      %10459 = vst.msk [vmem:[%s8092 + $0x9] sm:$0x1] %vm3021, %v8661
      %10460 = vst.msk [vmem:[%s8092 + $0xb] sm:$0x1] %vm3021, %v8675
      %10461 = vst.msk [vmem:[%s8092 + $0xd] sm:$0x1] %vm3021, %v8677
      %10462 = vst.msk [vmem:[%s8092 + $0xf] sm:$0x1] %vm3021, %v8679
      %10463 = vst.msk [vmem:[%s8092 + $0x11] sm:$0x1] %vm3021, %v8703
      %10464 = vst.msk [vmem:[%s8092 + $0x13] sm:$0x1] %vm3021, %v8717
      %10465 = vst.msk [vmem:[%s8092 + $0x15] sm:$0x1] %vm3021, %v8725
      %10466 = vst.msk [vmem:[%s8092 + $0x17] sm:$0x1] %vm3021, %v8727
      %10467 = vst.msk [vmem:[%s8092 + $0x19] sm:$0x1] %vm3021, %v8710
      %10468 = vst.msk [vmem:[%s8092 + $0x1b] sm:$0x1] %vm3021, %v8724
      %10469 = vst.msk [vmem:[%s8092 + $0x1d] sm:$0x1] %vm3021, %v8726
      %10470 = vst.msk [vmem:[%s8092 + $0x1f] sm:$0x1] %vm3021, %v8728
      %10471 = vst.msk [vmem:[%s8092 + $0x41] sm:$0x1] %vm3021, %v8752
      %10472 = vst.msk [vmem:[%s8092 + $0x43] sm:$0x1] %vm3021, %v8766
      %10473 = vst.msk [vmem:[%s8092 + $0x45] sm:$0x1] %vm3021, %v8774
      %10474 = vst.msk [vmem:[%s8092 + $0x47] sm:$0x1] %vm3021, %v8776
      %10475 = vst.msk [vmem:[%s8092 + $0x49] sm:$0x1] %vm3021, %v8759
      %10476 = vst.msk [vmem:[%s8092 + $0x4b] sm:$0x1] %vm3021, %v8773
      %10477 = vst.msk [vmem:[%s8092 + $0x4d] sm:$0x1] %vm3021, %v8775
      %10478 = vst.msk [vmem:[%s8092 + $0x4f] sm:$0x1] %vm3021, %v8777
      %10479 = vst.msk [vmem:[%s8092 + $0x51] sm:$0x1] %vm3021, %v8801
      %10480 = vst.msk [vmem:[%s8092 + $0x53] sm:$0x1] %vm3021, %v8815
      %10481 = vst.msk [vmem:[%s8092 + $0x55] sm:$0x1] %vm3021, %v8823
      %10482 = vst.msk [vmem:[%s8092 + $0x57] sm:$0x1] %vm3021, %v8825
      %10483 = vst.msk [vmem:[%s8092 + $0x59] sm:$0x1] %vm3021, %v8808
      %10484 = vst.msk [vmem:[%s8092 + $0x5b] sm:$0x1] %vm3021, %v8822
      %10485 = vst.msk [vmem:[%s8092 + $0x5d] sm:$0x1] %vm3021, %v8824
      %10486 = vst.msk [vmem:[%s8092 + $0x5f] sm:$0x1] %vm3021, %v8826
      %10487 = vst.msk [vmem:[%s8092 + $0x81] sm:$0x1] %vm3021, %v8850
      %10488 = vst.msk [vmem:[%s8092 + $0x83] sm:$0x1] %vm3021, %v8864
      %10489 = vst.msk [vmem:[%s8092 + $0x85] sm:$0x1] %vm3021, %v8872
      %10490 = vst.msk [vmem:[%s8092 + $0x87] sm:$0x1] %vm3021, %v8874
      %10491 = vst.msk [vmem:[%s8092 + $0x89] sm:$0x1] %vm3021, %v8857
      %10492 = vst.msk [vmem:[%s8092 + $0x8b] sm:$0x1] %vm3021, %v8871
      %10493 = vst.msk [vmem:[%s8092 + $0x8d] sm:$0x1] %vm3021, %v8873
      %10494 = vst.msk [vmem:[%s8092 + $0x8f] sm:$0x1] %vm3021, %v8875
      %10495 = vst.msk [vmem:[%s8092 + $0x91] sm:$0x1] %vm3021, %v8899
      %10496 = vst.msk [vmem:[%s8092 + $0x93] sm:$0x1] %vm3021, %v8913
      %10497 = vst.msk [vmem:[%s8092 + $0x95] sm:$0x1] %vm3021, %v8921
      %10498 = vst.msk [vmem:[%s8092 + $0x97] sm:$0x1] %vm3021, %v8923
      %10499 = vst.msk [vmem:[%s8092 + $0x99] sm:$0x1] %vm3021, %v8906
      %10500 = vst.msk [vmem:[%s8092 + $0x9b] sm:$0x1] %vm3021, %v8920
      %10501 = vst.msk [vmem:[%s8092 + $0x9d] sm:$0x1] %vm3021, %v8922
      %10502 = vst.msk [vmem:[%s8092 + $0x9f] sm:$0x1] %vm3021, %v8924
      %10503 = vst.msk [vmem:[%s8092 + $0xc1] sm:$0x1] %vm3021, %v8948
      %10504 = vst.msk [vmem:[%s8092 + $0xc3] sm:$0x1] %vm3021, %v8962
      %10505 = vst.msk [vmem:[%s8092 + $0xc5] sm:$0x1] %vm3021, %v8970
      %10506 = vst.msk [vmem:[%s8092 + $0xc7] sm:$0x1] %vm3021, %v8972
      %10507 = vst.msk [vmem:[%s8092 + $0xc9] sm:$0x1] %vm3021, %v8955
      %10508 = vst.msk [vmem:[%s8092 + $0xcb] sm:$0x1] %vm3021, %v8969
      %10509 = vst.msk [vmem:[%s8092 + $0xcd] sm:$0x1] %vm3021, %v8971
      %10510 = vst.msk [vmem:[%s8092 + $0xcf] sm:$0x1] %vm3021, %v8973
      %10511 = vst.msk [vmem:[%s8092 + $0xd1] sm:$0x1] %vm3021, %v8997
      %10512 = vst.msk [vmem:[%s8092 + $0xd3] sm:$0x1] %vm3021, %v9011
      %10513 = vst.msk [vmem:[%s8092 + $0xd5] sm:$0x1] %vm3021, %v9019
      %10514 = vst.msk [vmem:[%s8092 + $0xd7] sm:$0x1] %vm3021, %v9021
      %10515 = vst.msk [vmem:[%s8092 + $0xd9] sm:$0x1] %vm3021, %v9004
      %10516 = vst.msk [vmem:[%s8092 + $0xdb] sm:$0x1] %vm3021, %v9018
      %10517 = vst.msk [vmem:[%s8092 + $0xdd] sm:$0x1] %vm3021, %v9020
      %10518 = vst.msk [vmem:[%s8092 + $0xdf] sm:$0x1] %vm3021, %v9022
      %10519 = vst.msk [vmem:[%s8092 + $0x101] sm:$0x1] %vm3021, %v9046
      %10520 = vst.msk [vmem:[%s8092 + $0x103] sm:$0x1] %vm3021, %v9060
      %10521 = vst.msk [vmem:[%s8092 + $0x105] sm:$0x1] %vm3021, %v9068
      %10522 = vst.msk [vmem:[%s8092 + $0x107] sm:$0x1] %vm3021, %v9070
      %10523 = vst.msk [vmem:[%s8092 + $0x109] sm:$0x1] %vm3021, %v9053
      %10524 = vst.msk [vmem:[%s8092 + $0x10b] sm:$0x1] %vm3021, %v9067
      %10525 = vst.msk [vmem:[%s8092 + $0x10d] sm:$0x1] %vm3021, %v9069
      %10526 = vst.msk [vmem:[%s8092 + $0x10f] sm:$0x1] %vm3021, %v9071
      %10527 = vst.msk [vmem:[%s8092 + $0x111] sm:$0x1] %vm3021, %v9095
      %10528 = vst.msk [vmem:[%s8092 + $0x113] sm:$0x1] %vm3021, %v9109
      %10529 = vst.msk [vmem:[%s8092 + $0x115] sm:$0x1] %vm3021, %v9117
      %10530 = vst.msk [vmem:[%s8092 + $0x117] sm:$0x1] %vm3021, %v9119
      %10531 = vst.msk [vmem:[%s8092 + $0x119] sm:$0x1] %vm3021, %v9102
      %10532 = vst.msk [vmem:[%s8092 + $0x11b] sm:$0x1] %vm3021, %v9116
      %10533 = vst.msk [vmem:[%s8092 + $0x11d] sm:$0x1] %vm3021, %v9118
      %10534 = vst.msk [vmem:[%s8092 + $0x11f] sm:$0x1] %vm3021, %v9120
      %10535 = vst.msk [vmem:[%s8092 + $0x141] sm:$0x1] %vm3021, %v9144
      %10536 = vst.msk [vmem:[%s8092 + $0x143] sm:$0x1] %vm3021, %v9158
      %10537 = vst.msk [vmem:[%s8092 + $0x145] sm:$0x1] %vm3021, %v9166
      %10538 = vst.msk [vmem:[%s8092 + $0x147] sm:$0x1] %vm3021, %v9168
      %10539 = vst.msk [vmem:[%s8092 + $0x149] sm:$0x1] %vm3021, %v9151
      %10540 = vst.msk [vmem:[%s8092 + $0x14b] sm:$0x1] %vm3021, %v9165
      %10541 = vst.msk [vmem:[%s8092 + $0x14d] sm:$0x1] %vm3021, %v9167
      %10542 = vst.msk [vmem:[%s8092 + $0x14f] sm:$0x1] %vm3021, %v9169
      %10543 = vst.msk [vmem:[%s8092 + $0x151] sm:$0x1] %vm3021, %v9193
      %10544 = vst.msk [vmem:[%s8092 + $0x153] sm:$0x1] %vm3021, %v9207
      %10545 = vst.msk [vmem:[%s8092 + $0x155] sm:$0x1] %vm3021, %v9215
      %10546 = vst.msk [vmem:[%s8092 + $0x157] sm:$0x1] %vm3021, %v9217
      %10547 = vst.msk [vmem:[%s8092 + $0x159] sm:$0x1] %vm3021, %v9200
      %10548 = vst.msk [vmem:[%s8092 + $0x15b] sm:$0x1] %vm3021, %v9214
      %10549 = vst.msk [vmem:[%s8092 + $0x15d] sm:$0x1] %vm3021, %v9216
      %10550 = vst.msk [vmem:[%s8092 + $0x15f] sm:$0x1] %vm3021, %v9218
      %10551 = vst.msk [vmem:[%s8092 + $0x181] sm:$0x1] %vm3021, %v9242
      %10552 = vst.msk [vmem:[%s8092 + $0x183] sm:$0x1] %vm3021, %v9256
      %10553 = vst.msk [vmem:[%s8092 + $0x185] sm:$0x1] %vm3021, %v9264
      %10554 = vst.msk [vmem:[%s8092 + $0x187] sm:$0x1] %vm3021, %v9266
      %10555 = vst.msk [vmem:[%s8092 + $0x189] sm:$0x1] %vm3021, %v9249
      %10556 = vst.msk [vmem:[%s8092 + $0x18b] sm:$0x1] %vm3021, %v9263
      %10557 = vst.msk [vmem:[%s8092 + $0x18d] sm:$0x1] %vm3021, %v9265
      %10558 = vst.msk [vmem:[%s8092 + $0x18f] sm:$0x1] %vm3021, %v9267
      %10559 = vst.msk [vmem:[%s8092 + $0x191] sm:$0x1] %vm3021, %v9291
      %10560 = vst.msk [vmem:[%s8092 + $0x193] sm:$0x1] %vm3021, %v9305
      %10561 = vst.msk [vmem:[%s8092 + $0x195] sm:$0x1] %vm3021, %v9313
      %10562 = vst.msk [vmem:[%s8092 + $0x197] sm:$0x1] %vm3021, %v9315
      %10563 = vst.msk [vmem:[%s8092 + $0x199] sm:$0x1] %vm3021, %v9298
      %10564 = vst.msk [vmem:[%s8092 + $0x19b] sm:$0x1] %vm3021, %v9312
      %10565 = vst.msk [vmem:[%s8092 + $0x19d] sm:$0x1] %vm3021, %v9314
      %10566 = vst.msk [vmem:[%s8092 + $0x19f] sm:$0x1] %vm3021, %v9316
      %10567 = vst.msk [vmem:[%s8092 + $0x1c1] sm:$0x1] %vm3021, %v9340
      %10568 = vst.msk [vmem:[%s8092 + $0x1c3] sm:$0x1] %vm3021, %v9354
      %10569 = vst.msk [vmem:[%s8092 + $0x1c5] sm:$0x1] %vm3021, %v9362
      %10570 = vst.msk [vmem:[%s8092 + $0x1c7] sm:$0x1] %vm3021, %v9364
      %10571 = vst.msk [vmem:[%s8092 + $0x1c9] sm:$0x1] %vm3021, %v9347
      %10572 = vst.msk [vmem:[%s8092 + $0x1cb] sm:$0x1] %vm3021, %v9361
      %10573 = vst.msk [vmem:[%s8092 + $0x1cd] sm:$0x1] %vm3021, %v9363
      %10574 = vst.msk [vmem:[%s8092 + $0x1cf] sm:$0x1] %vm3021, %v9365
      %10575 = vst.msk [vmem:[%s8092 + $0x1d1] sm:$0x1] %vm3021, %v9389
      %10576 = vst.msk [vmem:[%s8092 + $0x1d3] sm:$0x1] %vm3021, %v9403
      %10577 = vst.msk [vmem:[%s8092 + $0x1d5] sm:$0x1] %vm3021, %v9411
      %10578 = vst.msk [vmem:[%s8092 + $0x1d7] sm:$0x1] %vm3021, %v9413
      %10579 = vst.msk [vmem:[%s8092 + $0x1d9] sm:$0x1] %vm3021, %v9396
      %10580 = vst.msk [vmem:[%s8092 + $0x1db] sm:$0x1] %vm3021, %v9410
      %10581 = vst.msk [vmem:[%s8092 + $0x1dd] sm:$0x1] %vm3021, %v9412
      %10582 = vst.msk [vmem:[%s8092 + $0x1df] sm:$0x1] %vm3021, %v9414
      %10583 = vst.msk [vmem:[%s8092 + $0x201] sm:$0x1] %vm3021, %v9438
      %10584 = vst.msk [vmem:[%s8092 + $0x203] sm:$0x1] %vm3021, %v9452
      %10585 = vst.msk [vmem:[%s8092 + $0x205] sm:$0x1] %vm3021, %v9460
      %10586 = vst.msk [vmem:[%s8092 + $0x207] sm:$0x1] %vm3021, %v9462
      %10587 = vst.msk [vmem:[%s8092 + $0x209] sm:$0x1] %vm3021, %v9445
      %10588 = vst.msk [vmem:[%s8092 + $0x20b] sm:$0x1] %vm3021, %v9459
      %10589 = vst.msk [vmem:[%s8092 + $0x20d] sm:$0x1] %vm3021, %v9461
      %10590 = vst.msk [vmem:[%s8092 + $0x20f] sm:$0x1] %vm3021, %v9463
      %10591 = vst.msk [vmem:[%s8092 + $0x211] sm:$0x1] %vm3021, %v9487
      %10592 = vst.msk [vmem:[%s8092 + $0x213] sm:$0x1] %vm3021, %v9501
      %10593 = vst.msk [vmem:[%s8092 + $0x215] sm:$0x1] %vm3021, %v9509
      %10594 = vst.msk [vmem:[%s8092 + $0x217] sm:$0x1] %vm3021, %v9511
      %10595 = vst.msk [vmem:[%s8092 + $0x219] sm:$0x1] %vm3021, %v9494
      %10596 = vst.msk [vmem:[%s8092 + $0x21b] sm:$0x1] %vm3021, %v9508
      %10597 = vst.msk [vmem:[%s8092 + $0x21d] sm:$0x1] %vm3021, %v9510
      %10598 = vst.msk [vmem:[%s8092 + $0x21f] sm:$0x1] %vm3021, %v9512
      %10599 = vst.msk [vmem:[%s8092 + $0x241] sm:$0x1] %vm3021, %v9536
      %10600 = vst.msk [vmem:[%s8092 + $0x243] sm:$0x1] %vm3021, %v9550
      %10601 = vst.msk [vmem:[%s8092 + $0x245] sm:$0x1] %vm3021, %v9558
      %10602 = vst.msk [vmem:[%s8092 + $0x247] sm:$0x1] %vm3021, %v9560
      %10603 = vst.msk [vmem:[%s8092 + $0x249] sm:$0x1] %vm3021, %v9543
      %10604 = vst.msk [vmem:[%s8092 + $0x24b] sm:$0x1] %vm3021, %v9557
      %10605 = vst.msk [vmem:[%s8092 + $0x24d] sm:$0x1] %vm3021, %v9559
      %10606 = vst.msk [vmem:[%s8092 + $0x24f] sm:$0x1] %vm3021, %v9561
      %10607 = vst.msk [vmem:[%s8092 + $0x251] sm:$0x1] %vm3021, %v9585
      %10608 = vst.msk [vmem:[%s8092 + $0x253] sm:$0x1] %vm3021, %v9599
      %10609 = vst.msk [vmem:[%s8092 + $0x255] sm:$0x1] %vm3021, %v9607
      %10610 = vst.msk [vmem:[%s8092 + $0x257] sm:$0x1] %vm3021, %v9609
      %10611 = vst.msk [vmem:[%s8092 + $0x259] sm:$0x1] %vm3021, %v9592
      %10612 = vst.msk [vmem:[%s8092 + $0x25b] sm:$0x1] %vm3021, %v9606
      %10613 = vst.msk [vmem:[%s8092 + $0x25d] sm:$0x1] %vm3021, %v9608
      %10614 = vst.msk [vmem:[%s8092 + $0x25f] sm:$0x1] %vm3021, %v9610
      %10615 = vst.msk [vmem:[%s8092 + $0x281] sm:$0x1] %vm3021, %v9634
      %10616 = vst.msk [vmem:[%s8092 + $0x283] sm:$0x1] %vm3021, %v9648
      %10617 = vst.msk [vmem:[%s8092 + $0x285] sm:$0x1] %vm3021, %v9656
      %10618 = vst.msk [vmem:[%s8092 + $0x287] sm:$0x1] %vm3021, %v9658
      %10619 = vst.msk [vmem:[%s8092 + $0x289] sm:$0x1] %vm3021, %v9641
      %10620 = vst.msk [vmem:[%s8092 + $0x28b] sm:$0x1] %vm3021, %v9655
      %10621 = vst.msk [vmem:[%s8092 + $0x28d] sm:$0x1] %vm3021, %v9657
      %10622 = vst.msk [vmem:[%s8092 + $0x28f] sm:$0x1] %vm3021, %v9659
      %10623 = vst.msk [vmem:[%s8092 + $0x291] sm:$0x1] %vm3021, %v9683
      %10624 = vst.msk [vmem:[%s8092 + $0x293] sm:$0x1] %vm3021, %v9697
      %10625 = vst.msk [vmem:[%s8092 + $0x295] sm:$0x1] %vm3021, %v9705
      %10626 = vst.msk [vmem:[%s8092 + $0x297] sm:$0x1] %vm3021, %v9707
      %10627 = vst.msk [vmem:[%s8092 + $0x299] sm:$0x1] %vm3021, %v9690
      %10628 = vst.msk [vmem:[%s8092 + $0x29b] sm:$0x1] %vm3021, %v9704
      %10629 = vst.msk [vmem:[%s8092 + $0x29d] sm:$0x1] %vm3021, %v9706
      %10630 = vst.msk [vmem:[%s8092 + $0x29f] sm:$0x1] %vm3021, %v9708
      %10631 = vst.msk [vmem:[%s8092 + $0x2c1] sm:$0x1] %vm3021, %v9732
      %10632 = vst.msk [vmem:[%s8092 + $0x2c3] sm:$0x1] %vm3021, %v9746
      %10633 = vst.msk [vmem:[%s8092 + $0x2c5] sm:$0x1] %vm3021, %v9754
      %10634 = vst.msk [vmem:[%s8092 + $0x2c7] sm:$0x1] %vm3021, %v9756
      %10635 = vst.msk [vmem:[%s8092 + $0x2c9] sm:$0x1] %vm3021, %v9739
      %10636 = vst.msk [vmem:[%s8092 + $0x2cb] sm:$0x1] %vm3021, %v9753
      %10637 = vst.msk [vmem:[%s8092 + $0x2cd] sm:$0x1] %vm3021, %v9755
      %10638 = vst.msk [vmem:[%s8092 + $0x2cf] sm:$0x1] %vm3021, %v9757
      %10639 = vst.msk [vmem:[%s8092 + $0x2d1] sm:$0x1] %vm3021, %v9781
      %10640 = vst.msk [vmem:[%s8092 + $0x2d3] sm:$0x1] %vm3021, %v9795
      %10641 = vst.msk [vmem:[%s8092 + $0x2d5] sm:$0x1] %vm3021, %v9803
      %10642 = vst.msk [vmem:[%s8092 + $0x2d7] sm:$0x1] %vm3021, %v9805
      %10643 = vst.msk [vmem:[%s8092 + $0x2d9] sm:$0x1] %vm3021, %v9788
      %10644 = vst.msk [vmem:[%s8092 + $0x2db] sm:$0x1] %vm3021, %v9802
      %10645 = vst.msk [vmem:[%s8092 + $0x2dd] sm:$0x1] %vm3021, %v9804
      %10646 = vst.msk [vmem:[%s8092 + $0x2df] sm:$0x1] %vm3021, %v9806
      %10647 = vst.msk [vmem:[%s8092 + $0x301] sm:$0x1] %vm3021, %v9830
      %10648 = vst.msk [vmem:[%s8092 + $0x303] sm:$0x1] %vm3021, %v9844
      %10649 = vst.msk [vmem:[%s8092 + $0x305] sm:$0x1] %vm3021, %v9852
      %10650 = vst.msk [vmem:[%s8092 + $0x307] sm:$0x1] %vm3021, %v9854
      %10651 = vst.msk [vmem:[%s8092 + $0x309] sm:$0x1] %vm3021, %v9837
      %10652 = vst.msk [vmem:[%s8092 + $0x30b] sm:$0x1] %vm3021, %v9851
      %10653 = vst.msk [vmem:[%s8092 + $0x30d] sm:$0x1] %vm3021, %v9853
      %10654 = vst.msk [vmem:[%s8092 + $0x30f] sm:$0x1] %vm3021, %v9855
      %10655 = vst.msk [vmem:[%s8092 + $0x311] sm:$0x1] %vm3021, %v9879
      %10656 = vst.msk [vmem:[%s8092 + $0x313] sm:$0x1] %vm3021, %v9893
      %10657 = vst.msk [vmem:[%s8092 + $0x315] sm:$0x1] %vm3021, %v9901
      %10658 = vst.msk [vmem:[%s8092 + $0x317] sm:$0x1] %vm3021, %v9903
      %10659 = vst.msk [vmem:[%s8092 + $0x319] sm:$0x1] %vm3021, %v9886
      %10660 = vst.msk [vmem:[%s8092 + $0x31b] sm:$0x1] %vm3021, %v9900
      %10661 = vst.msk [vmem:[%s8092 + $0x31d] sm:$0x1] %vm3021, %v9902
      %10662 = vst.msk [vmem:[%s8092 + $0x31f] sm:$0x1] %vm3021, %v9904
      %10663 = vst.msk [vmem:[%s8092 + $0x341] sm:$0x1] %vm3021, %v9928
      %10664 = vst.msk [vmem:[%s8092 + $0x343] sm:$0x1] %vm3021, %v9942
      %10665 = vst.msk [vmem:[%s8092 + $0x345] sm:$0x1] %vm3021, %v9950
      %10666 = vst.msk [vmem:[%s8092 + $0x347] sm:$0x1] %vm3021, %v9952
      %10667 = vst.msk [vmem:[%s8092 + $0x349] sm:$0x1] %vm3021, %v9935
      %10668 = vst.msk [vmem:[%s8092 + $0x34b] sm:$0x1] %vm3021, %v9949
      %10669 = vst.msk [vmem:[%s8092 + $0x34d] sm:$0x1] %vm3021, %v9951
      %10670 = vst.msk [vmem:[%s8092 + $0x34f] sm:$0x1] %vm3021, %v9953
      %10671 = vst.msk [vmem:[%s8092 + $0x351] sm:$0x1] %vm3021, %v9977
      %10672 = vst.msk [vmem:[%s8092 + $0x353] sm:$0x1] %vm3021, %v9991
      %10673 = vst.msk [vmem:[%s8092 + $0x355] sm:$0x1] %vm3021, %v9999
      %10674 = vst.msk [vmem:[%s8092 + $0x357] sm:$0x1] %vm3021, %v10001
      %10675 = vst.msk [vmem:[%s8092 + $0x359] sm:$0x1] %vm3021, %v9984
      %10676 = vst.msk [vmem:[%s8092 + $0x35b] sm:$0x1] %vm3021, %v9998
      %10677 = vst.msk [vmem:[%s8092 + $0x35d] sm:$0x1] %vm3021, %v10000
      %10678 = vst.msk [vmem:[%s8092 + $0x35f] sm:$0x1] %vm3021, %v10002
      %10679 = vst.msk [vmem:[%s8092 + $0x381] sm:$0x1] %vm3021, %v10026
      %10680 = vst.msk [vmem:[%s8092 + $0x383] sm:$0x1] %vm3021, %v10040
      %10681 = vst.msk [vmem:[%s8092 + $0x385] sm:$0x1] %vm3021, %v10048
      %10682 = vst.msk [vmem:[%s8092 + $0x387] sm:$0x1] %vm3021, %v10050
      %10683 = vst.msk [vmem:[%s8092 + $0x389] sm:$0x1] %vm3021, %v10033
      %10684 = vst.msk [vmem:[%s8092 + $0x38b] sm:$0x1] %vm3021, %v10047
      %10685 = vst.msk [vmem:[%s8092 + $0x38d] sm:$0x1] %vm3021, %v10049
      %10686 = vst.msk [vmem:[%s8092 + $0x38f] sm:$0x1] %vm3021, %v10051
      %10687 = vst.msk [vmem:[%s8092 + $0x391] sm:$0x1] %vm3021, %v10075
      %10688 = vst.msk [vmem:[%s8092 + $0x393] sm:$0x1] %vm3021, %v10089
      %10689 = vst.msk [vmem:[%s8092 + $0x395] sm:$0x1] %vm3021, %v10097
      %10690 = vst.msk [vmem:[%s8092 + $0x397] sm:$0x1] %vm3021, %v10099
      %10691 = vst.msk [vmem:[%s8092 + $0x399] sm:$0x1] %vm3021, %v10082
      %10692 = vst.msk [vmem:[%s8092 + $0x39b] sm:$0x1] %vm3021, %v10096
      %10693 = vst.msk [vmem:[%s8092 + $0x39d] sm:$0x1] %vm3021, %v10098
      %10694 = vst.msk [vmem:[%s8092 + $0x39f] sm:$0x1] %vm3021, %v10100
      %10695 = vst.msk [vmem:[%s8092 + $0x3c1] sm:$0x1] %vm3021, %v10124
      %10696 = vst.msk [vmem:[%s8092 + $0x3c3] sm:$0x1] %vm3021, %v10138
      %10697 = vst.msk [vmem:[%s8092 + $0x3c5] sm:$0x1] %vm3021, %v10146
      %10698 = vst.msk [vmem:[%s8092 + $0x3c7] sm:$0x1] %vm3021, %v10148
      %10699 = vst.msk [vmem:[%s8092 + $0x3c9] sm:$0x1] %vm3021, %v10131
      %10700 = vst.msk [vmem:[%s8092 + $0x3cb] sm:$0x1] %vm3021, %v10145
      %10701 = vst.msk [vmem:[%s8092 + $0x3cd] sm:$0x1] %vm3021, %v10147
      %10702 = vst.msk [vmem:[%s8092 + $0x3cf] sm:$0x1] %vm3021, %v10149
      %10703 = vst.msk [vmem:[%s8092 + $0x3d1] sm:$0x1] %vm3021, %v10173
      %10704 = vst.msk [vmem:[%s8092 + $0x3d3] sm:$0x1] %vm3021, %v10187
      %10705 = vst.msk [vmem:[%s8092 + $0x3d5] sm:$0x1] %vm3021, %v10195
      %10706 = vst.msk [vmem:[%s8092 + $0x3d7] sm:$0x1] %vm3021, %v10197
      %10707 = vst.msk [vmem:[%s8092 + $0x3d9] sm:$0x1] %vm3021, %v10180
      %10708 = vst.msk [vmem:[%s8092 + $0x3db] sm:$0x1] %vm3021, %v10194
      %10709 = vst.msk [vmem:[%s8092 + $0x3dd] sm:$0x1] %vm3021, %v10196
      %10710 = vst.msk [vmem:[%s8092 + $0x3df] sm:$0x1] %vm3021, %v10198
      %s10711 = smul.u32 16, %s20
      %p10712 = scmp.lt.s32.totalorder %s19, 1
      %s10713 = scalar_select %p10712, %s19, 1
      %p10714 = scmp.lt.s32.totalorder %s10711, 15
      %s10715 = scalar_select %p10714, %s10711, 15
      %p10716 = scmp.lt.s32.totalorder %s21, 0
      %s10717 = scalar_select %p10716, %s21, 0
      %s10718 = smul.addr %s10715, 32
      %s10719 = sadd.s32 %s10717, %s10718
      %s10720 = smul.addr %s10713, 512
      %s10721 = sadd.s32 %s10719, %s10720
      %s10722 = smul.addr %s10721, 2
      %s10723 = scalar_lea.vmem %s3, %s10722
      // Predicated region
      $region33: #{upsample_nearest2x_conv3x3.1} parent=31 // pred_check
        %p10724 = pneg %p135
      $region34: #{upsample_nearest2x_conv3x3.1} parent=31 // pred_check_branch
        %10726 = sbr.rel (%p10724) target = $region36
      $region35: #{upsample_nearest2x_conv3x3.1} parent=31 // pred_region
        %s10727 = smul.u32 16, %s20
      $region36: #{upsample_nearest2x_conv3x3.1} parent=31 // pred_fallthru
        _
    $region32: #{upsample_nearest2x_conv3x3.1} parent=5 // pred_fallthru
      _
    %p10728 = scmp.le.s32.totalorder 2, %s9
    // Predicated region
    $region37: #{upsample_nearest2x_conv3x3.1} parent=5 // pred_check
      %p10729 = pneg %p10728
    $region38: #{upsample_nearest2x_conv3x3.1} parent=5 // pred_check_branch
      %10731 = sbr.rel (%p10729) target = $region40
    $region39: #{upsample_nearest2x_conv3x3.1} parent=5 // pred_region
      %s10732 = ssub.s32 %s9, 2
      // Predicated region
      $region41: #{upsample_nearest2x_conv3x3.1} parent=39 // pred_check
        %p10733 = pneg %p141
      $region42: #{upsample_nearest2x_conv3x3.1} parent=39 // pred_check_branch
        %10735 = sbr.rel (%p10733) target = $region44
      $region43: #{upsample_nearest2x_conv3x3.1} parent=39 // pred_region
        %s10736 = smul.u32 16, %s23
        %p10737 = scmp.lt.s32.totalorder %s22, 1
        %s10738 = scalar_select %p10737, %s22, 1
        %p10739 = scmp.lt.s32.totalorder %s10736, 15
        %s10740 = scalar_select %p10739, %s10736, 15
        %p10741 = scmp.lt.s32.totalorder %s24, 0
        %s10742 = scalar_select %p10741, %s24, 0
        %s10743 = smul.addr %s10740, 32
        %s10744 = sadd.s32 %s10742, %s10743
        %s10745 = smul.addr %s10738, 512
        %s10746 = sadd.s32 %s10744, %s10745
        %s10747 = smul.addr %s10746, 2
        %s10748 = scalar_lea.vmem %s3, %s10747
      $region44: #{upsample_nearest2x_conv3x3.1} parent=39 // pred_fallthru
        _
    $region40: #{upsample_nearest2x_conv3x3.1} parent=5 // pred_fallthru
      _
  $region6: #{upsample_nearest2x_conv3x3.1} parent=0 // loop_footer
    %s13 = sadd.s32 1, %s9
  $region7: #{upsample_nearest2x_conv3x3.1} parent=0 // loop_footer_branch
    %8 = sbr.rel target = $region3
  $region8: #{upsample_nearest2x_conv3x3.1} parent=0 // loop_exit
    _

</llo_original>
